<compile_context>
chip_gen: v7x
topology: tpu7x:2x2x1
jax: 0.10.0
libtpu: 0.0.40
codegen_flags: <defaults>
</compile_context>

<pallas_src>
import jax
import jax.numpy as jnp
from jax import lax
from jax.experimental import pallas as pl
from jax.experimental.pallas import tpu as pltpu


def _round_up(v, m):
    return -(-v // m) * m


def _make_residual_block_kernel(H, W, P, C):
    PC = P * C
    Wp = W + 2                    # padded width (conv padding = 1 each side)
    M = H * Wp                    # rows of the "padded-width" conv result
    ALIGN = 16                    # bf16 sublane tile -> keep bulk stores aligned
    SHIFT_X = (-Wp) % ALIGN       # xpad origin shift so the data write is aligned
    SHIFT_Y = (-(Wp + 1)) % ALIGN # ypad origin shift so the data write is aligned
    WOX = Wp + SHIFT_X            # write offset of relu(x) rows into xpad
    WOY = Wp + 1 + SHIFT_Y        # write offset of conv1 output rows into ypad
    span = M + 2 * Wp + 2 + max(SHIFT_X, SHIFT_Y)   # max tap-read index + 1
    PAD_ROWS = _round_up(span, ALIGN)
    TM = min(128, M)              # row-chunk: keeps the f32 accumulator <= 16 vregs
    chunk_starts = tuple(range(0, M, TM))

    def conv_chunk(pad_ref, w_ref, shift, s, tm):
        # 3x3 "same" conv as 9 accumulated matmuls over statically shifted,
        # contiguous slices of the flattened zero-padded bf16 buffer:
        #   out[i] = sum_{kh,kw} pad[i + kh*Wp + kw + shift] @ W[kh,kw]
        acc = jnp.zeros((tm, PC), jnp.float32)
        for k in range(9):
            kh, kw = divmod(k, 3)
            patch = pad_ref[pl.ds(s + kh * Wp + kw + shift, tm), :]
            acc = acc + jnp.dot(patch, w_ref[k],
                                preferred_element_type=jnp.float32)
        return acc

    def kernel(x_ref, w1_ref, b1_ref, w2_ref, b2_ref, o_ref, xpad_ref, ypad_ref):
        # ---- zero only the uncovered head/tail pad rows (few KB, not the
        #      whole buffer; done every step so it is megacore-safe) ---------
        xpad_ref[pl.ds(0, WOX), :] = jnp.zeros((WOX, PC), jnp.bfloat16)
        xpad_ref[pl.ds(WOX + M, PAD_ROWS - WOX - M), :] = jnp.zeros(
            (PAD_ROWS - WOX - M, PC), jnp.bfloat16)
        ypad_ref[pl.ds(0, WOY), :] = jnp.zeros((WOY, PC), jnp.bfloat16)
        ypad_ref[pl.ds(WOY + M, PAD_ROWS - WOY - M), :] = jnp.zeros(
            (PAD_ROWS - WOY - M, PC), jnp.bfloat16)

        # ---- stage 0: xpad <- relu(x), aligned bulk stores ------------------
        # x is already W-padded by the wrapper; relu(0)=0 keeps padding valid.
        for s in chunk_starts:
            tm = min(TM, M - s)
            xpad_ref[pl.ds(WOX + s, tm), :] = jnp.maximum(
                x_ref[0, pl.ds(s, tm), :], 0.0).astype(jnp.bfloat16)

        # ---- stage 1: ypad <- relu(conv1(relu(x)) + b1), junk cols masked ---
        for s in chunk_starts:
            tm = min(TM, M - s)
            acc = conv_chunk(xpad_ref, w1_ref, SHIFT_X, s, tm)
            y = jnp.maximum(acc + b1_ref[...], 0.0)
            col = (lax.broadcasted_iota(jnp.int32, (tm, 1), 0) + s) % Wp
            y = jnp.where(col < W, y, 0.0)        # junk cols land on padding cells
            ypad_ref[pl.ds(WOY + s, tm), :] = y.astype(jnp.bfloat16)

        # ---- stage 2: out <- conv2(y) + b2 + x (residual from raw f32 x) ----
        for s in chunk_starts:
            tm = min(TM, M - s)
            acc = conv_chunk(ypad_ref, w2_ref, SHIFT_Y, s, tm)
            x_res = x_ref[0, pl.ds(s + 1, tm), :]   # image pixel = block col - 1
            o_ref[0, pl.ds(s, tm), :] = acc + b2_ref[...] + x_res

    return kernel, PAD_ROWS


def residual_block(x, w1, b1, w2, b2):
    """PyTorch ResidualBlock forward: conv2(relu(conv1(relu(x)))) + x.

    x      : (N, C, H, W) float32   (PyTorch NCHW)
    w1, w2 : (C, C, 3, 3)           (PyTorch OIHW)
    b1, b2 : (C,)
    returns (N, C, H, W) float32
    """
    N, C, H, W = x.shape
    P = max(1, 128 // C)          # lane-packing factor (4 images for C=32)
    PC = P * C
    Wp = W + 2
    M = H * Wp
    MX = M + 8                    # slack rows so the +1 residual slice is in-bounds
    Np = _round_up(N, P)
    G = Np // P

    # ---- pack P batch images into the lane dimension, pad W in the wrapper --
    x_nhwc = jnp.transpose(x, (0, 2, 3, 1))                       # (N, H, W, C)
    if Np != N:
        x_nhwc = jnp.pad(x_nhwc, ((0, Np - N), (0, 0), (0, 0), (0, 0)))
    x_wpad = jnp.pad(x_nhwc, ((0, 0), (0, 0), (1, 1), (0, 0)))    # (Np, H, Wp, C)
    x_pk = (x_wpad.reshape(G, P, H, Wp, C)
            .transpose(0, 2, 3, 1, 4)
            .reshape(G, M, PC))
    x_pk = jnp.pad(x_pk, ((0, 0), (0, MX - M), (0, 0)))           # (G, MX, PC)

    # ---- per-tap block-diagonal bf16 weights, lane-tiled f32 biases ---------
    eye = jnp.eye(P, dtype=jnp.float32)

    def prep_w(w):                      # OIHW -> (tap, P*Cin, P*Cout) block-diag
        w_t = jnp.transpose(w, (2, 3, 1, 0)).reshape(9, C, C)
        w_bd = jnp.einsum('pq,kio->kpiqo', eye, w_t).reshape(9, PC, PC)
        return w_bd.astype(jnp.bfloat16)

    def prep_b(b):
        return jnp.tile(b, P).reshape(1, PC).astype(jnp.float32)

    kernel, PAD_ROWS = _make_residual_block_kernel(H, W, P, C)

    out_pk = pl.pallas_call(
        kernel,
        grid=(G,),
        in_specs=[
            pl.BlockSpec((1, MX, PC), lambda g: (g, 0, 0)),       # packed x
            pl.BlockSpec((9, PC, PC), lambda g: (0, 0, 0)),       # w1 (resident)
            pl.BlockSpec((1, PC), lambda g: (0, 0)),              # b1
            pl.BlockSpec((9, PC, PC), lambda g: (0, 0, 0)),       # w2 (resident)
            pl.BlockSpec((1, PC), lambda g: (0, 0)),              # b2
        ],
        out_specs=pl.BlockSpec((1, M, PC), lambda g: (g, 0, 0)),
        out_shape=jax.ShapeDtypeStruct((G, M, PC), jnp.float32),
        scratch_shapes=[
            pltpu.VMEM((PAD_ROWS, PC), jnp.bfloat16),             # padded relu(x)
            pltpu.VMEM((PAD_ROWS, PC), jnp.bfloat16),             # padded relu(conv1)
        ],
        compiler_params=pltpu.CompilerParams(
            dimension_semantics=("parallel",)),
    )(x_pk, prep_w(w1), prep_b(b1), prep_w(w2), prep_b(b2))

    # ---- unpack: drop junk columns, undo lane packing, back to NCHW ---------
    out = (out_pk.reshape(G, H, Wp, P, C)[:, :, :W]
           .transpose(0, 3, 1, 2, 4)
           .reshape(Np, H, W, C)[:N])
    return jnp.transpose(out, (0, 3, 1, 2))


def _residual_block_ref(x, w1, b1, w2, b2):
    """Pure-JAX reference (matches PyTorch ResidualBlock.forward)."""
    dn = ('NCHW', 'OIHW', 'NCHW')

    def conv(v, w, b):
        y = lax.conv_general_dilated(v, w, (1, 1), ((1, 1), (1, 1)),
                                     dimension_numbers=dn,
                                     precision=lax.Precision.HIGHEST)
        return y + b[None, :, None, None]

    y = conv(jnp.maximum(x, 0.0), w1, b1)
    y = conv(jnp.maximum(y, 0.0), w2, b2)
    return y + x


if __name__ == "__main__":
    key = jax.random.PRNGKey(0)
    kx, k1, k2 = jax.random.split(key, 3)

    # Impala-stage-like shapes; C=32 -> P=4 lane packing, grid of 2 groups.
    N, C, H, W = 8, 32, 16, 16
    x = jax.random.normal(kx, (N, C, H, W), jnp.float32)
    scale = (9 * C) ** -0.5
    w1 = jax.random.normal(k1, (C, C, 3, 3), jnp.float32) * scale
    w2 = jax.random.normal(k2, (C, C, 3, 3), jnp.float32) * scale
    b1 = jnp.linspace(-0.1, 0.1, C, dtype=jnp.float32)
    b2 = jnp.linspace(0.1, -0.1, C, dtype=jnp.float32)

    out = jax.jit(residual_block)(x, w1, b1, w2, b2)
    out = jax.block_until_ready(out)
    assert out.shape == (N, C, H, W)
    assert bool(jnp.all(jnp.isfinite(out)))

    ref = _residual_block_ref(x, w1, b1, w2, b2)
    max_err = float(jnp.max(jnp.abs(out - ref)))
    # bf16 MXU operands with f32 accumulation: expect ~1e-2 worst-case error.
    assert max_err < 5e-2, f"mismatch vs reference: max abs err = {max_err}"

    print("KERNEL_OK")
</pallas_src>

<mosaic_0001>
module attributes {stable_mosaic.version = 11 : i64} {
  func.func @kernel(%arg0: i32, %arg1: memref<1x296x128xf32, #tpu.memory_space<vmem>>, %arg2: memref<9x128x128xbf16, #tpu.memory_space<vmem>>, %arg3: memref<1x128xf32, #tpu.memory_space<vmem>>, %arg4: memref<9x128x128xbf16, #tpu.memory_space<vmem>>, %arg5: memref<1x128xf32, #tpu.memory_space<vmem>>, %arg6: memref<1x288x128xf32, #tpu.memory_space<vmem>>, %arg7: memref<352x128xbf16, #tpu.memory_space<vmem>>, %arg8: memref<352x128xbf16, #tpu.memory_space<vmem>>) attributes {dimension_semantics = [#tpu.dimension_semantics<parallel>], iteration_bounds = array<i64: 2>, scalar_prefetch = 0 : i64, scratch_operands = 2 : i64, tpu.core_type = #tpu.core_type<tc>, window_params = [{transform_indices = @transform_0, window_bounds = array<i64: 1, 296, 128>}, {pipeline_mode = #tpu.pipeline_mode<synchronous>, transform_indices = @transform_1, window_bounds = array<i64: 9, 128, 128>}, {pipeline_mode = #tpu.pipeline_mode<synchronous>, transform_indices = @transform_2, window_bounds = array<i64: 1, 128>}, {pipeline_mode = #tpu.pipeline_mode<synchronous>, transform_indices = @transform_3, window_bounds = array<i64: 9, 128, 128>}, {pipeline_mode = #tpu.pipeline_mode<synchronous>, transform_indices = @transform_4, window_bounds = array<i64: 1, 128>}, {transform_indices = @transform_5, window_bounds = array<i64: 1, 288, 128>}]} {
    %cst = arith.constant 0.000000e+00 : bf16
    %0 = vector.broadcast %cst : bf16 to vector<32x128xbf16>
    %c0 = arith.constant 0 : index
    %c0_0 = arith.constant 0 : index
    %1 = vector.load %arg7[%c0, %c0_0] : memref<352x128xbf16, #tpu.memory_space<vmem>>, vector<32x128xbf16>
    tpu.vector_store %arg7[%c0, %c0_0], %0 {strides = array<i32>} : memref<352x128xbf16, #tpu.memory_space<vmem>>, vector<32x128xbf16>,
    %cst_1 = arith.constant 0.000000e+00 : bf16
    %2 = vector.broadcast %cst_1 : bf16 to vector<32x128xbf16>
    %c320 = arith.constant 320 : index
    %c0_2 = arith.constant 0 : index
    %3 = vector.load %arg7[%c320, %c0_2] : memref<352x128xbf16, #tpu.memory_space<vmem>>, vector<32x128xbf16>
    tpu.vector_store %arg7[%c320, %c0_2], %2 {strides = array<i32>} : memref<352x128xbf16, #tpu.memory_space<vmem>>, vector<32x128xbf16>,
    %cst_3 = arith.constant 0.000000e+00 : bf16
    %4 = vector.broadcast %cst_3 : bf16 to vector<32x128xbf16>
    %c0_4 = arith.constant 0 : index
    %c0_5 = arith.constant 0 : index
    %5 = vector.load %arg8[%c0_4, %c0_5] : memref<352x128xbf16, #tpu.memory_space<vmem>>, vector<32x128xbf16>
    tpu.vector_store %arg8[%c0_4, %c0_5], %4 {strides = array<i32>} : memref<352x128xbf16, #tpu.memory_space<vmem>>, vector<32x128xbf16>,
    %cst_6 = arith.constant 0.000000e+00 : bf16
    %6 = vector.broadcast %cst_6 : bf16 to vector<32x128xbf16>
    %c320_7 = arith.constant 320 : index
    %c0_8 = arith.constant 0 : index
    %7 = vector.load %arg8[%c320_7, %c0_8] : memref<352x128xbf16, #tpu.memory_space<vmem>>, vector<32x128xbf16>
    tpu.vector_store %arg8[%c320_7, %c0_8], %6 {strides = array<i32>} : memref<352x128xbf16, #tpu.memory_space<vmem>>, vector<32x128xbf16>,
    %c0_9 = arith.constant 0 : index
    %c0_10 = arith.constant 0 : index
    %c0_11 = arith.constant 0 : index
    %8 = vector.load %arg1[%c0_9, %c0_10, %c0_11] : memref<1x296x128xf32, #tpu.memory_space<vmem>>, vector<1x128x128xf32>
    %9 = vector.shape_cast %8 : vector<1x128x128xf32> to vector<128x128xf32>
    %cst_12 = arith.constant 0.000000e+00 : f32
    %10 = vector.broadcast %cst_12 : f32 to vector<128x128xf32>
    %11 = arith.maximumf %9, %10 : vector<128x128xf32>
    %12 = arith.truncf %11 : vector<128x128xf32> to vector<128x128xbf16>
    %c32 = arith.constant 32 : index
    %c0_13 = arith.constant 0 : index
    %13 = vector.load %arg7[%c32, %c0_13] : memref<352x128xbf16, #tpu.memory_space<vmem>>, vector<128x128xbf16>
    tpu.vector_store %arg7[%c32, %c0_13], %12 {strides = array<i32>} : memref<352x128xbf16, #tpu.memory_space<vmem>>, vector<128x128xbf16>,
    %c0_14 = arith.constant 0 : index
    %c128 = arith.constant 128 : index
    %c0_15 = arith.constant 0 : index
    %14 = vector.load %arg1[%c0_14, %c128, %c0_15] : memref<1x296x128xf32, #tpu.memory_space<vmem>>, vector<1x128x128xf32>
    %15 = vector.shape_cast %14 : vector<1x128x128xf32> to vector<128x128xf32>
    %cst_16 = arith.constant 0.000000e+00 : f32
    %16 = vector.broadcast %cst_16 : f32 to vector<128x128xf32>
    %17 = arith.maximumf %15, %16 : vector<128x128xf32>
    %18 = arith.truncf %17 : vector<128x128xf32> to vector<128x128xbf16>
    %c160 = arith.constant 160 : index
    %c0_17 = arith.constant 0 : index
    %19 = vector.load %arg7[%c160, %c0_17] : memref<352x128xbf16, #tpu.memory_space<vmem>>, vector<128x128xbf16>
    tpu.vector_store %arg7[%c160, %c0_17], %18 {strides = array<i32>} : memref<352x128xbf16, #tpu.memory_space<vmem>>, vector<128x128xbf16>,
    %c0_18 = arith.constant 0 : index
    %c256 = arith.constant 256 : index
    %c0_19 = arith.constant 0 : index
    %20 = vector.load %arg1[%c0_18, %c256, %c0_19] : memref<1x296x128xf32, #tpu.memory_space<vmem>>, vector<1x32x128xf32>
    %21 = vector.shape_cast %20 : vector<1x32x128xf32> to vector<32x128xf32>
    %cst_20 = arith.constant 0.000000e+00 : f32
    %22 = vector.broadcast %cst_20 : f32 to vector<32x128xf32>
    %23 = arith.maximumf %21, %22 : vector<32x128xf32>
    %24 = arith.truncf %23 : vector<32x128xf32> to vector<32x128xbf16>
    %c288 = arith.constant 288 : index
    %c0_21 = arith.constant 0 : index
    %25 = vector.load %arg7[%c288, %c0_21] : memref<352x128xbf16, #tpu.memory_space<vmem>>, vector<32x128xbf16>
    tpu.vector_store %arg7[%c288, %c0_21], %24 {strides = array<i32>} : memref<352x128xbf16, #tpu.memory_space<vmem>>, vector<32x128xbf16>,
    %cst_22 = arith.constant 0.000000e+00 : f32
    %26 = vector.broadcast %cst_22 : f32 to vector<128x128xf32>
    %c14 = arith.constant 14 : index
    %c0_23 = arith.constant 0 : index
    %27 = vector.load %arg7[%c14, %c0_23] : memref<352x128xbf16, #tpu.memory_space<vmem>>, vector<128x128xbf16>
    %c0_24 = arith.constant 0 : index
    %c0_25 = arith.constant 0 : index
    %c0_26 = arith.constant 0 : index
    %28 = vector.load %arg2[%c0_24, %c0_25, %c0_26] : memref<9x128x128xbf16, #tpu.memory_space<vmem>>, vector<1x128x128xbf16>
    %29 = vector.shape_cast %28 : vector<1x128x128xbf16> to vector<128x128xbf16>
    %cst_27 = arith.constant dense<0.000000e+00> : vector<128x128xf32>
    %30 = tpu.matmul %27, %29, %cst_27 {dimension_numbers = #tpu.dot_dimension_numbers<[1], [0], [0], [1], [0, 0, 1, 1], [], []>} : vector<128x128xbf16>, vector<128x128xbf16>, vector<128x128xf32> -> vector<128x128xf32>
    %31 = arith.addf %26, %30 : vector<128x128xf32>
    %c15 = arith.constant 15 : index
    %c0_28 = arith.constant 0 : index
    %32 = vector.load %arg7[%c15, %c0_28] : memref<352x128xbf16, #tpu.memory_space<vmem>>, vector<128x128xbf16>
    %c1 = arith.constant 1 : index
    %c0_29 = arith.constant 0 : index
    %c0_30 = arith.constant 0 : index
    %33 = vector.load %arg2[%c1, %c0_29, %c0_30] : memref<9x128x128xbf16, #tpu.memory_space<vmem>>, vector<1x128x128xbf16>
    %34 = vector.shape_cast %33 : vector<1x128x128xbf16> to vector<128x128xbf16>
    %cst_31 = arith.constant dense<0.000000e+00> : vector<128x128xf32>
    %35 = tpu.matmul %32, %34, %cst_31 {dimension_numbers = #tpu.dot_dimension_numbers<[1], [0], [0], [1], [0, 0, 1, 1], [], []>} : vector<128x128xbf16>, vector<128x128xbf16>, vector<128x128xf32> -> vector<128x128xf32>
    %36 = arith.addf %31, %35 : vector<128x128xf32>
    %c16 = arith.constant 16 : index
    %c0_32 = arith.constant 0 : index
    %37 = vector.load %arg7[%c16, %c0_32] : memref<352x128xbf16, #tpu.memory_space<vmem>>, vector<128x128xbf16>
    %c2 = arith.constant 2 : index
    %c0_33 = arith.constant 0 : index
    %c0_34 = arith.constant 0 : index
    %38 = vector.load %arg2[%c2, %c0_33, %c0_34] : memref<9x128x128xbf16, #tpu.memory_space<vmem>>, vector<1x128x128xbf16>
    %39 = vector.shape_cast %38 : vector<1x128x128xbf16> to vector<128x128xbf16>
    %cst_35 = arith.constant dense<0.000000e+00> : vector<128x128xf32>
    %40 = tpu.matmul %37, %39, %cst_35 {dimension_numbers = #tpu.dot_dimension_numbers<[1], [0], [0], [1], [0, 0, 1, 1], [], []>} : vector<128x128xbf16>, vector<128x128xbf16>, vector<128x128xf32> -> vector<128x128xf32>
    %41 = arith.addf %36, %40 : vector<128x128xf32>
    %c32_36 = arith.constant 32 : index
    %c0_37 = arith.constant 0 : index
    %42 = vector.load %arg7[%c32_36, %c0_37] : memref<352x128xbf16, #tpu.memory_space<vmem>>, vector<128x128xbf16>
    %c3 = arith.constant 3 : index
    %c0_38 = arith.constant 0 : index
    %c0_39 = arith.constant 0 : index
    %43 = vector.load %arg2[%c3, %c0_38, %c0_39] : memref<9x128x128xbf16, #tpu.memory_space<vmem>>, vector<1x128x128xbf16>
    %44 = vector.shape_cast %43 : vector<1x128x128xbf16> to vector<128x128xbf16>
    %cst_40 = arith.constant dense<0.000000e+00> : vector<128x128xf32>
    %45 = tpu.matmul %42, %44, %cst_40 {dimension_numbers = #tpu.dot_dimension_numbers<[1], [0], [0], [1], [0, 0, 1, 1], [], []>} : vector<128x128xbf16>, vector<128x128xbf16>, vector<128x128xf32> -> vector<128x128xf32>
    %46 = arith.addf %41, %45 : vector<128x128xf32>
    %c33 = arith.constant 33 : index
    %c0_41 = arith.constant 0 : index
    %47 = vector.load %arg7[%c33, %c0_41] : memref<352x128xbf16, #tpu.memory_space<vmem>>, vector<128x128xbf16>
    %c4 = arith.constant 4 : index
    %c0_42 = arith.constant 0 : index
    %c0_43 = arith.constant 0 : index
    %48 = vector.load %arg2[%c4, %c0_42, %c0_43] : memref<9x128x128xbf16, #tpu.memory_space<vmem>>, vector<1x128x128xbf16>
    %49 = vector.shape_cast %48 : vector<1x128x128xbf16> to vector<128x128xbf16>
    %cst_44 = arith.constant dense<0.000000e+00> : vector<128x128xf32>
    %50 = tpu.matmul %47, %49, %cst_44 {dimension_numbers = #tpu.dot_dimension_numbers<[1], [0], [0], [1], [0, 0, 1, 1], [], []>} : vector<128x128xbf16>, vector<128x128xbf16>, vector<128x128xf32> -> vector<128x128xf32>
    %51 = arith.addf %46, %50 : vector<128x128xf32>
    %c34 = arith.constant 34 : index
    %c0_45 = arith.constant 0 : index
    %52 = vector.load %arg7[%c34, %c0_45] : memref<352x128xbf16, #tpu.memory_space<vmem>>, vector<128x128xbf16>
    %c5 = arith.constant 5 : index
    %c0_46 = arith.constant 0 : index
    %c0_47 = arith.constant 0 : index
    %53 = vector.load %arg2[%c5, %c0_46, %c0_47] : memref<9x128x128xbf16, #tpu.memory_space<vmem>>, vector<1x128x128xbf16>
    %54 = vector.shape_cast %53 : vector<1x128x128xbf16> to vector<128x128xbf16>
    %cst_48 = arith.constant dense<0.000000e+00> : vector<128x128xf32>
    %55 = tpu.matmul %52, %54, %cst_48 {dimension_numbers = #tpu.dot_dimension_numbers<[1], [0], [0], [1], [0, 0, 1, 1], [], []>} : vector<128x128xbf16>, vector<128x128xbf16>, vector<128x128xf32> -> vector<128x128xf32>
    %56 = arith.addf %51, %55 : vector<128x128xf32>
    %c50 = arith.constant 50 : index
    %c0_49 = arith.constant 0 : index
    %57 = vector.load %arg7[%c50, %c0_49] : memref<352x128xbf16, #tpu.memory_space<vmem>>, vector<128x128xbf16>
    %c6 = arith.constant 6 : index
    %c0_50 = arith.constant 0 : index
    %c0_51 = arith.constant 0 : index
    %58 = vector.load %arg2[%c6, %c0_50, %c0_51] : memref<9x128x128xbf16, #tpu.memory_space<vmem>>, vector<1x128x128xbf16>
    %59 = vector.shape_cast %58 : vector<1x128x128xbf16> to vector<128x128xbf16>
    %cst_52 = arith.constant dense<0.000000e+00> : vector<128x128xf32>
    %60 = tpu.matmul %57, %59, %cst_52 {dimension_numbers = #tpu.dot_dimension_numbers<[1], [0], [0], [1], [0, 0, 1, 1], [], []>} : vector<128x128xbf16>, vector<128x128xbf16>, vector<128x128xf32> -> vector<128x128xf32>
    %61 = arith.addf %56, %60 : vector<128x128xf32>
    %c51 = arith.constant 51 : index
    %c0_53 = arith.constant 0 : index
    %62 = vector.load %arg7[%c51, %c0_53] : memref<352x128xbf16, #tpu.memory_space<vmem>>, vector<128x128xbf16>
    %c7 = arith.constant 7 : index
    %c0_54 = arith.constant 0 : index
    %c0_55 = arith.constant 0 : index
    %63 = vector.load %arg2[%c7, %c0_54, %c0_55] : memref<9x128x128xbf16, #tpu.memory_space<vmem>>, vector<1x128x128xbf16>
    %64 = vector.shape_cast %63 : vector<1x128x128xbf16> to vector<128x128xbf16>
    %cst_56 = arith.constant dense<0.000000e+00> : vector<128x128xf32>
    %65 = tpu.matmul %62, %64, %cst_56 {dimension_numbers = #tpu.dot_dimension_numbers<[1], [0], [0], [1], [0, 0, 1, 1], [], []>} : vector<128x128xbf16>, vector<128x128xbf16>, vector<128x128xf32> -> vector<128x128xf32>
    %66 = arith.addf %61, %65 : vector<128x128xf32>
    %c52 = arith.constant 52 : index
    %c0_57 = arith.constant 0 : index
    %67 = vector.load %arg7[%c52, %c0_57] : memref<352x128xbf16, #tpu.memory_space<vmem>>, vector<128x128xbf16>
    %c8 = arith.constant 8 : index
    %c0_58 = arith.constant 0 : index
    %c0_59 = arith.constant 0 : index
    %68 = vector.load %arg2[%c8, %c0_58, %c0_59] : memref<9x128x128xbf16, #tpu.memory_space<vmem>>, vector<1x128x128xbf16>
    %69 = vector.shape_cast %68 : vector<1x128x128xbf16> to vector<128x128xbf16>
    %cst_60 = arith.constant dense<0.000000e+00> : vector<128x128xf32>
    %70 = tpu.matmul %67, %69, %cst_60 {dimension_numbers = #tpu.dot_dimension_numbers<[1], [0], [0], [1], [0, 0, 1, 1], [], []>} : vector<128x128xbf16>, vector<128x128xbf16>, vector<128x128xf32> -> vector<128x128xf32>
    %71 = arith.addf %66, %70 : vector<128x128xf32>
    %c0_61 = arith.constant 0 : index
    %c0_62 = arith.constant 0 : index
    %72 = vector.load %arg3[%c0_61, %c0_62] : memref<1x128xf32, #tpu.memory_space<vmem>>, vector<1x128xf32>
    %73 = vector.broadcast %72 : vector<1x128xf32> to vector<128x128xf32>
    %74 = arith.addf %71, %73 : vector<128x128xf32>
    %cst_63 = arith.constant 0.000000e+00 : f32
    %75 = vector.broadcast %cst_63 : f32 to vector<128x128xf32>
    %76 = arith.maximumf %74, %75 : vector<128x128xf32>
    %77 = tpu.iota {dimensions = array<i32: 0>} : vector<128x1xi32>
    %c0_i32 = arith.constant 0 : i32
    %78 = vector.broadcast %c0_i32 : i32 to vector<128x1xi32>
    %79 = arith.addi %77, %78 : vector<128x1xi32>
    %c18_i32 = arith.constant 18 : i32
    %c0_i32_64 = arith.constant 0 : i32
    %80 = arith.cmpi eq, %c18_i32, %c0_i32_64 : i32
    %c1_i32 = arith.constant 1 : i32
    %81 = arith.select %80, %c1_i32, %c18_i32 : i32
    %82 = vector.broadcast %81 : i32 to vector<128x1xi32>
    %83 = arith.remsi %79, %82 : vector<128x1xi32>
    %c0_i32_65 = arith.constant 0 : i32
    %84 = vector.broadcast %c0_i32_65 : i32 to vector<128x1xi32>
    %85 = arith.cmpi ne, %83, %84 : vector<128x1xi32>
    %c0_i32_66 = arith.constant 0 : i32
    %86 = vector.broadcast %c0_i32_66 : i32 to vector<128x1xi32>
    %87 = arith.cmpi slt, %83, %86 : vector<128x1xi32>
    %c0_i32_67 = arith.constant 0 : i32
    %88 = arith.cmpi slt, %81, %c0_i32_67 : i32
    %89 = vector.broadcast %88 : i1 to vector<128x1xi1>
    %90 = vector.broadcast %89 : vector<128x1xi1> to vector<128x1xi1>
    %91 = arith.xori %87, %90 : vector<128x1xi1>
    %92 = arith.andi %91, %85 : vector<128x1xi1>
    %93 = vector.broadcast %81 : i32 to vector<128x1xi32>
    %94 = arith.addi %83, %93 : vector<128x1xi32>
    %95 = arith.select %92, %94, %83 : vector<128x1xi1>, vector<128x1xi32>
    %c16_i32 = arith.constant 16 : i32
    %96 = vector.broadcast %c16_i32 : i32 to vector<128x1xi32>
    %97 = arith.cmpi slt, %95, %96 : vector<128x1xi32>
    %cst_68 = arith.constant 0.000000e+00 : f32
    %98 = vector.shape_cast %97 : vector<128x1xi1> to vector<128x1xi1>
    %99 = vector.broadcast %98 : vector<128x1xi1> to vector<128x128xi1>
    %100 = vector.broadcast %cst_68 : f32 to vector<128x128xf32>
    %101 = arith.select %99, %76, %100 : vector<128x128xi1>, vector<128x128xf32>
    %102 = arith.truncf %101 : vector<128x128xf32> to vector<128x128xbf16>
    %c32_69 = arith.constant 32 : index
    %c0_70 = arith.constant 0 : index
    %103 = vector.load %arg8[%c32_69, %c0_70] : memref<352x128xbf16, #tpu.memory_space<vmem>>, vector<128x128xbf16>
    tpu.vector_store %arg8[%c32_69, %c0_70], %102 {strides = array<i32>} : memref<352x128xbf16, #tpu.memory_space<vmem>>, vector<128x128xbf16>,
    %cst_71 = arith.constant 0.000000e+00 : f32
    %104 = vector.broadcast %cst_71 : f32 to vector<128x128xf32>
    %c142 = arith.constant 142 : index
    %c0_72 = arith.constant 0 : index
    %105 = vector.load %arg7[%c142, %c0_72] : memref<352x128xbf16, #tpu.memory_space<vmem>>, vector<128x128xbf16>
    %c0_73 = arith.constant 0 : index
    %c0_74 = arith.constant 0 : index
    %c0_75 = arith.constant 0 : index
    %106 = vector.load %arg2[%c0_73, %c0_74, %c0_75] : memref<9x128x128xbf16, #tpu.memory_space<vmem>>, vector<1x128x128xbf16>
    %107 = vector.shape_cast %106 : vector<1x128x128xbf16> to vector<128x128xbf16>
    %cst_76 = arith.constant dense<0.000000e+00> : vector<128x128xf32>
    %108 = tpu.matmul %105, %107, %cst_76 {dimension_numbers = #tpu.dot_dimension_numbers<[1], [0], [0], [1], [0, 0, 1, 1], [], []>} : vector<128x128xbf16>, vector<128x128xbf16>, vector<128x128xf32> -> vector<128x128xf32>
    %109 = arith.addf %104, %108 : vector<128x128xf32>
    %c143 = arith.constant 143 : index
    %c0_77 = arith.constant 0 : index
    %110 = vector.load %arg7[%c143, %c0_77] : memref<352x128xbf16, #tpu.memory_space<vmem>>, vector<128x128xbf16>
    %c1_78 = arith.constant 1 : index
    %c0_79 = arith.constant 0 : index
    %c0_80 = arith.constant 0 : index
    %111 = vector.load %arg2[%c1_78, %c0_79, %c0_80] : memref<9x128x128xbf16, #tpu.memory_space<vmem>>, vector<1x128x128xbf16>
    %112 = vector.shape_cast %111 : vector<1x128x128xbf16> to vector<128x128xbf16>
    %cst_81 = arith.constant dense<0.000000e+00> : vector<128x128xf32>
    %113 = tpu.matmul %110, %112, %cst_81 {dimension_numbers = #tpu.dot_dimension_numbers<[1], [0], [0], [1], [0, 0, 1, 1], [], []>} : vector<128x128xbf16>, vector<128x128xbf16>, vector<128x128xf32> -> vector<128x128xf32>
    %114 = arith.addf %109, %113 : vector<128x128xf32>
    %c144 = arith.constant 144 : index
    %c0_82 = arith.constant 0 : index
    %115 = vector.load %arg7[%c144, %c0_82] : memref<352x128xbf16, #tpu.memory_space<vmem>>, vector<128x128xbf16>
    %c2_83 = arith.constant 2 : index
    %c0_84 = arith.constant 0 : index
    %c0_85 = arith.constant 0 : index
    %116 = vector.load %arg2[%c2_83, %c0_84, %c0_85] : memref<9x128x128xbf16, #tpu.memory_space<vmem>>, vector<1x128x128xbf16>
    %117 = vector.shape_cast %116 : vector<1x128x128xbf16> to vector<128x128xbf16>
    %cst_86 = arith.constant dense<0.000000e+00> : vector<128x128xf32>
    %118 = tpu.matmul %115, %117, %cst_86 {dimension_numbers = #tpu.dot_dimension_numbers<[1], [0], [0], [1], [0, 0, 1, 1], [], []>} : vector<128x128xbf16>, vector<128x128xbf16>, vector<128x128xf32> -> vector<128x128xf32>
    %119 = arith.addf %114, %118 : vector<128x128xf32>
    %c160_87 = arith.constant 160 : index
    %c0_88 = arith.constant 0 : index
    %120 = vector.load %arg7[%c160_87, %c0_88] : memref<352x128xbf16, #tpu.memory_space<vmem>>, vector<128x128xbf16>
    %c3_89 = arith.constant 3 : index
    %c0_90 = arith.constant 0 : index
    %c0_91 = arith.constant 0 : index
    %121 = vector.load %arg2[%c3_89, %c0_90, %c0_91] : memref<9x128x128xbf16, #tpu.memory_space<vmem>>, vector<1x128x128xbf16>
    %122 = vector.shape_cast %121 : vector<1x128x128xbf16> to vector<128x128xbf16>
    %cst_92 = arith.constant dense<0.000000e+00> : vector<128x128xf32>
    %123 = tpu.matmul %120, %122, %cst_92 {dimension_numbers = #tpu.dot_dimension_numbers<[1], [0], [0], [1], [0, 0, 1, 1], [], []>} : vector<128x128xbf16>, vector<128x128xbf16>, vector<128x128xf32> -> vector<128x128xf32>
    %124 = arith.addf %119, %123 : vector<128x128xf32>
    %c161 = arith.constant 161 : index
    %c0_93 = arith.constant 0 : index
    %125 = vector.load %arg7[%c161, %c0_93] : memref<352x128xbf16, #tpu.memory_space<vmem>>, vector<128x128xbf16>
    %c4_94 = arith.constant 4 : index
    %c0_95 = arith.constant 0 : index
    %c0_96 = arith.constant 0 : index
    %126 = vector.load %arg2[%c4_94, %c0_95, %c0_96] : memref<9x128x128xbf16, #tpu.memory_space<vmem>>, vector<1x128x128xbf16>
    %127 = vector.shape_cast %126 : vector<1x128x128xbf16> to vector<128x128xbf16>
    %cst_97 = arith.constant dense<0.000000e+00> : vector<128x128xf32>
    %128 = tpu.matmul %125, %127, %cst_97 {dimension_numbers = #tpu.dot_dimension_numbers<[1], [0], [0], [1], [0, 0, 1, 1], [], []>} : vector<128x128xbf16>, vector<128x128xbf16>, vector<128x128xf32> -> vector<128x128xf32>
    %129 = arith.addf %124, %128 : vector<128x128xf32>
    %c162 = arith.constant 162 : index
    %c0_98 = arith.constant 0 : index
    %130 = vector.load %arg7[%c162, %c0_98] : memref<352x128xbf16, #tpu.memory_space<vmem>>, vector<128x128xbf16>
    %c5_99 = arith.constant 5 : index
    %c0_100 = arith.constant 0 : index
    %c0_101 = arith.constant 0 : index
    %131 = vector.load %arg2[%c5_99, %c0_100, %c0_101] : memref<9x128x128xbf16, #tpu.memory_space<vmem>>, vector<1x128x128xbf16>
    %132 = vector.shape_cast %131 : vector<1x128x128xbf16> to vector<128x128xbf16>
    %cst_102 = arith.constant dense<0.000000e+00> : vector<128x128xf32>
    %133 = tpu.matmul %130, %132, %cst_102 {dimension_numbers = #tpu.dot_dimension_numbers<[1], [0], [0], [1], [0, 0, 1, 1], [], []>} : vector<128x128xbf16>, vector<128x128xbf16>, vector<128x128xf32> -> vector<128x128xf32>
    %134 = arith.addf %129, %133 : vector<128x128xf32>
    %c178 = arith.constant 178 : index
    %c0_103 = arith.constant 0 : index
    %135 = vector.load %arg7[%c178, %c0_103] : memref<352x128xbf16, #tpu.memory_space<vmem>>, vector<128x128xbf16>
    %c6_104 = arith.constant 6 : index
    %c0_105 = arith.constant 0 : index
    %c0_106 = arith.constant 0 : index
    %136 = vector.load %arg2[%c6_104, %c0_105, %c0_106] : memref<9x128x128xbf16, #tpu.memory_space<vmem>>, vector<1x128x128xbf16>
    %137 = vector.shape_cast %136 : vector<1x128x128xbf16> to vector<128x128xbf16>
    %cst_107 = arith.constant dense<0.000000e+00> : vector<128x128xf32>
    %138 = tpu.matmul %135, %137, %cst_107 {dimension_numbers = #tpu.dot_dimension_numbers<[1], [0], [0], [1], [0, 0, 1, 1], [], []>} : vector<128x128xbf16>, vector<128x128xbf16>, vector<128x128xf32> -> vector<128x128xf32>
    %139 = arith.addf %134, %138 : vector<128x128xf32>
    %c179 = arith.constant 179 : index
    %c0_108 = arith.constant 0 : index
    %140 = vector.load %arg7[%c179, %c0_108] : memref<352x128xbf16, #tpu.memory_space<vmem>>, vector<128x128xbf16>
    %c7_109 = arith.constant 7 : index
    %c0_110 = arith.constant 0 : index
    %c0_111 = arith.constant 0 : index
    %141 = vector.load %arg2[%c7_109, %c0_110, %c0_111] : memref<9x128x128xbf16, #tpu.memory_space<vmem>>, vector<1x128x128xbf16>
    %142 = vector.shape_cast %141 : vector<1x128x128xbf16> to vector<128x128xbf16>
    %cst_112 = arith.constant dense<0.000000e+00> : vector<128x128xf32>
    %143 = tpu.matmul %140, %142, %cst_112 {dimension_numbers = #tpu.dot_dimension_numbers<[1], [0], [0], [1], [0, 0, 1, 1], [], []>} : vector<128x128xbf16>, vector<128x128xbf16>, vector<128x128xf32> -> vector<128x128xf32>
    %144 = arith.addf %139, %143 : vector<128x128xf32>
    %c180 = arith.constant 180 : index
    %c0_113 = arith.constant 0 : index
    %145 = vector.load %arg7[%c180, %c0_113] : memref<352x128xbf16, #tpu.memory_space<vmem>>, vector<128x128xbf16>
    %c8_114 = arith.constant 8 : index
    %c0_115 = arith.constant 0 : index
    %c0_116 = arith.constant 0 : index
    %146 = vector.load %arg2[%c8_114, %c0_115, %c0_116] : memref<9x128x128xbf16, #tpu.memory_space<vmem>>, vector<1x128x128xbf16>
    %147 = vector.shape_cast %146 : vector<1x128x128xbf16> to vector<128x128xbf16>
    %cst_117 = arith.constant dense<0.000000e+00> : vector<128x128xf32>
    %148 = tpu.matmul %145, %147, %cst_117 {dimension_numbers = #tpu.dot_dimension_numbers<[1], [0], [0], [1], [0, 0, 1, 1], [], []>} : vector<128x128xbf16>, vector<128x128xbf16>, vector<128x128xf32> -> vector<128x128xf32>
    %149 = arith.addf %144, %148 : vector<128x128xf32>
    %c0_118 = arith.constant 0 : index
    %c0_119 = arith.constant 0 : index
    %150 = vector.load %arg3[%c0_118, %c0_119] : memref<1x128xf32, #tpu.memory_space<vmem>>, vector<1x128xf32>
    %151 = vector.broadcast %150 : vector<1x128xf32> to vector<128x128xf32>
    %152 = arith.addf %149, %151 : vector<128x128xf32>
    %cst_120 = arith.constant 0.000000e+00 : f32
    %153 = vector.broadcast %cst_120 : f32 to vector<128x128xf32>
    %154 = arith.maximumf %152, %153 : vector<128x128xf32>
    %155 = tpu.iota {dimensions = array<i32: 0>} : vector<128x1xi32>
    %c128_i32 = arith.constant 128 : i32
    %156 = vector.broadcast %c128_i32 : i32 to vector<128x1xi32>
    %157 = arith.addi %155, %156 : vector<128x1xi32>
    %c18_i32_121 = arith.constant 18 : i32
    %c0_i32_122 = arith.constant 0 : i32
    %158 = arith.cmpi eq, %c18_i32_121, %c0_i32_122 : i32
    %c1_i32_123 = arith.constant 1 : i32
    %159 = arith.select %158, %c1_i32_123, %c18_i32_121 : i32
    %160 = vector.broadcast %159 : i32 to vector<128x1xi32>
    %161 = arith.remsi %157, %160 : vector<128x1xi32>
    %c0_i32_124 = arith.constant 0 : i32
    %162 = vector.broadcast %c0_i32_124 : i32 to vector<128x1xi32>
    %163 = arith.cmpi ne, %161, %162 : vector<128x1xi32>
    %c0_i32_125 = arith.constant 0 : i32
    %164 = vector.broadcast %c0_i32_125 : i32 to vector<128x1xi32>
    %165 = arith.cmpi slt, %161, %164 : vector<128x1xi32>
    %c0_i32_126 = arith.constant 0 : i32
    %166 = arith.cmpi slt, %159, %c0_i32_126 : i32
    %167 = vector.broadcast %166 : i1 to vector<128x1xi1>
    %168 = vector.broadcast %167 : vector<128x1xi1> to vector<128x1xi1>
    %169 = arith.xori %165, %168 : vector<128x1xi1>
    %170 = arith.andi %169, %163 : vector<128x1xi1>
    %171 = vector.broadcast %159 : i32 to vector<128x1xi32>
    %172 = arith.addi %161, %171 : vector<128x1xi32>
    %173 = arith.select %170, %172, %161 : vector<128x1xi1>, vector<128x1xi32>
    %c16_i32_127 = arith.constant 16 : i32
    %174 = vector.broadcast %c16_i32_127 : i32 to vector<128x1xi32>
    %175 = arith.cmpi slt, %173, %174 : vector<128x1xi32>
    %cst_128 = arith.constant 0.000000e+00 : f32
    %176 = vector.shape_cast %175 : vector<128x1xi1> to vector<128x1xi1>
    %177 = vector.broadcast %176 : vector<128x1xi1> to vector<128x128xi1>
    %178 = vector.broadcast %cst_128 : f32 to vector<128x128xf32>
    %179 = arith.select %177, %154, %178 : vector<128x128xi1>, vector<128x128xf32>
    %180 = arith.truncf %179 : vector<128x128xf32> to vector<128x128xbf16>
    %c160_129 = arith.constant 160 : index
    %c0_130 = arith.constant 0 : index
    %181 = vector.load %arg8[%c160_129, %c0_130] : memref<352x128xbf16, #tpu.memory_space<vmem>>, vector<128x128xbf16>
    tpu.vector_store %arg8[%c160_129, %c0_130], %180 {strides = array<i32>} : memref<352x128xbf16, #tpu.memory_space<vmem>>, vector<128x128xbf16>,
    %cst_131 = arith.constant 0.000000e+00 : f32
    %182 = vector.broadcast %cst_131 : f32 to vector<32x128xf32>
    %c270 = arith.constant 270 : index
    %c0_132 = arith.constant 0 : index
    %183 = vector.load %arg7[%c270, %c0_132] : memref<352x128xbf16, #tpu.memory_space<vmem>>, vector<32x128xbf16>
    %c0_133 = arith.constant 0 : index
    %c0_134 = arith.constant 0 : index
    %c0_135 = arith.constant 0 : index
    %184 = vector.load %arg2[%c0_133, %c0_134, %c0_135] : memref<9x128x128xbf16, #tpu.memory_space<vmem>>, vector<1x128x128xbf16>
    %185 = vector.shape_cast %184 : vector<1x128x128xbf16> to vector<128x128xbf16>
    %cst_136 = arith.constant dense<0.000000e+00> : vector<32x128xf32>
    %186 = tpu.matmul %183, %185, %cst_136 {dimension_numbers = #tpu.dot_dimension_numbers<[1], [0], [0], [1], [0, 0, 1, 1], [], []>} : vector<32x128xbf16>, vector<128x128xbf16>, vector<32x128xf32> -> vector<32x128xf32>
    %187 = arith.addf %182, %186 : vector<32x128xf32>
    %c271 = arith.constant 271 : index
    %c0_137 = arith.constant 0 : index
    %188 = vector.load %arg7[%c271, %c0_137] : memref<352x128xbf16, #tpu.memory_space<vmem>>, vector<32x128xbf16>
    %c1_138 = arith.constant 1 : index
    %c0_139 = arith.constant 0 : index
    %c0_140 = arith.constant 0 : index
    %189 = vector.load %arg2[%c1_138, %c0_139, %c0_140] : memref<9x128x128xbf16, #tpu.memory_space<vmem>>, vector<1x128x128xbf16>
    %190 = vector.shape_cast %189 : vector<1x128x128xbf16> to vector<128x128xbf16>
    %cst_141 = arith.constant dense<0.000000e+00> : vector<32x128xf32>
    %191 = tpu.matmul %188, %190, %cst_141 {dimension_numbers = #tpu.dot_dimension_numbers<[1], [0], [0], [1], [0, 0, 1, 1], [], []>} : vector<32x128xbf16>, vector<128x128xbf16>, vector<32x128xf32> -> vector<32x128xf32>
    %192 = arith.addf %187, %191 : vector<32x128xf32>
    %c272 = arith.constant 272 : index
    %c0_142 = arith.constant 0 : index
    %193 = vector.load %arg7[%c272, %c0_142] : memref<352x128xbf16, #tpu.memory_space<vmem>>, vector<32x128xbf16>
    %c2_143 = arith.constant 2 : index
    %c0_144 = arith.constant 0 : index
    %c0_145 = arith.constant 0 : index
    %194 = vector.load %arg2[%c2_143, %c0_144, %c0_145] : memref<9x128x128xbf16, #tpu.memory_space<vmem>>, vector<1x128x128xbf16>
    %195 = vector.shape_cast %194 : vector<1x128x128xbf16> to vector<128x128xbf16>
    %cst_146 = arith.constant dense<0.000000e+00> : vector<32x128xf32>
    %196 = tpu.matmul %193, %195, %cst_146 {dimension_numbers = #tpu.dot_dimension_numbers<[1], [0], [0], [1], [0, 0, 1, 1], [], []>} : vector<32x128xbf16>, vector<128x128xbf16>, vector<32x128xf32> -> vector<32x128xf32>
    %197 = arith.addf %192, %196 : vector<32x128xf32>
    %c288_147 = arith.constant 288 : index
    %c0_148 = arith.constant 0 : index
    %198 = vector.load %arg7[%c288_147, %c0_148] : memref<352x128xbf16, #tpu.memory_space<vmem>>, vector<32x128xbf16>
    %c3_149 = arith.constant 3 : index
    %c0_150 = arith.constant 0 : index
    %c0_151 = arith.constant 0 : index
    %199 = vector.load %arg2[%c3_149, %c0_150, %c0_151] : memref<9x128x128xbf16, #tpu.memory_space<vmem>>, vector<1x128x128xbf16>
    %200 = vector.shape_cast %199 : vector<1x128x128xbf16> to vector<128x128xbf16>
    %cst_152 = arith.constant dense<0.000000e+00> : vector<32x128xf32>
    %201 = tpu.matmul %198, %200, %cst_152 {dimension_numbers = #tpu.dot_dimension_numbers<[1], [0], [0], [1], [0, 0, 1, 1], [], []>} : vector<32x128xbf16>, vector<128x128xbf16>, vector<32x128xf32> -> vector<32x128xf32>
    %202 = arith.addf %197, %201 : vector<32x128xf32>
    %c289 = arith.constant 289 : index
    %c0_153 = arith.constant 0 : index
    %203 = vector.load %arg7[%c289, %c0_153] : memref<352x128xbf16, #tpu.memory_space<vmem>>, vector<32x128xbf16>
    %c4_154 = arith.constant 4 : index
    %c0_155 = arith.constant 0 : index
    %c0_156 = arith.constant 0 : index
    %204 = vector.load %arg2[%c4_154, %c0_155, %c0_156] : memref<9x128x128xbf16, #tpu.memory_space<vmem>>, vector<1x128x128xbf16>
    %205 = vector.shape_cast %204 : vector<1x128x128xbf16> to vector<128x128xbf16>
    %cst_157 = arith.constant dense<0.000000e+00> : vector<32x128xf32>
    %206 = tpu.matmul %203, %205, %cst_157 {dimension_numbers = #tpu.dot_dimension_numbers<[1], [0], [0], [1], [0, 0, 1, 1], [], []>} : vector<32x128xbf16>, vector<128x128xbf16>, vector<32x128xf32> -> vector<32x128xf32>
    %207 = arith.addf %202, %206 : vector<32x128xf32>
    %c290 = arith.constant 290 : index
    %c0_158 = arith.constant 0 : index
    %208 = vector.load %arg7[%c290, %c0_158] : memref<352x128xbf16, #tpu.memory_space<vmem>>, vector<32x128xbf16>
    %c5_159 = arith.constant 5 : index
    %c0_160 = arith.constant 0 : index
    %c0_161 = arith.constant 0 : index
    %209 = vector.load %arg2[%c5_159, %c0_160, %c0_161] : memref<9x128x128xbf16, #tpu.memory_space<vmem>>, vector<1x128x128xbf16>
    %210 = vector.shape_cast %209 : vector<1x128x128xbf16> to vector<128x128xbf16>
    %cst_162 = arith.constant dense<0.000000e+00> : vector<32x128xf32>
    %211 = tpu.matmul %208, %210, %cst_162 {dimension_numbers = #tpu.dot_dimension_numbers<[1], [0], [0], [1], [0, 0, 1, 1], [], []>} : vector<32x128xbf16>, vector<128x128xbf16>, vector<32x128xf32> -> vector<32x128xf32>
    %212 = arith.addf %207, %211 : vector<32x128xf32>
    %c306 = arith.constant 306 : index
    %c0_163 = arith.constant 0 : index
    %213 = vector.load %arg7[%c306, %c0_163] : memref<352x128xbf16, #tpu.memory_space<vmem>>, vector<32x128xbf16>
    %c6_164 = arith.constant 6 : index
    %c0_165 = arith.constant 0 : index
    %c0_166 = arith.constant 0 : index
    %214 = vector.load %arg2[%c6_164, %c0_165, %c0_166] : memref<9x128x128xbf16, #tpu.memory_space<vmem>>, vector<1x128x128xbf16>
    %215 = vector.shape_cast %214 : vector<1x128x128xbf16> to vector<128x128xbf16>
    %cst_167 = arith.constant dense<0.000000e+00> : vector<32x128xf32>
    %216 = tpu.matmul %213, %215, %cst_167 {dimension_numbers = #tpu.dot_dimension_numbers<[1], [0], [0], [1], [0, 0, 1, 1], [], []>} : vector<32x128xbf16>, vector<128x128xbf16>, vector<32x128xf32> -> vector<32x128xf32>
    %217 = arith.addf %212, %216 : vector<32x128xf32>
    %c307 = arith.constant 307 : index
    %c0_168 = arith.constant 0 : index
    %218 = vector.load %arg7[%c307, %c0_168] : memref<352x128xbf16, #tpu.memory_space<vmem>>, vector<32x128xbf16>
    %c7_169 = arith.constant 7 : index
    %c0_170 = arith.constant 0 : index
    %c0_171 = arith.constant 0 : index
    %219 = vector.load %arg2[%c7_169, %c0_170, %c0_171] : memref<9x128x128xbf16, #tpu.memory_space<vmem>>, vector<1x128x128xbf16>
    %220 = vector.shape_cast %219 : vector<1x128x128xbf16> to vector<128x128xbf16>
    %cst_172 = arith.constant dense<0.000000e+00> : vector<32x128xf32>
    %221 = tpu.matmul %218, %220, %cst_172 {dimension_numbers = #tpu.dot_dimension_numbers<[1], [0], [0], [1], [0, 0, 1, 1], [], []>} : vector<32x128xbf16>, vector<128x128xbf16>, vector<32x128xf32> -> vector<32x128xf32>
    %222 = arith.addf %217, %221 : vector<32x128xf32>
    %c308 = arith.constant 308 : index
    %c0_173 = arith.constant 0 : index
    %223 = vector.load %arg7[%c308, %c0_173] : memref<352x128xbf16, #tpu.memory_space<vmem>>, vector<32x128xbf16>
    %c8_174 = arith.constant 8 : index
    %c0_175 = arith.constant 0 : index
    %c0_176 = arith.constant 0 : index
    %224 = vector.load %arg2[%c8_174, %c0_175, %c0_176] : memref<9x128x128xbf16, #tpu.memory_space<vmem>>, vector<1x128x128xbf16>
    %225 = vector.shape_cast %224 : vector<1x128x128xbf16> to vector<128x128xbf16>
    %cst_177 = arith.constant dense<0.000000e+00> : vector<32x128xf32>
    %226 = tpu.matmul %223, %225, %cst_177 {dimension_numbers = #tpu.dot_dimension_numbers<[1], [0], [0], [1], [0, 0, 1, 1], [], []>} : vector<32x128xbf16>, vector<128x128xbf16>, vector<32x128xf32> -> vector<32x128xf32>
    %227 = arith.addf %222, %226 : vector<32x128xf32>
    %c0_178 = arith.constant 0 : index
    %c0_179 = arith.constant 0 : index
    %228 = vector.load %arg3[%c0_178, %c0_179] : memref<1x128xf32, #tpu.memory_space<vmem>>, vector<1x128xf32>
    %229 = vector.broadcast %228 : vector<1x128xf32> to vector<32x128xf32>
    %230 = arith.addf %227, %229 : vector<32x128xf32>
    %cst_180 = arith.constant 0.000000e+00 : f32
    %231 = vector.broadcast %cst_180 : f32 to vector<32x128xf32>
    %232 = arith.maximumf %230, %231 : vector<32x128xf32>
    %233 = tpu.iota {dimensions = array<i32: 0>} : vector<32x1xi32>
    %c256_i32 = arith.constant 256 : i32
    %234 = vector.broadcast %c256_i32 : i32 to vector<32x1xi32>
    %235 = arith.addi %233, %234 : vector<32x1xi32>
    %c18_i32_181 = arith.constant 18 : i32
    %c0_i32_182 = arith.constant 0 : i32
    %236 = arith.cmpi eq, %c18_i32_181, %c0_i32_182 : i32
    %c1_i32_183 = arith.constant 1 : i32
    %237 = arith.select %236, %c1_i32_183, %c18_i32_181 : i32
    %238 = vector.broadcast %237 : i32 to vector<32x1xi32>
    %239 = arith.remsi %235, %238 : vector<32x1xi32>
    %c0_i32_184 = arith.constant 0 : i32
    %240 = vector.broadcast %c0_i32_184 : i32 to vector<32x1xi32>
    %241 = arith.cmpi ne, %239, %240 : vector<32x1xi32>
    %c0_i32_185 = arith.constant 0 : i32
    %242 = vector.broadcast %c0_i32_185 : i32 to vector<32x1xi32>
    %243 = arith.cmpi slt, %239, %242 : vector<32x1xi32>
    %c0_i32_186 = arith.constant 0 : i32
    %244 = arith.cmpi slt, %237, %c0_i32_186 : i32
    %245 = vector.broadcast %244 : i1 to vector<32x1xi1>
    %246 = vector.broadcast %245 : vector<32x1xi1> to vector<32x1xi1>
    %247 = arith.xori %243, %246 : vector<32x1xi1>
    %248 = arith.andi %247, %241 : vector<32x1xi1>
    %249 = vector.broadcast %237 : i32 to vector<32x1xi32>
    %250 = arith.addi %239, %249 : vector<32x1xi32>
    %251 = arith.select %248, %250, %239 : vector<32x1xi1>, vector<32x1xi32>
    %c16_i32_187 = arith.constant 16 : i32
    %252 = vector.broadcast %c16_i32_187 : i32 to vector<32x1xi32>
    %253 = arith.cmpi slt, %251, %252 : vector<32x1xi32>
    %cst_188 = arith.constant 0.000000e+00 : f32
    %254 = vector.shape_cast %253 : vector<32x1xi1> to vector<32x1xi1>
    %255 = vector.broadcast %254 : vector<32x1xi1> to vector<32x128xi1>
    %256 = vector.broadcast %cst_188 : f32 to vector<32x128xf32>
    %257 = arith.select %255, %232, %256 : vector<32x128xi1>, vector<32x128xf32>
    %258 = arith.truncf %257 : vector<32x128xf32> to vector<32x128xbf16>
    %c288_189 = arith.constant 288 : index
    %c0_190 = arith.constant 0 : index
    %259 = vector.load %arg8[%c288_189, %c0_190] : memref<352x128xbf16, #tpu.memory_space<vmem>>, vector<32x128xbf16>
    tpu.vector_store %arg8[%c288_189, %c0_190], %258 {strides = array<i32>} : memref<352x128xbf16, #tpu.memory_space<vmem>>, vector<32x128xbf16>,
    %cst_191 = arith.constant 0.000000e+00 : f32
    %260 = vector.broadcast %cst_191 : f32 to vector<128x128xf32>
    %c13 = arith.constant 13 : index
    %c0_192 = arith.constant 0 : index
    %261 = vector.load %arg8[%c13, %c0_192] : memref<352x128xbf16, #tpu.memory_space<vmem>>, vector<128x128xbf16>
    %c0_193 = arith.constant 0 : index
    %c0_194 = arith.constant 0 : index
    %c0_195 = arith.constant 0 : index
    %262 = vector.load %arg4[%c0_193, %c0_194, %c0_195] : memref<9x128x128xbf16, #tpu.memory_space<vmem>>, vector<1x128x128xbf16>
    %263 = vector.shape_cast %262 : vector<1x128x128xbf16> to vector<128x128xbf16>
    %cst_196 = arith.constant dense<0.000000e+00> : vector<128x128xf32>
    %264 = tpu.matmul %261, %263, %cst_196 {dimension_numbers = #tpu.dot_dimension_numbers<[1], [0], [0], [1], [0, 0, 1, 1], [], []>} : vector<128x128xbf16>, vector<128x128xbf16>, vector<128x128xf32> -> vector<128x128xf32>
    %265 = arith.addf %260, %264 : vector<128x128xf32>
    %c14_197 = arith.constant 14 : index
    %c0_198 = arith.constant 0 : index
    %266 = vector.load %arg8[%c14_197, %c0_198] : memref<352x128xbf16, #tpu.memory_space<vmem>>, vector<128x128xbf16>
    %c1_199 = arith.constant 1 : index
    %c0_200 = arith.constant 0 : index
    %c0_201 = arith.constant 0 : index
    %267 = vector.load %arg4[%c1_199, %c0_200, %c0_201] : memref<9x128x128xbf16, #tpu.memory_space<vmem>>, vector<1x128x128xbf16>
    %268 = vector.shape_cast %267 : vector<1x128x128xbf16> to vector<128x128xbf16>
    %cst_202 = arith.constant dense<0.000000e+00> : vector<128x128xf32>
    %269 = tpu.matmul %266, %268, %cst_202 {dimension_numbers = #tpu.dot_dimension_numbers<[1], [0], [0], [1], [0, 0, 1, 1], [], []>} : vector<128x128xbf16>, vector<128x128xbf16>, vector<128x128xf32> -> vector<128x128xf32>
    %270 = arith.addf %265, %269 : vector<128x128xf32>
    %c15_203 = arith.constant 15 : index
    %c0_204 = arith.constant 0 : index
    %271 = vector.load %arg8[%c15_203, %c0_204] : memref<352x128xbf16, #tpu.memory_space<vmem>>, vector<128x128xbf16>
    %c2_205 = arith.constant 2 : index
    %c0_206 = arith.constant 0 : index
    %c0_207 = arith.constant 0 : index
    %272 = vector.load %arg4[%c2_205, %c0_206, %c0_207] : memref<9x128x128xbf16, #tpu.memory_space<vmem>>, vector<1x128x128xbf16>
    %273 = vector.shape_cast %272 : vector<1x128x128xbf16> to vector<128x128xbf16>
    %cst_208 = arith.constant dense<0.000000e+00> : vector<128x128xf32>
    %274 = tpu.matmul %271, %273, %cst_208 {dimension_numbers = #tpu.dot_dimension_numbers<[1], [0], [0], [1], [0, 0, 1, 1], [], []>} : vector<128x128xbf16>, vector<128x128xbf16>, vector<128x128xf32> -> vector<128x128xf32>
    %275 = arith.addf %270, %274 : vector<128x128xf32>
    %c31 = arith.constant 31 : index
    %c0_209 = arith.constant 0 : index
    %276 = vector.load %arg8[%c31, %c0_209] : memref<352x128xbf16, #tpu.memory_space<vmem>>, vector<128x128xbf16>
    %c3_210 = arith.constant 3 : index
    %c0_211 = arith.constant 0 : index
    %c0_212 = arith.constant 0 : index
    %277 = vector.load %arg4[%c3_210, %c0_211, %c0_212] : memref<9x128x128xbf16, #tpu.memory_space<vmem>>, vector<1x128x128xbf16>
    %278 = vector.shape_cast %277 : vector<1x128x128xbf16> to vector<128x128xbf16>
    %cst_213 = arith.constant dense<0.000000e+00> : vector<128x128xf32>
    %279 = tpu.matmul %276, %278, %cst_213 {dimension_numbers = #tpu.dot_dimension_numbers<[1], [0], [0], [1], [0, 0, 1, 1], [], []>} : vector<128x128xbf16>, vector<128x128xbf16>, vector<128x128xf32> -> vector<128x128xf32>
    %280 = arith.addf %275, %279 : vector<128x128xf32>
    %c32_214 = arith.constant 32 : index
    %c0_215 = arith.constant 0 : index
    %281 = vector.load %arg8[%c32_214, %c0_215] : memref<352x128xbf16, #tpu.memory_space<vmem>>, vector<128x128xbf16>
    %c4_216 = arith.constant 4 : index
    %c0_217 = arith.constant 0 : index
    %c0_218 = arith.constant 0 : index
    %282 = vector.load %arg4[%c4_216, %c0_217, %c0_218] : memref<9x128x128xbf16, #tpu.memory_space<vmem>>, vector<1x128x128xbf16>
    %283 = vector.shape_cast %282 : vector<1x128x128xbf16> to vector<128x128xbf16>
    %cst_219 = arith.constant dense<0.000000e+00> : vector<128x128xf32>
    %284 = tpu.matmul %281, %283, %cst_219 {dimension_numbers = #tpu.dot_dimension_numbers<[1], [0], [0], [1], [0, 0, 1, 1], [], []>} : vector<128x128xbf16>, vector<128x128xbf16>, vector<128x128xf32> -> vector<128x128xf32>
    %285 = arith.addf %280, %284 : vector<128x128xf32>
    %c33_220 = arith.constant 33 : index
    %c0_221 = arith.constant 0 : index
    %286 = vector.load %arg8[%c33_220, %c0_221] : memref<352x128xbf16, #tpu.memory_space<vmem>>, vector<128x128xbf16>
    %c5_222 = arith.constant 5 : index
    %c0_223 = arith.constant 0 : index
    %c0_224 = arith.constant 0 : index
    %287 = vector.load %arg4[%c5_222, %c0_223, %c0_224] : memref<9x128x128xbf16, #tpu.memory_space<vmem>>, vector<1x128x128xbf16>
    %288 = vector.shape_cast %287 : vector<1x128x128xbf16> to vector<128x128xbf16>
    %cst_225 = arith.constant dense<0.000000e+00> : vector<128x128xf32>
    %289 = tpu.matmul %286, %288, %cst_225 {dimension_numbers = #tpu.dot_dimension_numbers<[1], [0], [0], [1], [0, 0, 1, 1], [], []>} : vector<128x128xbf16>, vector<128x128xbf16>, vector<128x128xf32> -> vector<128x128xf32>
    %290 = arith.addf %285, %289 : vector<128x128xf32>
    %c49 = arith.constant 49 : index
    %c0_226 = arith.constant 0 : index
    %291 = vector.load %arg8[%c49, %c0_226] : memref<352x128xbf16, #tpu.memory_space<vmem>>, vector<128x128xbf16>
    %c6_227 = arith.constant 6 : index
    %c0_228 = arith.constant 0 : index
    %c0_229 = arith.constant 0 : index
    %292 = vector.load %arg4[%c6_227, %c0_228, %c0_229] : memref<9x128x128xbf16, #tpu.memory_space<vmem>>, vector<1x128x128xbf16>
    %293 = vector.shape_cast %292 : vector<1x128x128xbf16> to vector<128x128xbf16>
    %cst_230 = arith.constant dense<0.000000e+00> : vector<128x128xf32>
    %294 = tpu.matmul %291, %293, %cst_230 {dimension_numbers = #tpu.dot_dimension_numbers<[1], [0], [0], [1], [0, 0, 1, 1], [], []>} : vector<128x128xbf16>, vector<128x128xbf16>, vector<128x128xf32> -> vector<128x128xf32>
    %295 = arith.addf %290, %294 : vector<128x128xf32>
    %c50_231 = arith.constant 50 : index
    %c0_232 = arith.constant 0 : index
    %296 = vector.load %arg8[%c50_231, %c0_232] : memref<352x128xbf16, #tpu.memory_space<vmem>>, vector<128x128xbf16>
    %c7_233 = arith.constant 7 : index
    %c0_234 = arith.constant 0 : index
    %c0_235 = arith.constant 0 : index
    %297 = vector.load %arg4[%c7_233, %c0_234, %c0_235] : memref<9x128x128xbf16, #tpu.memory_space<vmem>>, vector<1x128x128xbf16>
    %298 = vector.shape_cast %297 : vector<1x128x128xbf16> to vector<128x128xbf16>
    %cst_236 = arith.constant dense<0.000000e+00> : vector<128x128xf32>
    %299 = tpu.matmul %296, %298, %cst_236 {dimension_numbers = #tpu.dot_dimension_numbers<[1], [0], [0], [1], [0, 0, 1, 1], [], []>} : vector<128x128xbf16>, vector<128x128xbf16>, vector<128x128xf32> -> vector<128x128xf32>
    %300 = arith.addf %295, %299 : vector<128x128xf32>
    %c51_237 = arith.constant 51 : index
    %c0_238 = arith.constant 0 : index
    %301 = vector.load %arg8[%c51_237, %c0_238] : memref<352x128xbf16, #tpu.memory_space<vmem>>, vector<128x128xbf16>
    %c8_239 = arith.constant 8 : index
    %c0_240 = arith.constant 0 : index
    %c0_241 = arith.constant 0 : index
    %302 = vector.load %arg4[%c8_239, %c0_240, %c0_241] : memref<9x128x128xbf16, #tpu.memory_space<vmem>>, vector<1x128x128xbf16>
    %303 = vector.shape_cast %302 : vector<1x128x128xbf16> to vector<128x128xbf16>
    %cst_242 = arith.constant dense<0.000000e+00> : vector<128x128xf32>
    %304 = tpu.matmul %301, %303, %cst_242 {dimension_numbers = #tpu.dot_dimension_numbers<[1], [0], [0], [1], [0, 0, 1, 1], [], []>} : vector<128x128xbf16>, vector<128x128xbf16>, vector<128x128xf32> -> vector<128x128xf32>
    %305 = arith.addf %300, %304 : vector<128x128xf32>
    %c0_243 = arith.constant 0 : index
    %c1_244 = arith.constant 1 : index
    %c0_245 = arith.constant 0 : index
    %306 = vector.load %arg1[%c0_243, %c1_244, %c0_245] : memref<1x296x128xf32, #tpu.memory_space<vmem>>, vector<1x128x128xf32>
    %307 = vector.shape_cast %306 : vector<1x128x128xf32> to vector<128x128xf32>
    %c0_246 = arith.constant 0 : index
    %c0_247 = arith.constant 0 : index
    %308 = vector.load %arg5[%c0_246, %c0_247] : memref<1x128xf32, #tpu.memory_space<vmem>>, vector<1x128xf32>
    %309 = vector.broadcast %308 : vector<1x128xf32> to vector<128x128xf32>
    %310 = arith.addf %305, %309 : vector<128x128xf32>
    %311 = arith.addf %310, %307 : vector<128x128xf32>
    %c0_248 = arith.constant 0 : index
    %c0_249 = arith.constant 0 : index
    %c0_250 = arith.constant 0 : index
    %312 = vector.load %arg6[%c0_248, %c0_249, %c0_250] : memref<1x288x128xf32, #tpu.memory_space<vmem>>, vector<1x128x128xf32>
    %313 = vector.shape_cast %312 : vector<1x128x128xf32> to vector<128x128xf32>
    %314 = vector.shape_cast %311 : vector<128x128xf32> to vector<1x128x128xf32>
    tpu.vector_store %arg6[%c0_248, %c0_249, %c0_250], %314 {strides = array<i32>} : memref<1x288x128xf32, #tpu.memory_space<vmem>>, vector<1x128x128xf32>,
    %cst_251 = arith.constant 0.000000e+00 : f32
    %315 = vector.broadcast %cst_251 : f32 to vector<128x128xf32>
    %c141 = arith.constant 141 : index
    %c0_252 = arith.constant 0 : index
    %316 = vector.load %arg8[%c141, %c0_252] : memref<352x128xbf16, #tpu.memory_space<vmem>>, vector<128x128xbf16>
    %c0_253 = arith.constant 0 : index
    %c0_254 = arith.constant 0 : index
    %c0_255 = arith.constant 0 : index
    %317 = vector.load %arg4[%c0_253, %c0_254, %c0_255] : memref<9x128x128xbf16, #tpu.memory_space<vmem>>, vector<1x128x128xbf16>
    %318 = vector.shape_cast %317 : vector<1x128x128xbf16> to vector<128x128xbf16>
    %cst_256 = arith.constant dense<0.000000e+00> : vector<128x128xf32>
    %319 = tpu.matmul %316, %318, %cst_256 {dimension_numbers = #tpu.dot_dimension_numbers<[1], [0], [0], [1], [0, 0, 1, 1], [], []>} : vector<128x128xbf16>, vector<128x128xbf16>, vector<128x128xf32> -> vector<128x128xf32>
    %320 = arith.addf %315, %319 : vector<128x128xf32>
    %c142_257 = arith.constant 142 : index
    %c0_258 = arith.constant 0 : index
    %321 = vector.load %arg8[%c142_257, %c0_258] : memref<352x128xbf16, #tpu.memory_space<vmem>>, vector<128x128xbf16>
    %c1_259 = arith.constant 1 : index
    %c0_260 = arith.constant 0 : index
    %c0_261 = arith.constant 0 : index
    %322 = vector.load %arg4[%c1_259, %c0_260, %c0_261] : memref<9x128x128xbf16, #tpu.memory_space<vmem>>, vector<1x128x128xbf16>
    %323 = vector.shape_cast %322 : vector<1x128x128xbf16> to vector<128x128xbf16>
    %cst_262 = arith.constant dense<0.000000e+00> : vector<128x128xf32>
    %324 = tpu.matmul %321, %323, %cst_262 {dimension_numbers = #tpu.dot_dimension_numbers<[1], [0], [0], [1], [0, 0, 1, 1], [], []>} : vector<128x128xbf16>, vector<128x128xbf16>, vector<128x128xf32> -> vector<128x128xf32>
    %325 = arith.addf %320, %324 : vector<128x128xf32>
    %c143_263 = arith.constant 143 : index
    %c0_264 = arith.constant 0 : index
    %326 = vector.load %arg8[%c143_263, %c0_264] : memref<352x128xbf16, #tpu.memory_space<vmem>>, vector<128x128xbf16>
    %c2_265 = arith.constant 2 : index
    %c0_266 = arith.constant 0 : index
    %c0_267 = arith.constant 0 : index
    %327 = vector.load %arg4[%c2_265, %c0_266, %c0_267] : memref<9x128x128xbf16, #tpu.memory_space<vmem>>, vector<1x128x128xbf16>
    %328 = vector.shape_cast %327 : vector<1x128x128xbf16> to vector<128x128xbf16>
    %cst_268 = arith.constant dense<0.000000e+00> : vector<128x128xf32>
    %329 = tpu.matmul %326, %328, %cst_268 {dimension_numbers = #tpu.dot_dimension_numbers<[1], [0], [0], [1], [0, 0, 1, 1], [], []>} : vector<128x128xbf16>, vector<128x128xbf16>, vector<128x128xf32> -> vector<128x128xf32>
    %330 = arith.addf %325, %329 : vector<128x128xf32>
    %c159 = arith.constant 159 : index
    %c0_269 = arith.constant 0 : index
    %331 = vector.load %arg8[%c159, %c0_269] : memref<352x128xbf16, #tpu.memory_space<vmem>>, vector<128x128xbf16>
    %c3_270 = arith.constant 3 : index
    %c0_271 = arith.constant 0 : index
    %c0_272 = arith.constant 0 : index
    %332 = vector.load %arg4[%c3_270, %c0_271, %c0_272] : memref<9x128x128xbf16, #tpu.memory_space<vmem>>, vector<1x128x128xbf16>
    %333 = vector.shape_cast %332 : vector<1x128x128xbf16> to vector<128x128xbf16>
    %cst_273 = arith.constant dense<0.000000e+00> : vector<128x128xf32>
    %334 = tpu.matmul %331, %333, %cst_273 {dimension_numbers = #tpu.dot_dimension_numbers<[1], [0], [0], [1], [0, 0, 1, 1], [], []>} : vector<128x128xbf16>, vector<128x128xbf16>, vector<128x128xf32> -> vector<128x128xf32>
    %335 = arith.addf %330, %334 : vector<128x128xf32>
    %c160_274 = arith.constant 160 : index
    %c0_275 = arith.constant 0 : index
    %336 = vector.load %arg8[%c160_274, %c0_275] : memref<352x128xbf16, #tpu.memory_space<vmem>>, vector<128x128xbf16>
    %c4_276 = arith.constant 4 : index
    %c0_277 = arith.constant 0 : index
    %c0_278 = arith.constant 0 : index
    %337 = vector.load %arg4[%c4_276, %c0_277, %c0_278] : memref<9x128x128xbf16, #tpu.memory_space<vmem>>, vector<1x128x128xbf16>
    %338 = vector.shape_cast %337 : vector<1x128x128xbf16> to vector<128x128xbf16>
    %cst_279 = arith.constant dense<0.000000e+00> : vector<128x128xf32>
    %339 = tpu.matmul %336, %338, %cst_279 {dimension_numbers = #tpu.dot_dimension_numbers<[1], [0], [0], [1], [0, 0, 1, 1], [], []>} : vector<128x128xbf16>, vector<128x128xbf16>, vector<128x128xf32> -> vector<128x128xf32>
    %340 = arith.addf %335, %339 : vector<128x128xf32>
    %c161_280 = arith.constant 161 : index
    %c0_281 = arith.constant 0 : index
    %341 = vector.load %arg8[%c161_280, %c0_281] : memref<352x128xbf16, #tpu.memory_space<vmem>>, vector<128x128xbf16>
    %c5_282 = arith.constant 5 : index
    %c0_283 = arith.constant 0 : index
    %c0_284 = arith.constant 0 : index
    %342 = vector.load %arg4[%c5_282, %c0_283, %c0_284] : memref<9x128x128xbf16, #tpu.memory_space<vmem>>, vector<1x128x128xbf16>
    %343 = vector.shape_cast %342 : vector<1x128x128xbf16> to vector<128x128xbf16>
    %cst_285 = arith.constant dense<0.000000e+00> : vector<128x128xf32>
    %344 = tpu.matmul %341, %343, %cst_285 {dimension_numbers = #tpu.dot_dimension_numbers<[1], [0], [0], [1], [0, 0, 1, 1], [], []>} : vector<128x128xbf16>, vector<128x128xbf16>, vector<128x128xf32> -> vector<128x128xf32>
    %345 = arith.addf %340, %344 : vector<128x128xf32>
    %c177 = arith.constant 177 : index
    %c0_286 = arith.constant 0 : index
    %346 = vector.load %arg8[%c177, %c0_286] : memref<352x128xbf16, #tpu.memory_space<vmem>>, vector<128x128xbf16>
    %c6_287 = arith.constant 6 : index
    %c0_288 = arith.constant 0 : index
    %c0_289 = arith.constant 0 : index
    %347 = vector.load %arg4[%c6_287, %c0_288, %c0_289] : memref<9x128x128xbf16, #tpu.memory_space<vmem>>, vector<1x128x128xbf16>
    %348 = vector.shape_cast %347 : vector<1x128x128xbf16> to vector<128x128xbf16>
    %cst_290 = arith.constant dense<0.000000e+00> : vector<128x128xf32>
    %349 = tpu.matmul %346, %348, %cst_290 {dimension_numbers = #tpu.dot_dimension_numbers<[1], [0], [0], [1], [0, 0, 1, 1], [], []>} : vector<128x128xbf16>, vector<128x128xbf16>, vector<128x128xf32> -> vector<128x128xf32>
    %350 = arith.addf %345, %349 : vector<128x128xf32>
    %c178_291 = arith.constant 178 : index
    %c0_292 = arith.constant 0 : index
    %351 = vector.load %arg8[%c178_291, %c0_292] : memref<352x128xbf16, #tpu.memory_space<vmem>>, vector<128x128xbf16>
    %c7_293 = arith.constant 7 : index
    %c0_294 = arith.constant 0 : index
    %c0_295 = arith.constant 0 : index
    %352 = vector.load %arg4[%c7_293, %c0_294, %c0_295] : memref<9x128x128xbf16, #tpu.memory_space<vmem>>, vector<1x128x128xbf16>
    %353 = vector.shape_cast %352 : vector<1x128x128xbf16> to vector<128x128xbf16>
    %cst_296 = arith.constant dense<0.000000e+00> : vector<128x128xf32>
    %354 = tpu.matmul %351, %353, %cst_296 {dimension_numbers = #tpu.dot_dimension_numbers<[1], [0], [0], [1], [0, 0, 1, 1], [], []>} : vector<128x128xbf16>, vector<128x128xbf16>, vector<128x128xf32> -> vector<128x128xf32>
    %355 = arith.addf %350, %354 : vector<128x128xf32>
    %c179_297 = arith.constant 179 : index
    %c0_298 = arith.constant 0 : index
    %356 = vector.load %arg8[%c179_297, %c0_298] : memref<352x128xbf16, #tpu.memory_space<vmem>>, vector<128x128xbf16>
    %c8_299 = arith.constant 8 : index
    %c0_300 = arith.constant 0 : index
    %c0_301 = arith.constant 0 : index
    %357 = vector.load %arg4[%c8_299, %c0_300, %c0_301] : memref<9x128x128xbf16, #tpu.memory_space<vmem>>, vector<1x128x128xbf16>
    %358 = vector.shape_cast %357 : vector<1x128x128xbf16> to vector<128x128xbf16>
    %cst_302 = arith.constant dense<0.000000e+00> : vector<128x128xf32>
    %359 = tpu.matmul %356, %358, %cst_302 {dimension_numbers = #tpu.dot_dimension_numbers<[1], [0], [0], [1], [0, 0, 1, 1], [], []>} : vector<128x128xbf16>, vector<128x128xbf16>, vector<128x128xf32> -> vector<128x128xf32>
    %360 = arith.addf %355, %359 : vector<128x128xf32>
    %c0_303 = arith.constant 0 : index
    %c129 = arith.constant 129 : index
    %c0_304 = arith.constant 0 : index
    %361 = vector.load %arg1[%c0_303, %c129, %c0_304] : memref<1x296x128xf32, #tpu.memory_space<vmem>>, vector<1x128x128xf32>
    %362 = vector.shape_cast %361 : vector<1x128x128xf32> to vector<128x128xf32>
    %c0_305 = arith.constant 0 : index
    %c0_306 = arith.constant 0 : index
    %363 = vector.load %arg5[%c0_305, %c0_306] : memref<1x128xf32, #tpu.memory_space<vmem>>, vector<1x128xf32>
    %364 = vector.broadcast %363 : vector<1x128xf32> to vector<128x128xf32>
    %365 = arith.addf %360, %364 : vector<128x128xf32>
    %366 = arith.addf %365, %362 : vector<128x128xf32>
    %c0_307 = arith.constant 0 : index
    %c128_308 = arith.constant 128 : index
    %c0_309 = arith.constant 0 : index
    %367 = vector.load %arg6[%c0_307, %c128_308, %c0_309] : memref<1x288x128xf32, #tpu.memory_space<vmem>>, vector<1x128x128xf32>
    %368 = vector.shape_cast %367 : vector<1x128x128xf32> to vector<128x128xf32>
    %369 = vector.shape_cast %366 : vector<128x128xf32> to vector<1x128x128xf32>
    tpu.vector_store %arg6[%c0_307, %c128_308, %c0_309], %369 {strides = array<i32>} : memref<1x288x128xf32, #tpu.memory_space<vmem>>, vector<1x128x128xf32>,
    %cst_310 = arith.constant 0.000000e+00 : f32
    %370 = vector.broadcast %cst_310 : f32 to vector<32x128xf32>
    %c269 = arith.constant 269 : index
    %c0_311 = arith.constant 0 : index
    %371 = vector.load %arg8[%c269, %c0_311] : memref<352x128xbf16, #tpu.memory_space<vmem>>, vector<32x128xbf16>
    %c0_312 = arith.constant 0 : index
    %c0_313 = arith.constant 0 : index
    %c0_314 = arith.constant 0 : index
    %372 = vector.load %arg4[%c0_312, %c0_313, %c0_314] : memref<9x128x128xbf16, #tpu.memory_space<vmem>>, vector<1x128x128xbf16>
    %373 = vector.shape_cast %372 : vector<1x128x128xbf16> to vector<128x128xbf16>
    %cst_315 = arith.constant dense<0.000000e+00> : vector<32x128xf32>
    %374 = tpu.matmul %371, %373, %cst_315 {dimension_numbers = #tpu.dot_dimension_numbers<[1], [0], [0], [1], [0, 0, 1, 1], [], []>} : vector<32x128xbf16>, vector<128x128xbf16>, vector<32x128xf32> -> vector<32x128xf32>
    %375 = arith.addf %370, %374 : vector<32x128xf32>
    %c270_316 = arith.constant 270 : index
    %c0_317 = arith.constant 0 : index
    %376 = vector.load %arg8[%c270_316, %c0_317] : memref<352x128xbf16, #tpu.memory_space<vmem>>, vector<32x128xbf16>
    %c1_318 = arith.constant 1 : index
    %c0_319 = arith.constant 0 : index
    %c0_320 = arith.constant 0 : index
    %377 = vector.load %arg4[%c1_318, %c0_319, %c0_320] : memref<9x128x128xbf16, #tpu.memory_space<vmem>>, vector<1x128x128xbf16>
    %378 = vector.shape_cast %377 : vector<1x128x128xbf16> to vector<128x128xbf16>
    %cst_321 = arith.constant dense<0.000000e+00> : vector<32x128xf32>
    %379 = tpu.matmul %376, %378, %cst_321 {dimension_numbers = #tpu.dot_dimension_numbers<[1], [0], [0], [1], [0, 0, 1, 1], [], []>} : vector<32x128xbf16>, vector<128x128xbf16>, vector<32x128xf32> -> vector<32x128xf32>
    %380 = arith.addf %375, %379 : vector<32x128xf32>
    %c271_322 = arith.constant 271 : index
    %c0_323 = arith.constant 0 : index
    %381 = vector.load %arg8[%c271_322, %c0_323] : memref<352x128xbf16, #tpu.memory_space<vmem>>, vector<32x128xbf16>
    %c2_324 = arith.constant 2 : index
    %c0_325 = arith.constant 0 : index
    %c0_326 = arith.constant 0 : index
    %382 = vector.load %arg4[%c2_324, %c0_325, %c0_326] : memref<9x128x128xbf16, #tpu.memory_space<vmem>>, vector<1x128x128xbf16>
    %383 = vector.shape_cast %382 : vector<1x128x128xbf16> to vector<128x128xbf16>
    %cst_327 = arith.constant dense<0.000000e+00> : vector<32x128xf32>
    %384 = tpu.matmul %381, %383, %cst_327 {dimension_numbers = #tpu.dot_dimension_numbers<[1], [0], [0], [1], [0, 0, 1, 1], [], []>} : vector<32x128xbf16>, vector<128x128xbf16>, vector<32x128xf32> -> vector<32x128xf32>
    %385 = arith.addf %380, %384 : vector<32x128xf32>
    %c287 = arith.constant 287 : index
    %c0_328 = arith.constant 0 : index
    %386 = vector.load %arg8[%c287, %c0_328] : memref<352x128xbf16, #tpu.memory_space<vmem>>, vector<32x128xbf16>
    %c3_329 = arith.constant 3 : index
    %c0_330 = arith.constant 0 : index
    %c0_331 = arith.constant 0 : index
    %387 = vector.load %arg4[%c3_329, %c0_330, %c0_331] : memref<9x128x128xbf16, #tpu.memory_space<vmem>>, vector<1x128x128xbf16>
    %388 = vector.shape_cast %387 : vector<1x128x128xbf16> to vector<128x128xbf16>
    %cst_332 = arith.constant dense<0.000000e+00> : vector<32x128xf32>
    %389 = tpu.matmul %386, %388, %cst_332 {dimension_numbers = #tpu.dot_dimension_numbers<[1], [0], [0], [1], [0, 0, 1, 1], [], []>} : vector<32x128xbf16>, vector<128x128xbf16>, vector<32x128xf32> -> vector<32x128xf32>
    %390 = arith.addf %385, %389 : vector<32x128xf32>
    %c288_333 = arith.constant 288 : index
    %c0_334 = arith.constant 0 : index
    %391 = vector.load %arg8[%c288_333, %c0_334] : memref<352x128xbf16, #tpu.memory_space<vmem>>, vector<32x128xbf16>
    %c4_335 = arith.constant 4 : index
    %c0_336 = arith.constant 0 : index
    %c0_337 = arith.constant 0 : index
    %392 = vector.load %arg4[%c4_335, %c0_336, %c0_337] : memref<9x128x128xbf16, #tpu.memory_space<vmem>>, vector<1x128x128xbf16>
    %393 = vector.shape_cast %392 : vector<1x128x128xbf16> to vector<128x128xbf16>
    %cst_338 = arith.constant dense<0.000000e+00> : vector<32x128xf32>
    %394 = tpu.matmul %391, %393, %cst_338 {dimension_numbers = #tpu.dot_dimension_numbers<[1], [0], [0], [1], [0, 0, 1, 1], [], []>} : vector<32x128xbf16>, vector<128x128xbf16>, vector<32x128xf32> -> vector<32x128xf32>
    %395 = arith.addf %390, %394 : vector<32x128xf32>
    %c289_339 = arith.constant 289 : index
    %c0_340 = arith.constant 0 : index
    %396 = vector.load %arg8[%c289_339, %c0_340] : memref<352x128xbf16, #tpu.memory_space<vmem>>, vector<32x128xbf16>
    %c5_341 = arith.constant 5 : index
    %c0_342 = arith.constant 0 : index
    %c0_343 = arith.constant 0 : index
    %397 = vector.load %arg4[%c5_341, %c0_342, %c0_343] : memref<9x128x128xbf16, #tpu.memory_space<vmem>>, vector<1x128x128xbf16>
    %398 = vector.shape_cast %397 : vector<1x128x128xbf16> to vector<128x128xbf16>
    %cst_344 = arith.constant dense<0.000000e+00> : vector<32x128xf32>
    %399 = tpu.matmul %396, %398, %cst_344 {dimension_numbers = #tpu.dot_dimension_numbers<[1], [0], [0], [1], [0, 0, 1, 1], [], []>} : vector<32x128xbf16>, vector<128x128xbf16>, vector<32x128xf32> -> vector<32x128xf32>
    %400 = arith.addf %395, %399 : vector<32x128xf32>
    %c305 = arith.constant 305 : index
    %c0_345 = arith.constant 0 : index
    %401 = vector.load %arg8[%c305, %c0_345] : memref<352x128xbf16, #tpu.memory_space<vmem>>, vector<32x128xbf16>
    %c6_346 = arith.constant 6 : index
    %c0_347 = arith.constant 0 : index
    %c0_348 = arith.constant 0 : index
    %402 = vector.load %arg4[%c6_346, %c0_347, %c0_348] : memref<9x128x128xbf16, #tpu.memory_space<vmem>>, vector<1x128x128xbf16>
    %403 = vector.shape_cast %402 : vector<1x128x128xbf16> to vector<128x128xbf16>
    %cst_349 = arith.constant dense<0.000000e+00> : vector<32x128xf32>
    %404 = tpu.matmul %401, %403, %cst_349 {dimension_numbers = #tpu.dot_dimension_numbers<[1], [0], [0], [1], [0, 0, 1, 1], [], []>} : vector<32x128xbf16>, vector<128x128xbf16>, vector<32x128xf32> -> vector<32x128xf32>
    %405 = arith.addf %400, %404 : vector<32x128xf32>
    %c306_350 = arith.constant 306 : index
    %c0_351 = arith.constant 0 : index
    %406 = vector.load %arg8[%c306_350, %c0_351] : memref<352x128xbf16, #tpu.memory_space<vmem>>, vector<32x128xbf16>
    %c7_352 = arith.constant 7 : index
    %c0_353 = arith.constant 0 : index
    %c0_354 = arith.constant 0 : index
    %407 = vector.load %arg4[%c7_352, %c0_353, %c0_354] : memref<9x128x128xbf16, #tpu.memory_space<vmem>>, vector<1x128x128xbf16>
    %408 = vector.shape_cast %407 : vector<1x128x128xbf16> to vector<128x128xbf16>
    %cst_355 = arith.constant dense<0.000000e+00> : vector<32x128xf32>
    %409 = tpu.matmul %406, %408, %cst_355 {dimension_numbers = #tpu.dot_dimension_numbers<[1], [0], [0], [1], [0, 0, 1, 1], [], []>} : vector<32x128xbf16>, vector<128x128xbf16>, vector<32x128xf32> -> vector<32x128xf32>
    %410 = arith.addf %405, %409 : vector<32x128xf32>
    %c307_356 = arith.constant 307 : index
    %c0_357 = arith.constant 0 : index
    %411 = vector.load %arg8[%c307_356, %c0_357] : memref<352x128xbf16, #tpu.memory_space<vmem>>, vector<32x128xbf16>
    %c8_358 = arith.constant 8 : index
    %c0_359 = arith.constant 0 : index
    %c0_360 = arith.constant 0 : index
    %412 = vector.load %arg4[%c8_358, %c0_359, %c0_360] : memref<9x128x128xbf16, #tpu.memory_space<vmem>>, vector<1x128x128xbf16>
    %413 = vector.shape_cast %412 : vector<1x128x128xbf16> to vector<128x128xbf16>
    %cst_361 = arith.constant dense<0.000000e+00> : vector<32x128xf32>
    %414 = tpu.matmul %411, %413, %cst_361 {dimension_numbers = #tpu.dot_dimension_numbers<[1], [0], [0], [1], [0, 0, 1, 1], [], []>} : vector<32x128xbf16>, vector<128x128xbf16>, vector<32x128xf32> -> vector<32x128xf32>
    %415 = arith.addf %410, %414 : vector<32x128xf32>
    %c0_362 = arith.constant 0 : index
    %c257 = arith.constant 257 : index
    %c0_363 = arith.constant 0 : index
    %416 = vector.load %arg1[%c0_362, %c257, %c0_363] : memref<1x296x128xf32, #tpu.memory_space<vmem>>, vector<1x32x128xf32>
    %417 = vector.shape_cast %416 : vector<1x32x128xf32> to vector<32x128xf32>
    %c0_364 = arith.constant 0 : index
    %c0_365 = arith.constant 0 : index
    %418 = vector.load %arg5[%c0_364, %c0_365] : memref<1x128xf32, #tpu.memory_space<vmem>>, vector<1x128xf32>
    %419 = vector.broadcast %418 : vector<1x128xf32> to vector<32x128xf32>
    %420 = arith.addf %415, %419 : vector<32x128xf32>
    %421 = arith.addf %420, %417 : vector<32x128xf32>
    %c0_366 = arith.constant 0 : index
    %c256_367 = arith.constant 256 : index
    %c0_368 = arith.constant 0 : index
    %422 = vector.load %arg6[%c0_366, %c256_367, %c0_368] : memref<1x288x128xf32, #tpu.memory_space<vmem>>, vector<1x32x128xf32>
    %423 = vector.shape_cast %422 : vector<1x32x128xf32> to vector<32x128xf32>
    %424 = vector.shape_cast %421 : vector<32x128xf32> to vector<1x32x128xf32>
    tpu.vector_store %arg6[%c0_366, %c256_367, %c0_368], %424 {strides = array<i32>} : memref<1x288x128xf32, #tpu.memory_space<vmem>>, vector<1x32x128xf32>,
    return
  }
  func.func @transform_0(%arg0: i32) -> (i32, i32, i32) {
    %c0_i32 = arith.constant 0 : i32
    %c0_i32_0 = arith.constant 0 : i32
    %c0_i32_1 = arith.constant 0 : i32
    return %arg0, %c0_i32, %c0_i32_0 : i32, i32, i32
  }
  func.func @transform_1(%arg0: i32) -> (i32, i32, i32) {
    %c0_i32 = arith.constant 0 : i32
    %c0_i32_0 = arith.constant 0 : i32
    %c0_i32_1 = arith.constant 0 : i32
    %c0_i32_2 = arith.constant 0 : i32
    return %c0_i32, %c0_i32_0, %c0_i32_1 : i32, i32, i32
  }
  func.func @transform_2(%arg0: i32) -> (i32, i32) {
    %c0_i32 = arith.constant 0 : i32
    %c0_i32_0 = arith.constant 0 : i32
    %c0_i32_1 = arith.constant 0 : i32
    return %c0_i32, %c0_i32_0 : i32, i32
  }
  func.func @transform_3(%arg0: i32) -> (i32, i32, i32) {
    %c0_i32 = arith.constant 0 : i32
    %c0_i32_0 = arith.constant 0 : i32
    %c0_i32_1 = arith.constant 0 : i32
    %c0_i32_2 = arith.constant 0 : i32
    return %c0_i32, %c0_i32_0, %c0_i32_1 : i32, i32, i32
  }
  func.func @transform_4(%arg0: i32) -> (i32, i32) {
    %c0_i32 = arith.constant 0 : i32
    %c0_i32_0 = arith.constant 0 : i32
    %c0_i32_1 = arith.constant 0 : i32
    return %c0_i32, %c0_i32_0 : i32, i32
  }
  func.func @transform_5(%arg0: i32) -> (i32, i32, i32) {
    %c0_i32 = arith.constant 0 : i32
    %c0_i32_0 = arith.constant 0 : i32
    %c0_i32_1 = arith.constant 0 : i32
    return %arg0, %c0_i32, %c0_i32_0 : i32, i32, i32
  }
}

</mosaic_0001>

<llo_original>
// kernel: tile.13
$region0: #{tile.13}
  #allocation0 [shape = 's32[1]{0}', space=sflag, size = 0x4, scoped, tag = 'scoped memory for tile.13']
  %s0 = inlined_call_operand.vmem [shape: f32[32], index: 0, kind: input, shape index: {}]
  %s1 = inlined_call_operand.vmem [shape: f32[4,32], index: 1, kind: output, shape index: {}]
  // Predicated region
  $region2: #{tile.13} parent=0 // pred_check
    _
  $region3: #{tile.13} parent=0 // pred_check_branch
    %3 = sbr.rel (0) target = $region5
  $region4: #{tile.13} parent=0 // pred_region
    _
  $region5: #{tile.13} parent=0 // pred_fallthru
    _
  %v4 = vld [vmem:[%s0] ss:$0 sm:$0xff]
  %5 = vst [vmem:[%s1] sm:$0xf] %v4

// kernel: tile.14
$region0: #{tile.14}
  %s0 = inlined_call_operand.vmem [shape: f32[4,32], index: 0, kind: input, shape index: {}]
  %s1 = inlined_call_operand.vmem [shape: f32[1,128], index: 1, kind: output, shape index: {}]
  $region1: #{tile.14} parent=0
    #allocation0 [shape = 'u8[4096]{0}', space=vmem, size = 0x1000, scoped, tag = 'scoped mem for output reshape']
    #allocation1 [shape = 'u8[4096]{0}', space=vmem, size = 0x1000, scoped, tag = 'scoped mem for input reshape']
    %s3 = sshllo.u32 0, 4
    %v4 = vld [vmem:[%s0] sm:%s3]
    %5 = vst [vmem:[#allocation1] sm:%s3] %v4
    %v6 = vld [vmem:[#allocation1] sm:$0x1]
    %vm7 = vcmask 261120
    %8 = vst.msk [vmem:[#allocation0] sm:$0x1] %vm7, %v6
    %s9 = scalar_lea.vmem [#allocation1], 3
    %v10 = vld [vmem:[%s9] sm:$0x1]
    %11 = vrot.lane.b32.xlu0 %v10, 96
    %v12 = vpop.permute.xlu0 %11
    %vm13 = vcmask 1048320
    %14 = vst.msk [vmem:[#allocation0] sm:$0x1] %vm13, %v12
    %s15 = scalar_lea.vmem [#allocation1], 2
    %v16 = vld [vmem:[%s15] sm:$0x1]
    %17 = vrot.lane.b32.xlu0 %v16, 64
    %v18 = vpop.permute.xlu0 %17
    %vm19 = vcmask 785920
    %20 = vst.msk [vmem:[#allocation0] sm:$0x1] %vm19, %v18
    %s21 = scalar_lea.vmem [#allocation1], 1
    %v22 = vld [vmem:[%s21] sm:$0x1]
    %23 = vrot.lane.b32.xlu0 %v22, 32
    %v24 = vpop.permute.xlu0 %23
    %vm25 = vcmask 523520
    %26 = vst.msk [vmem:[#allocation0] sm:$0x1] %vm25, %v24
    %s28 = sshllo.u32 0, 1
    %v30 = vld [vmem:[#allocation0] sm:%s28]
    %s31 = sshllo.u32 0, 1
    %32 = vst [vmem:[%s1] sm:%s31] %v30

// kernel: residual_block.1
$region0: #{residual_block.1}
  #allocation0 [shape = 'u32[]', space=smem, size = 0x4, offset = 0x4, fixed_abs, tag = 'smem constant byte address 0x4 - core index']
  #allocation1 [shape = 'u32[144,128]{1,0:T(1,128)}', space=vmem, size = 0x12000, scoped, tag = 'internal scratch']
  #allocation2 [shape = 'bf16[352,128]{1,0:T(16,128)(2,1)}', space=vmem, size = 0x16000, scoped, tag = 'scratch operand']
  #allocation3 [shape = 'bf16[352,128]{1,0:T(16,128)(2,1)}', space=vmem, size = 0x16000, scoped, tag = 'scratch operand']
  %s0 = inlined_call_operand.vmem [shape: f32[2,296,128], index: 0, kind: input, shape index: {}]
  %s1 = inlined_call_operand.vmem [shape: bf16[9,128,128], index: 1, kind: input, shape index: {}]
  %s2 = inlined_call_operand.vmem [shape: f32[1,128], index: 2, kind: input, shape index: {}]
  %s3 = inlined_call_operand.vmem [shape: bf16[9,128,128], index: 3, kind: input, shape index: {}]
  %s4 = inlined_call_operand.vmem [shape: f32[1,128], index: 4, kind: input, shape index: {}]
  %s5 = inlined_call_operand.vmem [shape: f32[2,288,128], index: 5, kind: output, shape index: {}]
  %s6 = sld [smem:[#allocation0]]
  $region53: #{residual_block.1} parent=0
    _
  %s8 = ssub.s32 1, %s6
  %s9 = scalar_select 0, %s8, %s6
  loop: start=0, step=1, limit=4
  $region2: #{residual_block.1} parent=0 // loop_pre_header
    _
  $region3: #{residual_block.1} parent=0 // loop_header
    %s11 = sphi 0, %s15
    %p12 = scmp.ge.s32.totalorder %s11, 4
    %s21 = sphi 0, %s23
    %s24 = sphi 0, %s21
    %s25 = sphi 0, %s24
    %s41 = sphi 0, %s25
    %s45 = sphi 0, %s45
    %s47 = sphi 0, %s45
    %s48 = sphi 0, %s47
    %s62 = sphi 0, %s48
    %s66 = sphi 0, %s66
    %s68 = sphi 0, %s66
    %s69 = sphi 0, %s68
    %s83 = sphi 0, %s69
    %s87 = sphi 0, %s87
    %s89 = sphi 0, %s87
    %s90 = sphi 0, %s89
    %s104 = sphi 0, %s90
    %s108 = sphi 0, %s108
    %s110 = sphi 0, %s108
    %s111 = sphi 0, %s110
    %s125 = sphi 0, %s111
    %s131 = sphi 0, %s133
    %s134 = sphi 0, %s131
    %s135 = sphi 0, %s134
    %s151 = sphi 0, %s135
  $region4: #{residual_block.1} parent=0 // loop_header_branch
    %14 = sbr.rel (%p12) target = $region8
  $region5: #{residual_block.1} parent=0 // loop_body
    %s16 = ssub.s32 %s11, 1
    %s17 = ssub.s32 %s11, 2
    %s18 = sadd.s32 %s11, 1
    %s19 = ssub.s32 %s11, %s18
    %p20 = scmp.eq.s32.totalorder %s19, 0
    %s22 = sadd.s32 %s21, 1
    %s23 = scalar_select %p20, %s21, %s22
    %p26 = pneg %p20
    %p27 = scmp.eq.s32.totalorder %s11, 1
    %p28 = por %p26, %p27
    %p29 = scmp.ne.s32.totalorder %s21, %s24
    %p30 = scmp.eq.s32.totalorder %s11, 0
    %p31 = por %p29, %p30
    %p32 = scmp.ne.s32.totalorder %s21, %s24
    %p33 = scmp.eq.s32.totalorder %s16, 1
    %p34 = por %p32, %p33
    %p35 = scmp.ne.s32.totalorder %s24, %s25
    %p36 = scmp.eq.s32.totalorder %s16, 0
    %p37 = por %p35, %p36
    %p38 = scmp.ne.s32.totalorder %s24, %s25
    %p39 = scmp.eq.s32.totalorder %s17, 1
    %p40 = por %p38, %p39
    %p42 = scmp.ne.s32.totalorder %s25, %s41
    %p43 = scmp.eq.s32.totalorder %s17, 0
    %p44 = por %p42, %p43
    %s46 = sadd.s32 %s45, 1
    %p49 = scmp.eq.s32.totalorder %s11, 1
    %p50 = scmp.ne.s32.totalorder %s45, %s47
    %p51 = scmp.eq.s32.totalorder %s11, 0
    %p52 = por %p50, %p51
    %p53 = scmp.ne.s32.totalorder %s45, %s47
    %p54 = scmp.eq.s32.totalorder %s16, 1
    %p55 = por %p53, %p54
    %p56 = scmp.ne.s32.totalorder %s47, %s48
    %p57 = scmp.eq.s32.totalorder %s16, 0
    %p58 = por %p56, %p57
    %p59 = scmp.ne.s32.totalorder %s47, %s48
    %p60 = scmp.eq.s32.totalorder %s17, 1
    %p61 = por %p59, %p60
    %p63 = scmp.ne.s32.totalorder %s48, %s62
    %p64 = scmp.eq.s32.totalorder %s17, 0
    %p65 = por %p63, %p64
    %s67 = sadd.s32 %s66, 1
    %p70 = scmp.eq.s32.totalorder %s11, 1
    %p71 = scmp.ne.s32.totalorder %s66, %s68
    %p72 = scmp.eq.s32.totalorder %s11, 0
    %p73 = por %p71, %p72
    %p74 = scmp.ne.s32.totalorder %s66, %s68
    %p75 = scmp.eq.s32.totalorder %s16, 1
    %p76 = por %p74, %p75
    %p77 = scmp.ne.s32.totalorder %s68, %s69
    %p78 = scmp.eq.s32.totalorder %s16, 0
    %p79 = por %p77, %p78
    %p80 = scmp.ne.s32.totalorder %s68, %s69
    %p81 = scmp.eq.s32.totalorder %s17, 1
    %p82 = por %p80, %p81
    %p84 = scmp.ne.s32.totalorder %s69, %s83
    %p85 = scmp.eq.s32.totalorder %s17, 0
    %p86 = por %p84, %p85
    %s88 = sadd.s32 %s87, 1
    %p91 = scmp.eq.s32.totalorder %s11, 1
    %p92 = scmp.ne.s32.totalorder %s87, %s89
    %p93 = scmp.eq.s32.totalorder %s11, 0
    %p94 = por %p92, %p93
    %p95 = scmp.ne.s32.totalorder %s87, %s89
    %p96 = scmp.eq.s32.totalorder %s16, 1
    %p97 = por %p95, %p96
    %p98 = scmp.ne.s32.totalorder %s89, %s90
    %p99 = scmp.eq.s32.totalorder %s16, 0
    %p100 = por %p98, %p99
    %p101 = scmp.ne.s32.totalorder %s89, %s90
    %p102 = scmp.eq.s32.totalorder %s17, 1
    %p103 = por %p101, %p102
    %p105 = scmp.ne.s32.totalorder %s90, %s104
    %p106 = scmp.eq.s32.totalorder %s17, 0
    %p107 = por %p105, %p106
    %s109 = sadd.s32 %s108, 1
    %p112 = scmp.eq.s32.totalorder %s11, 1
    %p113 = scmp.ne.s32.totalorder %s108, %s110
    %p114 = scmp.eq.s32.totalorder %s11, 0
    %p115 = por %p113, %p114
    %p116 = scmp.ne.s32.totalorder %s108, %s110
    %p117 = scmp.eq.s32.totalorder %s16, 1
    %p118 = por %p116, %p117
    %p119 = scmp.ne.s32.totalorder %s110, %s111
    %p120 = scmp.eq.s32.totalorder %s16, 0
    %p121 = por %p119, %p120
    %p122 = scmp.ne.s32.totalorder %s110, %s111
    %p123 = scmp.eq.s32.totalorder %s17, 1
    %p124 = por %p122, %p123
    %p126 = scmp.ne.s32.totalorder %s111, %s125
    %p127 = scmp.eq.s32.totalorder %s17, 0
    %p128 = por %p126, %p127
    %s129 = ssub.s32 %s11, %s18
    %p130 = scmp.eq.s32.totalorder %s129, 0
    %s132 = sadd.s32 %s131, 1
    %s133 = scalar_select %p130, %s131, %s132
    %p136 = pneg %p130
    %p137 = scmp.eq.s32.totalorder %s11, 1
    %p138 = por %p136, %p137
    %p139 = scmp.ne.s32.totalorder %s131, %s134
    %p140 = scmp.eq.s32.totalorder %s11, 0
    %p141 = por %p139, %p140
    %p142 = scmp.ne.s32.totalorder %s131, %s134
    %p143 = scmp.eq.s32.totalorder %s16, 1
    %p144 = por %p142, %p143
    %p145 = scmp.ne.s32.totalorder %s134, %s135
    %p146 = scmp.eq.s32.totalorder %s16, 0
    %p147 = por %p145, %p146
    %p148 = scmp.ne.s32.totalorder %s134, %s135
    %p149 = scmp.eq.s32.totalorder %s17, 1
    %p150 = por %p148, %p149
    %p152 = scmp.ne.s32.totalorder %s135, %s151
    %p153 = scmp.eq.s32.totalorder %s17, 0
    %p154 = por %p152, %p153
    %p155 = scmp.le.s32.totalorder 1, %s11
    %p156 = scmp.lt.s32.totalorder %s11, 3
    %p157 = pnand %p155, %p156
    %p158 = pneg %p157
    // Predicated region
    $region9: #{residual_block.1} parent=5 // pred_check
      _
    $region10: #{residual_block.1} parent=5 // pred_check_branch
      %160 = sbr.rel (%p157) target = $region12
    $region11: #{residual_block.1} parent=5 // pred_region
      %s161 = ssub.s32 %s11, 1
      // Predicated region
      $region13: #{residual_block.1} parent=11 // pred_check
        %p162 = pneg %p58
      $region14: #{residual_block.1} parent=11 // pred_check_branch
        %164 = sbr.rel (%p162) target = $region16
      $region15: #{residual_block.1} parent=11 // pred_region
        _
      $region16: #{residual_block.1} parent=11 // pred_fallthru
        _
      // Predicated region
      $region17: #{residual_block.1} parent=11 // pred_check
        %p165 = pneg %p79
      $region18: #{residual_block.1} parent=11 // pred_check_branch
        %167 = sbr.rel (%p165) target = $region20
      $region19: #{residual_block.1} parent=11 // pred_region
        _
      $region20: #{residual_block.1} parent=11 // pred_fallthru
        _
      // Predicated region
      $region21: #{residual_block.1} parent=11 // pred_check
        %p168 = pneg %p100
      $region22: #{residual_block.1} parent=11 // pred_check_branch
        %170 = sbr.rel (%p168) target = $region24
      $region23: #{residual_block.1} parent=11 // pred_region
        _
      $region24: #{residual_block.1} parent=11 // pred_fallthru
        _
      // Predicated region
      $region25: #{residual_block.1} parent=11 // pred_check
        %p171 = pneg %p121
      $region26: #{residual_block.1} parent=11 // pred_check_branch
        %173 = sbr.rel (%p171) target = $region28
      $region27: #{residual_block.1} parent=11 // pred_region
        _
      $region28: #{residual_block.1} parent=11 // pred_fallthru
        _
    $region12: #{residual_block.1} parent=5 // pred_fallthru
      _
    %p174 = scmp.lt.s32.totalorder %s11, 2
    // Predicated region
    $region29: #{residual_block.1} parent=5 // pred_check
      %p175 = pneg %p174
    $region30: #{residual_block.1} parent=5 // pred_check_branch
      %177 = sbr.rel (%p175) target = $region32
    $region31: #{residual_block.1} parent=5 // pred_region
      // Predicated region
      $region33: #{residual_block.1} parent=31 // pred_check
        %p178 = pneg %p31
      $region34: #{residual_block.1} parent=31 // pred_check_branch
        %180 = sbr.rel (%p178) target = $region36
      $region35: #{residual_block.1} parent=31 // pred_region
        %p181 = scmp.lt.s32.totalorder %s11, 1
        %s182 = scalar_select %p181, %s11, 1
        %s183 = smul.addr %s182, 37
        %s184 = smul.addr %s183, 8
        %s185 = scalar_lea.vmem %s0, %s184
      $region36: #{residual_block.1} parent=31 // pred_fallthru
        _
    $region32: #{residual_block.1} parent=5 // pred_fallthru
      _
    %p186 = scmp.le.s32.totalorder 1, %s11
    %p187 = scmp.lt.s32.totalorder %s11, 3
    %p188 = pnand %p186, %p187
    %p189 = pneg %p188
    // Predicated region
    $region37: #{residual_block.1} parent=5 // pred_check
      _
    $region38: #{residual_block.1} parent=5 // pred_check_branch
      %191 = sbr.rel (%p188) target = $region40
    $region39: #{residual_block.1} parent=5 // pred_region
      %s192 = ssub.s32 %s11, 1
      %p193 = scmp.lt.s32.totalorder %s16, 1
      %s194 = scalar_select %p193, %s16, 1
      %s195 = smul.addr %s194, 37
      %s196 = smul.addr %s195, 8
      %s197 = scalar_lea.vmem %s0, %s196
      %p198 = pneg %p37
      %p199 = pneg %p34
      %p200 = pneg %p58
      %p201 = pneg %p55
      %p202 = pneg %p79
      %p203 = pneg %p76
      %p204 = pneg %p100
      %p205 = pneg %p97
      %p206 = pneg %p121
      %p207 = pneg %p118
      %p208 = pneg %p147
      %p209 = pneg %p144
      %p210 = scmp.lt.s32.totalorder %s16, 1
      %s211 = scalar_select %p210, %s16, 1
      %s212 = smul.addr %s211, 36
      %s213 = smul.addr %s212, 8
      %s214 = scalar_lea.vmem %s5, %s213
      %p215 = scmp.lt.s32.totalorder %s16, 1
      %s216 = scalar_select %p215, %s16, 1
      %s217 = smul.addr %s216, 37
      %s218 = smul.addr %s217, 8
      %s219 = scalar_lea.vmem %s0, %s218
      %p220 = scmp.lt.s32.totalorder %s16, 1
      %s221 = scalar_select %p220, %s16, 1
      %s222 = smul.addr %s221, 36
      %s223 = smul.addr %s222, 8
      %s224 = scalar_lea.vmem %s5, %s223
      %226 = vst [vmem:[#allocation2] sm:$0xff] 0
      %227 = vst [vmem:[#allocation2 + $0x8] sm:$0xff] 0
      %228 = vst [vmem:[#allocation2 + $0xa0] sm:$0xff] 0
      %229 = vst [vmem:[#allocation2 + $0xa8] sm:$0xff] 0
      %230 = vst [vmem:[#allocation3] sm:$0xff] 0
      %231 = vst [vmem:[#allocation3 + $0x8] sm:$0xff] 0
      %232 = vst [vmem:[#allocation3 + $0xa0] sm:$0xff] 0
      %233 = vst [vmem:[#allocation3 + $0xa8] sm:$0xff] 0
      %v234 = vld [vmem:[%s219] sm:$0xff]
      %v235 = vld [vmem:[%s219 + $0x8] sm:$0xff]
      %v236 = vld [vmem:[%s219 + $0x10] sm:$0xff]
      %v237 = vld [vmem:[%s219 + $0x18] sm:$0xff]
      %v238 = vld [vmem:[%s219 + $0x20] sm:$0xff]
      %v239 = vld [vmem:[%s219 + $0x28] sm:$0xff]
      %v240 = vld [vmem:[%s219 + $0x30] sm:$0xff]
      %v241 = vld [vmem:[%s219 + $0x38] sm:$0xff]
      %v242 = vld [vmem:[%s219 + $0x40] sm:$0xff]
      %v243 = vld [vmem:[%s219 + $0x48] sm:$0xff]
      %v244 = vld [vmem:[%s219 + $0x50] sm:$0xff]
      %v245 = vld [vmem:[%s219 + $0x58] sm:$0xff]
      %v246 = vld [vmem:[%s219 + $0x60] sm:$0xff]
      %v247 = vld [vmem:[%s219 + $0x68] sm:$0xff]
      %v248 = vld [vmem:[%s219 + $0x70] sm:$0xff]
      %v249 = vld [vmem:[%s219 + $0x78] sm:$0xff]
      %v250 = vmax.f32 %v234, 0.0
      %v251 = vmax.f32 %v235, 0.0
      %v252 = vmax.f32 %v236, 0.0
      %v253 = vmax.f32 %v237, 0.0
      %v254 = vmax.f32 %v238, 0.0
      %v255 = vmax.f32 %v239, 0.0
      %v256 = vmax.f32 %v240, 0.0
      %v257 = vmax.f32 %v241, 0.0
      %v258 = vmax.f32 %v242, 0.0
      %v259 = vmax.f32 %v243, 0.0
      %v260 = vmax.f32 %v244, 0.0
      %v261 = vmax.f32 %v245, 0.0
      %v262 = vmax.f32 %v246, 0.0
      %v263 = vmax.f32 %v247, 0.0
      %v264 = vmax.f32 %v248, 0.0
      %v265 = vmax.f32 %v249, 0.0
      %v266 = vpack.c.bf16 %v251, %v250
      %v267 = vpack.c.bf16 %v253, %v252
      %v268 = vpack.c.bf16 %v255, %v254
      %v269 = vpack.c.bf16 %v257, %v256
      %v270 = vpack.c.bf16 %v259, %v258
      %v271 = vpack.c.bf16 %v261, %v260
      %v272 = vpack.c.bf16 %v263, %v262
      %v273 = vpack.c.bf16 %v265, %v264
      %274 = vst [vmem:[#allocation2 + $0x10] sm:$0xff] %v266
      %275 = vst [vmem:[#allocation2 + $0x18] sm:$0xff] %v267
      %276 = vst [vmem:[#allocation2 + $0x20] sm:$0xff] %v268
      %277 = vst [vmem:[#allocation2 + $0x28] sm:$0xff] %v269
      %278 = vst [vmem:[#allocation2 + $0x30] sm:$0xff] %v270
      %279 = vst [vmem:[#allocation2 + $0x38] sm:$0xff] %v271
      %280 = vst [vmem:[#allocation2 + $0x40] sm:$0xff] %v272
      %281 = vst [vmem:[#allocation2 + $0x48] sm:$0xff] %v273
      %v282 = vld [vmem:[%s219 + $0x80] sm:$0xff]
      %v283 = vld [vmem:[%s219 + $0x88] sm:$0xff]
      %v284 = vld [vmem:[%s219 + $0x90] sm:$0xff]
      %v285 = vld [vmem:[%s219 + $0x98] sm:$0xff]
      %v286 = vld [vmem:[%s219 + $0xa0] sm:$0xff]
      %v287 = vld [vmem:[%s219 + $0xa8] sm:$0xff]
      %v288 = vld [vmem:[%s219 + $0xb0] sm:$0xff]
      %v289 = vld [vmem:[%s219 + $0xb8] sm:$0xff]
      %v290 = vld [vmem:[%s219 + $0xc0] sm:$0xff]
      %v291 = vld [vmem:[%s219 + $0xc8] sm:$0xff]
      %v292 = vld [vmem:[%s219 + $0xd0] sm:$0xff]
      %v293 = vld [vmem:[%s219 + $0xd8] sm:$0xff]
      %v294 = vld [vmem:[%s219 + $0xe0] sm:$0xff]
      %v295 = vld [vmem:[%s219 + $0xe8] sm:$0xff]
      %v296 = vld [vmem:[%s219 + $0xf0] sm:$0xff]
      %v297 = vld [vmem:[%s219 + $0xf8] sm:$0xff]
      %v298 = vmax.f32 %v282, 0.0
      %v299 = vmax.f32 %v283, 0.0
      %v300 = vmax.f32 %v284, 0.0
      %v301 = vmax.f32 %v285, 0.0
      %v302 = vmax.f32 %v286, 0.0
      %v303 = vmax.f32 %v287, 0.0
      %v304 = vmax.f32 %v288, 0.0
      %v305 = vmax.f32 %v289, 0.0
      %v306 = vmax.f32 %v290, 0.0
      %v307 = vmax.f32 %v291, 0.0
      %v308 = vmax.f32 %v292, 0.0
      %v309 = vmax.f32 %v293, 0.0
      %v310 = vmax.f32 %v294, 0.0
      %v311 = vmax.f32 %v295, 0.0
      %v312 = vmax.f32 %v296, 0.0
      %v313 = vmax.f32 %v297, 0.0
      %v314 = vpack.c.bf16 %v299, %v298
      %v315 = vpack.c.bf16 %v301, %v300
      %v316 = vpack.c.bf16 %v303, %v302
      %v317 = vpack.c.bf16 %v305, %v304
      %v318 = vpack.c.bf16 %v307, %v306
      %v319 = vpack.c.bf16 %v309, %v308
      %v320 = vpack.c.bf16 %v311, %v310
      %v321 = vpack.c.bf16 %v313, %v312
      %322 = vst [vmem:[#allocation2 + $0x50] sm:$0xff] %v314
      %323 = vst [vmem:[#allocation2 + $0x58] sm:$0xff] %v315
      %324 = vst [vmem:[#allocation2 + $0x60] sm:$0xff] %v316
      %325 = vst [vmem:[#allocation2 + $0x68] sm:$0xff] %v317
      %326 = vst [vmem:[#allocation2 + $0x70] sm:$0xff] %v318
      %327 = vst [vmem:[#allocation2 + $0x78] sm:$0xff] %v319
      %328 = vst [vmem:[#allocation2 + $0x80] sm:$0xff] %v320
      %329 = vst [vmem:[#allocation2 + $0x88] sm:$0xff] %v321
      %v330 = vld [vmem:[%s219 + $0x100] sm:$0xff]
      %v331 = vld [vmem:[%s219 + $0x108] sm:$0xff]
      %v332 = vld [vmem:[%s219 + $0x110] sm:$0xff]
      %v333 = vld [vmem:[%s219 + $0x118] sm:$0xff]
      %v334 = vmax.f32 %v330, 0.0
      %v335 = vmax.f32 %v331, 0.0
      %v336 = vmax.f32 %v332, 0.0
      %v337 = vmax.f32 %v333, 0.0
      %v338 = vpack.c.bf16 %v335, %v334
      %v339 = vpack.c.bf16 %v337, %v336
      %340 = vst [vmem:[#allocation2 + $0x90] sm:$0xff] %v338
      %341 = vst [vmem:[#allocation2 + $0x98] sm:$0xff] %v339
      %v342 = vld [vmem:[#allocation2] sm:$0x80]
      %v343 = vld [vmem:[#allocation2 + $0x8] sm:$0xff]
      %v344 = vld [vmem:[#allocation2 + $0x10] sm:$0xff]
      %v345 = vld [vmem:[#allocation2 + $0x18] sm:$0xff]
      %v346 = vld [vmem:[#allocation2 + $0x20] sm:$0xff]
      %v347 = vld [vmem:[#allocation2 + $0x28] sm:$0xff]
      %v348 = vld [vmem:[#allocation2 + $0x30] sm:$0xff]
      %v349 = vld [vmem:[#allocation2 + $0x38] sm:$0xff]
      %v350 = vld [vmem:[#allocation2 + $0x40] sm:$0x7f]
      %v351 = vld [vmem:[%s1] sm:$0xf]
      %v352 = vld [vmem:[%s1 + $0x4] sm:$0xf]
      %v353 = vld [vmem:[%s1 + $0x8] sm:$0xf]
      %v354 = vld [vmem:[%s1 + $0xc] sm:$0xf]
      %v355 = vld [vmem:[%s1 + $0x10] sm:$0xf]
      %v356 = vld [vmem:[%s1 + $0x14] sm:$0xf]
      %v357 = vld [vmem:[%s1 + $0x18] sm:$0xf]
      %v358 = vld [vmem:[%s1 + $0x1c] sm:$0xf]
      %v359 = vld [vmem:[%s1 + $0x20] sm:$0xf]
      %v360 = vld [vmem:[%s1 + $0x24] sm:$0xf]
      %v361 = vld [vmem:[%s1 + $0x28] sm:$0xf]
      %v362 = vld [vmem:[%s1 + $0x2c] sm:$0xf]
      %v363 = vld [vmem:[%s1 + $0x30] sm:$0xf]
      %v364 = vld [vmem:[%s1 + $0x34] sm:$0xf]
      %v365 = vld [vmem:[%s1 + $0x38] sm:$0xf]
      %v366 = vld [vmem:[%s1 + $0x3c] sm:$0xf]
      %v367 = vld [vmem:[#allocation2 + $0x40] sm:$0xff]
      %s368 = scalar_lea.vmem %s1, 64
      %v369 = vld [vmem:[%s368] sm:$0xf]
      %v370 = vld [vmem:[%s368 + $0x4] sm:$0xf]
      %v371 = vld [vmem:[%s368 + $0x8] sm:$0xf]
      %v372 = vld [vmem:[%s368 + $0xc] sm:$0xf]
      %v373 = vld [vmem:[%s368 + $0x10] sm:$0xf]
      %v374 = vld [vmem:[%s368 + $0x14] sm:$0xf]
      %v375 = vld [vmem:[%s368 + $0x18] sm:$0xf]
      %v376 = vld [vmem:[%s368 + $0x1c] sm:$0xf]
      %v377 = vld [vmem:[%s368 + $0x20] sm:$0xf]
      %v378 = vld [vmem:[%s368 + $0x24] sm:$0xf]
      %v379 = vld [vmem:[%s368 + $0x28] sm:$0xf]
      %v380 = vld [vmem:[%s368 + $0x2c] sm:$0xf]
      %v381 = vld [vmem:[%s368 + $0x30] sm:$0xf]
      %v382 = vld [vmem:[%s368 + $0x34] sm:$0xf]
      %v383 = vld [vmem:[%s368 + $0x38] sm:$0xf]
      %v384 = vld [vmem:[%s368 + $0x3c] sm:$0xf]
      %vm385 = vsmask.f32 256
      %v387 = vshrl.u32 %v342, 16
      %v389 = vrot.slane %v387, 7
      %v391 = vshrl.u32 %v343, 16
      %v393 = vrot.slane %v391, 7
      %v394 = vshll.u32 %v343, 16
      %v396 = vor.u32 %v393, %v394
      %v397 = vsel %vm385, %v389, %v396
      %v399 = vshrl.u32 %v344, 16
      %v401 = vrot.slane %v399, 7
      %v402 = vshll.u32 %v344, 16
      %v404 = vor.u32 %v401, %v402
      %v405 = vsel %vm385, %v393, %v404
      %v407 = vshrl.u32 %v345, 16
      %v409 = vrot.slane %v407, 7
      %v410 = vshll.u32 %v345, 16
      %v412 = vor.u32 %v409, %v410
      %v413 = vsel %vm385, %v401, %v412
      %v415 = vshrl.u32 %v346, 16
      %v417 = vrot.slane %v415, 7
      %v418 = vshll.u32 %v346, 16
      %v420 = vor.u32 %v417, %v418
      %v421 = vsel %vm385, %v409, %v420
      %v423 = vshrl.u32 %v347, 16
      %v425 = vrot.slane %v423, 7
      %v426 = vshll.u32 %v347, 16
      %v428 = vor.u32 %v425, %v426
      %v429 = vsel %vm385, %v417, %v428
      %v431 = vshrl.u32 %v348, 16
      %v433 = vrot.slane %v431, 7
      %v434 = vshll.u32 %v348, 16
      %v436 = vor.u32 %v433, %v434
      %v437 = vsel %vm385, %v425, %v436
      %v439 = vshrl.u32 %v349, 16
      %v441 = vrot.slane %v439, 7
      %v442 = vshll.u32 %v349, 16
      %v444 = vor.u32 %v441, %v442
      %v445 = vsel %vm385, %v433, %v444
      %v447 = vshrl.u32 %v367, 16
      %v449 = vrot.slane %v447, 7
      %v450 = vshll.u32 %v367, 16
      %v452 = vor.u32 %v449, %v450
      %v453 = vsel %vm385, %v441, %v452
      %v478 = vunpack.c.l.b16 %v369
      %v479 = vunpack.c.l.b16 %v370
      %v480 = vunpack.c.l.b16 %v371
      %v481 = vunpack.c.l.b16 %v372
      %v482 = vunpack.c.l.b16 %v373
      %v483 = vunpack.c.l.b16 %v374
      %v484 = vunpack.c.l.b16 %v375
      %v485 = vunpack.c.l.b16 %v376
      %v486 = vunpack.c.l.b16 %v377
      %v487 = vunpack.c.l.b16 %v378
      %v488 = vunpack.c.l.b16 %v379
      %v489 = vunpack.c.l.b16 %v380
      %v490 = vunpack.c.l.b16 %v381
      %v491 = vunpack.c.l.b16 %v382
      %v492 = vunpack.c.l.b16 %v383
      %v493 = vunpack.c.l.b16 %v384
      %v494 = vpack.c.b16 %v479, %v478
      %v495 = vpack.c.b16 %v481, %v480
      %v496 = vpack.c.b16 %v483, %v482
      %v497 = vpack.c.b16 %v485, %v484
      %v498 = vpack.c.b16 %v487, %v486
      %v499 = vpack.c.b16 %v489, %v488
      %v500 = vpack.c.b16 %v491, %v490
      %v501 = vpack.c.b16 %v493, %v492
      %510 = vmatprep.subr.bf16.mxu0 0
      %511 = vmatpush1.bf16.msra.mxu0 %v494
      %512 = vmatprep.subr.bf16.mxu0 0
      %513 = vmatpush1.bf16.msra.mxu0 %v495
      %514 = vmatprep.subr.bf16.mxu0 0
      %515 = vmatpush1.bf16.msra.mxu0 %v496
      %516 = vmatprep.subr.bf16.mxu0 0
      %517 = vmatpush1.bf16.msra.mxu0 %v497
      %518 = vmatprep.subr.bf16.mxu0 0
      %519 = vmatpush1.bf16.msra.mxu0 %v498
      %520 = vmatprep.subr.bf16.mxu0 0
      %521 = vmatpush1.bf16.msra.mxu0 %v499
      %522 = vmatprep.subr.bf16.mxu0 0
      %523 = vmatpush1.bf16.msra.mxu0 %v500
      %524 = vmatprep.subr.bf16.mxu0 0
      %525 = vmatpush1.bf16.msra.mxu0 %v501
      %526 = vmatprep.subr.bf16.mxu0 0
      %527 = vmatpush1.bf16.msra.mxu0 0
      %528 = vmatprep.subr.bf16.mxu0 0
      %529 = vmatpush1.bf16.msra.mxu0 0
      %530 = vmatprep.subr.bf16.mxu0 0
      %531 = vmatpush1.bf16.msra.mxu0 0
      %532 = vmatprep.subr.bf16.mxu0 0
      %533 = vmatpush1.bf16.msra.mxu0 0
      %534 = vmatprep.subr.bf16.mxu0 0
      %535 = vmatpush1.bf16.msra.mxu0 0
      %536 = vmatprep.subr.bf16.mxu0 0
      %537 = vmatpush1.bf16.msra.mxu0 0
      %538 = vmatprep.subr.bf16.mxu0 0
      %539 = vmatpush1.bf16.msra.mxu0 0
      %540 = vmatprep.subr.bf16.mxu0 0
      %541 = vmatpush1.bf16.msra.mxu0 0
      %542 = vmatprep.mubr.bf16.mxu0 0
      %543 = vmatmul.mubr.bf16.gmra.mrb[0].mxu0 %v397
      %v544 = vpop.f32.mrb[0].mxu0
      %v545 = vadd.f32 0.0, %v544
      %v546 = vpop.f32.mrb[0].mxu0
      %v547 = vpop.f32.mrb[0].mxu0
      %v548 = vadd.f32 0.0, %v547
      %v549 = vpop.f32.mrb[0].mxu0
      %550 = vmatprep.mubr.bf16.mxu0 0
      %551 = vmatmul.mubr.bf16.gmra.mrb[0].mxu0 %v405
      %v552 = vpop.f32.mrb[0].mxu0
      %v553 = vadd.f32 0.0, %v552
      %v554 = vpop.f32.mrb[0].mxu0
      %v555 = vpop.f32.mrb[0].mxu0
      %v556 = vadd.f32 0.0, %v555
      %v557 = vpop.f32.mrb[0].mxu0
      %558 = vmatprep.mubr.bf16.mxu0 0
      %559 = vmatmul.mubr.bf16.gmra.mrb[0].mxu0 %v413
      %v560 = vpop.f32.mrb[0].mxu0
      %v561 = vadd.f32 0.0, %v560
      %v562 = vpop.f32.mrb[0].mxu0
      %v563 = vpop.f32.mrb[0].mxu0
      %v564 = vadd.f32 0.0, %v563
      %v565 = vpop.f32.mrb[0].mxu0
      %566 = vmatprep.mubr.bf16.mxu0 0
      %567 = vmatmul.mubr.bf16.gmra.mrb[0].mxu0 %v421
      %v568 = vpop.f32.mrb[0].mxu0
      %v569 = vadd.f32 0.0, %v568
      %v570 = vpop.f32.mrb[0].mxu0
      %v571 = vpop.f32.mrb[0].mxu0
      %v572 = vadd.f32 0.0, %v571
      %v573 = vpop.f32.mrb[0].mxu0
      %574 = vmatprep.mubr.bf16.mxu0 0
      %575 = vmatmul.mubr.bf16.gmra.mrb[0].mxu0 %v429
      %v576 = vpop.f32.mrb[0].mxu0
      %v577 = vadd.f32 0.0, %v576
      %v578 = vpop.f32.mrb[0].mxu0
      %v579 = vpop.f32.mrb[0].mxu0
      %v580 = vadd.f32 0.0, %v579
      %v581 = vpop.f32.mrb[0].mxu0
      %582 = vmatprep.mubr.bf16.mxu0 0
      %583 = vmatmul.mubr.bf16.gmra.mrb[0].mxu0 %v437
      %v584 = vpop.f32.mrb[0].mxu0
      %v585 = vadd.f32 0.0, %v584
      %v586 = vpop.f32.mrb[0].mxu0
      %v587 = vpop.f32.mrb[0].mxu0
      %v588 = vadd.f32 0.0, %v587
      %v589 = vpop.f32.mrb[0].mxu0
      %590 = vmatprep.mubr.bf16.mxu0 0
      %591 = vmatmul.mubr.bf16.gmra.mrb[0].mxu0 %v445
      %v592 = vpop.f32.mrb[0].mxu0
      %v593 = vadd.f32 0.0, %v592
      %v594 = vpop.f32.mrb[0].mxu0
      %v595 = vpop.f32.mrb[0].mxu0
      %v596 = vadd.f32 0.0, %v595
      %v597 = vpop.f32.mrb[0].mxu0
      %598 = vmatprep.mubr.bf16.mxu0 0
      %599 = vmatmul.mubr.bf16.gmra.mrb[0].mxu0 %v453
      %v600 = vpop.f32.mrb[0].mxu0
      %v601 = vadd.f32 0.0, %v600
      %v602 = vpop.f32.mrb[0].mxu0
      %v603 = vpop.f32.mrb[0].mxu0
      %v604 = vadd.f32 0.0, %v603
      %v605 = vpop.f32.mrb[0].mxu0
      %606 = vdwg.mxu0
      %vm616 = vcmask 1040384
      %v617 = vrot.slane %v342, 7
      %v618 = vrot.slane %v343, 7
      %v619 = vsel %vm616, %v617, %v618
      %v620 = vrot.slane %v344, 7
      %v621 = vsel %vm616, %v618, %v620
      %v622 = vrot.slane %v345, 7
      %v623 = vsel %vm616, %v620, %v622
      %v624 = vrot.slane %v346, 7
      %v625 = vsel %vm616, %v622, %v624
      %v626 = vrot.slane %v347, 7
      %v627 = vsel %vm616, %v624, %v626
      %v628 = vrot.slane %v348, 7
      %v629 = vsel %vm616, %v626, %v628
      %v630 = vrot.slane %v349, 7
      %v631 = vsel %vm616, %v628, %v630
      %v632 = vrot.slane %v350, 7
      %v633 = vsel %vm616, %v630, %v632
      %v658 = vunpack.c.l.b16 %v351
      %v659 = vunpack.c.l.b16 %v352
      %v660 = vunpack.c.l.b16 %v353
      %v661 = vunpack.c.l.b16 %v354
      %v662 = vunpack.c.l.b16 %v355
      %v663 = vunpack.c.l.b16 %v356
      %v664 = vunpack.c.l.b16 %v357
      %v665 = vunpack.c.l.b16 %v358
      %v666 = vunpack.c.l.b16 %v359
      %v667 = vunpack.c.l.b16 %v360
      %v668 = vunpack.c.l.b16 %v361
      %v669 = vunpack.c.l.b16 %v362
      %v670 = vunpack.c.l.b16 %v363
      %v671 = vunpack.c.l.b16 %v364
      %v672 = vunpack.c.l.b16 %v365
      %v673 = vunpack.c.l.b16 %v366
      %v674 = vpack.c.b16 %v659, %v658
      %v675 = vpack.c.b16 %v661, %v660
      %v676 = vpack.c.b16 %v663, %v662
      %v677 = vpack.c.b16 %v665, %v664
      %v678 = vpack.c.b16 %v667, %v666
      %v679 = vpack.c.b16 %v669, %v668
      %v680 = vpack.c.b16 %v671, %v670
      %v681 = vpack.c.b16 %v673, %v672
      %690 = vmatprep.subr.bf16.mxu0 0
      %691 = vmatpush1.bf16.msra.mxu0 %v674
      %692 = vmatprep.subr.bf16.mxu0 0
      %693 = vmatpush1.bf16.msra.mxu0 %v675
      %694 = vmatprep.subr.bf16.mxu0 0
      %695 = vmatpush1.bf16.msra.mxu0 %v676
      %696 = vmatprep.subr.bf16.mxu0 0
      %697 = vmatpush1.bf16.msra.mxu0 %v677
      %698 = vmatprep.subr.bf16.mxu0 0
      %699 = vmatpush1.bf16.msra.mxu0 %v678
      %700 = vmatprep.subr.bf16.mxu0 0
      %701 = vmatpush1.bf16.msra.mxu0 %v679
      %702 = vmatprep.subr.bf16.mxu0 0
      %703 = vmatpush1.bf16.msra.mxu0 %v680
      %704 = vmatprep.subr.bf16.mxu0 0
      %705 = vmatpush1.bf16.msra.mxu0 %v681
      %706 = vmatprep.subr.bf16.mxu0 0
      %707 = vmatpush1.bf16.msra.mxu0 0
      %708 = vmatprep.subr.bf16.mxu0 0
      %709 = vmatpush1.bf16.msra.mxu0 0
      %710 = vmatprep.subr.bf16.mxu0 0
      %711 = vmatpush1.bf16.msra.mxu0 0
      %712 = vmatprep.subr.bf16.mxu0 0
      %713 = vmatpush1.bf16.msra.mxu0 0
      %714 = vmatprep.subr.bf16.mxu0 0
      %715 = vmatpush1.bf16.msra.mxu0 0
      %716 = vmatprep.subr.bf16.mxu0 0
      %717 = vmatpush1.bf16.msra.mxu0 0
      %718 = vmatprep.subr.bf16.mxu0 0
      %719 = vmatpush1.bf16.msra.mxu0 0
      %720 = vmatprep.subr.bf16.mxu0 0
      %721 = vmatpush1.bf16.msra.mxu0 0
      %722 = vmatprep.mubr.bf16.mxu0 0
      %723 = vmatmul.mubr.bf16.gmra.mrb[0].mxu0 %v619
      %v724 = vpop.f32.mrb[0].mxu0
      %v725 = vadd.f32 %v545, %v724
      %v726 = vpop.f32.mrb[0].mxu0
      %v727 = vpop.f32.mrb[0].mxu0
      %v728 = vadd.f32 %v548, %v727
      %v729 = vpop.f32.mrb[0].mxu0
      %730 = vmatprep.mubr.bf16.mxu0 0
      %731 = vmatmul.mubr.bf16.gmra.mrb[0].mxu0 %v621
      %v732 = vpop.f32.mrb[0].mxu0
      %v733 = vadd.f32 %v553, %v732
      %v734 = vpop.f32.mrb[0].mxu0
      %v735 = vpop.f32.mrb[0].mxu0
      %v736 = vadd.f32 %v556, %v735
      %v737 = vpop.f32.mrb[0].mxu0
      %738 = vmatprep.mubr.bf16.mxu0 0
      %739 = vmatmul.mubr.bf16.gmra.mrb[0].mxu0 %v623
      %v740 = vpop.f32.mrb[0].mxu0
      %v741 = vadd.f32 %v561, %v740
      %v742 = vpop.f32.mrb[0].mxu0
      %v743 = vpop.f32.mrb[0].mxu0
      %v744 = vadd.f32 %v564, %v743
      %v745 = vpop.f32.mrb[0].mxu0
      %746 = vmatprep.mubr.bf16.mxu0 0
      %747 = vmatmul.mubr.bf16.gmra.mrb[0].mxu0 %v625
      %v748 = vpop.f32.mrb[0].mxu0
      %v749 = vadd.f32 %v569, %v748
      %v750 = vpop.f32.mrb[0].mxu0
      %v751 = vpop.f32.mrb[0].mxu0
      %v752 = vadd.f32 %v572, %v751
      %v753 = vpop.f32.mrb[0].mxu0
      %754 = vmatprep.mubr.bf16.mxu0 0
      %755 = vmatmul.mubr.bf16.gmra.mrb[0].mxu0 %v627
      %v756 = vpop.f32.mrb[0].mxu0
      %v757 = vadd.f32 %v577, %v756
      %v758 = vpop.f32.mrb[0].mxu0
      %v759 = vpop.f32.mrb[0].mxu0
      %v760 = vadd.f32 %v580, %v759
      %v761 = vpop.f32.mrb[0].mxu0
      %762 = vmatprep.mubr.bf16.mxu0 0
      %763 = vmatmul.mubr.bf16.gmra.mrb[0].mxu0 %v629
      %v764 = vpop.f32.mrb[0].mxu0
      %v765 = vadd.f32 %v585, %v764
      %v766 = vpop.f32.mrb[0].mxu0
      %v767 = vpop.f32.mrb[0].mxu0
      %v768 = vadd.f32 %v588, %v767
      %v769 = vpop.f32.mrb[0].mxu0
      %770 = vmatprep.mubr.bf16.mxu0 0
      %771 = vmatmul.mubr.bf16.gmra.mrb[0].mxu0 %v631
      %v772 = vpop.f32.mrb[0].mxu0
      %v773 = vadd.f32 %v593, %v772
      %v774 = vpop.f32.mrb[0].mxu0
      %v775 = vpop.f32.mrb[0].mxu0
      %v776 = vadd.f32 %v596, %v775
      %v777 = vpop.f32.mrb[0].mxu0
      %778 = vmatprep.mubr.bf16.mxu0 0
      %779 = vmatmul.mubr.bf16.gmra.mrb[0].mxu0 %v633
      %v780 = vpop.f32.mrb[0].mxu0
      %v781 = vadd.f32 %v601, %v780
      %v782 = vpop.f32.mrb[0].mxu0
      %v783 = vpop.f32.mrb[0].mxu0
      %v784 = vadd.f32 %v604, %v783
      %v785 = vpop.f32.mrb[0].mxu0
      %786 = vdwg.mxu0
      %s787 = scalar_lea.vmem %s1, 128
      %v788 = vld [vmem:[%s787] sm:$0xf]
      %v789 = vld [vmem:[%s787 + $0x4] sm:$0xf]
      %v790 = vld [vmem:[%s787 + $0x8] sm:$0xf]
      %v791 = vld [vmem:[%s787 + $0xc] sm:$0xf]
      %v792 = vld [vmem:[%s787 + $0x10] sm:$0xf]
      %v793 = vld [vmem:[%s787 + $0x14] sm:$0xf]
      %v794 = vld [vmem:[%s787 + $0x18] sm:$0xf]
      %v795 = vld [vmem:[%s787 + $0x1c] sm:$0xf]
      %v796 = vld [vmem:[%s787 + $0x20] sm:$0xf]
      %v797 = vld [vmem:[%s787 + $0x24] sm:$0xf]
      %v798 = vld [vmem:[%s787 + $0x28] sm:$0xf]
      %v799 = vld [vmem:[%s787 + $0x2c] sm:$0xf]
      %v800 = vld [vmem:[%s787 + $0x30] sm:$0xf]
      %v801 = vld [vmem:[%s787 + $0x34] sm:$0xf]
      %v802 = vld [vmem:[%s787 + $0x38] sm:$0xf]
      %v803 = vld [vmem:[%s787 + $0x3c] sm:$0xf]
      %v820 = vunpack.c.l.b16 %v788
      %v821 = vunpack.c.l.b16 %v789
      %v822 = vunpack.c.l.b16 %v790
      %v823 = vunpack.c.l.b16 %v791
      %v824 = vunpack.c.l.b16 %v792
      %v825 = vunpack.c.l.b16 %v793
      %v826 = vunpack.c.l.b16 %v794
      %v827 = vunpack.c.l.b16 %v795
      %v828 = vunpack.c.l.b16 %v796
      %v829 = vunpack.c.l.b16 %v797
      %v830 = vunpack.c.l.b16 %v798
      %v831 = vunpack.c.l.b16 %v799
      %v832 = vunpack.c.l.b16 %v800
      %v833 = vunpack.c.l.b16 %v801
      %v834 = vunpack.c.l.b16 %v802
      %v835 = vunpack.c.l.b16 %v803
      %v836 = vpack.c.b16 %v821, %v820
      %v837 = vpack.c.b16 %v823, %v822
      %v838 = vpack.c.b16 %v825, %v824
      %v839 = vpack.c.b16 %v827, %v826
      %v840 = vpack.c.b16 %v829, %v828
      %v841 = vpack.c.b16 %v831, %v830
      %v842 = vpack.c.b16 %v833, %v832
      %v843 = vpack.c.b16 %v835, %v834
      %852 = vmatprep.subr.bf16.mxu0 0
      %853 = vmatpush1.bf16.msra.mxu0 %v836
      %854 = vmatprep.subr.bf16.mxu0 0
      %855 = vmatpush1.bf16.msra.mxu0 %v837
      %856 = vmatprep.subr.bf16.mxu0 0
      %857 = vmatpush1.bf16.msra.mxu0 %v838
      %858 = vmatprep.subr.bf16.mxu0 0
      %859 = vmatpush1.bf16.msra.mxu0 %v839
      %860 = vmatprep.subr.bf16.mxu0 0
      %861 = vmatpush1.bf16.msra.mxu0 %v840
      %862 = vmatprep.subr.bf16.mxu0 0
      %863 = vmatpush1.bf16.msra.mxu0 %v841
      %864 = vmatprep.subr.bf16.mxu0 0
      %865 = vmatpush1.bf16.msra.mxu0 %v842
      %866 = vmatprep.subr.bf16.mxu0 0
      %867 = vmatpush1.bf16.msra.mxu0 %v843
      %868 = vmatprep.subr.bf16.mxu0 0
      %869 = vmatpush1.bf16.msra.mxu0 0
      %870 = vmatprep.subr.bf16.mxu0 0
      %871 = vmatpush1.bf16.msra.mxu0 0
      %872 = vmatprep.subr.bf16.mxu0 0
      %873 = vmatpush1.bf16.msra.mxu0 0
      %874 = vmatprep.subr.bf16.mxu0 0
      %875 = vmatpush1.bf16.msra.mxu0 0
      %876 = vmatprep.subr.bf16.mxu0 0
      %877 = vmatpush1.bf16.msra.mxu0 0
      %878 = vmatprep.subr.bf16.mxu0 0
      %879 = vmatpush1.bf16.msra.mxu0 0
      %880 = vmatprep.subr.bf16.mxu0 0
      %881 = vmatpush1.bf16.msra.mxu0 0
      %882 = vmatprep.subr.bf16.mxu0 0
      %883 = vmatpush1.bf16.msra.mxu0 0
      %884 = vmatprep.mubr.bf16.mxu0 0
      %885 = vmatmul.mubr.bf16.gmra.mrb[0].mxu0 %v343
      %v886 = vpop.f32.mrb[0].mxu0
      %v887 = vadd.f32 0.0, %v886
      %v888 = vpop.f32.mrb[0].mxu0
      %v889 = vpop.f32.mrb[0].mxu0
      %v890 = vadd.f32 0.0, %v889
      %v891 = vpop.f32.mrb[0].mxu0
      %892 = vmatprep.mubr.bf16.mxu0 0
      %893 = vmatmul.mubr.bf16.gmra.mrb[0].mxu0 %v344
      %v894 = vpop.f32.mrb[0].mxu0
      %v895 = vadd.f32 0.0, %v894
      %v896 = vpop.f32.mrb[0].mxu0
      %v897 = vpop.f32.mrb[0].mxu0
      %v898 = vadd.f32 0.0, %v897
      %v899 = vpop.f32.mrb[0].mxu0
      %900 = vmatprep.mubr.bf16.mxu0 0
      %901 = vmatmul.mubr.bf16.gmra.mrb[0].mxu0 %v345
      %v902 = vpop.f32.mrb[0].mxu0
      %v903 = vadd.f32 0.0, %v902
      %v904 = vpop.f32.mrb[0].mxu0
      %v905 = vpop.f32.mrb[0].mxu0
      %v906 = vadd.f32 0.0, %v905
      %v907 = vpop.f32.mrb[0].mxu0
      %908 = vmatprep.mubr.bf16.mxu0 0
      %909 = vmatmul.mubr.bf16.gmra.mrb[0].mxu0 %v346
      %v910 = vpop.f32.mrb[0].mxu0
      %v911 = vadd.f32 0.0, %v910
      %v912 = vpop.f32.mrb[0].mxu0
      %v913 = vpop.f32.mrb[0].mxu0
      %v914 = vadd.f32 0.0, %v913
      %v915 = vpop.f32.mrb[0].mxu0
      %916 = vmatprep.mubr.bf16.mxu0 0
      %917 = vmatmul.mubr.bf16.gmra.mrb[0].mxu0 %v347
      %v918 = vpop.f32.mrb[0].mxu0
      %v919 = vadd.f32 0.0, %v918
      %v920 = vpop.f32.mrb[0].mxu0
      %v921 = vpop.f32.mrb[0].mxu0
      %v922 = vadd.f32 0.0, %v921
      %v923 = vpop.f32.mrb[0].mxu0
      %924 = vmatprep.mubr.bf16.mxu0 0
      %925 = vmatmul.mubr.bf16.gmra.mrb[0].mxu0 %v348
      %v926 = vpop.f32.mrb[0].mxu0
      %v927 = vadd.f32 0.0, %v926
      %v928 = vpop.f32.mrb[0].mxu0
      %v929 = vpop.f32.mrb[0].mxu0
      %v930 = vadd.f32 0.0, %v929
      %v931 = vpop.f32.mrb[0].mxu0
      %932 = vmatprep.mubr.bf16.mxu0 0
      %933 = vmatmul.mubr.bf16.gmra.mrb[0].mxu0 %v349
      %v934 = vpop.f32.mrb[0].mxu0
      %v935 = vadd.f32 0.0, %v934
      %v936 = vpop.f32.mrb[0].mxu0
      %v937 = vpop.f32.mrb[0].mxu0
      %v938 = vadd.f32 0.0, %v937
      %v939 = vpop.f32.mrb[0].mxu0
      %940 = vmatprep.mubr.bf16.mxu0 0
      %941 = vmatmul.mubr.bf16.gmra.mrb[0].mxu0 %v367
      %v942 = vpop.f32.mrb[0].mxu0
      %v943 = vadd.f32 0.0, %v942
      %v944 = vpop.f32.mrb[0].mxu0
      %v945 = vpop.f32.mrb[0].mxu0
      %v946 = vadd.f32 0.0, %v945
      %v947 = vpop.f32.mrb[0].mxu0
      %948 = vdwg.mxu0
      %v949 = vadd.f32 %v725, %v887
      %v950 = vadd.f32 %v728, %v890
      %v951 = vadd.f32 %v733, %v895
      %v952 = vadd.f32 %v736, %v898
      %v953 = vadd.f32 %v741, %v903
      %v954 = vadd.f32 %v744, %v906
      %v955 = vadd.f32 %v749, %v911
      %v956 = vadd.f32 %v752, %v914
      %v957 = vadd.f32 %v757, %v919
      %v958 = vadd.f32 %v760, %v922
      %v959 = vadd.f32 %v765, %v927
      %v960 = vadd.f32 %v768, %v930
      %v961 = vadd.f32 %v773, %v935
      %v962 = vadd.f32 %v776, %v938
      %v963 = vadd.f32 %v781, %v943
      %v964 = vadd.f32 %v784, %v946
      %v965 = vld [vmem:[#allocation2 + $0x10] sm:$0xff]
      %v966 = vld [vmem:[#allocation2 + $0x18] sm:$0xff]
      %v967 = vld [vmem:[#allocation2 + $0x20] sm:$0xff]
      %v968 = vld [vmem:[#allocation2 + $0x28] sm:$0xff]
      %v969 = vld [vmem:[#allocation2 + $0x30] sm:$0xff]
      %v970 = vld [vmem:[#allocation2 + $0x38] sm:$0xff]
      %v971 = vld [vmem:[#allocation2 + $0x40] sm:$0xff]
      %v972 = vld [vmem:[#allocation2 + $0x48] sm:$0xff]
      %s973 = scalar_lea.vmem %s1, 192
      %v974 = vld [vmem:[%s973] sm:$0xf]
      %v975 = vld [vmem:[%s973 + $0x4] sm:$0xf]
      %v976 = vld [vmem:[%s973 + $0x8] sm:$0xf]
      %v977 = vld [vmem:[%s973 + $0xc] sm:$0xf]
      %v978 = vld [vmem:[%s973 + $0x10] sm:$0xf]
      %v979 = vld [vmem:[%s973 + $0x14] sm:$0xf]
      %v980 = vld [vmem:[%s973 + $0x18] sm:$0xf]
      %v981 = vld [vmem:[%s973 + $0x1c] sm:$0xf]
      %v982 = vld [vmem:[%s973 + $0x20] sm:$0xf]
      %v983 = vld [vmem:[%s973 + $0x24] sm:$0xf]
      %v984 = vld [vmem:[%s973 + $0x28] sm:$0xf]
      %v985 = vld [vmem:[%s973 + $0x2c] sm:$0xf]
      %v986 = vld [vmem:[%s973 + $0x30] sm:$0xf]
      %v987 = vld [vmem:[%s973 + $0x34] sm:$0xf]
      %v988 = vld [vmem:[%s973 + $0x38] sm:$0xf]
      %v989 = vld [vmem:[%s973 + $0x3c] sm:$0xf]
      %v1006 = vunpack.c.l.b16 %v974
      %v1007 = vunpack.c.l.b16 %v975
      %v1008 = vunpack.c.l.b16 %v976
      %v1009 = vunpack.c.l.b16 %v977
      %v1010 = vunpack.c.l.b16 %v978
      %v1011 = vunpack.c.l.b16 %v979
      %v1012 = vunpack.c.l.b16 %v980
      %v1013 = vunpack.c.l.b16 %v981
      %v1014 = vunpack.c.l.b16 %v982
      %v1015 = vunpack.c.l.b16 %v983
      %v1016 = vunpack.c.l.b16 %v984
      %v1017 = vunpack.c.l.b16 %v985
      %v1018 = vunpack.c.l.b16 %v986
      %v1019 = vunpack.c.l.b16 %v987
      %v1020 = vunpack.c.l.b16 %v988
      %v1021 = vunpack.c.l.b16 %v989
      %v1022 = vpack.c.b16 %v1007, %v1006
      %v1023 = vpack.c.b16 %v1009, %v1008
      %v1024 = vpack.c.b16 %v1011, %v1010
      %v1025 = vpack.c.b16 %v1013, %v1012
      %v1026 = vpack.c.b16 %v1015, %v1014
      %v1027 = vpack.c.b16 %v1017, %v1016
      %v1028 = vpack.c.b16 %v1019, %v1018
      %v1029 = vpack.c.b16 %v1021, %v1020
      %1038 = vmatprep.subr.bf16.mxu0 0
      %1039 = vmatpush1.bf16.msra.mxu0 %v1022
      %1040 = vmatprep.subr.bf16.mxu0 0
      %1041 = vmatpush1.bf16.msra.mxu0 %v1023
      %1042 = vmatprep.subr.bf16.mxu0 0
      %1043 = vmatpush1.bf16.msra.mxu0 %v1024
      %1044 = vmatprep.subr.bf16.mxu0 0
      %1045 = vmatpush1.bf16.msra.mxu0 %v1025
      %1046 = vmatprep.subr.bf16.mxu0 0
      %1047 = vmatpush1.bf16.msra.mxu0 %v1026
      %1048 = vmatprep.subr.bf16.mxu0 0
      %1049 = vmatpush1.bf16.msra.mxu0 %v1027
      %1050 = vmatprep.subr.bf16.mxu0 0
      %1051 = vmatpush1.bf16.msra.mxu0 %v1028
      %1052 = vmatprep.subr.bf16.mxu0 0
      %1053 = vmatpush1.bf16.msra.mxu0 %v1029
      %1054 = vmatprep.subr.bf16.mxu0 0
      %1055 = vmatpush1.bf16.msra.mxu0 0
      %1056 = vmatprep.subr.bf16.mxu0 0
      %1057 = vmatpush1.bf16.msra.mxu0 0
      %1058 = vmatprep.subr.bf16.mxu0 0
      %1059 = vmatpush1.bf16.msra.mxu0 0
      %1060 = vmatprep.subr.bf16.mxu0 0
      %1061 = vmatpush1.bf16.msra.mxu0 0
      %1062 = vmatprep.subr.bf16.mxu0 0
      %1063 = vmatpush1.bf16.msra.mxu0 0
      %1064 = vmatprep.subr.bf16.mxu0 0
      %1065 = vmatpush1.bf16.msra.mxu0 0
      %1066 = vmatprep.subr.bf16.mxu0 0
      %1067 = vmatpush1.bf16.msra.mxu0 0
      %1068 = vmatprep.subr.bf16.mxu0 0
      %1069 = vmatpush1.bf16.msra.mxu0 0
      %1070 = vmatprep.mubr.bf16.mxu0 0
      %1071 = vmatmul.mubr.bf16.gmra.mrb[0].mxu0 %v965
      %v1072 = vpop.f32.mrb[0].mxu0
      %v1073 = vadd.f32 0.0, %v1072
      %v1074 = vpop.f32.mrb[0].mxu0
      %v1075 = vpop.f32.mrb[0].mxu0
      %v1076 = vadd.f32 0.0, %v1075
      %v1077 = vpop.f32.mrb[0].mxu0
      %1078 = vmatprep.mubr.bf16.mxu0 0
      %1079 = vmatmul.mubr.bf16.gmra.mrb[0].mxu0 %v966
      %v1080 = vpop.f32.mrb[0].mxu0
      %v1081 = vadd.f32 0.0, %v1080
      %v1082 = vpop.f32.mrb[0].mxu0
      %v1083 = vpop.f32.mrb[0].mxu0
      %v1084 = vadd.f32 0.0, %v1083
      %v1085 = vpop.f32.mrb[0].mxu0
      %1086 = vmatprep.mubr.bf16.mxu0 0
      %1087 = vmatmul.mubr.bf16.gmra.mrb[0].mxu0 %v967
      %v1088 = vpop.f32.mrb[0].mxu0
      %v1089 = vadd.f32 0.0, %v1088
      %v1090 = vpop.f32.mrb[0].mxu0
      %v1091 = vpop.f32.mrb[0].mxu0
      %v1092 = vadd.f32 0.0, %v1091
      %v1093 = vpop.f32.mrb[0].mxu0
      %1094 = vmatprep.mubr.bf16.mxu0 0
      %1095 = vmatmul.mubr.bf16.gmra.mrb[0].mxu0 %v968
      %v1096 = vpop.f32.mrb[0].mxu0
      %v1097 = vadd.f32 0.0, %v1096
      %v1098 = vpop.f32.mrb[0].mxu0
      %v1099 = vpop.f32.mrb[0].mxu0
      %v1100 = vadd.f32 0.0, %v1099
      %v1101 = vpop.f32.mrb[0].mxu0
      %1102 = vmatprep.mubr.bf16.mxu0 0
      %1103 = vmatmul.mubr.bf16.gmra.mrb[0].mxu0 %v969
      %v1104 = vpop.f32.mrb[0].mxu0
      %v1105 = vadd.f32 0.0, %v1104
      %v1106 = vpop.f32.mrb[0].mxu0
      %v1107 = vpop.f32.mrb[0].mxu0
      %v1108 = vadd.f32 0.0, %v1107
      %v1109 = vpop.f32.mrb[0].mxu0
      %1110 = vmatprep.mubr.bf16.mxu0 0
      %1111 = vmatmul.mubr.bf16.gmra.mrb[0].mxu0 %v970
      %v1112 = vpop.f32.mrb[0].mxu0
      %v1113 = vadd.f32 0.0, %v1112
      %v1114 = vpop.f32.mrb[0].mxu0
      %v1115 = vpop.f32.mrb[0].mxu0
      %v1116 = vadd.f32 0.0, %v1115
      %v1117 = vpop.f32.mrb[0].mxu0
      %1118 = vmatprep.mubr.bf16.mxu0 0
      %1119 = vmatmul.mubr.bf16.gmra.mrb[0].mxu0 %v971
      %v1120 = vpop.f32.mrb[0].mxu0
      %v1121 = vadd.f32 0.0, %v1120
      %v1122 = vpop.f32.mrb[0].mxu0
      %v1123 = vpop.f32.mrb[0].mxu0
      %v1124 = vadd.f32 0.0, %v1123
      %v1125 = vpop.f32.mrb[0].mxu0
      %1126 = vmatprep.mubr.bf16.mxu0 0
      %1127 = vmatmul.mubr.bf16.gmra.mrb[0].mxu0 %v972
      %v1128 = vpop.f32.mrb[0].mxu0
      %v1129 = vadd.f32 0.0, %v1128
      %v1130 = vpop.f32.mrb[0].mxu0
      %v1131 = vpop.f32.mrb[0].mxu0
      %v1132 = vadd.f32 0.0, %v1131
      %v1133 = vpop.f32.mrb[0].mxu0
      %1134 = vdwg.mxu0
      %v1135 = vadd.f32 %v949, %v1073
      %v1136 = vadd.f32 %v950, %v1076
      %v1137 = vadd.f32 %v951, %v1081
      %v1138 = vadd.f32 %v952, %v1084
      %v1139 = vadd.f32 %v953, %v1089
      %v1140 = vadd.f32 %v954, %v1092
      %v1141 = vadd.f32 %v955, %v1097
      %v1142 = vadd.f32 %v956, %v1100
      %v1143 = vadd.f32 %v957, %v1105
      %v1144 = vadd.f32 %v958, %v1108
      %v1145 = vadd.f32 %v959, %v1113
      %v1146 = vadd.f32 %v960, %v1116
      %v1147 = vadd.f32 %v961, %v1121
      %v1148 = vadd.f32 %v962, %v1124
      %v1149 = vadd.f32 %v963, %v1129
      %v1150 = vadd.f32 %v964, %v1132
      %v1151 = vld [vmem:[#allocation2 + $0x10] sm:$0xff]
      %v1152 = vld [vmem:[#allocation2 + $0x18] sm:$0xff]
      %v1153 = vld [vmem:[#allocation2 + $0x20] sm:$0xff]
      %v1154 = vld [vmem:[#allocation2 + $0x28] sm:$0xff]
      %v1155 = vld [vmem:[#allocation2 + $0x30] sm:$0xff]
      %v1156 = vld [vmem:[#allocation2 + $0x38] sm:$0xff]
      %v1157 = vld [vmem:[#allocation2 + $0x40] sm:$0xff]
      %v1158 = vld [vmem:[#allocation2 + $0x48] sm:$0xff]
      %v1159 = vld [vmem:[#allocation2 + $0x50] sm:$0x1]
      %s1160 = scalar_lea.vmem %s1, 256
      %v1161 = vld [vmem:[%s1160] sm:$0xf]
      %v1162 = vld [vmem:[%s1160 + $0x4] sm:$0xf]
      %v1163 = vld [vmem:[%s1160 + $0x8] sm:$0xf]
      %v1164 = vld [vmem:[%s1160 + $0xc] sm:$0xf]
      %v1165 = vld [vmem:[%s1160 + $0x10] sm:$0xf]
      %v1166 = vld [vmem:[%s1160 + $0x14] sm:$0xf]
      %v1167 = vld [vmem:[%s1160 + $0x18] sm:$0xf]
      %v1168 = vld [vmem:[%s1160 + $0x1c] sm:$0xf]
      %v1169 = vld [vmem:[%s1160 + $0x20] sm:$0xf]
      %v1170 = vld [vmem:[%s1160 + $0x24] sm:$0xf]
      %v1171 = vld [vmem:[%s1160 + $0x28] sm:$0xf]
      %v1172 = vld [vmem:[%s1160 + $0x2c] sm:$0xf]
      %v1173 = vld [vmem:[%s1160 + $0x30] sm:$0xf]
      %v1174 = vld [vmem:[%s1160 + $0x34] sm:$0xf]
      %v1175 = vld [vmem:[%s1160 + $0x38] sm:$0xf]
      %v1176 = vld [vmem:[%s1160 + $0x3c] sm:$0xf]
      %vm1177 = vsmask.f32 7424
      %v1179 = vshrl.u32 %v1151, 16
      %v1181 = vshll.u32 %v1151, 16
      %v1183 = vrot.slane %v1181, 1
      %v1184 = vor.u32 %v1179, %v1183
      %v1186 = vshll.u32 %v1152, 16
      %v1188 = vrot.slane %v1186, 1
      %v1189 = vsel %vm1177, %v1184, %v1188
      %v1190 = vshrl.u32 %v1152, 16
      %v1192 = vor.u32 %v1190, %v1188
      %v1194 = vshll.u32 %v1153, 16
      %v1196 = vrot.slane %v1194, 1
      %v1197 = vsel %vm1177, %v1192, %v1196
      %v1198 = vshrl.u32 %v1153, 16
      %v1200 = vor.u32 %v1198, %v1196
      %v1202 = vshll.u32 %v1154, 16
      %v1204 = vrot.slane %v1202, 1
      %v1205 = vsel %vm1177, %v1200, %v1204
      %v1206 = vshrl.u32 %v1154, 16
      %v1208 = vor.u32 %v1206, %v1204
      %v1210 = vshll.u32 %v1155, 16
      %v1212 = vrot.slane %v1210, 1
      %v1213 = vsel %vm1177, %v1208, %v1212
      %v1214 = vshrl.u32 %v1155, 16
      %v1216 = vor.u32 %v1214, %v1212
      %v1218 = vshll.u32 %v1156, 16
      %v1220 = vrot.slane %v1218, 1
      %v1221 = vsel %vm1177, %v1216, %v1220
      %v1222 = vshrl.u32 %v1156, 16
      %v1224 = vor.u32 %v1222, %v1220
      %v1226 = vshll.u32 %v1157, 16
      %v1228 = vrot.slane %v1226, 1
      %v1229 = vsel %vm1177, %v1224, %v1228
      %v1230 = vshrl.u32 %v1157, 16
      %v1232 = vor.u32 %v1230, %v1228
      %v1234 = vshll.u32 %v1158, 16
      %v1236 = vrot.slane %v1234, 1
      %v1237 = vsel %vm1177, %v1232, %v1236
      %v1238 = vshrl.u32 %v1158, 16
      %v1240 = vor.u32 %v1238, %v1236
      %v1242 = vshll.u32 %v1159, 16
      %v1244 = vrot.slane %v1242, 1
      %v1245 = vsel %vm1177, %v1240, %v1244
      %v1270 = vunpack.c.l.b16 %v1161
      %v1271 = vunpack.c.l.b16 %v1162
      %v1272 = vunpack.c.l.b16 %v1163
      %v1273 = vunpack.c.l.b16 %v1164
      %v1274 = vunpack.c.l.b16 %v1165
      %v1275 = vunpack.c.l.b16 %v1166
      %v1276 = vunpack.c.l.b16 %v1167
      %v1277 = vunpack.c.l.b16 %v1168
      %v1278 = vunpack.c.l.b16 %v1169
      %v1279 = vunpack.c.l.b16 %v1170
      %v1280 = vunpack.c.l.b16 %v1171
      %v1281 = vunpack.c.l.b16 %v1172
      %v1282 = vunpack.c.l.b16 %v1173
      %v1283 = vunpack.c.l.b16 %v1174
      %v1284 = vunpack.c.l.b16 %v1175
      %v1285 = vunpack.c.l.b16 %v1176
      %v1286 = vpack.c.b16 %v1271, %v1270
      %v1287 = vpack.c.b16 %v1273, %v1272
      %v1288 = vpack.c.b16 %v1275, %v1274
      %v1289 = vpack.c.b16 %v1277, %v1276
      %v1290 = vpack.c.b16 %v1279, %v1278
      %v1291 = vpack.c.b16 %v1281, %v1280
      %v1292 = vpack.c.b16 %v1283, %v1282
      %v1293 = vpack.c.b16 %v1285, %v1284
      %1302 = vmatprep.subr.bf16.mxu0 0
      %1303 = vmatpush1.bf16.msra.mxu0 %v1286
      %1304 = vmatprep.subr.bf16.mxu0 0
      %1305 = vmatpush1.bf16.msra.mxu0 %v1287
      %1306 = vmatprep.subr.bf16.mxu0 0
      %1307 = vmatpush1.bf16.msra.mxu0 %v1288
      %1308 = vmatprep.subr.bf16.mxu0 0
      %1309 = vmatpush1.bf16.msra.mxu0 %v1289
      %1310 = vmatprep.subr.bf16.mxu0 0
      %1311 = vmatpush1.bf16.msra.mxu0 %v1290
      %1312 = vmatprep.subr.bf16.mxu0 0
      %1313 = vmatpush1.bf16.msra.mxu0 %v1291
      %1314 = vmatprep.subr.bf16.mxu0 0
      %1315 = vmatpush1.bf16.msra.mxu0 %v1292
      %1316 = vmatprep.subr.bf16.mxu0 0
      %1317 = vmatpush1.bf16.msra.mxu0 %v1293
      %1318 = vmatprep.subr.bf16.mxu0 0
      %1319 = vmatpush1.bf16.msra.mxu0 0
      %1320 = vmatprep.subr.bf16.mxu0 0
      %1321 = vmatpush1.bf16.msra.mxu0 0
      %1322 = vmatprep.subr.bf16.mxu0 0
      %1323 = vmatpush1.bf16.msra.mxu0 0
      %1324 = vmatprep.subr.bf16.mxu0 0
      %1325 = vmatpush1.bf16.msra.mxu0 0
      %1326 = vmatprep.subr.bf16.mxu0 0
      %1327 = vmatpush1.bf16.msra.mxu0 0
      %1328 = vmatprep.subr.bf16.mxu0 0
      %1329 = vmatpush1.bf16.msra.mxu0 0
      %1330 = vmatprep.subr.bf16.mxu0 0
      %1331 = vmatpush1.bf16.msra.mxu0 0
      %1332 = vmatprep.subr.bf16.mxu0 0
      %1333 = vmatpush1.bf16.msra.mxu0 0
      %1334 = vmatprep.mubr.bf16.mxu0 0
      %1335 = vmatmul.mubr.bf16.gmra.mrb[0].mxu0 %v1189
      %v1336 = vpop.f32.mrb[0].mxu0
      %v1337 = vadd.f32 0.0, %v1336
      %v1338 = vpop.f32.mrb[0].mxu0
      %v1339 = vpop.f32.mrb[0].mxu0
      %v1340 = vadd.f32 0.0, %v1339
      %v1341 = vpop.f32.mrb[0].mxu0
      %1342 = vmatprep.mubr.bf16.mxu0 0
      %1343 = vmatmul.mubr.bf16.gmra.mrb[0].mxu0 %v1197
      %v1344 = vpop.f32.mrb[0].mxu0
      %v1345 = vadd.f32 0.0, %v1344
      %v1346 = vpop.f32.mrb[0].mxu0
      %v1347 = vpop.f32.mrb[0].mxu0
      %v1348 = vadd.f32 0.0, %v1347
      %v1349 = vpop.f32.mrb[0].mxu0
      %1350 = vmatprep.mubr.bf16.mxu0 0
      %1351 = vmatmul.mubr.bf16.gmra.mrb[0].mxu0 %v1205
      %v1352 = vpop.f32.mrb[0].mxu0
      %v1353 = vadd.f32 0.0, %v1352
      %v1354 = vpop.f32.mrb[0].mxu0
      %v1355 = vpop.f32.mrb[0].mxu0
      %v1356 = vadd.f32 0.0, %v1355
      %v1357 = vpop.f32.mrb[0].mxu0
      %1358 = vmatprep.mubr.bf16.mxu0 0
      %1359 = vmatmul.mubr.bf16.gmra.mrb[0].mxu0 %v1213
      %v1360 = vpop.f32.mrb[0].mxu0
      %v1361 = vadd.f32 0.0, %v1360
      %v1362 = vpop.f32.mrb[0].mxu0
      %v1363 = vpop.f32.mrb[0].mxu0
      %v1364 = vadd.f32 0.0, %v1363
      %v1365 = vpop.f32.mrb[0].mxu0
      %1366 = vmatprep.mubr.bf16.mxu0 0
      %1367 = vmatmul.mubr.bf16.gmra.mrb[0].mxu0 %v1221
      %v1368 = vpop.f32.mrb[0].mxu0
      %v1369 = vadd.f32 0.0, %v1368
      %v1370 = vpop.f32.mrb[0].mxu0
      %v1371 = vpop.f32.mrb[0].mxu0
      %v1372 = vadd.f32 0.0, %v1371
      %v1373 = vpop.f32.mrb[0].mxu0
      %1374 = vmatprep.mubr.bf16.mxu0 0
      %1375 = vmatmul.mubr.bf16.gmra.mrb[0].mxu0 %v1229
      %v1376 = vpop.f32.mrb[0].mxu0
      %v1377 = vadd.f32 0.0, %v1376
      %v1378 = vpop.f32.mrb[0].mxu0
      %v1379 = vpop.f32.mrb[0].mxu0
      %v1380 = vadd.f32 0.0, %v1379
      %v1381 = vpop.f32.mrb[0].mxu0
      %1382 = vmatprep.mubr.bf16.mxu0 0
      %1383 = vmatmul.mubr.bf16.gmra.mrb[0].mxu0 %v1237
      %v1384 = vpop.f32.mrb[0].mxu0
      %v1385 = vadd.f32 0.0, %v1384
      %v1386 = vpop.f32.mrb[0].mxu0
      %v1387 = vpop.f32.mrb[0].mxu0
      %v1388 = vadd.f32 0.0, %v1387
      %v1389 = vpop.f32.mrb[0].mxu0
      %1390 = vmatprep.mubr.bf16.mxu0 0
      %1391 = vmatmul.mubr.bf16.gmra.mrb[0].mxu0 %v1245
      %v1392 = vpop.f32.mrb[0].mxu0
      %v1393 = vadd.f32 0.0, %v1392
      %v1394 = vpop.f32.mrb[0].mxu0
      %v1395 = vpop.f32.mrb[0].mxu0
      %v1396 = vadd.f32 0.0, %v1395
      %v1397 = vpop.f32.mrb[0].mxu0
      %1398 = vdwg.mxu0
      %v1399 = vadd.f32 %v1135, %v1337
      %v1400 = vadd.f32 %v1136, %v1340
      %v1401 = vadd.f32 %v1137, %v1345
      %v1402 = vadd.f32 %v1138, %v1348
      %v1403 = vadd.f32 %v1139, %v1353
      %v1404 = vadd.f32 %v1140, %v1356
      %v1405 = vadd.f32 %v1141, %v1361
      %v1406 = vadd.f32 %v1142, %v1364
      %v1407 = vadd.f32 %v1143, %v1369
      %v1408 = vadd.f32 %v1144, %v1372
      %v1409 = vadd.f32 %v1145, %v1377
      %v1410 = vadd.f32 %v1146, %v1380
      %v1411 = vadd.f32 %v1147, %v1385
      %v1412 = vadd.f32 %v1148, %v1388
      %v1413 = vadd.f32 %v1149, %v1393
      %v1414 = vadd.f32 %v1150, %v1396
      %v1415 = vld [vmem:[#allocation2 + $0x10] sm:$0xfe]
      %s1416 = scalar_lea.vmem %s1, 320
      %v1417 = vld [vmem:[%s1416] sm:$0xf]
      %v1418 = vld [vmem:[%s1416 + $0x4] sm:$0xf]
      %v1419 = vld [vmem:[%s1416 + $0x8] sm:$0xf]
      %v1420 = vld [vmem:[%s1416 + $0xc] sm:$0xf]
      %v1421 = vld [vmem:[%s1416 + $0x10] sm:$0xf]
      %v1422 = vld [vmem:[%s1416 + $0x14] sm:$0xf]
      %v1423 = vld [vmem:[%s1416 + $0x18] sm:$0xf]
      %v1424 = vld [vmem:[%s1416 + $0x1c] sm:$0xf]
      %v1425 = vld [vmem:[%s1416 + $0x20] sm:$0xf]
      %v1426 = vld [vmem:[%s1416 + $0x24] sm:$0xf]
      %v1427 = vld [vmem:[%s1416 + $0x28] sm:$0xf]
      %v1428 = vld [vmem:[%s1416 + $0x2c] sm:$0xf]
      %v1429 = vld [vmem:[%s1416 + $0x30] sm:$0xf]
      %v1430 = vld [vmem:[%s1416 + $0x34] sm:$0xf]
      %v1431 = vld [vmem:[%s1416 + $0x38] sm:$0xf]
      %v1432 = vld [vmem:[%s1416 + $0x3c] sm:$0xf]
      %vm1442 = vcmask 1046528
      %v1443 = vrot.slane %v1415, 1
      %v1444 = vrot.slane %v1152, 1
      %v1445 = vsel %vm1442, %v1443, %v1444
      %v1446 = vrot.slane %v1153, 1
      %v1447 = vsel %vm1442, %v1444, %v1446
      %v1448 = vrot.slane %v1154, 1
      %v1449 = vsel %vm1442, %v1446, %v1448
      %v1450 = vrot.slane %v1155, 1
      %v1451 = vsel %vm1442, %v1448, %v1450
      %v1452 = vrot.slane %v1156, 1
      %v1453 = vsel %vm1442, %v1450, %v1452
      %v1454 = vrot.slane %v1157, 1
      %v1455 = vsel %vm1442, %v1452, %v1454
      %v1456 = vrot.slane %v1158, 1
      %v1457 = vsel %vm1442, %v1454, %v1456
      %v1458 = vrot.slane %v1159, 1
      %v1459 = vsel %vm1442, %v1456, %v1458
      %v1484 = vunpack.c.l.b16 %v1417
      %v1485 = vunpack.c.l.b16 %v1418
      %v1486 = vunpack.c.l.b16 %v1419
      %v1487 = vunpack.c.l.b16 %v1420
      %v1488 = vunpack.c.l.b16 %v1421
      %v1489 = vunpack.c.l.b16 %v1422
      %v1490 = vunpack.c.l.b16 %v1423
      %v1491 = vunpack.c.l.b16 %v1424
      %v1492 = vunpack.c.l.b16 %v1425
      %v1493 = vunpack.c.l.b16 %v1426
      %v1494 = vunpack.c.l.b16 %v1427
      %v1495 = vunpack.c.l.b16 %v1428
      %v1496 = vunpack.c.l.b16 %v1429
      %v1497 = vunpack.c.l.b16 %v1430
      %v1498 = vunpack.c.l.b16 %v1431
      %v1499 = vunpack.c.l.b16 %v1432
      %v1500 = vpack.c.b16 %v1485, %v1484
      %v1501 = vpack.c.b16 %v1487, %v1486
      %v1502 = vpack.c.b16 %v1489, %v1488
      %v1503 = vpack.c.b16 %v1491, %v1490
      %v1504 = vpack.c.b16 %v1493, %v1492
      %v1505 = vpack.c.b16 %v1495, %v1494
      %v1506 = vpack.c.b16 %v1497, %v1496
      %v1507 = vpack.c.b16 %v1499, %v1498
      %1516 = vmatprep.subr.bf16.mxu0 0
      %1517 = vmatpush1.bf16.msra.mxu0 %v1500
      %1518 = vmatprep.subr.bf16.mxu0 0
      %1519 = vmatpush1.bf16.msra.mxu0 %v1501
      %1520 = vmatprep.subr.bf16.mxu0 0
      %1521 = vmatpush1.bf16.msra.mxu0 %v1502
      %1522 = vmatprep.subr.bf16.mxu0 0
      %1523 = vmatpush1.bf16.msra.mxu0 %v1503
      %1524 = vmatprep.subr.bf16.mxu0 0
      %1525 = vmatpush1.bf16.msra.mxu0 %v1504
      %1526 = vmatprep.subr.bf16.mxu0 0
      %1527 = vmatpush1.bf16.msra.mxu0 %v1505
      %1528 = vmatprep.subr.bf16.mxu0 0
      %1529 = vmatpush1.bf16.msra.mxu0 %v1506
      %1530 = vmatprep.subr.bf16.mxu0 0
      %1531 = vmatpush1.bf16.msra.mxu0 %v1507
      %1532 = vmatprep.subr.bf16.mxu0 0
      %1533 = vmatpush1.bf16.msra.mxu0 0
      %1534 = vmatprep.subr.bf16.mxu0 0
      %1535 = vmatpush1.bf16.msra.mxu0 0
      %1536 = vmatprep.subr.bf16.mxu0 0
      %1537 = vmatpush1.bf16.msra.mxu0 0
      %1538 = vmatprep.subr.bf16.mxu0 0
      %1539 = vmatpush1.bf16.msra.mxu0 0
      %1540 = vmatprep.subr.bf16.mxu0 0
      %1541 = vmatpush1.bf16.msra.mxu0 0
      %1542 = vmatprep.subr.bf16.mxu0 0
      %1543 = vmatpush1.bf16.msra.mxu0 0
      %1544 = vmatprep.subr.bf16.mxu0 0
      %1545 = vmatpush1.bf16.msra.mxu0 0
      %1546 = vmatprep.subr.bf16.mxu0 0
      %1547 = vmatpush1.bf16.msra.mxu0 0
      %1548 = vmatprep.mubr.bf16.mxu0 0
      %1549 = vmatmul.mubr.bf16.gmra.mrb[0].mxu0 %v1445
      %v1550 = vpop.f32.mrb[0].mxu0
      %v1551 = vadd.f32 0.0, %v1550
      %v1552 = vpop.f32.mrb[0].mxu0
      %v1553 = vpop.f32.mrb[0].mxu0
      %v1554 = vadd.f32 0.0, %v1553
      %v1555 = vpop.f32.mrb[0].mxu0
      %1556 = vmatprep.mubr.bf16.mxu0 0
      %1557 = vmatmul.mubr.bf16.gmra.mrb[0].mxu0 %v1447
      %v1558 = vpop.f32.mrb[0].mxu0
      %v1559 = vadd.f32 0.0, %v1558
      %v1560 = vpop.f32.mrb[0].mxu0
      %v1561 = vpop.f32.mrb[0].mxu0
      %v1562 = vadd.f32 0.0, %v1561
      %v1563 = vpop.f32.mrb[0].mxu0
      %1564 = vmatprep.mubr.bf16.mxu0 0
      %1565 = vmatmul.mubr.bf16.gmra.mrb[0].mxu0 %v1449
      %v1566 = vpop.f32.mrb[0].mxu0
      %v1567 = vadd.f32 0.0, %v1566
      %v1568 = vpop.f32.mrb[0].mxu0
      %v1569 = vpop.f32.mrb[0].mxu0
      %v1570 = vadd.f32 0.0, %v1569
      %v1571 = vpop.f32.mrb[0].mxu0
      %1572 = vmatprep.mubr.bf16.mxu0 0
      %1573 = vmatmul.mubr.bf16.gmra.mrb[0].mxu0 %v1451
      %v1574 = vpop.f32.mrb[0].mxu0
      %v1575 = vadd.f32 0.0, %v1574
      %v1576 = vpop.f32.mrb[0].mxu0
      %v1577 = vpop.f32.mrb[0].mxu0
      %v1578 = vadd.f32 0.0, %v1577
      %v1579 = vpop.f32.mrb[0].mxu0
      %1580 = vmatprep.mubr.bf16.mxu0 0
      %1581 = vmatmul.mubr.bf16.gmra.mrb[0].mxu0 %v1453
      %v1582 = vpop.f32.mrb[0].mxu0
      %v1583 = vadd.f32 0.0, %v1582
      %v1584 = vpop.f32.mrb[0].mxu0
      %v1585 = vpop.f32.mrb[0].mxu0
      %v1586 = vadd.f32 0.0, %v1585
      %v1587 = vpop.f32.mrb[0].mxu0
      %1588 = vmatprep.mubr.bf16.mxu0 0
      %1589 = vmatmul.mubr.bf16.gmra.mrb[0].mxu0 %v1455
      %v1590 = vpop.f32.mrb[0].mxu0
      %v1591 = vadd.f32 0.0, %v1590
      %v1592 = vpop.f32.mrb[0].mxu0
      %v1593 = vpop.f32.mrb[0].mxu0
      %v1594 = vadd.f32 0.0, %v1593
      %v1595 = vpop.f32.mrb[0].mxu0
      %1596 = vmatprep.mubr.bf16.mxu0 0
      %1597 = vmatmul.mubr.bf16.gmra.mrb[0].mxu0 %v1457
      %v1598 = vpop.f32.mrb[0].mxu0
      %v1599 = vadd.f32 0.0, %v1598
      %v1600 = vpop.f32.mrb[0].mxu0
      %v1601 = vpop.f32.mrb[0].mxu0
      %v1602 = vadd.f32 0.0, %v1601
      %v1603 = vpop.f32.mrb[0].mxu0
      %1604 = vmatprep.mubr.bf16.mxu0 0
      %1605 = vmatmul.mubr.bf16.gmra.mrb[0].mxu0 %v1459
      %v1606 = vpop.f32.mrb[0].mxu0
      %v1607 = vadd.f32 0.0, %v1606
      %v1608 = vpop.f32.mrb[0].mxu0
      %v1609 = vpop.f32.mrb[0].mxu0
      %v1610 = vadd.f32 0.0, %v1609
      %v1611 = vpop.f32.mrb[0].mxu0
      %1612 = vdwg.mxu0
      %v1613 = vadd.f32 %v1399, %v1551
      %v1614 = vadd.f32 %v1400, %v1554
      %v1615 = vadd.f32 %v1401, %v1559
      %v1616 = vadd.f32 %v1402, %v1562
      %v1617 = vadd.f32 %v1403, %v1567
      %v1618 = vadd.f32 %v1404, %v1570
      %v1619 = vadd.f32 %v1405, %v1575
      %v1620 = vadd.f32 %v1406, %v1578
      %v1621 = vadd.f32 %v1407, %v1583
      %v1622 = vadd.f32 %v1408, %v1586
      %v1623 = vadd.f32 %v1409, %v1591
      %v1624 = vadd.f32 %v1410, %v1594
      %v1625 = vadd.f32 %v1411, %v1599
      %v1626 = vadd.f32 %v1412, %v1602
      %v1627 = vadd.f32 %v1413, %v1607
      %v1628 = vadd.f32 %v1414, %v1610
      %v1629 = vld [vmem:[#allocation2 + $0x18] sm:$0xfe]
      %v1630 = vld [vmem:[#allocation2 + $0x20] sm:$0xff]
      %v1631 = vld [vmem:[#allocation2 + $0x28] sm:$0xff]
      %v1632 = vld [vmem:[#allocation2 + $0x30] sm:$0xff]
      %v1633 = vld [vmem:[#allocation2 + $0x38] sm:$0xff]
      %v1634 = vld [vmem:[#allocation2 + $0x40] sm:$0xff]
      %v1635 = vld [vmem:[#allocation2 + $0x48] sm:$0xff]
      %v1636 = vld [vmem:[#allocation2 + $0x50] sm:$0xff]
      %v1637 = vld [vmem:[#allocation2 + $0x58] sm:$0x1]
      %s1638 = scalar_lea.vmem %s1, 384
      %v1639 = vld [vmem:[%s1638] sm:$0xf]
      %v1640 = vld [vmem:[%s1638 + $0x4] sm:$0xf]
      %v1641 = vld [vmem:[%s1638 + $0x8] sm:$0xf]
      %v1642 = vld [vmem:[%s1638 + $0xc] sm:$0xf]
      %v1643 = vld [vmem:[%s1638 + $0x10] sm:$0xf]
      %v1644 = vld [vmem:[%s1638 + $0x14] sm:$0xf]
      %v1645 = vld [vmem:[%s1638 + $0x18] sm:$0xf]
      %v1646 = vld [vmem:[%s1638 + $0x1c] sm:$0xf]
      %v1647 = vld [vmem:[%s1638 + $0x20] sm:$0xf]
      %v1648 = vld [vmem:[%s1638 + $0x24] sm:$0xf]
      %v1649 = vld [vmem:[%s1638 + $0x28] sm:$0xf]
      %v1650 = vld [vmem:[%s1638 + $0x2c] sm:$0xf]
      %v1651 = vld [vmem:[%s1638 + $0x30] sm:$0xf]
      %v1652 = vld [vmem:[%s1638 + $0x34] sm:$0xf]
      %v1653 = vld [vmem:[%s1638 + $0x38] sm:$0xf]
      %v1654 = vld [vmem:[%s1638 + $0x3c] sm:$0xf]
      %v1664 = vrot.slane %v1629, 1
      %v1665 = vrot.slane %v1630, 1
      %v1666 = vsel %vm1442, %v1664, %v1665
      %v1667 = vrot.slane %v1631, 1
      %v1668 = vsel %vm1442, %v1665, %v1667
      %v1669 = vrot.slane %v1632, 1
      %v1670 = vsel %vm1442, %v1667, %v1669
      %v1671 = vrot.slane %v1633, 1
      %v1672 = vsel %vm1442, %v1669, %v1671
      %v1673 = vrot.slane %v1634, 1
      %v1674 = vsel %vm1442, %v1671, %v1673
      %v1675 = vrot.slane %v1635, 1
      %v1676 = vsel %vm1442, %v1673, %v1675
      %v1677 = vrot.slane %v1636, 1
      %v1678 = vsel %vm1442, %v1675, %v1677
      %v1679 = vrot.slane %v1637, 1
      %v1680 = vsel %vm1442, %v1677, %v1679
      %v1705 = vunpack.c.l.b16 %v1639
      %v1706 = vunpack.c.l.b16 %v1640
      %v1707 = vunpack.c.l.b16 %v1641
      %v1708 = vunpack.c.l.b16 %v1642
      %v1709 = vunpack.c.l.b16 %v1643
      %v1710 = vunpack.c.l.b16 %v1644
      %v1711 = vunpack.c.l.b16 %v1645
      %v1712 = vunpack.c.l.b16 %v1646
      %v1713 = vunpack.c.l.b16 %v1647
      %v1714 = vunpack.c.l.b16 %v1648
      %v1715 = vunpack.c.l.b16 %v1649
      %v1716 = vunpack.c.l.b16 %v1650
      %v1717 = vunpack.c.l.b16 %v1651
      %v1718 = vunpack.c.l.b16 %v1652
      %v1719 = vunpack.c.l.b16 %v1653
      %v1720 = vunpack.c.l.b16 %v1654
      %v1721 = vpack.c.b16 %v1706, %v1705
      %v1722 = vpack.c.b16 %v1708, %v1707
      %v1723 = vpack.c.b16 %v1710, %v1709
      %v1724 = vpack.c.b16 %v1712, %v1711
      %v1725 = vpack.c.b16 %v1714, %v1713
      %v1726 = vpack.c.b16 %v1716, %v1715
      %v1727 = vpack.c.b16 %v1718, %v1717
      %v1728 = vpack.c.b16 %v1720, %v1719
      %1737 = vmatprep.subr.bf16.mxu0 0
      %1738 = vmatpush1.bf16.msra.mxu0 %v1721
      %1739 = vmatprep.subr.bf16.mxu0 0
      %1740 = vmatpush1.bf16.msra.mxu0 %v1722
      %1741 = vmatprep.subr.bf16.mxu0 0
      %1742 = vmatpush1.bf16.msra.mxu0 %v1723
      %1743 = vmatprep.subr.bf16.mxu0 0
      %1744 = vmatpush1.bf16.msra.mxu0 %v1724
      %1745 = vmatprep.subr.bf16.mxu0 0
      %1746 = vmatpush1.bf16.msra.mxu0 %v1725
      %1747 = vmatprep.subr.bf16.mxu0 0
      %1748 = vmatpush1.bf16.msra.mxu0 %v1726
      %1749 = vmatprep.subr.bf16.mxu0 0
      %1750 = vmatpush1.bf16.msra.mxu0 %v1727
      %1751 = vmatprep.subr.bf16.mxu0 0
      %1752 = vmatpush1.bf16.msra.mxu0 %v1728
      %1753 = vmatprep.subr.bf16.mxu0 0
      %1754 = vmatpush1.bf16.msra.mxu0 0
      %1755 = vmatprep.subr.bf16.mxu0 0
      %1756 = vmatpush1.bf16.msra.mxu0 0
      %1757 = vmatprep.subr.bf16.mxu0 0
      %1758 = vmatpush1.bf16.msra.mxu0 0
      %1759 = vmatprep.subr.bf16.mxu0 0
      %1760 = vmatpush1.bf16.msra.mxu0 0
      %1761 = vmatprep.subr.bf16.mxu0 0
      %1762 = vmatpush1.bf16.msra.mxu0 0
      %1763 = vmatprep.subr.bf16.mxu0 0
      %1764 = vmatpush1.bf16.msra.mxu0 0
      %1765 = vmatprep.subr.bf16.mxu0 0
      %1766 = vmatpush1.bf16.msra.mxu0 0
      %1767 = vmatprep.subr.bf16.mxu0 0
      %1768 = vmatpush1.bf16.msra.mxu0 0
      %1769 = vmatprep.mubr.bf16.mxu0 0
      %1770 = vmatmul.mubr.bf16.gmra.mrb[0].mxu0 %v1666
      %v1771 = vpop.f32.mrb[0].mxu0
      %v1772 = vadd.f32 0.0, %v1771
      %v1773 = vpop.f32.mrb[0].mxu0
      %v1774 = vpop.f32.mrb[0].mxu0
      %v1775 = vadd.f32 0.0, %v1774
      %v1776 = vpop.f32.mrb[0].mxu0
      %1777 = vmatprep.mubr.bf16.mxu0 0
      %1778 = vmatmul.mubr.bf16.gmra.mrb[0].mxu0 %v1668
      %v1779 = vpop.f32.mrb[0].mxu0
      %v1780 = vadd.f32 0.0, %v1779
      %v1781 = vpop.f32.mrb[0].mxu0
      %v1782 = vpop.f32.mrb[0].mxu0
      %v1783 = vadd.f32 0.0, %v1782
      %v1784 = vpop.f32.mrb[0].mxu0
      %1785 = vmatprep.mubr.bf16.mxu0 0
      %1786 = vmatmul.mubr.bf16.gmra.mrb[0].mxu0 %v1670
      %v1787 = vpop.f32.mrb[0].mxu0
      %v1788 = vadd.f32 0.0, %v1787
      %v1789 = vpop.f32.mrb[0].mxu0
      %v1790 = vpop.f32.mrb[0].mxu0
      %v1791 = vadd.f32 0.0, %v1790
      %v1792 = vpop.f32.mrb[0].mxu0
      %1793 = vmatprep.mubr.bf16.mxu0 0
      %1794 = vmatmul.mubr.bf16.gmra.mrb[0].mxu0 %v1672
      %v1795 = vpop.f32.mrb[0].mxu0
      %v1796 = vadd.f32 0.0, %v1795
      %v1797 = vpop.f32.mrb[0].mxu0
      %v1798 = vpop.f32.mrb[0].mxu0
      %v1799 = vadd.f32 0.0, %v1798
      %v1800 = vpop.f32.mrb[0].mxu0
      %1801 = vmatprep.mubr.bf16.mxu0 0
      %1802 = vmatmul.mubr.bf16.gmra.mrb[0].mxu0 %v1674
      %v1803 = vpop.f32.mrb[0].mxu0
      %v1804 = vadd.f32 0.0, %v1803
      %v1805 = vpop.f32.mrb[0].mxu0
      %v1806 = vpop.f32.mrb[0].mxu0
      %v1807 = vadd.f32 0.0, %v1806
      %v1808 = vpop.f32.mrb[0].mxu0
      %1809 = vmatprep.mubr.bf16.mxu0 0
      %1810 = vmatmul.mubr.bf16.gmra.mrb[0].mxu0 %v1676
      %v1811 = vpop.f32.mrb[0].mxu0
      %v1812 = vadd.f32 0.0, %v1811
      %v1813 = vpop.f32.mrb[0].mxu0
      %v1814 = vpop.f32.mrb[0].mxu0
      %v1815 = vadd.f32 0.0, %v1814
      %v1816 = vpop.f32.mrb[0].mxu0
      %1817 = vmatprep.mubr.bf16.mxu0 0
      %1818 = vmatmul.mubr.bf16.gmra.mrb[0].mxu0 %v1678
      %v1819 = vpop.f32.mrb[0].mxu0
      %v1820 = vadd.f32 0.0, %v1819
      %v1821 = vpop.f32.mrb[0].mxu0
      %v1822 = vpop.f32.mrb[0].mxu0
      %v1823 = vadd.f32 0.0, %v1822
      %v1824 = vpop.f32.mrb[0].mxu0
      %1825 = vmatprep.mubr.bf16.mxu0 0
      %1826 = vmatmul.mubr.bf16.gmra.mrb[0].mxu0 %v1680
      %v1827 = vpop.f32.mrb[0].mxu0
      %v1828 = vadd.f32 0.0, %v1827
      %v1829 = vpop.f32.mrb[0].mxu0
      %v1830 = vpop.f32.mrb[0].mxu0
      %v1831 = vadd.f32 0.0, %v1830
      %v1832 = vpop.f32.mrb[0].mxu0
      %1833 = vdwg.mxu0
      %v1834 = vadd.f32 %v1613, %v1772
      %v1835 = vadd.f32 %v1614, %v1775
      %v1836 = vadd.f32 %v1615, %v1780
      %v1837 = vadd.f32 %v1616, %v1783
      %v1838 = vadd.f32 %v1617, %v1788
      %v1839 = vadd.f32 %v1618, %v1791
      %v1840 = vadd.f32 %v1619, %v1796
      %v1841 = vadd.f32 %v1620, %v1799
      %v1842 = vadd.f32 %v1621, %v1804
      %v1843 = vadd.f32 %v1622, %v1807
      %v1844 = vadd.f32 %v1623, %v1812
      %v1845 = vadd.f32 %v1624, %v1815
      %v1846 = vadd.f32 %v1625, %v1820
      %v1847 = vadd.f32 %v1626, %v1823
      %v1848 = vadd.f32 %v1627, %v1828
      %v1849 = vadd.f32 %v1628, %v1831
      %v1850 = vld [vmem:[#allocation2 + $0x58] sm:$0x3]
      %s1851 = scalar_lea.vmem %s1, 448
      %v1852 = vld [vmem:[%s1851] sm:$0xf]
      %v1853 = vld [vmem:[%s1851 + $0x4] sm:$0xf]
      %v1854 = vld [vmem:[%s1851 + $0x8] sm:$0xf]
      %v1855 = vld [vmem:[%s1851 + $0xc] sm:$0xf]
      %v1856 = vld [vmem:[%s1851 + $0x10] sm:$0xf]
      %v1857 = vld [vmem:[%s1851 + $0x14] sm:$0xf]
      %v1858 = vld [vmem:[%s1851 + $0x18] sm:$0xf]
      %v1859 = vld [vmem:[%s1851 + $0x1c] sm:$0xf]
      %v1860 = vld [vmem:[%s1851 + $0x20] sm:$0xf]
      %v1861 = vld [vmem:[%s1851 + $0x24] sm:$0xf]
      %v1862 = vld [vmem:[%s1851 + $0x28] sm:$0xf]
      %v1863 = vld [vmem:[%s1851 + $0x2c] sm:$0xf]
      %v1864 = vld [vmem:[%s1851 + $0x30] sm:$0xf]
      %v1865 = vld [vmem:[%s1851 + $0x34] sm:$0xf]
      %v1866 = vld [vmem:[%s1851 + $0x38] sm:$0xf]
      %v1867 = vld [vmem:[%s1851 + $0x3c] sm:$0xf]
      %vm1868 = vsmask.f32 6400
      %v1870 = vshrl.u32 %v1629, 16
      %v1872 = vrot.slane %v1870, 1
      %v1873 = vshll.u32 %v1629, 16
      %v1875 = vrot.slane %v1873, 2
      %v1876 = vor.u32 %v1872, %v1875
      %v1878 = vshrl.u32 %v1630, 16
      %v1880 = vrot.slane %v1878, 1
      %v1881 = vshll.u32 %v1630, 16
      %v1883 = vrot.slane %v1881, 2
      %v1884 = vor.u32 %v1880, %v1883
      %v1885 = vsel %vm1868, %v1876, %v1884
      %v1887 = vshrl.u32 %v1631, 16
      %v1889 = vrot.slane %v1887, 1
      %v1890 = vshll.u32 %v1631, 16
      %v1892 = vrot.slane %v1890, 2
      %v1893 = vor.u32 %v1889, %v1892
      %v1894 = vsel %vm1868, %v1884, %v1893
      %v1896 = vshrl.u32 %v1632, 16
      %v1898 = vrot.slane %v1896, 1
      %v1899 = vshll.u32 %v1632, 16
      %v1901 = vrot.slane %v1899, 2
      %v1902 = vor.u32 %v1898, %v1901
      %v1903 = vsel %vm1868, %v1893, %v1902
      %v1905 = vshrl.u32 %v1633, 16
      %v1907 = vrot.slane %v1905, 1
      %v1908 = vshll.u32 %v1633, 16
      %v1910 = vrot.slane %v1908, 2
      %v1911 = vor.u32 %v1907, %v1910
      %v1912 = vsel %vm1868, %v1902, %v1911
      %v1914 = vshrl.u32 %v1634, 16
      %v1916 = vrot.slane %v1914, 1
      %v1917 = vshll.u32 %v1634, 16
      %v1919 = vrot.slane %v1917, 2
      %v1920 = vor.u32 %v1916, %v1919
      %v1921 = vsel %vm1868, %v1911, %v1920
      %v1923 = vshrl.u32 %v1635, 16
      %v1925 = vrot.slane %v1923, 1
      %v1926 = vshll.u32 %v1635, 16
      %v1928 = vrot.slane %v1926, 2
      %v1929 = vor.u32 %v1925, %v1928
      %v1930 = vsel %vm1868, %v1920, %v1929
      %v1932 = vshrl.u32 %v1636, 16
      %v1934 = vrot.slane %v1932, 1
      %v1935 = vshll.u32 %v1636, 16
      %v1937 = vrot.slane %v1935, 2
      %v1938 = vor.u32 %v1934, %v1937
      %v1939 = vsel %vm1868, %v1929, %v1938
      %v1941 = vshrl.u32 %v1850, 16
      %v1943 = vrot.slane %v1941, 1
      %v1944 = vshll.u32 %v1850, 16
      %v1946 = vrot.slane %v1944, 2
      %v1947 = vor.u32 %v1943, %v1946
      %v1948 = vsel %vm1868, %v1938, %v1947
      %v1973 = vunpack.c.l.b16 %v1852
      %v1974 = vunpack.c.l.b16 %v1853
      %v1975 = vunpack.c.l.b16 %v1854
      %v1976 = vunpack.c.l.b16 %v1855
      %v1977 = vunpack.c.l.b16 %v1856
      %v1978 = vunpack.c.l.b16 %v1857
      %v1979 = vunpack.c.l.b16 %v1858
      %v1980 = vunpack.c.l.b16 %v1859
      %v1981 = vunpack.c.l.b16 %v1860
      %v1982 = vunpack.c.l.b16 %v1861
      %v1983 = vunpack.c.l.b16 %v1862
      %v1984 = vunpack.c.l.b16 %v1863
      %v1985 = vunpack.c.l.b16 %v1864
      %v1986 = vunpack.c.l.b16 %v1865
      %v1987 = vunpack.c.l.b16 %v1866
      %v1988 = vunpack.c.l.b16 %v1867
      %v1989 = vpack.c.b16 %v1974, %v1973
      %v1990 = vpack.c.b16 %v1976, %v1975
      %v1991 = vpack.c.b16 %v1978, %v1977
      %v1992 = vpack.c.b16 %v1980, %v1979
      %v1993 = vpack.c.b16 %v1982, %v1981
      %v1994 = vpack.c.b16 %v1984, %v1983
      %v1995 = vpack.c.b16 %v1986, %v1985
      %v1996 = vpack.c.b16 %v1988, %v1987
      %2005 = vmatprep.subr.bf16.mxu0 0
      %2006 = vmatpush1.bf16.msra.mxu0 %v1989
      %2007 = vmatprep.subr.bf16.mxu0 0
      %2008 = vmatpush1.bf16.msra.mxu0 %v1990
      %2009 = vmatprep.subr.bf16.mxu0 0
      %2010 = vmatpush1.bf16.msra.mxu0 %v1991
      %2011 = vmatprep.subr.bf16.mxu0 0
      %2012 = vmatpush1.bf16.msra.mxu0 %v1992
      %2013 = vmatprep.subr.bf16.mxu0 0
      %2014 = vmatpush1.bf16.msra.mxu0 %v1993
      %2015 = vmatprep.subr.bf16.mxu0 0
      %2016 = vmatpush1.bf16.msra.mxu0 %v1994
      %2017 = vmatprep.subr.bf16.mxu0 0
      %2018 = vmatpush1.bf16.msra.mxu0 %v1995
      %2019 = vmatprep.subr.bf16.mxu0 0
      %2020 = vmatpush1.bf16.msra.mxu0 %v1996
      %2021 = vmatprep.subr.bf16.mxu0 0
      %2022 = vmatpush1.bf16.msra.mxu0 0
      %2023 = vmatprep.subr.bf16.mxu0 0
      %2024 = vmatpush1.bf16.msra.mxu0 0
      %2025 = vmatprep.subr.bf16.mxu0 0
      %2026 = vmatpush1.bf16.msra.mxu0 0
      %2027 = vmatprep.subr.bf16.mxu0 0
      %2028 = vmatpush1.bf16.msra.mxu0 0
      %2029 = vmatprep.subr.bf16.mxu0 0
      %2030 = vmatpush1.bf16.msra.mxu0 0
      %2031 = vmatprep.subr.bf16.mxu0 0
      %2032 = vmatpush1.bf16.msra.mxu0 0
      %2033 = vmatprep.subr.bf16.mxu0 0
      %2034 = vmatpush1.bf16.msra.mxu0 0
      %2035 = vmatprep.subr.bf16.mxu0 0
      %2036 = vmatpush1.bf16.msra.mxu0 0
      %2037 = vmatprep.mubr.bf16.mxu0 0
      %2038 = vmatmul.mubr.bf16.gmra.mrb[0].mxu0 %v1885
      %v2039 = vpop.f32.mrb[0].mxu0
      %v2040 = vadd.f32 0.0, %v2039
      %v2041 = vpop.f32.mrb[0].mxu0
      %v2042 = vpop.f32.mrb[0].mxu0
      %v2043 = vadd.f32 0.0, %v2042
      %v2044 = vpop.f32.mrb[0].mxu0
      %2045 = vmatprep.mubr.bf16.mxu0 0
      %2046 = vmatmul.mubr.bf16.gmra.mrb[0].mxu0 %v1894
      %v2047 = vpop.f32.mrb[0].mxu0
      %v2048 = vadd.f32 0.0, %v2047
      %v2049 = vpop.f32.mrb[0].mxu0
      %v2050 = vpop.f32.mrb[0].mxu0
      %v2051 = vadd.f32 0.0, %v2050
      %v2052 = vpop.f32.mrb[0].mxu0
      %2053 = vmatprep.mubr.bf16.mxu0 0
      %2054 = vmatmul.mubr.bf16.gmra.mrb[0].mxu0 %v1903
      %v2055 = vpop.f32.mrb[0].mxu0
      %v2056 = vadd.f32 0.0, %v2055
      %v2057 = vpop.f32.mrb[0].mxu0
      %v2058 = vpop.f32.mrb[0].mxu0
      %v2059 = vadd.f32 0.0, %v2058
      %v2060 = vpop.f32.mrb[0].mxu0
      %2061 = vmatprep.mubr.bf16.mxu0 0
      %2062 = vmatmul.mubr.bf16.gmra.mrb[0].mxu0 %v1912
      %v2063 = vpop.f32.mrb[0].mxu0
      %v2064 = vadd.f32 0.0, %v2063
      %v2065 = vpop.f32.mrb[0].mxu0
      %v2066 = vpop.f32.mrb[0].mxu0
      %v2067 = vadd.f32 0.0, %v2066
      %v2068 = vpop.f32.mrb[0].mxu0
      %2069 = vmatprep.mubr.bf16.mxu0 0
      %2070 = vmatmul.mubr.bf16.gmra.mrb[0].mxu0 %v1921
      %v2071 = vpop.f32.mrb[0].mxu0
      %v2072 = vadd.f32 0.0, %v2071
      %v2073 = vpop.f32.mrb[0].mxu0
      %v2074 = vpop.f32.mrb[0].mxu0
      %v2075 = vadd.f32 0.0, %v2074
      %v2076 = vpop.f32.mrb[0].mxu0
      %2077 = vmatprep.mubr.bf16.mxu0 0
      %2078 = vmatmul.mubr.bf16.gmra.mrb[0].mxu0 %v1930
      %v2079 = vpop.f32.mrb[0].mxu0
      %v2080 = vadd.f32 0.0, %v2079
      %v2081 = vpop.f32.mrb[0].mxu0
      %v2082 = vpop.f32.mrb[0].mxu0
      %v2083 = vadd.f32 0.0, %v2082
      %v2084 = vpop.f32.mrb[0].mxu0
      %2085 = vmatprep.mubr.bf16.mxu0 0
      %2086 = vmatmul.mubr.bf16.gmra.mrb[0].mxu0 %v1939
      %v2087 = vpop.f32.mrb[0].mxu0
      %v2088 = vadd.f32 0.0, %v2087
      %v2089 = vpop.f32.mrb[0].mxu0
      %v2090 = vpop.f32.mrb[0].mxu0
      %v2091 = vadd.f32 0.0, %v2090
      %v2092 = vpop.f32.mrb[0].mxu0
      %2093 = vmatprep.mubr.bf16.mxu0 0
      %2094 = vmatmul.mubr.bf16.gmra.mrb[0].mxu0 %v1948
      %v2095 = vpop.f32.mrb[0].mxu0
      %v2096 = vadd.f32 0.0, %v2095
      %v2097 = vpop.f32.mrb[0].mxu0
      %v2098 = vpop.f32.mrb[0].mxu0
      %v2099 = vadd.f32 0.0, %v2098
      %v2100 = vpop.f32.mrb[0].mxu0
      %2101 = vdwg.mxu0
      %v2102 = vadd.f32 %v1834, %v2040
      %v2103 = vadd.f32 %v1835, %v2043
      %v2104 = vadd.f32 %v1836, %v2048
      %v2105 = vadd.f32 %v1837, %v2051
      %v2106 = vadd.f32 %v1838, %v2056
      %v2107 = vadd.f32 %v1839, %v2059
      %v2108 = vadd.f32 %v1840, %v2064
      %v2109 = vadd.f32 %v1841, %v2067
      %v2110 = vadd.f32 %v1842, %v2072
      %v2111 = vadd.f32 %v1843, %v2075
      %v2112 = vadd.f32 %v1844, %v2080
      %v2113 = vadd.f32 %v1845, %v2083
      %v2114 = vadd.f32 %v1846, %v2088
      %v2115 = vadd.f32 %v1847, %v2091
      %v2116 = vadd.f32 %v1848, %v2096
      %v2117 = vadd.f32 %v1849, %v2099
      %v2118 = vld [vmem:[#allocation2 + $0x18] sm:$0xfc]
      %s2119 = scalar_lea.vmem %s1, 512
      %v2120 = vld [vmem:[%s2119] sm:$0xf]
      %v2121 = vld [vmem:[%s2119 + $0x4] sm:$0xf]
      %v2122 = vld [vmem:[%s2119 + $0x8] sm:$0xf]
      %v2123 = vld [vmem:[%s2119 + $0xc] sm:$0xf]
      %v2124 = vld [vmem:[%s2119 + $0x10] sm:$0xf]
      %v2125 = vld [vmem:[%s2119 + $0x14] sm:$0xf]
      %v2126 = vld [vmem:[%s2119 + $0x18] sm:$0xf]
      %v2127 = vld [vmem:[%s2119 + $0x1c] sm:$0xf]
      %v2128 = vld [vmem:[%s2119 + $0x20] sm:$0xf]
      %v2129 = vld [vmem:[%s2119 + $0x24] sm:$0xf]
      %v2130 = vld [vmem:[%s2119 + $0x28] sm:$0xf]
      %v2131 = vld [vmem:[%s2119 + $0x2c] sm:$0xf]
      %v2132 = vld [vmem:[%s2119 + $0x30] sm:$0xf]
      %v2133 = vld [vmem:[%s2119 + $0x34] sm:$0xf]
      %v2134 = vld [vmem:[%s2119 + $0x38] sm:$0xf]
      %v2135 = vld [vmem:[%s2119 + $0x3c] sm:$0xf]
      %vm2138 = vcmask 1045504
      %v2139 = vrot.slane %v2118, 2
      %v2140 = vrot.slane %v1630, 2
      %v2141 = vsel %vm2138, %v2139, %v2140
      %v2142 = vrot.slane %v1631, 2
      %v2143 = vsel %vm2138, %v2140, %v2142
      %v2144 = vrot.slane %v1632, 2
      %v2145 = vsel %vm2138, %v2142, %v2144
      %v2146 = vrot.slane %v1633, 2
      %v2147 = vsel %vm2138, %v2144, %v2146
      %v2148 = vrot.slane %v1634, 2
      %v2149 = vsel %vm2138, %v2146, %v2148
      %v2150 = vrot.slane %v1635, 2
      %v2151 = vsel %vm2138, %v2148, %v2150
      %v2152 = vrot.slane %v1636, 2
      %v2153 = vsel %vm2138, %v2150, %v2152
      %v2154 = vrot.slane %v1850, 2
      %v2155 = vsel %vm2138, %v2152, %v2154
      %v2180 = vunpack.c.l.b16 %v2120
      %v2181 = vunpack.c.l.b16 %v2121
      %v2182 = vunpack.c.l.b16 %v2122
      %v2183 = vunpack.c.l.b16 %v2123
      %v2184 = vunpack.c.l.b16 %v2124
      %v2185 = vunpack.c.l.b16 %v2125
      %v2186 = vunpack.c.l.b16 %v2126
      %v2187 = vunpack.c.l.b16 %v2127
      %v2188 = vunpack.c.l.b16 %v2128
      %v2189 = vunpack.c.l.b16 %v2129
      %v2190 = vunpack.c.l.b16 %v2130
      %v2191 = vunpack.c.l.b16 %v2131
      %v2192 = vunpack.c.l.b16 %v2132
      %v2193 = vunpack.c.l.b16 %v2133
      %v2194 = vunpack.c.l.b16 %v2134
      %v2195 = vunpack.c.l.b16 %v2135
      %v2196 = vpack.c.b16 %v2181, %v2180
      %v2197 = vpack.c.b16 %v2183, %v2182
      %v2198 = vpack.c.b16 %v2185, %v2184
      %v2199 = vpack.c.b16 %v2187, %v2186
      %v2200 = vpack.c.b16 %v2189, %v2188
      %v2201 = vpack.c.b16 %v2191, %v2190
      %v2202 = vpack.c.b16 %v2193, %v2192
      %v2203 = vpack.c.b16 %v2195, %v2194
      %2212 = vmatprep.subr.bf16.mxu0 0
      %2213 = vmatpush1.bf16.msra.mxu0 %v2196
      %2214 = vmatprep.subr.bf16.mxu0 0
      %2215 = vmatpush1.bf16.msra.mxu0 %v2197
      %2216 = vmatprep.subr.bf16.mxu0 0
      %2217 = vmatpush1.bf16.msra.mxu0 %v2198
      %2218 = vmatprep.subr.bf16.mxu0 0
      %2219 = vmatpush1.bf16.msra.mxu0 %v2199
      %2220 = vmatprep.subr.bf16.mxu0 0
      %2221 = vmatpush1.bf16.msra.mxu0 %v2200
      %2222 = vmatprep.subr.bf16.mxu0 0
      %2223 = vmatpush1.bf16.msra.mxu0 %v2201
      %2224 = vmatprep.subr.bf16.mxu0 0
      %2225 = vmatpush1.bf16.msra.mxu0 %v2202
      %2226 = vmatprep.subr.bf16.mxu0 0
      %2227 = vmatpush1.bf16.msra.mxu0 %v2203
      %2228 = vmatprep.subr.bf16.mxu0 0
      %2229 = vmatpush1.bf16.msra.mxu0 0
      %2230 = vmatprep.subr.bf16.mxu0 0
      %2231 = vmatpush1.bf16.msra.mxu0 0
      %2232 = vmatprep.subr.bf16.mxu0 0
      %2233 = vmatpush1.bf16.msra.mxu0 0
      %2234 = vmatprep.subr.bf16.mxu0 0
      %2235 = vmatpush1.bf16.msra.mxu0 0
      %2236 = vmatprep.subr.bf16.mxu0 0
      %2237 = vmatpush1.bf16.msra.mxu0 0
      %2238 = vmatprep.subr.bf16.mxu0 0
      %2239 = vmatpush1.bf16.msra.mxu0 0
      %2240 = vmatprep.subr.bf16.mxu0 0
      %2241 = vmatpush1.bf16.msra.mxu0 0
      %2242 = vmatprep.subr.bf16.mxu0 0
      %2243 = vmatpush1.bf16.msra.mxu0 0
      %2244 = vmatprep.mubr.bf16.mxu0 0
      %2245 = vmatmul.mubr.bf16.gmra.mrb[0].mxu0 %v2141
      %v2246 = vpop.f32.mrb[0].mxu0
      %v2247 = vadd.f32 0.0, %v2246
      %v2248 = vpop.f32.mrb[0].mxu0
      %v2249 = vpop.f32.mrb[0].mxu0
      %v2250 = vadd.f32 0.0, %v2249
      %v2251 = vpop.f32.mrb[0].mxu0
      %2252 = vmatprep.mubr.bf16.mxu0 0
      %2253 = vmatmul.mubr.bf16.gmra.mrb[0].mxu0 %v2143
      %v2254 = vpop.f32.mrb[0].mxu0
      %v2255 = vadd.f32 0.0, %v2254
      %v2256 = vpop.f32.mrb[0].mxu0
      %v2257 = vpop.f32.mrb[0].mxu0
      %v2258 = vadd.f32 0.0, %v2257
      %v2259 = vpop.f32.mrb[0].mxu0
      %2260 = vmatprep.mubr.bf16.mxu0 0
      %2261 = vmatmul.mubr.bf16.gmra.mrb[0].mxu0 %v2145
      %v2262 = vpop.f32.mrb[0].mxu0
      %v2263 = vadd.f32 0.0, %v2262
      %v2264 = vpop.f32.mrb[0].mxu0
      %v2265 = vpop.f32.mrb[0].mxu0
      %v2266 = vadd.f32 0.0, %v2265
      %v2267 = vpop.f32.mrb[0].mxu0
      %2268 = vmatprep.mubr.bf16.mxu0 0
      %2269 = vmatmul.mubr.bf16.gmra.mrb[0].mxu0 %v2147
      %v2270 = vpop.f32.mrb[0].mxu0
      %v2271 = vadd.f32 0.0, %v2270
      %v2272 = vpop.f32.mrb[0].mxu0
      %v2273 = vpop.f32.mrb[0].mxu0
      %v2274 = vadd.f32 0.0, %v2273
      %v2275 = vpop.f32.mrb[0].mxu0
      %2276 = vmatprep.mubr.bf16.mxu0 0
      %2277 = vmatmul.mubr.bf16.gmra.mrb[0].mxu0 %v2149
      %v2278 = vpop.f32.mrb[0].mxu0
      %v2279 = vadd.f32 0.0, %v2278
      %v2280 = vpop.f32.mrb[0].mxu0
      %v2281 = vpop.f32.mrb[0].mxu0
      %v2282 = vadd.f32 0.0, %v2281
      %v2283 = vpop.f32.mrb[0].mxu0
      %2284 = vmatprep.mubr.bf16.mxu0 0
      %2285 = vmatmul.mubr.bf16.gmra.mrb[0].mxu0 %v2151
      %v2286 = vpop.f32.mrb[0].mxu0
      %v2287 = vadd.f32 0.0, %v2286
      %v2288 = vpop.f32.mrb[0].mxu0
      %v2289 = vpop.f32.mrb[0].mxu0
      %v2290 = vadd.f32 0.0, %v2289
      %v2291 = vpop.f32.mrb[0].mxu0
      %2292 = vmatprep.mubr.bf16.mxu0 0
      %2293 = vmatmul.mubr.bf16.gmra.mrb[0].mxu0 %v2153
      %v2294 = vpop.f32.mrb[0].mxu0
      %v2295 = vadd.f32 0.0, %v2294
      %v2296 = vpop.f32.mrb[0].mxu0
      %v2297 = vpop.f32.mrb[0].mxu0
      %v2298 = vadd.f32 0.0, %v2297
      %v2299 = vpop.f32.mrb[0].mxu0
      %2300 = vmatprep.mubr.bf16.mxu0 0
      %2301 = vmatmul.mubr.bf16.gmra.mrb[0].mxu0 %v2155
      %v2302 = vpop.f32.mrb[0].mxu0
      %v2303 = vadd.f32 0.0, %v2302
      %v2304 = vpop.f32.mrb[0].mxu0
      %v2305 = vpop.f32.mrb[0].mxu0
      %v2306 = vadd.f32 0.0, %v2305
      %v2307 = vpop.f32.mrb[0].mxu0
      %2308 = vdwg.mxu0
      %v2309 = vadd.f32 %v2102, %v2247
      %v2310 = vadd.f32 %v2103, %v2250
      %v2311 = vadd.f32 %v2104, %v2255
      %v2312 = vadd.f32 %v2105, %v2258
      %v2313 = vadd.f32 %v2106, %v2263
      %v2314 = vadd.f32 %v2107, %v2266
      %v2315 = vadd.f32 %v2108, %v2271
      %v2316 = vadd.f32 %v2109, %v2274
      %v2317 = vadd.f32 %v2110, %v2279
      %v2318 = vadd.f32 %v2111, %v2282
      %v2319 = vadd.f32 %v2112, %v2287
      %v2320 = vadd.f32 %v2113, %v2290
      %v2321 = vadd.f32 %v2114, %v2295
      %v2322 = vadd.f32 %v2115, %v2298
      %v2323 = vadd.f32 %v2116, %v2303
      %v2324 = vadd.f32 %v2117, %v2306
      %v2325 = vld [vmem:[%s2] sm:$0x1]
      %v2327 = vlaneseq
      %v2328 = vshrl.u32 %v2327, 7
      %v2329 = vsub.s32 0, %v2328
      %v2330 = vrot.slane %v2325, %v2329
      %v2332 = vadd.f32 %v2309, %v2330
      %v2333 = vadd.f32 %v2310, %v2330
      %v2334 = vadd.f32 %v2311, %v2330
      %v2335 = vadd.f32 %v2312, %v2330
      %v2336 = vadd.f32 %v2313, %v2330
      %v2337 = vadd.f32 %v2314, %v2330
      %v2338 = vadd.f32 %v2315, %v2330
      %v2339 = vadd.f32 %v2316, %v2330
      %v2340 = vadd.f32 %v2317, %v2330
      %v2341 = vadd.f32 %v2318, %v2330
      %v2342 = vadd.f32 %v2319, %v2330
      %v2343 = vadd.f32 %v2320, %v2330
      %v2344 = vadd.f32 %v2321, %v2330
      %v2345 = vadd.f32 %v2322, %v2330
      %v2346 = vadd.f32 %v2323, %v2330
      %v2347 = vadd.f32 %v2324, %v2330
      %v2348 = vmax.f32 %v2332, 0.0
      %v2349 = vmax.f32 %v2333, 0.0
      %v2350 = vmax.f32 %v2334, 0.0
      %v2351 = vmax.f32 %v2335, 0.0
      %v2352 = vmax.f32 %v2336, 0.0
      %v2353 = vmax.f32 %v2337, 0.0
      %v2354 = vmax.f32 %v2338, 0.0
      %v2355 = vmax.f32 %v2339, 0.0
      %v2356 = vmax.f32 %v2340, 0.0
      %v2357 = vmax.f32 %v2341, 0.0
      %v2358 = vmax.f32 %v2342, 0.0
      %v2359 = vmax.f32 %v2343, 0.0
      %v2360 = vmax.f32 %v2344, 0.0
      %v2361 = vmax.f32 %v2345, 0.0
      %v2362 = vmax.f32 %v2346, 0.0
      %v2363 = vmax.f32 %v2347, 0.0
      %v2364 = vlaneseq
      %v2365 = vshrl.u32 %v2364, 7
      %v2366 = vadd.s32 %v2365, 8
      %v2367 = vadd.s32 %v2365, 16
      %v2368 = vadd.s32 %v2365, 24
      %v2369 = vadd.s32 %v2365, 32
      %v2370 = vadd.s32 %v2365, 40
      %v2371 = vadd.s32 %v2365, 48
      %v2372 = vadd.s32 %v2365, 56
      %v2373 = vadd.s32 %v2365, 64
      %v2374 = vadd.s32 %v2365, 72
      %v2375 = vadd.s32 %v2365, 80
      %v2376 = vadd.s32 %v2365, 88
      %v2377 = vadd.s32 %v2365, 96
      %v2378 = vadd.s32 %v2365, 104
      %v2379 = vadd.s32 %v2365, 112
      %v2380 = vadd.s32 %v2365, 120
      %vm2381 = vcmp.lt.s32.totalorder %v2365, 0
      %v2382 = vsub.s32 0, %v2365
      %v2383 = vsel %vm2381, %v2382, %v2365
      %v2384 = vmul.u32.u64.compose %v2383, 3817748708
      %v2385 = vextract.low.u32 %v2384
      %v2386 = vextract.high.u32 %v2384
      %v2387 = vshrl.u32 %v2386, 4
      %v2388 = vmul.u32 %v2387, 18
      %v2389 = vsub.s32 %v2383, %v2388
      %v2390 = vsub.s32 0, %v2389
      %v2391 = vsel %vm2381, %v2390, %v2389
      %vm2392 = vcmp.lt.s32.totalorder %v2366, 0
      %v2393 = vsub.s32 0, %v2366
      %v2394 = vsel %vm2392, %v2393, %v2366
      %v2395 = vmul.u32.u64.compose %v2394, 3817748708
      %v2396 = vextract.low.u32 %v2395
      %v2397 = vextract.high.u32 %v2395
      %v2398 = vshrl.u32 %v2397, 4
      %v2399 = vmul.u32 %v2398, 18
      %v2400 = vsub.s32 %v2394, %v2399
      %v2401 = vsub.s32 0, %v2400
      %v2402 = vsel %vm2392, %v2401, %v2400
      %vm2403 = vcmp.lt.s32.totalorder %v2367, 0
      %v2404 = vsub.s32 0, %v2367
      %v2405 = vsel %vm2403, %v2404, %v2367
      %v2406 = vmul.u32.u64.compose %v2405, 3817748708
      %v2407 = vextract.low.u32 %v2406
      %v2408 = vextract.high.u32 %v2406
      %v2409 = vshrl.u32 %v2408, 4
      %v2410 = vmul.u32 %v2409, 18
      %v2411 = vsub.s32 %v2405, %v2410
      %v2412 = vsub.s32 0, %v2411
      %v2413 = vsel %vm2403, %v2412, %v2411
      %vm2414 = vcmp.lt.s32.totalorder %v2368, 0
      %v2415 = vsub.s32 0, %v2368
      %v2416 = vsel %vm2414, %v2415, %v2368
      %v2417 = vmul.u32.u64.compose %v2416, 3817748708
      %v2418 = vextract.low.u32 %v2417
      %v2419 = vextract.high.u32 %v2417
      %v2420 = vshrl.u32 %v2419, 4
      %v2421 = vmul.u32 %v2420, 18
      %v2422 = vsub.s32 %v2416, %v2421
      %v2423 = vsub.s32 0, %v2422
      %v2424 = vsel %vm2414, %v2423, %v2422
      %vm2425 = vcmp.lt.s32.totalorder %v2369, 0
      %v2426 = vsub.s32 0, %v2369
      %v2427 = vsel %vm2425, %v2426, %v2369
      %v2428 = vmul.u32.u64.compose %v2427, 3817748708
      %v2429 = vextract.low.u32 %v2428
      %v2430 = vextract.high.u32 %v2428
      %v2431 = vshrl.u32 %v2430, 4
      %v2432 = vmul.u32 %v2431, 18
      %v2433 = vsub.s32 %v2427, %v2432
      %v2434 = vsub.s32 0, %v2433
      %v2435 = vsel %vm2425, %v2434, %v2433
      %vm2436 = vcmp.lt.s32.totalorder %v2370, 0
      %v2437 = vsub.s32 0, %v2370
      %v2438 = vsel %vm2436, %v2437, %v2370
      %v2439 = vmul.u32.u64.compose %v2438, 3817748708
      %v2440 = vextract.low.u32 %v2439
      %v2441 = vextract.high.u32 %v2439
      %v2442 = vshrl.u32 %v2441, 4
      %v2443 = vmul.u32 %v2442, 18
      %v2444 = vsub.s32 %v2438, %v2443
      %v2445 = vsub.s32 0, %v2444
      %v2446 = vsel %vm2436, %v2445, %v2444
      %vm2447 = vcmp.lt.s32.totalorder %v2371, 0
      %v2448 = vsub.s32 0, %v2371
      %v2449 = vsel %vm2447, %v2448, %v2371
      %v2450 = vmul.u32.u64.compose %v2449, 3817748708
      %v2451 = vextract.low.u32 %v2450
      %v2452 = vextract.high.u32 %v2450
      %v2453 = vshrl.u32 %v2452, 4
      %v2454 = vmul.u32 %v2453, 18
      %v2455 = vsub.s32 %v2449, %v2454
      %v2456 = vsub.s32 0, %v2455
      %v2457 = vsel %vm2447, %v2456, %v2455
      %vm2458 = vcmp.lt.s32.totalorder %v2372, 0
      %v2459 = vsub.s32 0, %v2372
      %v2460 = vsel %vm2458, %v2459, %v2372
      %v2461 = vmul.u32.u64.compose %v2460, 3817748708
      %v2462 = vextract.low.u32 %v2461
      %v2463 = vextract.high.u32 %v2461
      %v2464 = vshrl.u32 %v2463, 4
      %v2465 = vmul.u32 %v2464, 18
      %v2466 = vsub.s32 %v2460, %v2465
      %v2467 = vsub.s32 0, %v2466
      %v2468 = vsel %vm2458, %v2467, %v2466
      %vm2469 = vcmp.lt.s32.totalorder %v2373, 0
      %v2470 = vsub.s32 0, %v2373
      %v2471 = vsel %vm2469, %v2470, %v2373
      %v2472 = vmul.u32.u64.compose %v2471, 3817748708
      %v2473 = vextract.low.u32 %v2472
      %v2474 = vextract.high.u32 %v2472
      %v2475 = vshrl.u32 %v2474, 4
      %v2476 = vmul.u32 %v2475, 18
      %v2477 = vsub.s32 %v2471, %v2476
      %v2478 = vsub.s32 0, %v2477
      %v2479 = vsel %vm2469, %v2478, %v2477
      %vm2480 = vcmp.lt.s32.totalorder %v2374, 0
      %v2481 = vsub.s32 0, %v2374
      %v2482 = vsel %vm2480, %v2481, %v2374
      %v2483 = vmul.u32.u64.compose %v2482, 3817748708
      %v2484 = vextract.low.u32 %v2483
      %v2485 = vextract.high.u32 %v2483
      %v2486 = vshrl.u32 %v2485, 4
      %v2487 = vmul.u32 %v2486, 18
      %v2488 = vsub.s32 %v2482, %v2487
      %v2489 = vsub.s32 0, %v2488
      %v2490 = vsel %vm2480, %v2489, %v2488
      %vm2491 = vcmp.lt.s32.totalorder %v2375, 0
      %v2492 = vsub.s32 0, %v2375
      %v2493 = vsel %vm2491, %v2492, %v2375
      %v2494 = vmul.u32.u64.compose %v2493, 3817748708
      %v2495 = vextract.low.u32 %v2494
      %v2496 = vextract.high.u32 %v2494
      %v2497 = vshrl.u32 %v2496, 4
      %v2498 = vmul.u32 %v2497, 18
      %v2499 = vsub.s32 %v2493, %v2498
      %v2500 = vsub.s32 0, %v2499
      %v2501 = vsel %vm2491, %v2500, %v2499
      %vm2502 = vcmp.lt.s32.totalorder %v2376, 0
      %v2503 = vsub.s32 0, %v2376
      %v2504 = vsel %vm2502, %v2503, %v2376
      %v2505 = vmul.u32.u64.compose %v2504, 3817748708
      %v2506 = vextract.low.u32 %v2505
      %v2507 = vextract.high.u32 %v2505
      %v2508 = vshrl.u32 %v2507, 4
      %v2509 = vmul.u32 %v2508, 18
      %v2510 = vsub.s32 %v2504, %v2509
      %v2511 = vsub.s32 0, %v2510
      %v2512 = vsel %vm2502, %v2511, %v2510
      %vm2513 = vcmp.lt.s32.totalorder %v2377, 0
      %v2514 = vsub.s32 0, %v2377
      %v2515 = vsel %vm2513, %v2514, %v2377
      %v2516 = vmul.u32.u64.compose %v2515, 3817748708
      %v2517 = vextract.low.u32 %v2516
      %v2518 = vextract.high.u32 %v2516
      %v2519 = vshrl.u32 %v2518, 4
      %v2520 = vmul.u32 %v2519, 18
      %v2521 = vsub.s32 %v2515, %v2520
      %v2522 = vsub.s32 0, %v2521
      %v2523 = vsel %vm2513, %v2522, %v2521
      %vm2524 = vcmp.lt.s32.totalorder %v2378, 0
      %v2525 = vsub.s32 0, %v2378
      %v2526 = vsel %vm2524, %v2525, %v2378
      %v2527 = vmul.u32.u64.compose %v2526, 3817748708
      %v2528 = vextract.low.u32 %v2527
      %v2529 = vextract.high.u32 %v2527
      %v2530 = vshrl.u32 %v2529, 4
      %v2531 = vmul.u32 %v2530, 18
      %v2532 = vsub.s32 %v2526, %v2531
      %v2533 = vsub.s32 0, %v2532
      %v2534 = vsel %vm2524, %v2533, %v2532
      %vm2535 = vcmp.lt.s32.totalorder %v2379, 0
      %v2536 = vsub.s32 0, %v2379
      %v2537 = vsel %vm2535, %v2536, %v2379
      %v2538 = vmul.u32.u64.compose %v2537, 3817748708
      %v2539 = vextract.low.u32 %v2538
      %v2540 = vextract.high.u32 %v2538
      %v2541 = vshrl.u32 %v2540, 4
      %v2542 = vmul.u32 %v2541, 18
      %v2543 = vsub.s32 %v2537, %v2542
      %v2544 = vsub.s32 0, %v2543
      %v2545 = vsel %vm2535, %v2544, %v2543
      %vm2546 = vcmp.lt.s32.totalorder %v2380, 0
      %v2547 = vsub.s32 0, %v2380
      %v2548 = vsel %vm2546, %v2547, %v2380
      %v2549 = vmul.u32.u64.compose %v2548, 3817748708
      %v2550 = vextract.low.u32 %v2549
      %v2551 = vextract.high.u32 %v2549
      %v2552 = vshrl.u32 %v2551, 4
      %v2553 = vmul.u32 %v2552, 18
      %v2554 = vsub.s32 %v2548, %v2553
      %v2555 = vsub.s32 0, %v2554
      %v2556 = vsel %vm2546, %v2555, %v2554
      %vm2557 = vcmp.ne.s32.totalorder %v2391, 0
      %vm2558 = vcmp.ne.s32.totalorder %v2402, 0
      %vm2559 = vcmp.ne.s32.totalorder %v2413, 0
      %vm2560 = vcmp.ne.s32.totalorder %v2424, 0
      %vm2561 = vcmp.ne.s32.totalorder %v2435, 0
      %vm2562 = vcmp.ne.s32.totalorder %v2446, 0
      %vm2563 = vcmp.ne.s32.totalorder %v2457, 0
      %vm2564 = vcmp.ne.s32.totalorder %v2468, 0
      %vm2565 = vcmp.ne.s32.totalorder %v2479, 0
      %vm2566 = vcmp.ne.s32.totalorder %v2490, 0
      %vm2567 = vcmp.ne.s32.totalorder %v2501, 0
      %vm2568 = vcmp.ne.s32.totalorder %v2512, 0
      %vm2569 = vcmp.ne.s32.totalorder %v2523, 0
      %vm2570 = vcmp.ne.s32.totalorder %v2534, 0
      %vm2571 = vcmp.ne.s32.totalorder %v2545, 0
      %vm2572 = vcmp.ne.s32.totalorder %v2556, 0
      %vm2573 = vcmp.lt.s32.totalorder %v2391, 0
      %vm2574 = vcmp.lt.s32.totalorder %v2402, 0
      %vm2575 = vcmp.lt.s32.totalorder %v2413, 0
      %vm2576 = vcmp.lt.s32.totalorder %v2424, 0
      %vm2577 = vcmp.lt.s32.totalorder %v2435, 0
      %vm2578 = vcmp.lt.s32.totalorder %v2446, 0
      %vm2579 = vcmp.lt.s32.totalorder %v2457, 0
      %vm2580 = vcmp.lt.s32.totalorder %v2468, 0
      %vm2581 = vcmp.lt.s32.totalorder %v2479, 0
      %vm2582 = vcmp.lt.s32.totalorder %v2490, 0
      %vm2583 = vcmp.lt.s32.totalorder %v2501, 0
      %vm2584 = vcmp.lt.s32.totalorder %v2512, 0
      %vm2585 = vcmp.lt.s32.totalorder %v2523, 0
      %vm2586 = vcmp.lt.s32.totalorder %v2534, 0
      %vm2587 = vcmp.lt.s32.totalorder %v2545, 0
      %vm2588 = vcmp.lt.s32.totalorder %v2556, 0
      %vm2589 = vmand %vm2573, %vm2557
      %vm2590 = vmand %vm2574, %vm2558
      %vm2591 = vmand %vm2575, %vm2559
      %vm2592 = vmand %vm2576, %vm2560
      %vm2593 = vmand %vm2577, %vm2561
      %vm2594 = vmand %vm2578, %vm2562
      %vm2595 = vmand %vm2579, %vm2563
      %vm2596 = vmand %vm2580, %vm2564
      %vm2597 = vmand %vm2581, %vm2565
      %vm2598 = vmand %vm2582, %vm2566
      %vm2599 = vmand %vm2583, %vm2567
      %vm2600 = vmand %vm2584, %vm2568
      %vm2601 = vmand %vm2585, %vm2569
      %vm2602 = vmand %vm2586, %vm2570
      %vm2603 = vmand %vm2587, %vm2571
      %vm2604 = vmand %vm2588, %vm2572
      %v2605 = vadd.s32 %v2391, 18
      %v2606 = vadd.s32 %v2402, 18
      %v2607 = vadd.s32 %v2413, 18
      %v2608 = vadd.s32 %v2424, 18
      %v2609 = vadd.s32 %v2435, 18
      %v2610 = vadd.s32 %v2446, 18
      %v2611 = vadd.s32 %v2457, 18
      %v2612 = vadd.s32 %v2468, 18
      %v2613 = vadd.s32 %v2479, 18
      %v2614 = vadd.s32 %v2490, 18
      %v2615 = vadd.s32 %v2501, 18
      %v2616 = vadd.s32 %v2512, 18
      %v2617 = vadd.s32 %v2523, 18
      %v2618 = vadd.s32 %v2534, 18
      %v2619 = vadd.s32 %v2545, 18
      %v2620 = vadd.s32 %v2556, 18
      %v2621 = vsel %vm2589, %v2605, %v2391
      %v2622 = vsel %vm2590, %v2606, %v2402
      %v2623 = vsel %vm2591, %v2607, %v2413
      %v2624 = vsel %vm2592, %v2608, %v2424
      %v2625 = vsel %vm2593, %v2609, %v2435
      %v2626 = vsel %vm2594, %v2610, %v2446
      %v2627 = vsel %vm2595, %v2611, %v2457
      %v2628 = vsel %vm2596, %v2612, %v2468
      %v2629 = vsel %vm2597, %v2613, %v2479
      %v2630 = vsel %vm2598, %v2614, %v2490
      %v2631 = vsel %vm2599, %v2615, %v2501
      %v2632 = vsel %vm2600, %v2616, %v2512
      %v2633 = vsel %vm2601, %v2617, %v2523
      %v2634 = vsel %vm2602, %v2618, %v2534
      %v2635 = vsel %vm2603, %v2619, %v2545
      %v2636 = vsel %vm2604, %v2620, %v2556
      %vm2637 = vcmp.lt.s32.totalorder %v2621, 16
      %vm2638 = vcmp.lt.s32.totalorder %v2622, 16
      %vm2639 = vcmp.lt.s32.totalorder %v2623, 16
      %vm2640 = vcmp.lt.s32.totalorder %v2624, 16
      %vm2641 = vcmp.lt.s32.totalorder %v2625, 16
      %vm2642 = vcmp.lt.s32.totalorder %v2626, 16
      %vm2643 = vcmp.lt.s32.totalorder %v2627, 16
      %vm2644 = vcmp.lt.s32.totalorder %v2628, 16
      %vm2645 = vcmp.lt.s32.totalorder %v2629, 16
      %vm2646 = vcmp.lt.s32.totalorder %v2630, 16
      %vm2647 = vcmp.lt.s32.totalorder %v2631, 16
      %vm2648 = vcmp.lt.s32.totalorder %v2632, 16
      %vm2649 = vcmp.lt.s32.totalorder %v2633, 16
      %vm2650 = vcmp.lt.s32.totalorder %v2634, 16
      %vm2651 = vcmp.lt.s32.totalorder %v2635, 16
      %vm2652 = vcmp.lt.s32.totalorder %v2636, 16
      %v2653 = vsel %vm2637, 1, 0
      %v2654 = vsel %vm2638, 1, 0
      %v2655 = vsel %vm2639, 1, 0
      %v2656 = vsel %vm2640, 1, 0
      %v2657 = vsel %vm2641, 1, 0
      %v2658 = vsel %vm2642, 1, 0
      %v2659 = vsel %vm2643, 1, 0
      %v2660 = vsel %vm2644, 1, 0
      %v2661 = vsel %vm2645, 1, 0
      %v2662 = vsel %vm2646, 1, 0
      %v2663 = vsel %vm2647, 1, 0
      %v2664 = vsel %vm2648, 1, 0
      %v2665 = vsel %vm2649, 1, 0
      %v2666 = vsel %vm2650, 1, 0
      %v2667 = vsel %vm2651, 1, 0
      %v2668 = vsel %vm2652, 1, 0
      %vm2669 = vcmp.eq.s32.totalorder %v2653, 1
      %vm2670 = vcmp.eq.s32.totalorder %v2654, 1
      %vm2671 = vcmp.eq.s32.totalorder %v2655, 1
      %vm2672 = vcmp.eq.s32.totalorder %v2656, 1
      %vm2673 = vcmp.eq.s32.totalorder %v2657, 1
      %vm2674 = vcmp.eq.s32.totalorder %v2658, 1
      %vm2675 = vcmp.eq.s32.totalorder %v2659, 1
      %vm2676 = vcmp.eq.s32.totalorder %v2660, 1
      %vm2677 = vcmp.eq.s32.totalorder %v2661, 1
      %vm2678 = vcmp.eq.s32.totalorder %v2662, 1
      %vm2679 = vcmp.eq.s32.totalorder %v2663, 1
      %vm2680 = vcmp.eq.s32.totalorder %v2664, 1
      %vm2681 = vcmp.eq.s32.totalorder %v2665, 1
      %vm2682 = vcmp.eq.s32.totalorder %v2666, 1
      %vm2683 = vcmp.eq.s32.totalorder %v2667, 1
      %vm2684 = vcmp.eq.s32.totalorder %v2668, 1
      %v2685 = vsel %vm2669, %v2348, 0.0
      %v2686 = vsel %vm2670, %v2349, 0.0
      %v2687 = vsel %vm2671, %v2350, 0.0
      %v2688 = vsel %vm2672, %v2351, 0.0
      %v2689 = vsel %vm2673, %v2352, 0.0
      %v2690 = vsel %vm2674, %v2353, 0.0
      %v2691 = vsel %vm2675, %v2354, 0.0
      %v2692 = vsel %vm2676, %v2355, 0.0
      %v2693 = vsel %vm2677, %v2356, 0.0
      %v2694 = vsel %vm2678, %v2357, 0.0
      %v2695 = vsel %vm2679, %v2358, 0.0
      %v2696 = vsel %vm2680, %v2359, 0.0
      %v2697 = vsel %vm2681, %v2360, 0.0
      %v2698 = vsel %vm2682, %v2361, 0.0
      %v2699 = vsel %vm2683, %v2362, 0.0
      %v2700 = vsel %vm2684, %v2363, 0.0
      %v2701 = vpack.c.bf16 %v2686, %v2685
      %v2702 = vpack.c.bf16 %v2688, %v2687
      %v2703 = vpack.c.bf16 %v2690, %v2689
      %v2704 = vpack.c.bf16 %v2692, %v2691
      %v2705 = vpack.c.bf16 %v2694, %v2693
      %v2706 = vpack.c.bf16 %v2696, %v2695
      %v2707 = vpack.c.bf16 %v2698, %v2697
      %v2708 = vpack.c.bf16 %v2700, %v2699
      %2709 = vst [vmem:[#allocation3 + $0x10] sm:$0xff] %v2701
      %2710 = vst [vmem:[#allocation3 + $0x18] sm:$0xff] %v2702
      %2711 = vst [vmem:[#allocation3 + $0x20] sm:$0xff] %v2703
      %2712 = vst [vmem:[#allocation3 + $0x28] sm:$0xff] %v2704
      %2713 = vst [vmem:[#allocation3 + $0x30] sm:$0xff] %v2705
      %2714 = vst [vmem:[#allocation3 + $0x38] sm:$0xff] %v2706
      %2715 = vst [vmem:[#allocation3 + $0x40] sm:$0xff] %v2707
      %2716 = vst [vmem:[#allocation3 + $0x48] sm:$0xff] %v2708
      %v2717 = vld [vmem:[#allocation2 + $0x40] sm:$0x80]
      %v2718 = vld [vmem:[#allocation2 + $0x48] sm:$0xff]
      %v2719 = vld [vmem:[#allocation2 + $0x50] sm:$0xff]
      %v2720 = vld [vmem:[#allocation2 + $0x58] sm:$0xff]
      %v2721 = vld [vmem:[#allocation2 + $0x60] sm:$0xff]
      %v2722 = vld [vmem:[#allocation2 + $0x68] sm:$0xff]
      %v2723 = vld [vmem:[#allocation2 + $0x70] sm:$0xff]
      %v2724 = vld [vmem:[#allocation2 + $0x78] sm:$0xff]
      %v2725 = vld [vmem:[#allocation2 + $0x80] sm:$0x7f]
      %v2726 = vld [vmem:[%s1] sm:$0xf]
      %v2727 = vld [vmem:[%s1 + $0x4] sm:$0xf]
      %v2728 = vld [vmem:[%s1 + $0x8] sm:$0xf]
      %v2729 = vld [vmem:[%s1 + $0xc] sm:$0xf]
      %v2730 = vld [vmem:[%s1 + $0x10] sm:$0xf]
      %v2731 = vld [vmem:[%s1 + $0x14] sm:$0xf]
      %v2732 = vld [vmem:[%s1 + $0x18] sm:$0xf]
      %v2733 = vld [vmem:[%s1 + $0x1c] sm:$0xf]
      %v2734 = vld [vmem:[%s1 + $0x20] sm:$0xf]
      %v2735 = vld [vmem:[%s1 + $0x24] sm:$0xf]
      %v2736 = vld [vmem:[%s1 + $0x28] sm:$0xf]
      %v2737 = vld [vmem:[%s1 + $0x2c] sm:$0xf]
      %v2738 = vld [vmem:[%s1 + $0x30] sm:$0xf]
      %v2739 = vld [vmem:[%s1 + $0x34] sm:$0xf]
      %v2740 = vld [vmem:[%s1 + $0x38] sm:$0xf]
      %v2741 = vld [vmem:[%s1 + $0x3c] sm:$0xf]
      %v2742 = vld [vmem:[#allocation2 + $0x80] sm:$0xff]
      %v2743 = vld [vmem:[%s368] sm:$0xf]
      %v2744 = vld [vmem:[%s368 + $0x4] sm:$0xf]
      %v2745 = vld [vmem:[%s368 + $0x8] sm:$0xf]
      %v2746 = vld [vmem:[%s368 + $0xc] sm:$0xf]
      %v2747 = vld [vmem:[%s368 + $0x10] sm:$0xf]
      %v2748 = vld [vmem:[%s368 + $0x14] sm:$0xf]
      %v2749 = vld [vmem:[%s368 + $0x18] sm:$0xf]
      %v2750 = vld [vmem:[%s368 + $0x1c] sm:$0xf]
      %v2751 = vld [vmem:[%s368 + $0x20] sm:$0xf]
      %v2752 = vld [vmem:[%s368 + $0x24] sm:$0xf]
      %v2753 = vld [vmem:[%s368 + $0x28] sm:$0xf]
      %v2754 = vld [vmem:[%s368 + $0x2c] sm:$0xf]
      %v2755 = vld [vmem:[%s368 + $0x30] sm:$0xf]
      %v2756 = vld [vmem:[%s368 + $0x34] sm:$0xf]
      %v2757 = vld [vmem:[%s368 + $0x38] sm:$0xf]
      %v2758 = vld [vmem:[%s368 + $0x3c] sm:$0xf]
      %v2760 = vshrl.u32 %v2717, 16
      %v2762 = vrot.slane %v2760, 7
      %v2764 = vshrl.u32 %v2718, 16
      %v2766 = vrot.slane %v2764, 7
      %v2767 = vshll.u32 %v2718, 16
      %v2769 = vor.u32 %v2766, %v2767
      %v2770 = vsel %vm385, %v2762, %v2769
      %v2772 = vshrl.u32 %v2719, 16
      %v2774 = vrot.slane %v2772, 7
      %v2775 = vshll.u32 %v2719, 16
      %v2777 = vor.u32 %v2774, %v2775
      %v2778 = vsel %vm385, %v2766, %v2777
      %v2780 = vshrl.u32 %v2720, 16
      %v2782 = vrot.slane %v2780, 7
      %v2783 = vshll.u32 %v2720, 16
      %v2785 = vor.u32 %v2782, %v2783
      %v2786 = vsel %vm385, %v2774, %v2785
      %v2788 = vshrl.u32 %v2721, 16
      %v2790 = vrot.slane %v2788, 7
      %v2791 = vshll.u32 %v2721, 16
      %v2793 = vor.u32 %v2790, %v2791
      %v2794 = vsel %vm385, %v2782, %v2793
      %v2796 = vshrl.u32 %v2722, 16
      %v2798 = vrot.slane %v2796, 7
      %v2799 = vshll.u32 %v2722, 16
      %v2801 = vor.u32 %v2798, %v2799
      %v2802 = vsel %vm385, %v2790, %v2801
      %v2804 = vshrl.u32 %v2723, 16
      %v2806 = vrot.slane %v2804, 7
      %v2807 = vshll.u32 %v2723, 16
      %v2809 = vor.u32 %v2806, %v2807
      %v2810 = vsel %vm385, %v2798, %v2809
      %v2812 = vshrl.u32 %v2724, 16
      %v2814 = vrot.slane %v2812, 7
      %v2815 = vshll.u32 %v2724, 16
      %v2817 = vor.u32 %v2814, %v2815
      %v2818 = vsel %vm385, %v2806, %v2817
      %v2820 = vshrl.u32 %v2742, 16
      %v2822 = vrot.slane %v2820, 7
      %v2823 = vshll.u32 %v2742, 16
      %v2825 = vor.u32 %v2822, %v2823
      %v2826 = vsel %vm385, %v2814, %v2825
      %v2851 = vunpack.c.l.b16 %v2743
      %v2852 = vunpack.c.l.b16 %v2744
      %v2853 = vunpack.c.l.b16 %v2745
      %v2854 = vunpack.c.l.b16 %v2746
      %v2855 = vunpack.c.l.b16 %v2747
      %v2856 = vunpack.c.l.b16 %v2748
      %v2857 = vunpack.c.l.b16 %v2749
      %v2858 = vunpack.c.l.b16 %v2750
      %v2859 = vunpack.c.l.b16 %v2751
      %v2860 = vunpack.c.l.b16 %v2752
      %v2861 = vunpack.c.l.b16 %v2753
      %v2862 = vunpack.c.l.b16 %v2754
      %v2863 = vunpack.c.l.b16 %v2755
      %v2864 = vunpack.c.l.b16 %v2756
      %v2865 = vunpack.c.l.b16 %v2757
      %v2866 = vunpack.c.l.b16 %v2758
      %v2867 = vpack.c.b16 %v2852, %v2851
      %v2868 = vpack.c.b16 %v2854, %v2853
      %v2869 = vpack.c.b16 %v2856, %v2855
      %v2870 = vpack.c.b16 %v2858, %v2857
      %v2871 = vpack.c.b16 %v2860, %v2859
      %v2872 = vpack.c.b16 %v2862, %v2861
      %v2873 = vpack.c.b16 %v2864, %v2863
      %v2874 = vpack.c.b16 %v2866, %v2865
      %2883 = vmatprep.subr.bf16.mxu0 0
      %2884 = vmatpush1.bf16.msra.mxu0 %v2867
      %2885 = vmatprep.subr.bf16.mxu0 0
      %2886 = vmatpush1.bf16.msra.mxu0 %v2868
      %2887 = vmatprep.subr.bf16.mxu0 0
      %2888 = vmatpush1.bf16.msra.mxu0 %v2869
      %2889 = vmatprep.subr.bf16.mxu0 0
      %2890 = vmatpush1.bf16.msra.mxu0 %v2870
      %2891 = vmatprep.subr.bf16.mxu0 0
      %2892 = vmatpush1.bf16.msra.mxu0 %v2871
      %2893 = vmatprep.subr.bf16.mxu0 0
      %2894 = vmatpush1.bf16.msra.mxu0 %v2872
      %2895 = vmatprep.subr.bf16.mxu0 0
      %2896 = vmatpush1.bf16.msra.mxu0 %v2873
      %2897 = vmatprep.subr.bf16.mxu0 0
      %2898 = vmatpush1.bf16.msra.mxu0 %v2874
      %2899 = vmatprep.subr.bf16.mxu0 0
      %2900 = vmatpush1.bf16.msra.mxu0 0
      %2901 = vmatprep.subr.bf16.mxu0 0
      %2902 = vmatpush1.bf16.msra.mxu0 0
      %2903 = vmatprep.subr.bf16.mxu0 0
      %2904 = vmatpush1.bf16.msra.mxu0 0
      %2905 = vmatprep.subr.bf16.mxu0 0
      %2906 = vmatpush1.bf16.msra.mxu0 0
      %2907 = vmatprep.subr.bf16.mxu0 0
      %2908 = vmatpush1.bf16.msra.mxu0 0
      %2909 = vmatprep.subr.bf16.mxu0 0
      %2910 = vmatpush1.bf16.msra.mxu0 0
      %2911 = vmatprep.subr.bf16.mxu0 0
      %2912 = vmatpush1.bf16.msra.mxu0 0
      %2913 = vmatprep.subr.bf16.mxu0 0
      %2914 = vmatpush1.bf16.msra.mxu0 0
      %2915 = vmatprep.mubr.bf16.mxu0 0
      %2916 = vmatmul.mubr.bf16.gmra.mrb[0].mxu0 %v2770
      %v2917 = vpop.f32.mrb[0].mxu0
      %v2918 = vadd.f32 0.0, %v2917
      %v2919 = vpop.f32.mrb[0].mxu0
      %v2920 = vpop.f32.mrb[0].mxu0
      %v2921 = vadd.f32 0.0, %v2920
      %v2922 = vpop.f32.mrb[0].mxu0
      %2923 = vmatprep.mubr.bf16.mxu0 0
      %2924 = vmatmul.mubr.bf16.gmra.mrb[0].mxu0 %v2778
      %v2925 = vpop.f32.mrb[0].mxu0
      %v2926 = vadd.f32 0.0, %v2925
      %v2927 = vpop.f32.mrb[0].mxu0
      %v2928 = vpop.f32.mrb[0].mxu0
      %v2929 = vadd.f32 0.0, %v2928
      %v2930 = vpop.f32.mrb[0].mxu0
      %2931 = vmatprep.mubr.bf16.mxu0 0
      %2932 = vmatmul.mubr.bf16.gmra.mrb[0].mxu0 %v2786
      %v2933 = vpop.f32.mrb[0].mxu0
      %v2934 = vadd.f32 0.0, %v2933
      %v2935 = vpop.f32.mrb[0].mxu0
      %v2936 = vpop.f32.mrb[0].mxu0
      %v2937 = vadd.f32 0.0, %v2936
      %v2938 = vpop.f32.mrb[0].mxu0
      %2939 = vmatprep.mubr.bf16.mxu0 0
      %2940 = vmatmul.mubr.bf16.gmra.mrb[0].mxu0 %v2794
      %v2941 = vpop.f32.mrb[0].mxu0
      %v2942 = vadd.f32 0.0, %v2941
      %v2943 = vpop.f32.mrb[0].mxu0
      %v2944 = vpop.f32.mrb[0].mxu0
      %v2945 = vadd.f32 0.0, %v2944
      %v2946 = vpop.f32.mrb[0].mxu0
      %2947 = vmatprep.mubr.bf16.mxu0 0
      %2948 = vmatmul.mubr.bf16.gmra.mrb[0].mxu0 %v2802
      %v2949 = vpop.f32.mrb[0].mxu0
      %v2950 = vadd.f32 0.0, %v2949
      %v2951 = vpop.f32.mrb[0].mxu0
      %v2952 = vpop.f32.mrb[0].mxu0
      %v2953 = vadd.f32 0.0, %v2952
      %v2954 = vpop.f32.mrb[0].mxu0
      %2955 = vmatprep.mubr.bf16.mxu0 0
      %2956 = vmatmul.mubr.bf16.gmra.mrb[0].mxu0 %v2810
      %v2957 = vpop.f32.mrb[0].mxu0
      %v2958 = vadd.f32 0.0, %v2957
      %v2959 = vpop.f32.mrb[0].mxu0
      %v2960 = vpop.f32.mrb[0].mxu0
      %v2961 = vadd.f32 0.0, %v2960
      %v2962 = vpop.f32.mrb[0].mxu0
      %2963 = vmatprep.mubr.bf16.mxu0 0
      %2964 = vmatmul.mubr.bf16.gmra.mrb[0].mxu0 %v2818
      %v2965 = vpop.f32.mrb[0].mxu0
      %v2966 = vadd.f32 0.0, %v2965
      %v2967 = vpop.f32.mrb[0].mxu0
      %v2968 = vpop.f32.mrb[0].mxu0
      %v2969 = vadd.f32 0.0, %v2968
      %v2970 = vpop.f32.mrb[0].mxu0
      %2971 = vmatprep.mubr.bf16.mxu0 0
      %2972 = vmatmul.mubr.bf16.gmra.mrb[0].mxu0 %v2826
      %v2973 = vpop.f32.mrb[0].mxu0
      %v2974 = vadd.f32 0.0, %v2973
      %v2975 = vpop.f32.mrb[0].mxu0
      %v2976 = vpop.f32.mrb[0].mxu0
      %v2977 = vadd.f32 0.0, %v2976
      %v2978 = vpop.f32.mrb[0].mxu0
      %2979 = vdwg.mxu0
      %v2989 = vrot.slane %v2717, 7
      %v2990 = vrot.slane %v2718, 7
      %v2991 = vsel %vm616, %v2989, %v2990
      %v2992 = vrot.slane %v2719, 7
      %v2993 = vsel %vm616, %v2990, %v2992
      %v2994 = vrot.slane %v2720, 7
      %v2995 = vsel %vm616, %v2992, %v2994
      %v2996 = vrot.slane %v2721, 7
      %v2997 = vsel %vm616, %v2994, %v2996
      %v2998 = vrot.slane %v2722, 7
      %v2999 = vsel %vm616, %v2996, %v2998
      %v3000 = vrot.slane %v2723, 7
      %v3001 = vsel %vm616, %v2998, %v3000
      %v3002 = vrot.slane %v2724, 7
      %v3003 = vsel %vm616, %v3000, %v3002
      %v3004 = vrot.slane %v2725, 7
      %v3005 = vsel %vm616, %v3002, %v3004
      %v3030 = vunpack.c.l.b16 %v2726
      %v3031 = vunpack.c.l.b16 %v2727
      %v3032 = vunpack.c.l.b16 %v2728
      %v3033 = vunpack.c.l.b16 %v2729
      %v3034 = vunpack.c.l.b16 %v2730
      %v3035 = vunpack.c.l.b16 %v2731
      %v3036 = vunpack.c.l.b16 %v2732
      %v3037 = vunpack.c.l.b16 %v2733
      %v3038 = vunpack.c.l.b16 %v2734
      %v3039 = vunpack.c.l.b16 %v2735
      %v3040 = vunpack.c.l.b16 %v2736
      %v3041 = vunpack.c.l.b16 %v2737
      %v3042 = vunpack.c.l.b16 %v2738
      %v3043 = vunpack.c.l.b16 %v2739
      %v3044 = vunpack.c.l.b16 %v2740
      %v3045 = vunpack.c.l.b16 %v2741
      %v3046 = vpack.c.b16 %v3031, %v3030
      %v3047 = vpack.c.b16 %v3033, %v3032
      %v3048 = vpack.c.b16 %v3035, %v3034
      %v3049 = vpack.c.b16 %v3037, %v3036
      %v3050 = vpack.c.b16 %v3039, %v3038
      %v3051 = vpack.c.b16 %v3041, %v3040
      %v3052 = vpack.c.b16 %v3043, %v3042
      %v3053 = vpack.c.b16 %v3045, %v3044
      %3062 = vmatprep.subr.bf16.mxu0 0
      %3063 = vmatpush1.bf16.msra.mxu0 %v3046
      %3064 = vmatprep.subr.bf16.mxu0 0
      %3065 = vmatpush1.bf16.msra.mxu0 %v3047
      %3066 = vmatprep.subr.bf16.mxu0 0
      %3067 = vmatpush1.bf16.msra.mxu0 %v3048
      %3068 = vmatprep.subr.bf16.mxu0 0
      %3069 = vmatpush1.bf16.msra.mxu0 %v3049
      %3070 = vmatprep.subr.bf16.mxu0 0
      %3071 = vmatpush1.bf16.msra.mxu0 %v3050
      %3072 = vmatprep.subr.bf16.mxu0 0
      %3073 = vmatpush1.bf16.msra.mxu0 %v3051
      %3074 = vmatprep.subr.bf16.mxu0 0
      %3075 = vmatpush1.bf16.msra.mxu0 %v3052
      %3076 = vmatprep.subr.bf16.mxu0 0
      %3077 = vmatpush1.bf16.msra.mxu0 %v3053
      %3078 = vmatprep.subr.bf16.mxu0 0
      %3079 = vmatpush1.bf16.msra.mxu0 0
      %3080 = vmatprep.subr.bf16.mxu0 0
      %3081 = vmatpush1.bf16.msra.mxu0 0
      %3082 = vmatprep.subr.bf16.mxu0 0
      %3083 = vmatpush1.bf16.msra.mxu0 0
      %3084 = vmatprep.subr.bf16.mxu0 0
      %3085 = vmatpush1.bf16.msra.mxu0 0
      %3086 = vmatprep.subr.bf16.mxu0 0
      %3087 = vmatpush1.bf16.msra.mxu0 0
      %3088 = vmatprep.subr.bf16.mxu0 0
      %3089 = vmatpush1.bf16.msra.mxu0 0
      %3090 = vmatprep.subr.bf16.mxu0 0
      %3091 = vmatpush1.bf16.msra.mxu0 0
      %3092 = vmatprep.subr.bf16.mxu0 0
      %3093 = vmatpush1.bf16.msra.mxu0 0
      %3094 = vmatprep.mubr.bf16.mxu0 0
      %3095 = vmatmul.mubr.bf16.gmra.mrb[0].mxu0 %v2991
      %v3096 = vpop.f32.mrb[0].mxu0
      %v3097 = vadd.f32 %v2918, %v3096
      %v3098 = vpop.f32.mrb[0].mxu0
      %v3099 = vpop.f32.mrb[0].mxu0
      %v3100 = vadd.f32 %v2921, %v3099
      %v3101 = vpop.f32.mrb[0].mxu0
      %3102 = vmatprep.mubr.bf16.mxu0 0
      %3103 = vmatmul.mubr.bf16.gmra.mrb[0].mxu0 %v2993
      %v3104 = vpop.f32.mrb[0].mxu0
      %v3105 = vadd.f32 %v2926, %v3104
      %v3106 = vpop.f32.mrb[0].mxu0
      %v3107 = vpop.f32.mrb[0].mxu0
      %v3108 = vadd.f32 %v2929, %v3107
      %v3109 = vpop.f32.mrb[0].mxu0
      %3110 = vmatprep.mubr.bf16.mxu0 0
      %3111 = vmatmul.mubr.bf16.gmra.mrb[0].mxu0 %v2995
      %v3112 = vpop.f32.mrb[0].mxu0
      %v3113 = vadd.f32 %v2934, %v3112
      %v3114 = vpop.f32.mrb[0].mxu0
      %v3115 = vpop.f32.mrb[0].mxu0
      %v3116 = vadd.f32 %v2937, %v3115
      %v3117 = vpop.f32.mrb[0].mxu0
      %3118 = vmatprep.mubr.bf16.mxu0 0
      %3119 = vmatmul.mubr.bf16.gmra.mrb[0].mxu0 %v2997
      %v3120 = vpop.f32.mrb[0].mxu0
      %v3121 = vadd.f32 %v2942, %v3120
      %v3122 = vpop.f32.mrb[0].mxu0
      %v3123 = vpop.f32.mrb[0].mxu0
      %v3124 = vadd.f32 %v2945, %v3123
      %v3125 = vpop.f32.mrb[0].mxu0
      %3126 = vmatprep.mubr.bf16.mxu0 0
      %3127 = vmatmul.mubr.bf16.gmra.mrb[0].mxu0 %v2999
      %v3128 = vpop.f32.mrb[0].mxu0
      %v3129 = vadd.f32 %v2950, %v3128
      %v3130 = vpop.f32.mrb[0].mxu0
      %v3131 = vpop.f32.mrb[0].mxu0
      %v3132 = vadd.f32 %v2953, %v3131
      %v3133 = vpop.f32.mrb[0].mxu0
      %3134 = vmatprep.mubr.bf16.mxu0 0
      %3135 = vmatmul.mubr.bf16.gmra.mrb[0].mxu0 %v3001
      %v3136 = vpop.f32.mrb[0].mxu0
      %v3137 = vadd.f32 %v2958, %v3136
      %v3138 = vpop.f32.mrb[0].mxu0
      %v3139 = vpop.f32.mrb[0].mxu0
      %v3140 = vadd.f32 %v2961, %v3139
      %v3141 = vpop.f32.mrb[0].mxu0
      %3142 = vmatprep.mubr.bf16.mxu0 0
      %3143 = vmatmul.mubr.bf16.gmra.mrb[0].mxu0 %v3003
      %v3144 = vpop.f32.mrb[0].mxu0
      %v3145 = vadd.f32 %v2966, %v3144
      %v3146 = vpop.f32.mrb[0].mxu0
      %v3147 = vpop.f32.mrb[0].mxu0
      %v3148 = vadd.f32 %v2969, %v3147
      %v3149 = vpop.f32.mrb[0].mxu0
      %3150 = vmatprep.mubr.bf16.mxu0 0
      %3151 = vmatmul.mubr.bf16.gmra.mrb[0].mxu0 %v3005
      %v3152 = vpop.f32.mrb[0].mxu0
      %v3153 = vadd.f32 %v2974, %v3152
      %v3154 = vpop.f32.mrb[0].mxu0
      %v3155 = vpop.f32.mrb[0].mxu0
      %v3156 = vadd.f32 %v2977, %v3155
      %v3157 = vpop.f32.mrb[0].mxu0
      %3158 = vdwg.mxu0
      %v3159 = vld [vmem:[%s787] sm:$0xf]
      %v3160 = vld [vmem:[%s787 + $0x4] sm:$0xf]
      %v3161 = vld [vmem:[%s787 + $0x8] sm:$0xf]
      %v3162 = vld [vmem:[%s787 + $0xc] sm:$0xf]
      %v3163 = vld [vmem:[%s787 + $0x10] sm:$0xf]
      %v3164 = vld [vmem:[%s787 + $0x14] sm:$0xf]
      %v3165 = vld [vmem:[%s787 + $0x18] sm:$0xf]
      %v3166 = vld [vmem:[%s787 + $0x1c] sm:$0xf]
      %v3167 = vld [vmem:[%s787 + $0x20] sm:$0xf]
      %v3168 = vld [vmem:[%s787 + $0x24] sm:$0xf]
      %v3169 = vld [vmem:[%s787 + $0x28] sm:$0xf]
      %v3170 = vld [vmem:[%s787 + $0x2c] sm:$0xf]
      %v3171 = vld [vmem:[%s787 + $0x30] sm:$0xf]
      %v3172 = vld [vmem:[%s787 + $0x34] sm:$0xf]
      %v3173 = vld [vmem:[%s787 + $0x38] sm:$0xf]
      %v3174 = vld [vmem:[%s787 + $0x3c] sm:$0xf]
      %v3191 = vunpack.c.l.b16 %v3159
      %v3192 = vunpack.c.l.b16 %v3160
      %v3193 = vunpack.c.l.b16 %v3161
      %v3194 = vunpack.c.l.b16 %v3162
      %v3195 = vunpack.c.l.b16 %v3163
      %v3196 = vunpack.c.l.b16 %v3164
      %v3197 = vunpack.c.l.b16 %v3165
      %v3198 = vunpack.c.l.b16 %v3166
      %v3199 = vunpack.c.l.b16 %v3167
      %v3200 = vunpack.c.l.b16 %v3168
      %v3201 = vunpack.c.l.b16 %v3169
      %v3202 = vunpack.c.l.b16 %v3170
      %v3203 = vunpack.c.l.b16 %v3171
      %v3204 = vunpack.c.l.b16 %v3172
      %v3205 = vunpack.c.l.b16 %v3173
      %v3206 = vunpack.c.l.b16 %v3174
      %v3207 = vpack.c.b16 %v3192, %v3191
      %v3208 = vpack.c.b16 %v3194, %v3193
      %v3209 = vpack.c.b16 %v3196, %v3195
      %v3210 = vpack.c.b16 %v3198, %v3197
      %v3211 = vpack.c.b16 %v3200, %v3199
      %v3212 = vpack.c.b16 %v3202, %v3201
      %v3213 = vpack.c.b16 %v3204, %v3203
      %v3214 = vpack.c.b16 %v3206, %v3205
      %3223 = vmatprep.subr.bf16.mxu0 0
      %3224 = vmatpush1.bf16.msra.mxu0 %v3207
      %3225 = vmatprep.subr.bf16.mxu0 0
      %3226 = vmatpush1.bf16.msra.mxu0 %v3208
      %3227 = vmatprep.subr.bf16.mxu0 0
      %3228 = vmatpush1.bf16.msra.mxu0 %v3209
      %3229 = vmatprep.subr.bf16.mxu0 0
      %3230 = vmatpush1.bf16.msra.mxu0 %v3210
      %3231 = vmatprep.subr.bf16.mxu0 0
      %3232 = vmatpush1.bf16.msra.mxu0 %v3211
      %3233 = vmatprep.subr.bf16.mxu0 0
      %3234 = vmatpush1.bf16.msra.mxu0 %v3212
      %3235 = vmatprep.subr.bf16.mxu0 0
      %3236 = vmatpush1.bf16.msra.mxu0 %v3213
      %3237 = vmatprep.subr.bf16.mxu0 0
      %3238 = vmatpush1.bf16.msra.mxu0 %v3214
      %3239 = vmatprep.subr.bf16.mxu0 0
      %3240 = vmatpush1.bf16.msra.mxu0 0
      %3241 = vmatprep.subr.bf16.mxu0 0
      %3242 = vmatpush1.bf16.msra.mxu0 0
      %3243 = vmatprep.subr.bf16.mxu0 0
      %3244 = vmatpush1.bf16.msra.mxu0 0
      %3245 = vmatprep.subr.bf16.mxu0 0
      %3246 = vmatpush1.bf16.msra.mxu0 0
      %3247 = vmatprep.subr.bf16.mxu0 0
      %3248 = vmatpush1.bf16.msra.mxu0 0
      %3249 = vmatprep.subr.bf16.mxu0 0
      %3250 = vmatpush1.bf16.msra.mxu0 0
      %3251 = vmatprep.subr.bf16.mxu0 0
      %3252 = vmatpush1.bf16.msra.mxu0 0
      %3253 = vmatprep.subr.bf16.mxu0 0
      %3254 = vmatpush1.bf16.msra.mxu0 0
      %3255 = vmatprep.mubr.bf16.mxu0 0
      %3256 = vmatmul.mubr.bf16.gmra.mrb[0].mxu0 %v2718
      %v3257 = vpop.f32.mrb[0].mxu0
      %v3258 = vadd.f32 0.0, %v3257
      %v3259 = vpop.f32.mrb[0].mxu0
      %v3260 = vpop.f32.mrb[0].mxu0
      %v3261 = vadd.f32 0.0, %v3260
      %v3262 = vpop.f32.mrb[0].mxu0
      %3263 = vmatprep.mubr.bf16.mxu0 0
      %3264 = vmatmul.mubr.bf16.gmra.mrb[0].mxu0 %v2719
      %v3265 = vpop.f32.mrb[0].mxu0
      %v3266 = vadd.f32 0.0, %v3265
      %v3267 = vpop.f32.mrb[0].mxu0
      %v3268 = vpop.f32.mrb[0].mxu0
      %v3269 = vadd.f32 0.0, %v3268
      %v3270 = vpop.f32.mrb[0].mxu0
      %3271 = vmatprep.mubr.bf16.mxu0 0
      %3272 = vmatmul.mubr.bf16.gmra.mrb[0].mxu0 %v2720
      %v3273 = vpop.f32.mrb[0].mxu0
      %v3274 = vadd.f32 0.0, %v3273
      %v3275 = vpop.f32.mrb[0].mxu0
      %v3276 = vpop.f32.mrb[0].mxu0
      %v3277 = vadd.f32 0.0, %v3276
      %v3278 = vpop.f32.mrb[0].mxu0
      %3279 = vmatprep.mubr.bf16.mxu0 0
      %3280 = vmatmul.mubr.bf16.gmra.mrb[0].mxu0 %v2721
      %v3281 = vpop.f32.mrb[0].mxu0
      %v3282 = vadd.f32 0.0, %v3281
      %v3283 = vpop.f32.mrb[0].mxu0
      %v3284 = vpop.f32.mrb[0].mxu0
      %v3285 = vadd.f32 0.0, %v3284
      %v3286 = vpop.f32.mrb[0].mxu0
      %3287 = vmatprep.mubr.bf16.mxu0 0
      %3288 = vmatmul.mubr.bf16.gmra.mrb[0].mxu0 %v2722
      %v3289 = vpop.f32.mrb[0].mxu0
      %v3290 = vadd.f32 0.0, %v3289
      %v3291 = vpop.f32.mrb[0].mxu0
      %v3292 = vpop.f32.mrb[0].mxu0
      %v3293 = vadd.f32 0.0, %v3292
      %v3294 = vpop.f32.mrb[0].mxu0
      %3295 = vmatprep.mubr.bf16.mxu0 0
      %3296 = vmatmul.mubr.bf16.gmra.mrb[0].mxu0 %v2723
      %v3297 = vpop.f32.mrb[0].mxu0
      %v3298 = vadd.f32 0.0, %v3297
      %v3299 = vpop.f32.mrb[0].mxu0
      %v3300 = vpop.f32.mrb[0].mxu0
      %v3301 = vadd.f32 0.0, %v3300
      %v3302 = vpop.f32.mrb[0].mxu0
      %3303 = vmatprep.mubr.bf16.mxu0 0
      %3304 = vmatmul.mubr.bf16.gmra.mrb[0].mxu0 %v2724
      %v3305 = vpop.f32.mrb[0].mxu0
      %v3306 = vadd.f32 0.0, %v3305
      %v3307 = vpop.f32.mrb[0].mxu0
      %v3308 = vpop.f32.mrb[0].mxu0
      %v3309 = vadd.f32 0.0, %v3308
      %v3310 = vpop.f32.mrb[0].mxu0
      %3311 = vmatprep.mubr.bf16.mxu0 0
      %3312 = vmatmul.mubr.bf16.gmra.mrb[0].mxu0 %v2742
      %v3313 = vpop.f32.mrb[0].mxu0
      %v3314 = vadd.f32 0.0, %v3313
      %v3315 = vpop.f32.mrb[0].mxu0
      %v3316 = vpop.f32.mrb[0].mxu0
      %v3317 = vadd.f32 0.0, %v3316
      %v3318 = vpop.f32.mrb[0].mxu0
      %3319 = vdwg.mxu0
      %v3320 = vadd.f32 %v3097, %v3258
      %v3321 = vadd.f32 %v3100, %v3261
      %v3322 = vadd.f32 %v3105, %v3266
      %v3323 = vadd.f32 %v3108, %v3269
      %v3324 = vadd.f32 %v3113, %v3274
      %v3325 = vadd.f32 %v3116, %v3277
      %v3326 = vadd.f32 %v3121, %v3282
      %v3327 = vadd.f32 %v3124, %v3285
      %v3328 = vadd.f32 %v3129, %v3290
      %v3329 = vadd.f32 %v3132, %v3293
      %v3330 = vadd.f32 %v3137, %v3298
      %v3331 = vadd.f32 %v3140, %v3301
      %v3332 = vadd.f32 %v3145, %v3306
      %v3333 = vadd.f32 %v3148, %v3309
      %v3334 = vadd.f32 %v3153, %v3314
      %v3335 = vadd.f32 %v3156, %v3317
      %v3336 = vld [vmem:[#allocation2 + $0x50] sm:$0xff]
      %v3337 = vld [vmem:[#allocation2 + $0x58] sm:$0xff]
      %v3338 = vld [vmem:[#allocation2 + $0x60] sm:$0xff]
      %v3339 = vld [vmem:[#allocation2 + $0x68] sm:$0xff]
      %v3340 = vld [vmem:[#allocation2 + $0x70] sm:$0xff]
      %v3341 = vld [vmem:[#allocation2 + $0x78] sm:$0xff]
      %v3342 = vld [vmem:[#allocation2 + $0x80] sm:$0xff]
      %v3343 = vld [vmem:[#allocation2 + $0x88] sm:$0xff]
      %v3344 = vld [vmem:[%s973] sm:$0xf]
      %v3345 = vld [vmem:[%s973 + $0x4] sm:$0xf]
      %v3346 = vld [vmem:[%s973 + $0x8] sm:$0xf]
      %v3347 = vld [vmem:[%s973 + $0xc] sm:$0xf]
      %v3348 = vld [vmem:[%s973 + $0x10] sm:$0xf]
      %v3349 = vld [vmem:[%s973 + $0x14] sm:$0xf]
      %v3350 = vld [vmem:[%s973 + $0x18] sm:$0xf]
      %v3351 = vld [vmem:[%s973 + $0x1c] sm:$0xf]
      %v3352 = vld [vmem:[%s973 + $0x20] sm:$0xf]
      %v3353 = vld [vmem:[%s973 + $0x24] sm:$0xf]
      %v3354 = vld [vmem:[%s973 + $0x28] sm:$0xf]
      %v3355 = vld [vmem:[%s973 + $0x2c] sm:$0xf]
      %v3356 = vld [vmem:[%s973 + $0x30] sm:$0xf]
      %v3357 = vld [vmem:[%s973 + $0x34] sm:$0xf]
      %v3358 = vld [vmem:[%s973 + $0x38] sm:$0xf]
      %v3359 = vld [vmem:[%s973 + $0x3c] sm:$0xf]
      %v3376 = vunpack.c.l.b16 %v3344
      %v3377 = vunpack.c.l.b16 %v3345
      %v3378 = vunpack.c.l.b16 %v3346
      %v3379 = vunpack.c.l.b16 %v3347
      %v3380 = vunpack.c.l.b16 %v3348
      %v3381 = vunpack.c.l.b16 %v3349
      %v3382 = vunpack.c.l.b16 %v3350
      %v3383 = vunpack.c.l.b16 %v3351
      %v3384 = vunpack.c.l.b16 %v3352
      %v3385 = vunpack.c.l.b16 %v3353
      %v3386 = vunpack.c.l.b16 %v3354
      %v3387 = vunpack.c.l.b16 %v3355
      %v3388 = vunpack.c.l.b16 %v3356
      %v3389 = vunpack.c.l.b16 %v3357
      %v3390 = vunpack.c.l.b16 %v3358
      %v3391 = vunpack.c.l.b16 %v3359
      %v3392 = vpack.c.b16 %v3377, %v3376
      %v3393 = vpack.c.b16 %v3379, %v3378
      %v3394 = vpack.c.b16 %v3381, %v3380
      %v3395 = vpack.c.b16 %v3383, %v3382
      %v3396 = vpack.c.b16 %v3385, %v3384
      %v3397 = vpack.c.b16 %v3387, %v3386
      %v3398 = vpack.c.b16 %v3389, %v3388
      %v3399 = vpack.c.b16 %v3391, %v3390
      %3408 = vmatprep.subr.bf16.mxu0 0
      %3409 = vmatpush1.bf16.msra.mxu0 %v3392
      %3410 = vmatprep.subr.bf16.mxu0 0
      %3411 = vmatpush1.bf16.msra.mxu0 %v3393
      %3412 = vmatprep.subr.bf16.mxu0 0
      %3413 = vmatpush1.bf16.msra.mxu0 %v3394
      %3414 = vmatprep.subr.bf16.mxu0 0
      %3415 = vmatpush1.bf16.msra.mxu0 %v3395
      %3416 = vmatprep.subr.bf16.mxu0 0
      %3417 = vmatpush1.bf16.msra.mxu0 %v3396
      %3418 = vmatprep.subr.bf16.mxu0 0
      %3419 = vmatpush1.bf16.msra.mxu0 %v3397
      %3420 = vmatprep.subr.bf16.mxu0 0
      %3421 = vmatpush1.bf16.msra.mxu0 %v3398
      %3422 = vmatprep.subr.bf16.mxu0 0
      %3423 = vmatpush1.bf16.msra.mxu0 %v3399
      %3424 = vmatprep.subr.bf16.mxu0 0
      %3425 = vmatpush1.bf16.msra.mxu0 0
      %3426 = vmatprep.subr.bf16.mxu0 0
      %3427 = vmatpush1.bf16.msra.mxu0 0
      %3428 = vmatprep.subr.bf16.mxu0 0
      %3429 = vmatpush1.bf16.msra.mxu0 0
      %3430 = vmatprep.subr.bf16.mxu0 0
      %3431 = vmatpush1.bf16.msra.mxu0 0
      %3432 = vmatprep.subr.bf16.mxu0 0
      %3433 = vmatpush1.bf16.msra.mxu0 0
      %3434 = vmatprep.subr.bf16.mxu0 0
      %3435 = vmatpush1.bf16.msra.mxu0 0
      %3436 = vmatprep.subr.bf16.mxu0 0
      %3437 = vmatpush1.bf16.msra.mxu0 0
      %3438 = vmatprep.subr.bf16.mxu0 0
      %3439 = vmatpush1.bf16.msra.mxu0 0
      %3440 = vmatprep.mubr.bf16.mxu0 0
      %3441 = vmatmul.mubr.bf16.gmra.mrb[0].mxu0 %v3336
      %v3442 = vpop.f32.mrb[0].mxu0
      %v3443 = vadd.f32 0.0, %v3442
      %v3444 = vpop.f32.mrb[0].mxu0
      %v3445 = vpop.f32.mrb[0].mxu0
      %v3446 = vadd.f32 0.0, %v3445
      %v3447 = vpop.f32.mrb[0].mxu0
      %3448 = vmatprep.mubr.bf16.mxu0 0
      %3449 = vmatmul.mubr.bf16.gmra.mrb[0].mxu0 %v3337
      %v3450 = vpop.f32.mrb[0].mxu0
      %v3451 = vadd.f32 0.0, %v3450
      %v3452 = vpop.f32.mrb[0].mxu0
      %v3453 = vpop.f32.mrb[0].mxu0
      %v3454 = vadd.f32 0.0, %v3453
      %v3455 = vpop.f32.mrb[0].mxu0
      %3456 = vmatprep.mubr.bf16.mxu0 0
      %3457 = vmatmul.mubr.bf16.gmra.mrb[0].mxu0 %v3338
      %v3458 = vpop.f32.mrb[0].mxu0
      %v3459 = vadd.f32 0.0, %v3458
      %v3460 = vpop.f32.mrb[0].mxu0
      %v3461 = vpop.f32.mrb[0].mxu0
      %v3462 = vadd.f32 0.0, %v3461
      %v3463 = vpop.f32.mrb[0].mxu0
      %3464 = vmatprep.mubr.bf16.mxu0 0
      %3465 = vmatmul.mubr.bf16.gmra.mrb[0].mxu0 %v3339
      %v3466 = vpop.f32.mrb[0].mxu0
      %v3467 = vadd.f32 0.0, %v3466
      %v3468 = vpop.f32.mrb[0].mxu0
      %v3469 = vpop.f32.mrb[0].mxu0
      %v3470 = vadd.f32 0.0, %v3469
      %v3471 = vpop.f32.mrb[0].mxu0
      %3472 = vmatprep.mubr.bf16.mxu0 0
      %3473 = vmatmul.mubr.bf16.gmra.mrb[0].mxu0 %v3340
      %v3474 = vpop.f32.mrb[0].mxu0
      %v3475 = vadd.f32 0.0, %v3474
      %v3476 = vpop.f32.mrb[0].mxu0
      %v3477 = vpop.f32.mrb[0].mxu0
      %v3478 = vadd.f32 0.0, %v3477
      %v3479 = vpop.f32.mrb[0].mxu0
      %3480 = vmatprep.mubr.bf16.mxu0 0
      %3481 = vmatmul.mubr.bf16.gmra.mrb[0].mxu0 %v3341
      %v3482 = vpop.f32.mrb[0].mxu0
      %v3483 = vadd.f32 0.0, %v3482
      %v3484 = vpop.f32.mrb[0].mxu0
      %v3485 = vpop.f32.mrb[0].mxu0
      %v3486 = vadd.f32 0.0, %v3485
      %v3487 = vpop.f32.mrb[0].mxu0
      %3488 = vmatprep.mubr.bf16.mxu0 0
      %3489 = vmatmul.mubr.bf16.gmra.mrb[0].mxu0 %v3342
      %v3490 = vpop.f32.mrb[0].mxu0
      %v3491 = vadd.f32 0.0, %v3490
      %v3492 = vpop.f32.mrb[0].mxu0
      %v3493 = vpop.f32.mrb[0].mxu0
      %v3494 = vadd.f32 0.0, %v3493
      %v3495 = vpop.f32.mrb[0].mxu0
      %3496 = vmatprep.mubr.bf16.mxu0 0
      %3497 = vmatmul.mubr.bf16.gmra.mrb[0].mxu0 %v3343
      %v3498 = vpop.f32.mrb[0].mxu0
      %v3499 = vadd.f32 0.0, %v3498
      %v3500 = vpop.f32.mrb[0].mxu0
      %v3501 = vpop.f32.mrb[0].mxu0
      %v3502 = vadd.f32 0.0, %v3501
      %v3503 = vpop.f32.mrb[0].mxu0
      %3504 = vdwg.mxu0
      %v3505 = vadd.f32 %v3320, %v3443
      %v3506 = vadd.f32 %v3321, %v3446
      %v3507 = vadd.f32 %v3322, %v3451
      %v3508 = vadd.f32 %v3323, %v3454
      %v3509 = vadd.f32 %v3324, %v3459
      %v3510 = vadd.f32 %v3325, %v3462
      %v3511 = vadd.f32 %v3326, %v3467
      %v3512 = vadd.f32 %v3327, %v3470
      %v3513 = vadd.f32 %v3328, %v3475
      %v3514 = vadd.f32 %v3329, %v3478
      %v3515 = vadd.f32 %v3330, %v3483
      %v3516 = vadd.f32 %v3331, %v3486
      %v3517 = vadd.f32 %v3332, %v3491
      %v3518 = vadd.f32 %v3333, %v3494
      %v3519 = vadd.f32 %v3334, %v3499
      %v3520 = vadd.f32 %v3335, %v3502
      %v3521 = vld [vmem:[#allocation2 + $0x50] sm:$0xff]
      %v3522 = vld [vmem:[#allocation2 + $0x58] sm:$0xff]
      %v3523 = vld [vmem:[#allocation2 + $0x60] sm:$0xff]
      %v3524 = vld [vmem:[#allocation2 + $0x68] sm:$0xff]
      %v3525 = vld [vmem:[#allocation2 + $0x70] sm:$0xff]
      %v3526 = vld [vmem:[#allocation2 + $0x78] sm:$0xff]
      %v3527 = vld [vmem:[#allocation2 + $0x80] sm:$0xff]
      %v3528 = vld [vmem:[#allocation2 + $0x88] sm:$0xff]
      %v3529 = vld [vmem:[#allocation2 + $0x90] sm:$0x1]
      %v3530 = vld [vmem:[%s1160] sm:$0xf]
      %v3531 = vld [vmem:[%s1160 + $0x4] sm:$0xf]
      %v3532 = vld [vmem:[%s1160 + $0x8] sm:$0xf]
      %v3533 = vld [vmem:[%s1160 + $0xc] sm:$0xf]
      %v3534 = vld [vmem:[%s1160 + $0x10] sm:$0xf]
      %v3535 = vld [vmem:[%s1160 + $0x14] sm:$0xf]
      %v3536 = vld [vmem:[%s1160 + $0x18] sm:$0xf]
      %v3537 = vld [vmem:[%s1160 + $0x1c] sm:$0xf]
      %v3538 = vld [vmem:[%s1160 + $0x20] sm:$0xf]
      %v3539 = vld [vmem:[%s1160 + $0x24] sm:$0xf]
      %v3540 = vld [vmem:[%s1160 + $0x28] sm:$0xf]
      %v3541 = vld [vmem:[%s1160 + $0x2c] sm:$0xf]
      %v3542 = vld [vmem:[%s1160 + $0x30] sm:$0xf]
      %v3543 = vld [vmem:[%s1160 + $0x34] sm:$0xf]
      %v3544 = vld [vmem:[%s1160 + $0x38] sm:$0xf]
      %v3545 = vld [vmem:[%s1160 + $0x3c] sm:$0xf]
      %v3547 = vshrl.u32 %v3521, 16
      %v3549 = vshll.u32 %v3521, 16
      %v3551 = vrot.slane %v3549, 1
      %v3552 = vor.u32 %v3547, %v3551
      %v3554 = vshll.u32 %v3522, 16
      %v3556 = vrot.slane %v3554, 1
      %v3557 = vsel %vm1177, %v3552, %v3556
      %v3558 = vshrl.u32 %v3522, 16
      %v3560 = vor.u32 %v3558, %v3556
      %v3562 = vshll.u32 %v3523, 16
      %v3564 = vrot.slane %v3562, 1
      %v3565 = vsel %vm1177, %v3560, %v3564
      %v3566 = vshrl.u32 %v3523, 16
      %v3568 = vor.u32 %v3566, %v3564
      %v3570 = vshll.u32 %v3524, 16
      %v3572 = vrot.slane %v3570, 1
      %v3573 = vsel %vm1177, %v3568, %v3572
      %v3574 = vshrl.u32 %v3524, 16
      %v3576 = vor.u32 %v3574, %v3572
      %v3578 = vshll.u32 %v3525, 16
      %v3580 = vrot.slane %v3578, 1
      %v3581 = vsel %vm1177, %v3576, %v3580
      %v3582 = vshrl.u32 %v3525, 16
      %v3584 = vor.u32 %v3582, %v3580
      %v3586 = vshll.u32 %v3526, 16
      %v3588 = vrot.slane %v3586, 1
      %v3589 = vsel %vm1177, %v3584, %v3588
      %v3590 = vshrl.u32 %v3526, 16
      %v3592 = vor.u32 %v3590, %v3588
      %v3594 = vshll.u32 %v3527, 16
      %v3596 = vrot.slane %v3594, 1
      %v3597 = vsel %vm1177, %v3592, %v3596
      %v3598 = vshrl.u32 %v3527, 16
      %v3600 = vor.u32 %v3598, %v3596
      %v3602 = vshll.u32 %v3528, 16
      %v3604 = vrot.slane %v3602, 1
      %v3605 = vsel %vm1177, %v3600, %v3604
      %v3606 = vshrl.u32 %v3528, 16
      %v3608 = vor.u32 %v3606, %v3604
      %v3610 = vshll.u32 %v3529, 16
      %v3612 = vrot.slane %v3610, 1
      %v3613 = vsel %vm1177, %v3608, %v3612
      %v3638 = vunpack.c.l.b16 %v3530
      %v3639 = vunpack.c.l.b16 %v3531
      %v3640 = vunpack.c.l.b16 %v3532
      %v3641 = vunpack.c.l.b16 %v3533
      %v3642 = vunpack.c.l.b16 %v3534
      %v3643 = vunpack.c.l.b16 %v3535
      %v3644 = vunpack.c.l.b16 %v3536
      %v3645 = vunpack.c.l.b16 %v3537
      %v3646 = vunpack.c.l.b16 %v3538
      %v3647 = vunpack.c.l.b16 %v3539
      %v3648 = vunpack.c.l.b16 %v3540
      %v3649 = vunpack.c.l.b16 %v3541
      %v3650 = vunpack.c.l.b16 %v3542
      %v3651 = vunpack.c.l.b16 %v3543
      %v3652 = vunpack.c.l.b16 %v3544
      %v3653 = vunpack.c.l.b16 %v3545
      %v3654 = vpack.c.b16 %v3639, %v3638
      %v3655 = vpack.c.b16 %v3641, %v3640
      %v3656 = vpack.c.b16 %v3643, %v3642
      %v3657 = vpack.c.b16 %v3645, %v3644
      %v3658 = vpack.c.b16 %v3647, %v3646
      %v3659 = vpack.c.b16 %v3649, %v3648
      %v3660 = vpack.c.b16 %v3651, %v3650
      %v3661 = vpack.c.b16 %v3653, %v3652
      %3670 = vmatprep.subr.bf16.mxu0 0
      %3671 = vmatpush1.bf16.msra.mxu0 %v3654
      %3672 = vmatprep.subr.bf16.mxu0 0
      %3673 = vmatpush1.bf16.msra.mxu0 %v3655
      %3674 = vmatprep.subr.bf16.mxu0 0
      %3675 = vmatpush1.bf16.msra.mxu0 %v3656
      %3676 = vmatprep.subr.bf16.mxu0 0
      %3677 = vmatpush1.bf16.msra.mxu0 %v3657
      %3678 = vmatprep.subr.bf16.mxu0 0
      %3679 = vmatpush1.bf16.msra.mxu0 %v3658
      %3680 = vmatprep.subr.bf16.mxu0 0
      %3681 = vmatpush1.bf16.msra.mxu0 %v3659
      %3682 = vmatprep.subr.bf16.mxu0 0
      %3683 = vmatpush1.bf16.msra.mxu0 %v3660
      %3684 = vmatprep.subr.bf16.mxu0 0
      %3685 = vmatpush1.bf16.msra.mxu0 %v3661
      %3686 = vmatprep.subr.bf16.mxu0 0
      %3687 = vmatpush1.bf16.msra.mxu0 0
      %3688 = vmatprep.subr.bf16.mxu0 0
      %3689 = vmatpush1.bf16.msra.mxu0 0
      %3690 = vmatprep.subr.bf16.mxu0 0
      %3691 = vmatpush1.bf16.msra.mxu0 0
      %3692 = vmatprep.subr.bf16.mxu0 0
      %3693 = vmatpush1.bf16.msra.mxu0 0
      %3694 = vmatprep.subr.bf16.mxu0 0
      %3695 = vmatpush1.bf16.msra.mxu0 0
      %3696 = vmatprep.subr.bf16.mxu0 0
      %3697 = vmatpush1.bf16.msra.mxu0 0
      %3698 = vmatprep.subr.bf16.mxu0 0
      %3699 = vmatpush1.bf16.msra.mxu0 0
      %3700 = vmatprep.subr.bf16.mxu0 0
      %3701 = vmatpush1.bf16.msra.mxu0 0
      %3702 = vmatprep.mubr.bf16.mxu0 0
      %3703 = vmatmul.mubr.bf16.gmra.mrb[0].mxu0 %v3557
      %v3704 = vpop.f32.mrb[0].mxu0
      %v3705 = vadd.f32 0.0, %v3704
      %v3706 = vpop.f32.mrb[0].mxu0
      %v3707 = vpop.f32.mrb[0].mxu0
      %v3708 = vadd.f32 0.0, %v3707
      %v3709 = vpop.f32.mrb[0].mxu0
      %3710 = vmatprep.mubr.bf16.mxu0 0
      %3711 = vmatmul.mubr.bf16.gmra.mrb[0].mxu0 %v3565
      %v3712 = vpop.f32.mrb[0].mxu0
      %v3713 = vadd.f32 0.0, %v3712
      %v3714 = vpop.f32.mrb[0].mxu0
      %v3715 = vpop.f32.mrb[0].mxu0
      %v3716 = vadd.f32 0.0, %v3715
      %v3717 = vpop.f32.mrb[0].mxu0
      %3718 = vmatprep.mubr.bf16.mxu0 0
      %3719 = vmatmul.mubr.bf16.gmra.mrb[0].mxu0 %v3573
      %v3720 = vpop.f32.mrb[0].mxu0
      %v3721 = vadd.f32 0.0, %v3720
      %v3722 = vpop.f32.mrb[0].mxu0
      %v3723 = vpop.f32.mrb[0].mxu0
      %v3724 = vadd.f32 0.0, %v3723
      %v3725 = vpop.f32.mrb[0].mxu0
      %3726 = vmatprep.mubr.bf16.mxu0 0
      %3727 = vmatmul.mubr.bf16.gmra.mrb[0].mxu0 %v3581
      %v3728 = vpop.f32.mrb[0].mxu0
      %v3729 = vadd.f32 0.0, %v3728
      %v3730 = vpop.f32.mrb[0].mxu0
      %v3731 = vpop.f32.mrb[0].mxu0
      %v3732 = vadd.f32 0.0, %v3731
      %v3733 = vpop.f32.mrb[0].mxu0
      %3734 = vmatprep.mubr.bf16.mxu0 0
      %3735 = vmatmul.mubr.bf16.gmra.mrb[0].mxu0 %v3589
      %v3736 = vpop.f32.mrb[0].mxu0
      %v3737 = vadd.f32 0.0, %v3736
      %v3738 = vpop.f32.mrb[0].mxu0
      %v3739 = vpop.f32.mrb[0].mxu0
      %v3740 = vadd.f32 0.0, %v3739
      %v3741 = vpop.f32.mrb[0].mxu0
      %3742 = vmatprep.mubr.bf16.mxu0 0
      %3743 = vmatmul.mubr.bf16.gmra.mrb[0].mxu0 %v3597
      %v3744 = vpop.f32.mrb[0].mxu0
      %v3745 = vadd.f32 0.0, %v3744
      %v3746 = vpop.f32.mrb[0].mxu0
      %v3747 = vpop.f32.mrb[0].mxu0
      %v3748 = vadd.f32 0.0, %v3747
      %v3749 = vpop.f32.mrb[0].mxu0
      %3750 = vmatprep.mubr.bf16.mxu0 0
      %3751 = vmatmul.mubr.bf16.gmra.mrb[0].mxu0 %v3605
      %v3752 = vpop.f32.mrb[0].mxu0
      %v3753 = vadd.f32 0.0, %v3752
      %v3754 = vpop.f32.mrb[0].mxu0
      %v3755 = vpop.f32.mrb[0].mxu0
      %v3756 = vadd.f32 0.0, %v3755
      %v3757 = vpop.f32.mrb[0].mxu0
      %3758 = vmatprep.mubr.bf16.mxu0 0
      %3759 = vmatmul.mubr.bf16.gmra.mrb[0].mxu0 %v3613
      %v3760 = vpop.f32.mrb[0].mxu0
      %v3761 = vadd.f32 0.0, %v3760
      %v3762 = vpop.f32.mrb[0].mxu0
      %v3763 = vpop.f32.mrb[0].mxu0
      %v3764 = vadd.f32 0.0, %v3763
      %v3765 = vpop.f32.mrb[0].mxu0
      %3766 = vdwg.mxu0
      %v3767 = vadd.f32 %v3505, %v3705
      %v3768 = vadd.f32 %v3506, %v3708
      %v3769 = vadd.f32 %v3507, %v3713
      %v3770 = vadd.f32 %v3508, %v3716
      %v3771 = vadd.f32 %v3509, %v3721
      %v3772 = vadd.f32 %v3510, %v3724
      %v3773 = vadd.f32 %v3511, %v3729
      %v3774 = vadd.f32 %v3512, %v3732
      %v3775 = vadd.f32 %v3513, %v3737
      %v3776 = vadd.f32 %v3514, %v3740
      %v3777 = vadd.f32 %v3515, %v3745
      %v3778 = vadd.f32 %v3516, %v3748
      %v3779 = vadd.f32 %v3517, %v3753
      %v3780 = vadd.f32 %v3518, %v3756
      %v3781 = vadd.f32 %v3519, %v3761
      %v3782 = vadd.f32 %v3520, %v3764
      %v3783 = vld [vmem:[#allocation2 + $0x50] sm:$0xfe]
      %v3784 = vld [vmem:[%s1416] sm:$0xf]
      %v3785 = vld [vmem:[%s1416 + $0x4] sm:$0xf]
      %v3786 = vld [vmem:[%s1416 + $0x8] sm:$0xf]
      %v3787 = vld [vmem:[%s1416 + $0xc] sm:$0xf]
      %v3788 = vld [vmem:[%s1416 + $0x10] sm:$0xf]
      %v3789 = vld [vmem:[%s1416 + $0x14] sm:$0xf]
      %v3790 = vld [vmem:[%s1416 + $0x18] sm:$0xf]
      %v3791 = vld [vmem:[%s1416 + $0x1c] sm:$0xf]
      %v3792 = vld [vmem:[%s1416 + $0x20] sm:$0xf]
      %v3793 = vld [vmem:[%s1416 + $0x24] sm:$0xf]
      %v3794 = vld [vmem:[%s1416 + $0x28] sm:$0xf]
      %v3795 = vld [vmem:[%s1416 + $0x2c] sm:$0xf]
      %v3796 = vld [vmem:[%s1416 + $0x30] sm:$0xf]
      %v3797 = vld [vmem:[%s1416 + $0x34] sm:$0xf]
      %v3798 = vld [vmem:[%s1416 + $0x38] sm:$0xf]
      %v3799 = vld [vmem:[%s1416 + $0x3c] sm:$0xf]
      %v3809 = vrot.slane %v3783, 1
      %v3810 = vrot.slane %v3522, 1
      %v3811 = vsel %vm1442, %v3809, %v3810
      %v3812 = vrot.slane %v3523, 1
      %v3813 = vsel %vm1442, %v3810, %v3812
      %v3814 = vrot.slane %v3524, 1
      %v3815 = vsel %vm1442, %v3812, %v3814
      %v3816 = vrot.slane %v3525, 1
      %v3817 = vsel %vm1442, %v3814, %v3816
      %v3818 = vrot.slane %v3526, 1
      %v3819 = vsel %vm1442, %v3816, %v3818
      %v3820 = vrot.slane %v3527, 1
      %v3821 = vsel %vm1442, %v3818, %v3820
      %v3822 = vrot.slane %v3528, 1
      %v3823 = vsel %vm1442, %v3820, %v3822
      %v3824 = vrot.slane %v3529, 1
      %v3825 = vsel %vm1442, %v3822, %v3824
      %v3850 = vunpack.c.l.b16 %v3784
      %v3851 = vunpack.c.l.b16 %v3785
      %v3852 = vunpack.c.l.b16 %v3786
      %v3853 = vunpack.c.l.b16 %v3787
      %v3854 = vunpack.c.l.b16 %v3788
      %v3855 = vunpack.c.l.b16 %v3789
      %v3856 = vunpack.c.l.b16 %v3790
      %v3857 = vunpack.c.l.b16 %v3791
      %v3858 = vunpack.c.l.b16 %v3792
      %v3859 = vunpack.c.l.b16 %v3793
      %v3860 = vunpack.c.l.b16 %v3794
      %v3861 = vunpack.c.l.b16 %v3795
      %v3862 = vunpack.c.l.b16 %v3796
      %v3863 = vunpack.c.l.b16 %v3797
      %v3864 = vunpack.c.l.b16 %v3798
      %v3865 = vunpack.c.l.b16 %v3799
      %v3866 = vpack.c.b16 %v3851, %v3850
      %v3867 = vpack.c.b16 %v3853, %v3852
      %v3868 = vpack.c.b16 %v3855, %v3854
      %v3869 = vpack.c.b16 %v3857, %v3856
      %v3870 = vpack.c.b16 %v3859, %v3858
      %v3871 = vpack.c.b16 %v3861, %v3860
      %v3872 = vpack.c.b16 %v3863, %v3862
      %v3873 = vpack.c.b16 %v3865, %v3864
      %3882 = vmatprep.subr.bf16.mxu0 0
      %3883 = vmatpush1.bf16.msra.mxu0 %v3866
      %3884 = vmatprep.subr.bf16.mxu0 0
      %3885 = vmatpush1.bf16.msra.mxu0 %v3867
      %3886 = vmatprep.subr.bf16.mxu0 0
      %3887 = vmatpush1.bf16.msra.mxu0 %v3868
      %3888 = vmatprep.subr.bf16.mxu0 0
      %3889 = vmatpush1.bf16.msra.mxu0 %v3869
      %3890 = vmatprep.subr.bf16.mxu0 0
      %3891 = vmatpush1.bf16.msra.mxu0 %v3870
      %3892 = vmatprep.subr.bf16.mxu0 0
      %3893 = vmatpush1.bf16.msra.mxu0 %v3871
      %3894 = vmatprep.subr.bf16.mxu0 0
      %3895 = vmatpush1.bf16.msra.mxu0 %v3872
      %3896 = vmatprep.subr.bf16.mxu0 0
      %3897 = vmatpush1.bf16.msra.mxu0 %v3873
      %3898 = vmatprep.subr.bf16.mxu0 0
      %3899 = vmatpush1.bf16.msra.mxu0 0
      %3900 = vmatprep.subr.bf16.mxu0 0
      %3901 = vmatpush1.bf16.msra.mxu0 0
      %3902 = vmatprep.subr.bf16.mxu0 0
      %3903 = vmatpush1.bf16.msra.mxu0 0
      %3904 = vmatprep.subr.bf16.mxu0 0
      %3905 = vmatpush1.bf16.msra.mxu0 0
      %3906 = vmatprep.subr.bf16.mxu0 0
      %3907 = vmatpush1.bf16.msra.mxu0 0
      %3908 = vmatprep.subr.bf16.mxu0 0
      %3909 = vmatpush1.bf16.msra.mxu0 0
      %3910 = vmatprep.subr.bf16.mxu0 0
      %3911 = vmatpush1.bf16.msra.mxu0 0
      %3912 = vmatprep.subr.bf16.mxu0 0
      %3913 = vmatpush1.bf16.msra.mxu0 0
      %3914 = vmatprep.mubr.bf16.mxu0 0
      %3915 = vmatmul.mubr.bf16.gmra.mrb[0].mxu0 %v3811
      %v3916 = vpop.f32.mrb[0].mxu0
      %v3917 = vadd.f32 0.0, %v3916
      %v3918 = vpop.f32.mrb[0].mxu0
      %v3919 = vpop.f32.mrb[0].mxu0
      %v3920 = vadd.f32 0.0, %v3919
      %v3921 = vpop.f32.mrb[0].mxu0
      %3922 = vmatprep.mubr.bf16.mxu0 0
      %3923 = vmatmul.mubr.bf16.gmra.mrb[0].mxu0 %v3813
      %v3924 = vpop.f32.mrb[0].mxu0
      %v3925 = vadd.f32 0.0, %v3924
      %v3926 = vpop.f32.mrb[0].mxu0
      %v3927 = vpop.f32.mrb[0].mxu0
      %v3928 = vadd.f32 0.0, %v3927
      %v3929 = vpop.f32.mrb[0].mxu0
      %3930 = vmatprep.mubr.bf16.mxu0 0
      %3931 = vmatmul.mubr.bf16.gmra.mrb[0].mxu0 %v3815
      %v3932 = vpop.f32.mrb[0].mxu0
      %v3933 = vadd.f32 0.0, %v3932
      %v3934 = vpop.f32.mrb[0].mxu0
      %v3935 = vpop.f32.mrb[0].mxu0
      %v3936 = vadd.f32 0.0, %v3935
      %v3937 = vpop.f32.mrb[0].mxu0
      %3938 = vmatprep.mubr.bf16.mxu0 0
      %3939 = vmatmul.mubr.bf16.gmra.mrb[0].mxu0 %v3817
      %v3940 = vpop.f32.mrb[0].mxu0
      %v3941 = vadd.f32 0.0, %v3940
      %v3942 = vpop.f32.mrb[0].mxu0
      %v3943 = vpop.f32.mrb[0].mxu0
      %v3944 = vadd.f32 0.0, %v3943
      %v3945 = vpop.f32.mrb[0].mxu0
      %3946 = vmatprep.mubr.bf16.mxu0 0
      %3947 = vmatmul.mubr.bf16.gmra.mrb[0].mxu0 %v3819
      %v3948 = vpop.f32.mrb[0].mxu0
      %v3949 = vadd.f32 0.0, %v3948
      %v3950 = vpop.f32.mrb[0].mxu0
      %v3951 = vpop.f32.mrb[0].mxu0
      %v3952 = vadd.f32 0.0, %v3951
      %v3953 = vpop.f32.mrb[0].mxu0
      %3954 = vmatprep.mubr.bf16.mxu0 0
      %3955 = vmatmul.mubr.bf16.gmra.mrb[0].mxu0 %v3821
      %v3956 = vpop.f32.mrb[0].mxu0
      %v3957 = vadd.f32 0.0, %v3956
      %v3958 = vpop.f32.mrb[0].mxu0
      %v3959 = vpop.f32.mrb[0].mxu0
      %v3960 = vadd.f32 0.0, %v3959
      %v3961 = vpop.f32.mrb[0].mxu0
      %3962 = vmatprep.mubr.bf16.mxu0 0
      %3963 = vmatmul.mubr.bf16.gmra.mrb[0].mxu0 %v3823
      %v3964 = vpop.f32.mrb[0].mxu0
      %v3965 = vadd.f32 0.0, %v3964
      %v3966 = vpop.f32.mrb[0].mxu0
      %v3967 = vpop.f32.mrb[0].mxu0
      %v3968 = vadd.f32 0.0, %v3967
      %v3969 = vpop.f32.mrb[0].mxu0
      %3970 = vmatprep.mubr.bf16.mxu0 0
      %3971 = vmatmul.mubr.bf16.gmra.mrb[0].mxu0 %v3825
      %v3972 = vpop.f32.mrb[0].mxu0
      %v3973 = vadd.f32 0.0, %v3972
      %v3974 = vpop.f32.mrb[0].mxu0
      %v3975 = vpop.f32.mrb[0].mxu0
      %v3976 = vadd.f32 0.0, %v3975
      %v3977 = vpop.f32.mrb[0].mxu0
      %3978 = vdwg.mxu0
      %v3979 = vadd.f32 %v3767, %v3917
      %v3980 = vadd.f32 %v3768, %v3920
      %v3981 = vadd.f32 %v3769, %v3925
      %v3982 = vadd.f32 %v3770, %v3928
      %v3983 = vadd.f32 %v3771, %v3933
      %v3984 = vadd.f32 %v3772, %v3936
      %v3985 = vadd.f32 %v3773, %v3941
      %v3986 = vadd.f32 %v3774, %v3944
      %v3987 = vadd.f32 %v3775, %v3949
      %v3988 = vadd.f32 %v3776, %v3952
      %v3989 = vadd.f32 %v3777, %v3957
      %v3990 = vadd.f32 %v3778, %v3960
      %v3991 = vadd.f32 %v3779, %v3965
      %v3992 = vadd.f32 %v3780, %v3968
      %v3993 = vadd.f32 %v3781, %v3973
      %v3994 = vadd.f32 %v3782, %v3976
      %v3995 = vld [vmem:[#allocation2 + $0x58] sm:$0xfe]
      %v3996 = vld [vmem:[#allocation2 + $0x60] sm:$0xff]
      %v3997 = vld [vmem:[#allocation2 + $0x68] sm:$0xff]
      %v3998 = vld [vmem:[#allocation2 + $0x70] sm:$0xff]
      %v3999 = vld [vmem:[#allocation2 + $0x78] sm:$0xff]
      %v4000 = vld [vmem:[#allocation2 + $0x80] sm:$0xff]
      %v4001 = vld [vmem:[#allocation2 + $0x88] sm:$0xff]
      %v4002 = vld [vmem:[#allocation2 + $0x90] sm:$0xff]
      %v4003 = vld [vmem:[#allocation2 + $0x98] sm:$0x1]
      %v4004 = vld [vmem:[%s1638] sm:$0xf]
      %v4005 = vld [vmem:[%s1638 + $0x4] sm:$0xf]
      %v4006 = vld [vmem:[%s1638 + $0x8] sm:$0xf]
      %v4007 = vld [vmem:[%s1638 + $0xc] sm:$0xf]
      %v4008 = vld [vmem:[%s1638 + $0x10] sm:$0xf]
      %v4009 = vld [vmem:[%s1638 + $0x14] sm:$0xf]
      %v4010 = vld [vmem:[%s1638 + $0x18] sm:$0xf]
      %v4011 = vld [vmem:[%s1638 + $0x1c] sm:$0xf]
      %v4012 = vld [vmem:[%s1638 + $0x20] sm:$0xf]
      %v4013 = vld [vmem:[%s1638 + $0x24] sm:$0xf]
      %v4014 = vld [vmem:[%s1638 + $0x28] sm:$0xf]
      %v4015 = vld [vmem:[%s1638 + $0x2c] sm:$0xf]
      %v4016 = vld [vmem:[%s1638 + $0x30] sm:$0xf]
      %v4017 = vld [vmem:[%s1638 + $0x34] sm:$0xf]
      %v4018 = vld [vmem:[%s1638 + $0x38] sm:$0xf]
      %v4019 = vld [vmem:[%s1638 + $0x3c] sm:$0xf]
      %v4029 = vrot.slane %v3995, 1
      %v4030 = vrot.slane %v3996, 1
      %v4031 = vsel %vm1442, %v4029, %v4030
      %v4032 = vrot.slane %v3997, 1
      %v4033 = vsel %vm1442, %v4030, %v4032
      %v4034 = vrot.slane %v3998, 1
      %v4035 = vsel %vm1442, %v4032, %v4034
      %v4036 = vrot.slane %v3999, 1
      %v4037 = vsel %vm1442, %v4034, %v4036
      %v4038 = vrot.slane %v4000, 1
      %v4039 = vsel %vm1442, %v4036, %v4038
      %v4040 = vrot.slane %v4001, 1
      %v4041 = vsel %vm1442, %v4038, %v4040
      %v4042 = vrot.slane %v4002, 1
      %v4043 = vsel %vm1442, %v4040, %v4042
      %v4044 = vrot.slane %v4003, 1
      %v4045 = vsel %vm1442, %v4042, %v4044
      %v4070 = vunpack.c.l.b16 %v4004
      %v4071 = vunpack.c.l.b16 %v4005
      %v4072 = vunpack.c.l.b16 %v4006
      %v4073 = vunpack.c.l.b16 %v4007
      %v4074 = vunpack.c.l.b16 %v4008
      %v4075 = vunpack.c.l.b16 %v4009
      %v4076 = vunpack.c.l.b16 %v4010
      %v4077 = vunpack.c.l.b16 %v4011
      %v4078 = vunpack.c.l.b16 %v4012
      %v4079 = vunpack.c.l.b16 %v4013
      %v4080 = vunpack.c.l.b16 %v4014
      %v4081 = vunpack.c.l.b16 %v4015
      %v4082 = vunpack.c.l.b16 %v4016
      %v4083 = vunpack.c.l.b16 %v4017
      %v4084 = vunpack.c.l.b16 %v4018
      %v4085 = vunpack.c.l.b16 %v4019
      %v4086 = vpack.c.b16 %v4071, %v4070
      %v4087 = vpack.c.b16 %v4073, %v4072
      %v4088 = vpack.c.b16 %v4075, %v4074
      %v4089 = vpack.c.b16 %v4077, %v4076
      %v4090 = vpack.c.b16 %v4079, %v4078
      %v4091 = vpack.c.b16 %v4081, %v4080
      %v4092 = vpack.c.b16 %v4083, %v4082
      %v4093 = vpack.c.b16 %v4085, %v4084
      %4102 = vmatprep.subr.bf16.mxu0 0
      %4103 = vmatpush1.bf16.msra.mxu0 %v4086
      %4104 = vmatprep.subr.bf16.mxu0 0
      %4105 = vmatpush1.bf16.msra.mxu0 %v4087
      %4106 = vmatprep.subr.bf16.mxu0 0
      %4107 = vmatpush1.bf16.msra.mxu0 %v4088
      %4108 = vmatprep.subr.bf16.mxu0 0
      %4109 = vmatpush1.bf16.msra.mxu0 %v4089
      %4110 = vmatprep.subr.bf16.mxu0 0
      %4111 = vmatpush1.bf16.msra.mxu0 %v4090
      %4112 = vmatprep.subr.bf16.mxu0 0
      %4113 = vmatpush1.bf16.msra.mxu0 %v4091
      %4114 = vmatprep.subr.bf16.mxu0 0
      %4115 = vmatpush1.bf16.msra.mxu0 %v4092
      %4116 = vmatprep.subr.bf16.mxu0 0
      %4117 = vmatpush1.bf16.msra.mxu0 %v4093
      %4118 = vmatprep.subr.bf16.mxu0 0
      %4119 = vmatpush1.bf16.msra.mxu0 0
      %4120 = vmatprep.subr.bf16.mxu0 0
      %4121 = vmatpush1.bf16.msra.mxu0 0
      %4122 = vmatprep.subr.bf16.mxu0 0
      %4123 = vmatpush1.bf16.msra.mxu0 0
      %4124 = vmatprep.subr.bf16.mxu0 0
      %4125 = vmatpush1.bf16.msra.mxu0 0
      %4126 = vmatprep.subr.bf16.mxu0 0
      %4127 = vmatpush1.bf16.msra.mxu0 0
      %4128 = vmatprep.subr.bf16.mxu0 0
      %4129 = vmatpush1.bf16.msra.mxu0 0
      %4130 = vmatprep.subr.bf16.mxu0 0
      %4131 = vmatpush1.bf16.msra.mxu0 0
      %4132 = vmatprep.subr.bf16.mxu0 0
      %4133 = vmatpush1.bf16.msra.mxu0 0
      %4134 = vmatprep.mubr.bf16.mxu0 0
      %4135 = vmatmul.mubr.bf16.gmra.mrb[0].mxu0 %v4031
      %v4136 = vpop.f32.mrb[0].mxu0
      %v4137 = vadd.f32 0.0, %v4136
      %v4138 = vpop.f32.mrb[0].mxu0
      %v4139 = vpop.f32.mrb[0].mxu0
      %v4140 = vadd.f32 0.0, %v4139
      %v4141 = vpop.f32.mrb[0].mxu0
      %4142 = vmatprep.mubr.bf16.mxu0 0
      %4143 = vmatmul.mubr.bf16.gmra.mrb[0].mxu0 %v4033
      %v4144 = vpop.f32.mrb[0].mxu0
      %v4145 = vadd.f32 0.0, %v4144
      %v4146 = vpop.f32.mrb[0].mxu0
      %v4147 = vpop.f32.mrb[0].mxu0
      %v4148 = vadd.f32 0.0, %v4147
      %v4149 = vpop.f32.mrb[0].mxu0
      %4150 = vmatprep.mubr.bf16.mxu0 0
      %4151 = vmatmul.mubr.bf16.gmra.mrb[0].mxu0 %v4035
      %v4152 = vpop.f32.mrb[0].mxu0
      %v4153 = vadd.f32 0.0, %v4152
      %v4154 = vpop.f32.mrb[0].mxu0
      %v4155 = vpop.f32.mrb[0].mxu0
      %v4156 = vadd.f32 0.0, %v4155
      %v4157 = vpop.f32.mrb[0].mxu0
      %4158 = vmatprep.mubr.bf16.mxu0 0
      %4159 = vmatmul.mubr.bf16.gmra.mrb[0].mxu0 %v4037
      %v4160 = vpop.f32.mrb[0].mxu0
      %v4161 = vadd.f32 0.0, %v4160
      %v4162 = vpop.f32.mrb[0].mxu0
      %v4163 = vpop.f32.mrb[0].mxu0
      %v4164 = vadd.f32 0.0, %v4163
      %v4165 = vpop.f32.mrb[0].mxu0
      %4166 = vmatprep.mubr.bf16.mxu0 0
      %4167 = vmatmul.mubr.bf16.gmra.mrb[0].mxu0 %v4039
      %v4168 = vpop.f32.mrb[0].mxu0
      %v4169 = vadd.f32 0.0, %v4168
      %v4170 = vpop.f32.mrb[0].mxu0
      %v4171 = vpop.f32.mrb[0].mxu0
      %v4172 = vadd.f32 0.0, %v4171
      %v4173 = vpop.f32.mrb[0].mxu0
      %4174 = vmatprep.mubr.bf16.mxu0 0
      %4175 = vmatmul.mubr.bf16.gmra.mrb[0].mxu0 %v4041
      %v4176 = vpop.f32.mrb[0].mxu0
      %v4177 = vadd.f32 0.0, %v4176
      %v4178 = vpop.f32.mrb[0].mxu0
      %v4179 = vpop.f32.mrb[0].mxu0
      %v4180 = vadd.f32 0.0, %v4179
      %v4181 = vpop.f32.mrb[0].mxu0
      %4182 = vmatprep.mubr.bf16.mxu0 0
      %4183 = vmatmul.mubr.bf16.gmra.mrb[0].mxu0 %v4043
      %v4184 = vpop.f32.mrb[0].mxu0
      %v4185 = vadd.f32 0.0, %v4184
      %v4186 = vpop.f32.mrb[0].mxu0
      %v4187 = vpop.f32.mrb[0].mxu0
      %v4188 = vadd.f32 0.0, %v4187
      %v4189 = vpop.f32.mrb[0].mxu0
      %4190 = vmatprep.mubr.bf16.mxu0 0
      %4191 = vmatmul.mubr.bf16.gmra.mrb[0].mxu0 %v4045
      %v4192 = vpop.f32.mrb[0].mxu0
      %v4193 = vadd.f32 0.0, %v4192
      %v4194 = vpop.f32.mrb[0].mxu0
      %v4195 = vpop.f32.mrb[0].mxu0
      %v4196 = vadd.f32 0.0, %v4195
      %v4197 = vpop.f32.mrb[0].mxu0
      %4198 = vdwg.mxu0
      %v4199 = vadd.f32 %v3979, %v4137
      %v4200 = vadd.f32 %v3980, %v4140
      %v4201 = vadd.f32 %v3981, %v4145
      %v4202 = vadd.f32 %v3982, %v4148
      %v4203 = vadd.f32 %v3983, %v4153
      %v4204 = vadd.f32 %v3984, %v4156
      %v4205 = vadd.f32 %v3985, %v4161
      %v4206 = vadd.f32 %v3986, %v4164
      %v4207 = vadd.f32 %v3987, %v4169
      %v4208 = vadd.f32 %v3988, %v4172
      %v4209 = vadd.f32 %v3989, %v4177
      %v4210 = vadd.f32 %v3990, %v4180
      %v4211 = vadd.f32 %v3991, %v4185
      %v4212 = vadd.f32 %v3992, %v4188
      %v4213 = vadd.f32 %v3993, %v4193
      %v4214 = vadd.f32 %v3994, %v4196
      %v4215 = vld [vmem:[#allocation2 + $0x98] sm:$0x3]
      %v4216 = vld [vmem:[%s1851] sm:$0xf]
      %v4217 = vld [vmem:[%s1851 + $0x4] sm:$0xf]
      %v4218 = vld [vmem:[%s1851 + $0x8] sm:$0xf]
      %v4219 = vld [vmem:[%s1851 + $0xc] sm:$0xf]
      %v4220 = vld [vmem:[%s1851 + $0x10] sm:$0xf]
      %v4221 = vld [vmem:[%s1851 + $0x14] sm:$0xf]
      %v4222 = vld [vmem:[%s1851 + $0x18] sm:$0xf]
      %v4223 = vld [vmem:[%s1851 + $0x1c] sm:$0xf]
      %v4224 = vld [vmem:[%s1851 + $0x20] sm:$0xf]
      %v4225 = vld [vmem:[%s1851 + $0x24] sm:$0xf]
      %v4226 = vld [vmem:[%s1851 + $0x28] sm:$0xf]
      %v4227 = vld [vmem:[%s1851 + $0x2c] sm:$0xf]
      %v4228 = vld [vmem:[%s1851 + $0x30] sm:$0xf]
      %v4229 = vld [vmem:[%s1851 + $0x34] sm:$0xf]
      %v4230 = vld [vmem:[%s1851 + $0x38] sm:$0xf]
      %v4231 = vld [vmem:[%s1851 + $0x3c] sm:$0xf]
      %v4233 = vshrl.u32 %v3995, 16
      %v4235 = vrot.slane %v4233, 1
      %v4236 = vshll.u32 %v3995, 16
      %v4238 = vrot.slane %v4236, 2
      %v4239 = vor.u32 %v4235, %v4238
      %v4241 = vshrl.u32 %v3996, 16
      %v4243 = vrot.slane %v4241, 1
      %v4244 = vshll.u32 %v3996, 16
      %v4246 = vrot.slane %v4244, 2
      %v4247 = vor.u32 %v4243, %v4246
      %v4248 = vsel %vm1868, %v4239, %v4247
      %v4250 = vshrl.u32 %v3997, 16
      %v4252 = vrot.slane %v4250, 1
      %v4253 = vshll.u32 %v3997, 16
      %v4255 = vrot.slane %v4253, 2
      %v4256 = vor.u32 %v4252, %v4255
      %v4257 = vsel %vm1868, %v4247, %v4256
      %v4259 = vshrl.u32 %v3998, 16
      %v4261 = vrot.slane %v4259, 1
      %v4262 = vshll.u32 %v3998, 16
      %v4264 = vrot.slane %v4262, 2
      %v4265 = vor.u32 %v4261, %v4264
      %v4266 = vsel %vm1868, %v4256, %v4265
      %v4268 = vshrl.u32 %v3999, 16
      %v4270 = vrot.slane %v4268, 1
      %v4271 = vshll.u32 %v3999, 16
      %v4273 = vrot.slane %v4271, 2
      %v4274 = vor.u32 %v4270, %v4273
      %v4275 = vsel %vm1868, %v4265, %v4274
      %v4277 = vshrl.u32 %v4000, 16
      %v4279 = vrot.slane %v4277, 1
      %v4280 = vshll.u32 %v4000, 16
      %v4282 = vrot.slane %v4280, 2
      %v4283 = vor.u32 %v4279, %v4282
      %v4284 = vsel %vm1868, %v4274, %v4283
      %v4286 = vshrl.u32 %v4001, 16
      %v4288 = vrot.slane %v4286, 1
      %v4289 = vshll.u32 %v4001, 16
      %v4291 = vrot.slane %v4289, 2
      %v4292 = vor.u32 %v4288, %v4291
      %v4293 = vsel %vm1868, %v4283, %v4292
      %v4295 = vshrl.u32 %v4002, 16
      %v4297 = vrot.slane %v4295, 1
      %v4298 = vshll.u32 %v4002, 16
      %v4300 = vrot.slane %v4298, 2
      %v4301 = vor.u32 %v4297, %v4300
      %v4302 = vsel %vm1868, %v4292, %v4301
      %v4304 = vshrl.u32 %v4215, 16
      %v4306 = vrot.slane %v4304, 1
      %v4307 = vshll.u32 %v4215, 16
      %v4309 = vrot.slane %v4307, 2
      %v4310 = vor.u32 %v4306, %v4309
      %v4311 = vsel %vm1868, %v4301, %v4310
      %v4336 = vunpack.c.l.b16 %v4216
      %v4337 = vunpack.c.l.b16 %v4217
      %v4338 = vunpack.c.l.b16 %v4218
      %v4339 = vunpack.c.l.b16 %v4219
      %v4340 = vunpack.c.l.b16 %v4220
      %v4341 = vunpack.c.l.b16 %v4221
      %v4342 = vunpack.c.l.b16 %v4222
      %v4343 = vunpack.c.l.b16 %v4223
      %v4344 = vunpack.c.l.b16 %v4224
      %v4345 = vunpack.c.l.b16 %v4225
      %v4346 = vunpack.c.l.b16 %v4226
      %v4347 = vunpack.c.l.b16 %v4227
      %v4348 = vunpack.c.l.b16 %v4228
      %v4349 = vunpack.c.l.b16 %v4229
      %v4350 = vunpack.c.l.b16 %v4230
      %v4351 = vunpack.c.l.b16 %v4231
      %v4352 = vpack.c.b16 %v4337, %v4336
      %v4353 = vpack.c.b16 %v4339, %v4338
      %v4354 = vpack.c.b16 %v4341, %v4340
      %v4355 = vpack.c.b16 %v4343, %v4342
      %v4356 = vpack.c.b16 %v4345, %v4344
      %v4357 = vpack.c.b16 %v4347, %v4346
      %v4358 = vpack.c.b16 %v4349, %v4348
      %v4359 = vpack.c.b16 %v4351, %v4350
      %4368 = vmatprep.subr.bf16.mxu0 0
      %4369 = vmatpush1.bf16.msra.mxu0 %v4352
      %4370 = vmatprep.subr.bf16.mxu0 0
      %4371 = vmatpush1.bf16.msra.mxu0 %v4353
      %4372 = vmatprep.subr.bf16.mxu0 0
      %4373 = vmatpush1.bf16.msra.mxu0 %v4354
      %4374 = vmatprep.subr.bf16.mxu0 0
      %4375 = vmatpush1.bf16.msra.mxu0 %v4355
      %4376 = vmatprep.subr.bf16.mxu0 0
      %4377 = vmatpush1.bf16.msra.mxu0 %v4356
      %4378 = vmatprep.subr.bf16.mxu0 0
      %4379 = vmatpush1.bf16.msra.mxu0 %v4357
      %4380 = vmatprep.subr.bf16.mxu0 0
      %4381 = vmatpush1.bf16.msra.mxu0 %v4358
      %4382 = vmatprep.subr.bf16.mxu0 0
      %4383 = vmatpush1.bf16.msra.mxu0 %v4359
      %4384 = vmatprep.subr.bf16.mxu0 0
      %4385 = vmatpush1.bf16.msra.mxu0 0
      %4386 = vmatprep.subr.bf16.mxu0 0
      %4387 = vmatpush1.bf16.msra.mxu0 0
      %4388 = vmatprep.subr.bf16.mxu0 0
      %4389 = vmatpush1.bf16.msra.mxu0 0
      %4390 = vmatprep.subr.bf16.mxu0 0
      %4391 = vmatpush1.bf16.msra.mxu0 0
      %4392 = vmatprep.subr.bf16.mxu0 0
      %4393 = vmatpush1.bf16.msra.mxu0 0
      %4394 = vmatprep.subr.bf16.mxu0 0
      %4395 = vmatpush1.bf16.msra.mxu0 0
      %4396 = vmatprep.subr.bf16.mxu0 0
      %4397 = vmatpush1.bf16.msra.mxu0 0
      %4398 = vmatprep.subr.bf16.mxu0 0
      %4399 = vmatpush1.bf16.msra.mxu0 0
      %4400 = vmatprep.mubr.bf16.mxu0 0
      %4401 = vmatmul.mubr.bf16.gmra.mrb[0].mxu0 %v4248
      %v4402 = vpop.f32.mrb[0].mxu0
      %v4403 = vadd.f32 0.0, %v4402
      %v4404 = vpop.f32.mrb[0].mxu0
      %v4405 = vpop.f32.mrb[0].mxu0
      %v4406 = vadd.f32 0.0, %v4405
      %v4407 = vpop.f32.mrb[0].mxu0
      %4408 = vmatprep.mubr.bf16.mxu0 0
      %4409 = vmatmul.mubr.bf16.gmra.mrb[0].mxu0 %v4257
      %v4410 = vpop.f32.mrb[0].mxu0
      %v4411 = vadd.f32 0.0, %v4410
      %v4412 = vpop.f32.mrb[0].mxu0
      %v4413 = vpop.f32.mrb[0].mxu0
      %v4414 = vadd.f32 0.0, %v4413
      %v4415 = vpop.f32.mrb[0].mxu0
      %4416 = vmatprep.mubr.bf16.mxu0 0
      %4417 = vmatmul.mubr.bf16.gmra.mrb[0].mxu0 %v4266
      %v4418 = vpop.f32.mrb[0].mxu0
      %v4419 = vadd.f32 0.0, %v4418
      %v4420 = vpop.f32.mrb[0].mxu0
      %v4421 = vpop.f32.mrb[0].mxu0
      %v4422 = vadd.f32 0.0, %v4421
      %v4423 = vpop.f32.mrb[0].mxu0
      %4424 = vmatprep.mubr.bf16.mxu0 0
      %4425 = vmatmul.mubr.bf16.gmra.mrb[0].mxu0 %v4275
      %v4426 = vpop.f32.mrb[0].mxu0
      %v4427 = vadd.f32 0.0, %v4426
      %v4428 = vpop.f32.mrb[0].mxu0
      %v4429 = vpop.f32.mrb[0].mxu0
      %v4430 = vadd.f32 0.0, %v4429
      %v4431 = vpop.f32.mrb[0].mxu0
      %4432 = vmatprep.mubr.bf16.mxu0 0
      %4433 = vmatmul.mubr.bf16.gmra.mrb[0].mxu0 %v4284
      %v4434 = vpop.f32.mrb[0].mxu0
      %v4435 = vadd.f32 0.0, %v4434
      %v4436 = vpop.f32.mrb[0].mxu0
      %v4437 = vpop.f32.mrb[0].mxu0
      %v4438 = vadd.f32 0.0, %v4437
      %v4439 = vpop.f32.mrb[0].mxu0
      %4440 = vmatprep.mubr.bf16.mxu0 0
      %4441 = vmatmul.mubr.bf16.gmra.mrb[0].mxu0 %v4293
      %v4442 = vpop.f32.mrb[0].mxu0
      %v4443 = vadd.f32 0.0, %v4442
      %v4444 = vpop.f32.mrb[0].mxu0
      %v4445 = vpop.f32.mrb[0].mxu0
      %v4446 = vadd.f32 0.0, %v4445
      %v4447 = vpop.f32.mrb[0].mxu0
      %4448 = vmatprep.mubr.bf16.mxu0 0
      %4449 = vmatmul.mubr.bf16.gmra.mrb[0].mxu0 %v4302
      %v4450 = vpop.f32.mrb[0].mxu0
      %v4451 = vadd.f32 0.0, %v4450
      %v4452 = vpop.f32.mrb[0].mxu0
      %v4453 = vpop.f32.mrb[0].mxu0
      %v4454 = vadd.f32 0.0, %v4453
      %v4455 = vpop.f32.mrb[0].mxu0
      %4456 = vmatprep.mubr.bf16.mxu0 0
      %4457 = vmatmul.mubr.bf16.gmra.mrb[0].mxu0 %v4311
      %v4458 = vpop.f32.mrb[0].mxu0
      %v4459 = vadd.f32 0.0, %v4458
      %v4460 = vpop.f32.mrb[0].mxu0
      %v4461 = vpop.f32.mrb[0].mxu0
      %v4462 = vadd.f32 0.0, %v4461
      %v4463 = vpop.f32.mrb[0].mxu0
      %4464 = vdwg.mxu0
      %v4465 = vadd.f32 %v4199, %v4403
      %v4466 = vadd.f32 %v4200, %v4406
      %v4467 = vadd.f32 %v4201, %v4411
      %v4468 = vadd.f32 %v4202, %v4414
      %v4469 = vadd.f32 %v4203, %v4419
      %v4470 = vadd.f32 %v4204, %v4422
      %v4471 = vadd.f32 %v4205, %v4427
      %v4472 = vadd.f32 %v4206, %v4430
      %v4473 = vadd.f32 %v4207, %v4435
      %v4474 = vadd.f32 %v4208, %v4438
      %v4475 = vadd.f32 %v4209, %v4443
      %v4476 = vadd.f32 %v4210, %v4446
      %v4477 = vadd.f32 %v4211, %v4451
      %v4478 = vadd.f32 %v4212, %v4454
      %v4479 = vadd.f32 %v4213, %v4459
      %v4480 = vadd.f32 %v4214, %v4462
      %v4481 = vld [vmem:[#allocation2 + $0x58] sm:$0xfc]
      %v4482 = vld [vmem:[%s2119] sm:$0xf]
      %v4483 = vld [vmem:[%s2119 + $0x4] sm:$0xf]
      %v4484 = vld [vmem:[%s2119 + $0x8] sm:$0xf]
      %v4485 = vld [vmem:[%s2119 + $0xc] sm:$0xf]
      %v4486 = vld [vmem:[%s2119 + $0x10] sm:$0xf]
      %v4487 = vld [vmem:[%s2119 + $0x14] sm:$0xf]
      %v4488 = vld [vmem:[%s2119 + $0x18] sm:$0xf]
      %v4489 = vld [vmem:[%s2119 + $0x1c] sm:$0xf]
      %v4490 = vld [vmem:[%s2119 + $0x20] sm:$0xf]
      %v4491 = vld [vmem:[%s2119 + $0x24] sm:$0xf]
      %v4492 = vld [vmem:[%s2119 + $0x28] sm:$0xf]
      %v4493 = vld [vmem:[%s2119 + $0x2c] sm:$0xf]
      %v4494 = vld [vmem:[%s2119 + $0x30] sm:$0xf]
      %v4495 = vld [vmem:[%s2119 + $0x34] sm:$0xf]
      %v4496 = vld [vmem:[%s2119 + $0x38] sm:$0xf]
      %v4497 = vld [vmem:[%s2119 + $0x3c] sm:$0xf]
      %v4500 = vrot.slane %v4481, 2
      %v4501 = vrot.slane %v3996, 2
      %v4502 = vsel %vm2138, %v4500, %v4501
      %v4503 = vrot.slane %v3997, 2
      %v4504 = vsel %vm2138, %v4501, %v4503
      %v4505 = vrot.slane %v3998, 2
      %v4506 = vsel %vm2138, %v4503, %v4505
      %v4507 = vrot.slane %v3999, 2
      %v4508 = vsel %vm2138, %v4505, %v4507
      %v4509 = vrot.slane %v4000, 2
      %v4510 = vsel %vm2138, %v4507, %v4509
      %v4511 = vrot.slane %v4001, 2
      %v4512 = vsel %vm2138, %v4509, %v4511
      %v4513 = vrot.slane %v4002, 2
      %v4514 = vsel %vm2138, %v4511, %v4513
      %v4515 = vrot.slane %v4215, 2
      %v4516 = vsel %vm2138, %v4513, %v4515
      %v4541 = vunpack.c.l.b16 %v4482
      %v4542 = vunpack.c.l.b16 %v4483
      %v4543 = vunpack.c.l.b16 %v4484
      %v4544 = vunpack.c.l.b16 %v4485
      %v4545 = vunpack.c.l.b16 %v4486
      %v4546 = vunpack.c.l.b16 %v4487
      %v4547 = vunpack.c.l.b16 %v4488
      %v4548 = vunpack.c.l.b16 %v4489
      %v4549 = vunpack.c.l.b16 %v4490
      %v4550 = vunpack.c.l.b16 %v4491
      %v4551 = vunpack.c.l.b16 %v4492
      %v4552 = vunpack.c.l.b16 %v4493
      %v4553 = vunpack.c.l.b16 %v4494
      %v4554 = vunpack.c.l.b16 %v4495
      %v4555 = vunpack.c.l.b16 %v4496
      %v4556 = vunpack.c.l.b16 %v4497
      %v4557 = vpack.c.b16 %v4542, %v4541
      %v4558 = vpack.c.b16 %v4544, %v4543
      %v4559 = vpack.c.b16 %v4546, %v4545
      %v4560 = vpack.c.b16 %v4548, %v4547
      %v4561 = vpack.c.b16 %v4550, %v4549
      %v4562 = vpack.c.b16 %v4552, %v4551
      %v4563 = vpack.c.b16 %v4554, %v4553
      %v4564 = vpack.c.b16 %v4556, %v4555
      %4573 = vmatprep.subr.bf16.mxu0 0
      %4574 = vmatpush1.bf16.msra.mxu0 %v4557
      %4575 = vmatprep.subr.bf16.mxu0 0
      %4576 = vmatpush1.bf16.msra.mxu0 %v4558
      %4577 = vmatprep.subr.bf16.mxu0 0
      %4578 = vmatpush1.bf16.msra.mxu0 %v4559
      %4579 = vmatprep.subr.bf16.mxu0 0
      %4580 = vmatpush1.bf16.msra.mxu0 %v4560
      %4581 = vmatprep.subr.bf16.mxu0 0
      %4582 = vmatpush1.bf16.msra.mxu0 %v4561
      %4583 = vmatprep.subr.bf16.mxu0 0
      %4584 = vmatpush1.bf16.msra.mxu0 %v4562
      %4585 = vmatprep.subr.bf16.mxu0 0
      %4586 = vmatpush1.bf16.msra.mxu0 %v4563
      %4587 = vmatprep.subr.bf16.mxu0 0
      %4588 = vmatpush1.bf16.msra.mxu0 %v4564
      %4589 = vmatprep.subr.bf16.mxu0 0
      %4590 = vmatpush1.bf16.msra.mxu0 0
      %4591 = vmatprep.subr.bf16.mxu0 0
      %4592 = vmatpush1.bf16.msra.mxu0 0
      %4593 = vmatprep.subr.bf16.mxu0 0
      %4594 = vmatpush1.bf16.msra.mxu0 0
      %4595 = vmatprep.subr.bf16.mxu0 0
      %4596 = vmatpush1.bf16.msra.mxu0 0
      %4597 = vmatprep.subr.bf16.mxu0 0
      %4598 = vmatpush1.bf16.msra.mxu0 0
      %4599 = vmatprep.subr.bf16.mxu0 0
      %4600 = vmatpush1.bf16.msra.mxu0 0
      %4601 = vmatprep.subr.bf16.mxu0 0
      %4602 = vmatpush1.bf16.msra.mxu0 0
      %4603 = vmatprep.subr.bf16.mxu0 0
      %4604 = vmatpush1.bf16.msra.mxu0 0
      %4605 = vmatprep.mubr.bf16.mxu0 0
      %4606 = vmatmul.mubr.bf16.gmra.mrb[0].mxu0 %v4502
      %v4607 = vpop.f32.mrb[0].mxu0
      %v4608 = vadd.f32 0.0, %v4607
      %v4609 = vpop.f32.mrb[0].mxu0
      %v4610 = vpop.f32.mrb[0].mxu0
      %v4611 = vadd.f32 0.0, %v4610
      %v4612 = vpop.f32.mrb[0].mxu0
      %4613 = vmatprep.mubr.bf16.mxu0 0
      %4614 = vmatmul.mubr.bf16.gmra.mrb[0].mxu0 %v4504
      %v4615 = vpop.f32.mrb[0].mxu0
      %v4616 = vadd.f32 0.0, %v4615
      %v4617 = vpop.f32.mrb[0].mxu0
      %v4618 = vpop.f32.mrb[0].mxu0
      %v4619 = vadd.f32 0.0, %v4618
      %v4620 = vpop.f32.mrb[0].mxu0
      %4621 = vmatprep.mubr.bf16.mxu0 0
      %4622 = vmatmul.mubr.bf16.gmra.mrb[0].mxu0 %v4506
      %v4623 = vpop.f32.mrb[0].mxu0
      %v4624 = vadd.f32 0.0, %v4623
      %v4625 = vpop.f32.mrb[0].mxu0
      %v4626 = vpop.f32.mrb[0].mxu0
      %v4627 = vadd.f32 0.0, %v4626
      %v4628 = vpop.f32.mrb[0].mxu0
      %4629 = vmatprep.mubr.bf16.mxu0 0
      %4630 = vmatmul.mubr.bf16.gmra.mrb[0].mxu0 %v4508
      %v4631 = vpop.f32.mrb[0].mxu0
      %v4632 = vadd.f32 0.0, %v4631
      %v4633 = vpop.f32.mrb[0].mxu0
      %v4634 = vpop.f32.mrb[0].mxu0
      %v4635 = vadd.f32 0.0, %v4634
      %v4636 = vpop.f32.mrb[0].mxu0
      %4637 = vmatprep.mubr.bf16.mxu0 0
      %4638 = vmatmul.mubr.bf16.gmra.mrb[0].mxu0 %v4510
      %v4639 = vpop.f32.mrb[0].mxu0
      %v4640 = vadd.f32 0.0, %v4639
      %v4641 = vpop.f32.mrb[0].mxu0
      %v4642 = vpop.f32.mrb[0].mxu0
      %v4643 = vadd.f32 0.0, %v4642
      %v4644 = vpop.f32.mrb[0].mxu0
      %4645 = vmatprep.mubr.bf16.mxu0 0
      %4646 = vmatmul.mubr.bf16.gmra.mrb[0].mxu0 %v4512
      %v4647 = vpop.f32.mrb[0].mxu0
      %v4648 = vadd.f32 0.0, %v4647
      %v4649 = vpop.f32.mrb[0].mxu0
      %v4650 = vpop.f32.mrb[0].mxu0
      %v4651 = vadd.f32 0.0, %v4650
      %v4652 = vpop.f32.mrb[0].mxu0
      %4653 = vmatprep.mubr.bf16.mxu0 0
      %4654 = vmatmul.mubr.bf16.gmra.mrb[0].mxu0 %v4514
      %v4655 = vpop.f32.mrb[0].mxu0
      %v4656 = vadd.f32 0.0, %v4655
      %v4657 = vpop.f32.mrb[0].mxu0
      %v4658 = vpop.f32.mrb[0].mxu0
      %v4659 = vadd.f32 0.0, %v4658
      %v4660 = vpop.f32.mrb[0].mxu0
      %4661 = vmatprep.mubr.bf16.mxu0 0
      %4662 = vmatmul.mubr.bf16.gmra.mrb[0].mxu0 %v4516
      %v4663 = vpop.f32.mrb[0].mxu0
      %v4664 = vadd.f32 0.0, %v4663
      %v4665 = vpop.f32.mrb[0].mxu0
      %v4666 = vpop.f32.mrb[0].mxu0
      %v4667 = vadd.f32 0.0, %v4666
      %v4668 = vpop.f32.mrb[0].mxu0
      %4669 = vdwg.mxu0
      %v4670 = vadd.f32 %v4465, %v4608
      %v4671 = vadd.f32 %v4466, %v4611
      %v4672 = vadd.f32 %v4467, %v4616
      %v4673 = vadd.f32 %v4468, %v4619
      %v4674 = vadd.f32 %v4469, %v4624
      %v4675 = vadd.f32 %v4470, %v4627
      %v4676 = vadd.f32 %v4471, %v4632
      %v4677 = vadd.f32 %v4472, %v4635
      %v4678 = vadd.f32 %v4473, %v4640
      %v4679 = vadd.f32 %v4474, %v4643
      %v4680 = vadd.f32 %v4475, %v4648
      %v4681 = vadd.f32 %v4476, %v4651
      %v4682 = vadd.f32 %v4477, %v4656
      %v4683 = vadd.f32 %v4478, %v4659
      %v4684 = vadd.f32 %v4479, %v4664
      %v4685 = vadd.f32 %v4480, %v4667
      %v4686 = vld [vmem:[%s2] sm:$0x1]
      %v4688 = vlaneseq
      %v4689 = vshrl.u32 %v4688, 7
      %v4690 = vsub.s32 0, %v4689
      %v4691 = vrot.slane %v4686, %v4690
      %v4693 = vadd.f32 %v4670, %v4691
      %v4694 = vadd.f32 %v4671, %v4691
      %v4695 = vadd.f32 %v4672, %v4691
      %v4696 = vadd.f32 %v4673, %v4691
      %v4697 = vadd.f32 %v4674, %v4691
      %v4698 = vadd.f32 %v4675, %v4691
      %v4699 = vadd.f32 %v4676, %v4691
      %v4700 = vadd.f32 %v4677, %v4691
      %v4701 = vadd.f32 %v4678, %v4691
      %v4702 = vadd.f32 %v4679, %v4691
      %v4703 = vadd.f32 %v4680, %v4691
      %v4704 = vadd.f32 %v4681, %v4691
      %v4705 = vadd.f32 %v4682, %v4691
      %v4706 = vadd.f32 %v4683, %v4691
      %v4707 = vadd.f32 %v4684, %v4691
      %v4708 = vadd.f32 %v4685, %v4691
      %v4709 = vmax.f32 %v4693, 0.0
      %v4710 = vmax.f32 %v4694, 0.0
      %v4711 = vmax.f32 %v4695, 0.0
      %v4712 = vmax.f32 %v4696, 0.0
      %v4713 = vmax.f32 %v4697, 0.0
      %v4714 = vmax.f32 %v4698, 0.0
      %v4715 = vmax.f32 %v4699, 0.0
      %v4716 = vmax.f32 %v4700, 0.0
      %v4717 = vmax.f32 %v4701, 0.0
      %v4718 = vmax.f32 %v4702, 0.0
      %v4719 = vmax.f32 %v4703, 0.0
      %v4720 = vmax.f32 %v4704, 0.0
      %v4721 = vmax.f32 %v4705, 0.0
      %v4722 = vmax.f32 %v4706, 0.0
      %v4723 = vmax.f32 %v4707, 0.0
      %v4724 = vmax.f32 %v4708, 0.0
      %v4725 = vadd.s32 %v2365, 128
      %v4726 = vadd.s32 %v2366, 128
      %v4727 = vadd.s32 %v2367, 128
      %v4728 = vadd.s32 %v2368, 128
      %v4729 = vadd.s32 %v2369, 128
      %v4730 = vadd.s32 %v2370, 128
      %v4731 = vadd.s32 %v2371, 128
      %v4732 = vadd.s32 %v2372, 128
      %v4733 = vadd.s32 %v2373, 128
      %v4734 = vadd.s32 %v2374, 128
      %v4735 = vadd.s32 %v2375, 128
      %v4736 = vadd.s32 %v2376, 128
      %v4737 = vadd.s32 %v2377, 128
      %v4738 = vadd.s32 %v2378, 128
      %v4739 = vadd.s32 %v2379, 128
      %v4740 = vadd.s32 %v2380, 128
      %vm4741 = vcmp.lt.s32.totalorder %v4725, 0
      %v4742 = vsub.s32 0, %v4725
      %v4743 = vsel %vm4741, %v4742, %v4725
      %v4744 = vmul.u32.u64.compose %v4743, 3817748708
      %v4745 = vextract.low.u32 %v4744
      %v4746 = vextract.high.u32 %v4744
      %v4747 = vshrl.u32 %v4746, 4
      %v4748 = vmul.u32 %v4747, 18
      %v4749 = vsub.s32 %v4743, %v4748
      %v4750 = vsub.s32 0, %v4749
      %v4751 = vsel %vm4741, %v4750, %v4749
      %vm4752 = vcmp.lt.s32.totalorder %v4726, 0
      %v4753 = vsub.s32 0, %v4726
      %v4754 = vsel %vm4752, %v4753, %v4726
      %v4755 = vmul.u32.u64.compose %v4754, 3817748708
      %v4756 = vextract.low.u32 %v4755
      %v4757 = vextract.high.u32 %v4755
      %v4758 = vshrl.u32 %v4757, 4
      %v4759 = vmul.u32 %v4758, 18
      %v4760 = vsub.s32 %v4754, %v4759
      %v4761 = vsub.s32 0, %v4760
      %v4762 = vsel %vm4752, %v4761, %v4760
      %vm4763 = vcmp.lt.s32.totalorder %v4727, 0
      %v4764 = vsub.s32 0, %v4727
      %v4765 = vsel %vm4763, %v4764, %v4727
      %v4766 = vmul.u32.u64.compose %v4765, 3817748708
      %v4767 = vextract.low.u32 %v4766
      %v4768 = vextract.high.u32 %v4766
      %v4769 = vshrl.u32 %v4768, 4
      %v4770 = vmul.u32 %v4769, 18
      %v4771 = vsub.s32 %v4765, %v4770
      %v4772 = vsub.s32 0, %v4771
      %v4773 = vsel %vm4763, %v4772, %v4771
      %vm4774 = vcmp.lt.s32.totalorder %v4728, 0
      %v4775 = vsub.s32 0, %v4728
      %v4776 = vsel %vm4774, %v4775, %v4728
      %v4777 = vmul.u32.u64.compose %v4776, 3817748708
      %v4778 = vextract.low.u32 %v4777
      %v4779 = vextract.high.u32 %v4777
      %v4780 = vshrl.u32 %v4779, 4
      %v4781 = vmul.u32 %v4780, 18
      %v4782 = vsub.s32 %v4776, %v4781
      %v4783 = vsub.s32 0, %v4782
      %v4784 = vsel %vm4774, %v4783, %v4782
      %vm4785 = vcmp.lt.s32.totalorder %v4729, 0
      %v4786 = vsub.s32 0, %v4729
      %v4787 = vsel %vm4785, %v4786, %v4729
      %v4788 = vmul.u32.u64.compose %v4787, 3817748708
      %v4789 = vextract.low.u32 %v4788
      %v4790 = vextract.high.u32 %v4788
      %v4791 = vshrl.u32 %v4790, 4
      %v4792 = vmul.u32 %v4791, 18
      %v4793 = vsub.s32 %v4787, %v4792
      %v4794 = vsub.s32 0, %v4793
      %v4795 = vsel %vm4785, %v4794, %v4793
      %vm4796 = vcmp.lt.s32.totalorder %v4730, 0
      %v4797 = vsub.s32 0, %v4730
      %v4798 = vsel %vm4796, %v4797, %v4730
      %v4799 = vmul.u32.u64.compose %v4798, 3817748708
      %v4800 = vextract.low.u32 %v4799
      %v4801 = vextract.high.u32 %v4799
      %v4802 = vshrl.u32 %v4801, 4
      %v4803 = vmul.u32 %v4802, 18
      %v4804 = vsub.s32 %v4798, %v4803
      %v4805 = vsub.s32 0, %v4804
      %v4806 = vsel %vm4796, %v4805, %v4804
      %vm4807 = vcmp.lt.s32.totalorder %v4731, 0
      %v4808 = vsub.s32 0, %v4731
      %v4809 = vsel %vm4807, %v4808, %v4731
      %v4810 = vmul.u32.u64.compose %v4809, 3817748708
      %v4811 = vextract.low.u32 %v4810
      %v4812 = vextract.high.u32 %v4810
      %v4813 = vshrl.u32 %v4812, 4
      %v4814 = vmul.u32 %v4813, 18
      %v4815 = vsub.s32 %v4809, %v4814
      %v4816 = vsub.s32 0, %v4815
      %v4817 = vsel %vm4807, %v4816, %v4815
      %vm4818 = vcmp.lt.s32.totalorder %v4732, 0
      %v4819 = vsub.s32 0, %v4732
      %v4820 = vsel %vm4818, %v4819, %v4732
      %v4821 = vmul.u32.u64.compose %v4820, 3817748708
      %v4822 = vextract.low.u32 %v4821
      %v4823 = vextract.high.u32 %v4821
      %v4824 = vshrl.u32 %v4823, 4
      %v4825 = vmul.u32 %v4824, 18
      %v4826 = vsub.s32 %v4820, %v4825
      %v4827 = vsub.s32 0, %v4826
      %v4828 = vsel %vm4818, %v4827, %v4826
      %vm4829 = vcmp.lt.s32.totalorder %v4733, 0
      %v4830 = vsub.s32 0, %v4733
      %v4831 = vsel %vm4829, %v4830, %v4733
      %v4832 = vmul.u32.u64.compose %v4831, 3817748708
      %v4833 = vextract.low.u32 %v4832
      %v4834 = vextract.high.u32 %v4832
      %v4835 = vshrl.u32 %v4834, 4
      %v4836 = vmul.u32 %v4835, 18
      %v4837 = vsub.s32 %v4831, %v4836
      %v4838 = vsub.s32 0, %v4837
      %v4839 = vsel %vm4829, %v4838, %v4837
      %vm4840 = vcmp.lt.s32.totalorder %v4734, 0
      %v4841 = vsub.s32 0, %v4734
      %v4842 = vsel %vm4840, %v4841, %v4734
      %v4843 = vmul.u32.u64.compose %v4842, 3817748708
      %v4844 = vextract.low.u32 %v4843
      %v4845 = vextract.high.u32 %v4843
      %v4846 = vshrl.u32 %v4845, 4
      %v4847 = vmul.u32 %v4846, 18
      %v4848 = vsub.s32 %v4842, %v4847
      %v4849 = vsub.s32 0, %v4848
      %v4850 = vsel %vm4840, %v4849, %v4848
      %vm4851 = vcmp.lt.s32.totalorder %v4735, 0
      %v4852 = vsub.s32 0, %v4735
      %v4853 = vsel %vm4851, %v4852, %v4735
      %v4854 = vmul.u32.u64.compose %v4853, 3817748708
      %v4855 = vextract.low.u32 %v4854
      %v4856 = vextract.high.u32 %v4854
      %v4857 = vshrl.u32 %v4856, 4
      %v4858 = vmul.u32 %v4857, 18
      %v4859 = vsub.s32 %v4853, %v4858
      %v4860 = vsub.s32 0, %v4859
      %v4861 = vsel %vm4851, %v4860, %v4859
      %vm4862 = vcmp.lt.s32.totalorder %v4736, 0
      %v4863 = vsub.s32 0, %v4736
      %v4864 = vsel %vm4862, %v4863, %v4736
      %v4865 = vmul.u32.u64.compose %v4864, 3817748708
      %v4866 = vextract.low.u32 %v4865
      %v4867 = vextract.high.u32 %v4865
      %v4868 = vshrl.u32 %v4867, 4
      %v4869 = vmul.u32 %v4868, 18
      %v4870 = vsub.s32 %v4864, %v4869
      %v4871 = vsub.s32 0, %v4870
      %v4872 = vsel %vm4862, %v4871, %v4870
      %vm4873 = vcmp.lt.s32.totalorder %v4737, 0
      %v4874 = vsub.s32 0, %v4737
      %v4875 = vsel %vm4873, %v4874, %v4737
      %v4876 = vmul.u32.u64.compose %v4875, 3817748708
      %v4877 = vextract.low.u32 %v4876
      %v4878 = vextract.high.u32 %v4876
      %v4879 = vshrl.u32 %v4878, 4
      %v4880 = vmul.u32 %v4879, 18
      %v4881 = vsub.s32 %v4875, %v4880
      %v4882 = vsub.s32 0, %v4881
      %v4883 = vsel %vm4873, %v4882, %v4881
      %vm4884 = vcmp.lt.s32.totalorder %v4738, 0
      %v4885 = vsub.s32 0, %v4738
      %v4886 = vsel %vm4884, %v4885, %v4738
      %v4887 = vmul.u32.u64.compose %v4886, 3817748708
      %v4888 = vextract.low.u32 %v4887
      %v4889 = vextract.high.u32 %v4887
      %v4890 = vshrl.u32 %v4889, 4
      %v4891 = vmul.u32 %v4890, 18
      %v4892 = vsub.s32 %v4886, %v4891
      %v4893 = vsub.s32 0, %v4892
      %v4894 = vsel %vm4884, %v4893, %v4892
      %vm4895 = vcmp.lt.s32.totalorder %v4739, 0
      %v4896 = vsub.s32 0, %v4739
      %v4897 = vsel %vm4895, %v4896, %v4739
      %v4898 = vmul.u32.u64.compose %v4897, 3817748708
      %v4899 = vextract.low.u32 %v4898
      %v4900 = vextract.high.u32 %v4898
      %v4901 = vshrl.u32 %v4900, 4
      %v4902 = vmul.u32 %v4901, 18
      %v4903 = vsub.s32 %v4897, %v4902
      %v4904 = vsub.s32 0, %v4903
      %v4905 = vsel %vm4895, %v4904, %v4903
      %vm4906 = vcmp.lt.s32.totalorder %v4740, 0
      %v4907 = vsub.s32 0, %v4740
      %v4908 = vsel %vm4906, %v4907, %v4740
      %v4909 = vmul.u32.u64.compose %v4908, 3817748708
      %v4910 = vextract.low.u32 %v4909
      %v4911 = vextract.high.u32 %v4909
      %v4912 = vshrl.u32 %v4911, 4
      %v4913 = vmul.u32 %v4912, 18
      %v4914 = vsub.s32 %v4908, %v4913
      %v4915 = vsub.s32 0, %v4914
      %v4916 = vsel %vm4906, %v4915, %v4914
      %vm4917 = vcmp.ne.s32.totalorder %v4751, 0
      %vm4918 = vcmp.ne.s32.totalorder %v4762, 0
      %vm4919 = vcmp.ne.s32.totalorder %v4773, 0
      %vm4920 = vcmp.ne.s32.totalorder %v4784, 0
      %vm4921 = vcmp.ne.s32.totalorder %v4795, 0
      %vm4922 = vcmp.ne.s32.totalorder %v4806, 0
      %vm4923 = vcmp.ne.s32.totalorder %v4817, 0
      %vm4924 = vcmp.ne.s32.totalorder %v4828, 0
      %vm4925 = vcmp.ne.s32.totalorder %v4839, 0
      %vm4926 = vcmp.ne.s32.totalorder %v4850, 0
      %vm4927 = vcmp.ne.s32.totalorder %v4861, 0
      %vm4928 = vcmp.ne.s32.totalorder %v4872, 0
      %vm4929 = vcmp.ne.s32.totalorder %v4883, 0
      %vm4930 = vcmp.ne.s32.totalorder %v4894, 0
      %vm4931 = vcmp.ne.s32.totalorder %v4905, 0
      %vm4932 = vcmp.ne.s32.totalorder %v4916, 0
      %vm4933 = vcmp.lt.s32.totalorder %v4751, 0
      %vm4934 = vcmp.lt.s32.totalorder %v4762, 0
      %vm4935 = vcmp.lt.s32.totalorder %v4773, 0
      %vm4936 = vcmp.lt.s32.totalorder %v4784, 0
      %vm4937 = vcmp.lt.s32.totalorder %v4795, 0
      %vm4938 = vcmp.lt.s32.totalorder %v4806, 0
      %vm4939 = vcmp.lt.s32.totalorder %v4817, 0
      %vm4940 = vcmp.lt.s32.totalorder %v4828, 0
      %vm4941 = vcmp.lt.s32.totalorder %v4839, 0
      %vm4942 = vcmp.lt.s32.totalorder %v4850, 0
      %vm4943 = vcmp.lt.s32.totalorder %v4861, 0
      %vm4944 = vcmp.lt.s32.totalorder %v4872, 0
      %vm4945 = vcmp.lt.s32.totalorder %v4883, 0
      %vm4946 = vcmp.lt.s32.totalorder %v4894, 0
      %vm4947 = vcmp.lt.s32.totalorder %v4905, 0
      %vm4948 = vcmp.lt.s32.totalorder %v4916, 0
      %vm4949 = vmand %vm4933, %vm4917
      %vm4950 = vmand %vm4934, %vm4918
      %vm4951 = vmand %vm4935, %vm4919
      %vm4952 = vmand %vm4936, %vm4920
      %vm4953 = vmand %vm4937, %vm4921
      %vm4954 = vmand %vm4938, %vm4922
      %vm4955 = vmand %vm4939, %vm4923
      %vm4956 = vmand %vm4940, %vm4924
      %vm4957 = vmand %vm4941, %vm4925
      %vm4958 = vmand %vm4942, %vm4926
      %vm4959 = vmand %vm4943, %vm4927
      %vm4960 = vmand %vm4944, %vm4928
      %vm4961 = vmand %vm4945, %vm4929
      %vm4962 = vmand %vm4946, %vm4930
      %vm4963 = vmand %vm4947, %vm4931
      %vm4964 = vmand %vm4948, %vm4932
      %v4965 = vadd.s32 %v4751, 18
      %v4966 = vadd.s32 %v4762, 18
      %v4967 = vadd.s32 %v4773, 18
      %v4968 = vadd.s32 %v4784, 18
      %v4969 = vadd.s32 %v4795, 18
      %v4970 = vadd.s32 %v4806, 18
      %v4971 = vadd.s32 %v4817, 18
      %v4972 = vadd.s32 %v4828, 18
      %v4973 = vadd.s32 %v4839, 18
      %v4974 = vadd.s32 %v4850, 18
      %v4975 = vadd.s32 %v4861, 18
      %v4976 = vadd.s32 %v4872, 18
      %v4977 = vadd.s32 %v4883, 18
      %v4978 = vadd.s32 %v4894, 18
      %v4979 = vadd.s32 %v4905, 18
      %v4980 = vadd.s32 %v4916, 18
      %v4981 = vsel %vm4949, %v4965, %v4751
      %v4982 = vsel %vm4950, %v4966, %v4762
      %v4983 = vsel %vm4951, %v4967, %v4773
      %v4984 = vsel %vm4952, %v4968, %v4784
      %v4985 = vsel %vm4953, %v4969, %v4795
      %v4986 = vsel %vm4954, %v4970, %v4806
      %v4987 = vsel %vm4955, %v4971, %v4817
      %v4988 = vsel %vm4956, %v4972, %v4828
      %v4989 = vsel %vm4957, %v4973, %v4839
      %v4990 = vsel %vm4958, %v4974, %v4850
      %v4991 = vsel %vm4959, %v4975, %v4861
      %v4992 = vsel %vm4960, %v4976, %v4872
      %v4993 = vsel %vm4961, %v4977, %v4883
      %v4994 = vsel %vm4962, %v4978, %v4894
      %v4995 = vsel %vm4963, %v4979, %v4905
      %v4996 = vsel %vm4964, %v4980, %v4916
      %vm4997 = vcmp.lt.s32.totalorder %v4981, 16
      %vm4998 = vcmp.lt.s32.totalorder %v4982, 16
      %vm4999 = vcmp.lt.s32.totalorder %v4983, 16
      %vm5000 = vcmp.lt.s32.totalorder %v4984, 16
      %vm5001 = vcmp.lt.s32.totalorder %v4985, 16
      %vm5002 = vcmp.lt.s32.totalorder %v4986, 16
      %vm5003 = vcmp.lt.s32.totalorder %v4987, 16
      %vm5004 = vcmp.lt.s32.totalorder %v4988, 16
      %vm5005 = vcmp.lt.s32.totalorder %v4989, 16
      %vm5006 = vcmp.lt.s32.totalorder %v4990, 16
      %vm5007 = vcmp.lt.s32.totalorder %v4991, 16
      %vm5008 = vcmp.lt.s32.totalorder %v4992, 16
      %vm5009 = vcmp.lt.s32.totalorder %v4993, 16
      %vm5010 = vcmp.lt.s32.totalorder %v4994, 16
      %vm5011 = vcmp.lt.s32.totalorder %v4995, 16
      %vm5012 = vcmp.lt.s32.totalorder %v4996, 16
      %v5013 = vsel %vm4997, 1, 0
      %v5014 = vsel %vm4998, 1, 0
      %v5015 = vsel %vm4999, 1, 0
      %v5016 = vsel %vm5000, 1, 0
      %v5017 = vsel %vm5001, 1, 0
      %v5018 = vsel %vm5002, 1, 0
      %v5019 = vsel %vm5003, 1, 0
      %v5020 = vsel %vm5004, 1, 0
      %v5021 = vsel %vm5005, 1, 0
      %v5022 = vsel %vm5006, 1, 0
      %v5023 = vsel %vm5007, 1, 0
      %v5024 = vsel %vm5008, 1, 0
      %v5025 = vsel %vm5009, 1, 0
      %v5026 = vsel %vm5010, 1, 0
      %v5027 = vsel %vm5011, 1, 0
      %v5028 = vsel %vm5012, 1, 0
      %vm5029 = vcmp.eq.s32.totalorder %v5013, 1
      %vm5030 = vcmp.eq.s32.totalorder %v5014, 1
      %vm5031 = vcmp.eq.s32.totalorder %v5015, 1
      %vm5032 = vcmp.eq.s32.totalorder %v5016, 1
      %vm5033 = vcmp.eq.s32.totalorder %v5017, 1
      %vm5034 = vcmp.eq.s32.totalorder %v5018, 1
      %vm5035 = vcmp.eq.s32.totalorder %v5019, 1
      %vm5036 = vcmp.eq.s32.totalorder %v5020, 1
      %vm5037 = vcmp.eq.s32.totalorder %v5021, 1
      %vm5038 = vcmp.eq.s32.totalorder %v5022, 1
      %vm5039 = vcmp.eq.s32.totalorder %v5023, 1
      %vm5040 = vcmp.eq.s32.totalorder %v5024, 1
      %vm5041 = vcmp.eq.s32.totalorder %v5025, 1
      %vm5042 = vcmp.eq.s32.totalorder %v5026, 1
      %vm5043 = vcmp.eq.s32.totalorder %v5027, 1
      %vm5044 = vcmp.eq.s32.totalorder %v5028, 1
      %v5045 = vsel %vm5029, %v4709, 0.0
      %v5046 = vsel %vm5030, %v4710, 0.0
      %v5047 = vsel %vm5031, %v4711, 0.0
      %v5048 = vsel %vm5032, %v4712, 0.0
      %v5049 = vsel %vm5033, %v4713, 0.0
      %v5050 = vsel %vm5034, %v4714, 0.0
      %v5051 = vsel %vm5035, %v4715, 0.0
      %v5052 = vsel %vm5036, %v4716, 0.0
      %v5053 = vsel %vm5037, %v4717, 0.0
      %v5054 = vsel %vm5038, %v4718, 0.0
      %v5055 = vsel %vm5039, %v4719, 0.0
      %v5056 = vsel %vm5040, %v4720, 0.0
      %v5057 = vsel %vm5041, %v4721, 0.0
      %v5058 = vsel %vm5042, %v4722, 0.0
      %v5059 = vsel %vm5043, %v4723, 0.0
      %v5060 = vsel %vm5044, %v4724, 0.0
      %v5061 = vpack.c.bf16 %v5046, %v5045
      %v5062 = vpack.c.bf16 %v5048, %v5047
      %v5063 = vpack.c.bf16 %v5050, %v5049
      %v5064 = vpack.c.bf16 %v5052, %v5051
      %v5065 = vpack.c.bf16 %v5054, %v5053
      %v5066 = vpack.c.bf16 %v5056, %v5055
      %v5067 = vpack.c.bf16 %v5058, %v5057
      %v5068 = vpack.c.bf16 %v5060, %v5059
      %5069 = vst [vmem:[#allocation3 + $0x50] sm:$0xff] %v5061
      %5070 = vst [vmem:[#allocation3 + $0x58] sm:$0xff] %v5062
      %5071 = vst [vmem:[#allocation3 + $0x60] sm:$0xff] %v5063
      %5072 = vst [vmem:[#allocation3 + $0x68] sm:$0xff] %v5064
      %5073 = vst [vmem:[#allocation3 + $0x70] sm:$0xff] %v5065
      %5074 = vst [vmem:[#allocation3 + $0x78] sm:$0xff] %v5066
      %5075 = vst [vmem:[#allocation3 + $0x80] sm:$0xff] %v5067
      %5076 = vst [vmem:[#allocation3 + $0x88] sm:$0xff] %v5068
      %v5077 = vld [vmem:[#allocation2 + $0x80] sm:$0x80]
      %v5078 = vld [vmem:[#allocation2 + $0x88] sm:$0xff]
      %v5079 = vld [vmem:[#allocation2 + $0x90] sm:$0x7f]
      %v5080 = vld [vmem:[%s1] sm:$0xf]
      %v5081 = vld [vmem:[%s1 + $0x4] sm:$0xf]
      %v5082 = vld [vmem:[%s1 + $0x8] sm:$0xf]
      %v5083 = vld [vmem:[%s1 + $0xc] sm:$0xf]
      %v5084 = vld [vmem:[%s1 + $0x10] sm:$0xf]
      %v5085 = vld [vmem:[%s1 + $0x14] sm:$0xf]
      %v5086 = vld [vmem:[%s1 + $0x18] sm:$0xf]
      %v5087 = vld [vmem:[%s1 + $0x1c] sm:$0xf]
      %v5088 = vld [vmem:[%s1 + $0x20] sm:$0xf]
      %v5089 = vld [vmem:[%s1 + $0x24] sm:$0xf]
      %v5090 = vld [vmem:[%s1 + $0x28] sm:$0xf]
      %v5091 = vld [vmem:[%s1 + $0x2c] sm:$0xf]
      %v5092 = vld [vmem:[%s1 + $0x30] sm:$0xf]
      %v5093 = vld [vmem:[%s1 + $0x34] sm:$0xf]
      %v5094 = vld [vmem:[%s1 + $0x38] sm:$0xf]
      %v5095 = vld [vmem:[%s1 + $0x3c] sm:$0xf]
      %v5096 = vld [vmem:[#allocation2 + $0x90] sm:$0xff]
      %v5097 = vld [vmem:[%s368] sm:$0xf]
      %v5098 = vld [vmem:[%s368 + $0x4] sm:$0xf]
      %v5099 = vld [vmem:[%s368 + $0x8] sm:$0xf]
      %v5100 = vld [vmem:[%s368 + $0xc] sm:$0xf]
      %v5101 = vld [vmem:[%s368 + $0x10] sm:$0xf]
      %v5102 = vld [vmem:[%s368 + $0x14] sm:$0xf]
      %v5103 = vld [vmem:[%s368 + $0x18] sm:$0xf]
      %v5104 = vld [vmem:[%s368 + $0x1c] sm:$0xf]
      %v5105 = vld [vmem:[%s368 + $0x20] sm:$0xf]
      %v5106 = vld [vmem:[%s368 + $0x24] sm:$0xf]
      %v5107 = vld [vmem:[%s368 + $0x28] sm:$0xf]
      %v5108 = vld [vmem:[%s368 + $0x2c] sm:$0xf]
      %v5109 = vld [vmem:[%s368 + $0x30] sm:$0xf]
      %v5110 = vld [vmem:[%s368 + $0x34] sm:$0xf]
      %v5111 = vld [vmem:[%s368 + $0x38] sm:$0xf]
      %v5112 = vld [vmem:[%s368 + $0x3c] sm:$0xf]
      %v5114 = vshrl.u32 %v5077, 16
      %v5116 = vrot.slane %v5114, 7
      %v5118 = vshrl.u32 %v5078, 16
      %v5120 = vrot.slane %v5118, 7
      %v5121 = vshll.u32 %v5078, 16
      %v5123 = vor.u32 %v5120, %v5121
      %v5124 = vsel %vm385, %v5116, %v5123
      %v5126 = vshrl.u32 %v5096, 16
      %v5128 = vrot.slane %v5126, 7
      %v5129 = vshll.u32 %v5096, 16
      %v5131 = vor.u32 %v5128, %v5129
      %v5132 = vsel %vm385, %v5120, %v5131
      %v5151 = vunpack.c.l.b16 %v5097
      %v5152 = vunpack.c.l.b16 %v5098
      %v5153 = vunpack.c.l.b16 %v5099
      %v5154 = vunpack.c.l.b16 %v5100
      %v5155 = vunpack.c.l.b16 %v5101
      %v5156 = vunpack.c.l.b16 %v5102
      %v5157 = vunpack.c.l.b16 %v5103
      %v5158 = vunpack.c.l.b16 %v5104
      %v5159 = vunpack.c.l.b16 %v5105
      %v5160 = vunpack.c.l.b16 %v5106
      %v5161 = vunpack.c.l.b16 %v5107
      %v5162 = vunpack.c.l.b16 %v5108
      %v5163 = vunpack.c.l.b16 %v5109
      %v5164 = vunpack.c.l.b16 %v5110
      %v5165 = vunpack.c.l.b16 %v5111
      %v5166 = vunpack.c.l.b16 %v5112
      %v5167 = vpack.c.b16 %v5152, %v5151
      %v5168 = vpack.c.b16 %v5154, %v5153
      %v5169 = vpack.c.b16 %v5156, %v5155
      %v5170 = vpack.c.b16 %v5158, %v5157
      %v5171 = vpack.c.b16 %v5160, %v5159
      %v5172 = vpack.c.b16 %v5162, %v5161
      %v5173 = vpack.c.b16 %v5164, %v5163
      %v5174 = vpack.c.b16 %v5166, %v5165
      %5183 = vmatprep.subr.bf16.mxu0 0
      %5184 = vmatpush1.bf16.msra.mxu0 %v5167
      %5185 = vmatprep.subr.bf16.mxu0 0
      %5186 = vmatpush1.bf16.msra.mxu0 %v5168
      %5187 = vmatprep.subr.bf16.mxu0 0
      %5188 = vmatpush1.bf16.msra.mxu0 %v5169
      %5189 = vmatprep.subr.bf16.mxu0 0
      %5190 = vmatpush1.bf16.msra.mxu0 %v5170
      %5191 = vmatprep.subr.bf16.mxu0 0
      %5192 = vmatpush1.bf16.msra.mxu0 %v5171
      %5193 = vmatprep.subr.bf16.mxu0 0
      %5194 = vmatpush1.bf16.msra.mxu0 %v5172
      %5195 = vmatprep.subr.bf16.mxu0 0
      %5196 = vmatpush1.bf16.msra.mxu0 %v5173
      %5197 = vmatprep.subr.bf16.mxu0 0
      %5198 = vmatpush1.bf16.msra.mxu0 %v5174
      %5199 = vmatprep.subr.bf16.mxu0 0
      %5200 = vmatpush1.bf16.msra.mxu0 0
      %5201 = vmatprep.subr.bf16.mxu0 0
      %5202 = vmatpush1.bf16.msra.mxu0 0
      %5203 = vmatprep.subr.bf16.mxu0 0
      %5204 = vmatpush1.bf16.msra.mxu0 0
      %5205 = vmatprep.subr.bf16.mxu0 0
      %5206 = vmatpush1.bf16.msra.mxu0 0
      %5207 = vmatprep.subr.bf16.mxu0 0
      %5208 = vmatpush1.bf16.msra.mxu0 0
      %5209 = vmatprep.subr.bf16.mxu0 0
      %5210 = vmatpush1.bf16.msra.mxu0 0
      %5211 = vmatprep.subr.bf16.mxu0 0
      %5212 = vmatpush1.bf16.msra.mxu0 0
      %5213 = vmatprep.subr.bf16.mxu0 0
      %5214 = vmatpush1.bf16.msra.mxu0 0
      %5215 = vmatprep.mubr.bf16.mxu0 0
      %5216 = vmatmul.mubr.bf16.gmra.mrb[0].mxu0 %v5124
      %v5217 = vpop.f32.mrb[0].mxu0
      %v5218 = vadd.f32 0.0, %v5217
      %v5219 = vpop.f32.mrb[0].mxu0
      %v5220 = vpop.f32.mrb[0].mxu0
      %v5221 = vadd.f32 0.0, %v5220
      %v5222 = vpop.f32.mrb[0].mxu0
      %5223 = vmatprep.mubr.bf16.mxu0 0
      %5224 = vmatmul.mubr.bf16.gmra.mrb[0].mxu0 %v5132
      %v5225 = vpop.f32.mrb[0].mxu0
      %v5226 = vadd.f32 0.0, %v5225
      %v5227 = vpop.f32.mrb[0].mxu0
      %v5228 = vpop.f32.mrb[0].mxu0
      %v5229 = vadd.f32 0.0, %v5228
      %v5230 = vpop.f32.mrb[0].mxu0
      %5231 = vdwg.mxu0
      %v5235 = vrot.slane %v5077, 7
      %v5236 = vrot.slane %v5078, 7
      %v5237 = vsel %vm616, %v5235, %v5236
      %v5238 = vrot.slane %v5079, 7
      %v5239 = vsel %vm616, %v5236, %v5238
      %v5258 = vunpack.c.l.b16 %v5080
      %v5259 = vunpack.c.l.b16 %v5081
      %v5260 = vunpack.c.l.b16 %v5082
      %v5261 = vunpack.c.l.b16 %v5083
      %v5262 = vunpack.c.l.b16 %v5084
      %v5263 = vunpack.c.l.b16 %v5085
      %v5264 = vunpack.c.l.b16 %v5086
      %v5265 = vunpack.c.l.b16 %v5087
      %v5266 = vunpack.c.l.b16 %v5088
      %v5267 = vunpack.c.l.b16 %v5089
      %v5268 = vunpack.c.l.b16 %v5090
      %v5269 = vunpack.c.l.b16 %v5091
      %v5270 = vunpack.c.l.b16 %v5092
      %v5271 = vunpack.c.l.b16 %v5093
      %v5272 = vunpack.c.l.b16 %v5094
      %v5273 = vunpack.c.l.b16 %v5095
      %v5274 = vpack.c.b16 %v5259, %v5258
      %v5275 = vpack.c.b16 %v5261, %v5260
      %v5276 = vpack.c.b16 %v5263, %v5262
      %v5277 = vpack.c.b16 %v5265, %v5264
      %v5278 = vpack.c.b16 %v5267, %v5266
      %v5279 = vpack.c.b16 %v5269, %v5268
      %v5280 = vpack.c.b16 %v5271, %v5270
      %v5281 = vpack.c.b16 %v5273, %v5272
      %5290 = vmatprep.subr.bf16.mxu0 0
      %5291 = vmatpush1.bf16.msra.mxu0 %v5274
      %5292 = vmatprep.subr.bf16.mxu0 0
      %5293 = vmatpush1.bf16.msra.mxu0 %v5275
      %5294 = vmatprep.subr.bf16.mxu0 0
      %5295 = vmatpush1.bf16.msra.mxu0 %v5276
      %5296 = vmatprep.subr.bf16.mxu0 0
      %5297 = vmatpush1.bf16.msra.mxu0 %v5277
      %5298 = vmatprep.subr.bf16.mxu0 0
      %5299 = vmatpush1.bf16.msra.mxu0 %v5278
      %5300 = vmatprep.subr.bf16.mxu0 0
      %5301 = vmatpush1.bf16.msra.mxu0 %v5279
      %5302 = vmatprep.subr.bf16.mxu0 0
      %5303 = vmatpush1.bf16.msra.mxu0 %v5280
      %5304 = vmatprep.subr.bf16.mxu0 0
      %5305 = vmatpush1.bf16.msra.mxu0 %v5281
      %5306 = vmatprep.subr.bf16.mxu0 0
      %5307 = vmatpush1.bf16.msra.mxu0 0
      %5308 = vmatprep.subr.bf16.mxu0 0
      %5309 = vmatpush1.bf16.msra.mxu0 0
      %5310 = vmatprep.subr.bf16.mxu0 0
      %5311 = vmatpush1.bf16.msra.mxu0 0
      %5312 = vmatprep.subr.bf16.mxu0 0
      %5313 = vmatpush1.bf16.msra.mxu0 0
      %5314 = vmatprep.subr.bf16.mxu0 0
      %5315 = vmatpush1.bf16.msra.mxu0 0
      %5316 = vmatprep.subr.bf16.mxu0 0
      %5317 = vmatpush1.bf16.msra.mxu0 0
      %5318 = vmatprep.subr.bf16.mxu0 0
      %5319 = vmatpush1.bf16.msra.mxu0 0
      %5320 = vmatprep.subr.bf16.mxu0 0
      %5321 = vmatpush1.bf16.msra.mxu0 0
      %5322 = vmatprep.mubr.bf16.mxu0 0
      %5323 = vmatmul.mubr.bf16.gmra.mrb[0].mxu0 %v5237
      %v5324 = vpop.f32.mrb[0].mxu0
      %v5325 = vadd.f32 %v5218, %v5324
      %v5326 = vpop.f32.mrb[0].mxu0
      %v5327 = vpop.f32.mrb[0].mxu0
      %v5328 = vadd.f32 %v5221, %v5327
      %v5329 = vpop.f32.mrb[0].mxu0
      %5330 = vmatprep.mubr.bf16.mxu0 0
      %5331 = vmatmul.mubr.bf16.gmra.mrb[0].mxu0 %v5239
      %v5332 = vpop.f32.mrb[0].mxu0
      %v5333 = vadd.f32 %v5226, %v5332
      %v5334 = vpop.f32.mrb[0].mxu0
      %v5335 = vpop.f32.mrb[0].mxu0
      %v5336 = vadd.f32 %v5229, %v5335
      %v5337 = vpop.f32.mrb[0].mxu0
      %5338 = vdwg.mxu0
      %v5339 = vld [vmem:[%s787] sm:$0xf]
      %v5340 = vld [vmem:[%s787 + $0x4] sm:$0xf]
      %v5341 = vld [vmem:[%s787 + $0x8] sm:$0xf]
      %v5342 = vld [vmem:[%s787 + $0xc] sm:$0xf]
      %v5343 = vld [vmem:[%s787 + $0x10] sm:$0xf]
      %v5344 = vld [vmem:[%s787 + $0x14] sm:$0xf]
      %v5345 = vld [vmem:[%s787 + $0x18] sm:$0xf]
      %v5346 = vld [vmem:[%s787 + $0x1c] sm:$0xf]
      %v5347 = vld [vmem:[%s787 + $0x20] sm:$0xf]
      %v5348 = vld [vmem:[%s787 + $0x24] sm:$0xf]
      %v5349 = vld [vmem:[%s787 + $0x28] sm:$0xf]
      %v5350 = vld [vmem:[%s787 + $0x2c] sm:$0xf]
      %v5351 = vld [vmem:[%s787 + $0x30] sm:$0xf]
      %v5352 = vld [vmem:[%s787 + $0x34] sm:$0xf]
      %v5353 = vld [vmem:[%s787 + $0x38] sm:$0xf]
      %v5354 = vld [vmem:[%s787 + $0x3c] sm:$0xf]
      %v5371 = vunpack.c.l.b16 %v5339
      %v5372 = vunpack.c.l.b16 %v5340
      %v5373 = vunpack.c.l.b16 %v5341
      %v5374 = vunpack.c.l.b16 %v5342
      %v5375 = vunpack.c.l.b16 %v5343
      %v5376 = vunpack.c.l.b16 %v5344
      %v5377 = vunpack.c.l.b16 %v5345
      %v5378 = vunpack.c.l.b16 %v5346
      %v5379 = vunpack.c.l.b16 %v5347
      %v5380 = vunpack.c.l.b16 %v5348
      %v5381 = vunpack.c.l.b16 %v5349
      %v5382 = vunpack.c.l.b16 %v5350
      %v5383 = vunpack.c.l.b16 %v5351
      %v5384 = vunpack.c.l.b16 %v5352
      %v5385 = vunpack.c.l.b16 %v5353
      %v5386 = vunpack.c.l.b16 %v5354
      %v5387 = vpack.c.b16 %v5372, %v5371
      %v5388 = vpack.c.b16 %v5374, %v5373
      %v5389 = vpack.c.b16 %v5376, %v5375
      %v5390 = vpack.c.b16 %v5378, %v5377
      %v5391 = vpack.c.b16 %v5380, %v5379
      %v5392 = vpack.c.b16 %v5382, %v5381
      %v5393 = vpack.c.b16 %v5384, %v5383
      %v5394 = vpack.c.b16 %v5386, %v5385
      %5403 = vmatprep.subr.bf16.mxu0 0
      %5404 = vmatpush1.bf16.msra.mxu0 %v5387
      %5405 = vmatprep.subr.bf16.mxu0 0
      %5406 = vmatpush1.bf16.msra.mxu0 %v5388
      %5407 = vmatprep.subr.bf16.mxu0 0
      %5408 = vmatpush1.bf16.msra.mxu0 %v5389
      %5409 = vmatprep.subr.bf16.mxu0 0
      %5410 = vmatpush1.bf16.msra.mxu0 %v5390
      %5411 = vmatprep.subr.bf16.mxu0 0
      %5412 = vmatpush1.bf16.msra.mxu0 %v5391
      %5413 = vmatprep.subr.bf16.mxu0 0
      %5414 = vmatpush1.bf16.msra.mxu0 %v5392
      %5415 = vmatprep.subr.bf16.mxu0 0
      %5416 = vmatpush1.bf16.msra.mxu0 %v5393
      %5417 = vmatprep.subr.bf16.mxu0 0
      %5418 = vmatpush1.bf16.msra.mxu0 %v5394
      %5419 = vmatprep.subr.bf16.mxu0 0
      %5420 = vmatpush1.bf16.msra.mxu0 0
      %5421 = vmatprep.subr.bf16.mxu0 0
      %5422 = vmatpush1.bf16.msra.mxu0 0
      %5423 = vmatprep.subr.bf16.mxu0 0
      %5424 = vmatpush1.bf16.msra.mxu0 0
      %5425 = vmatprep.subr.bf16.mxu0 0
      %5426 = vmatpush1.bf16.msra.mxu0 0
      %5427 = vmatprep.subr.bf16.mxu0 0
      %5428 = vmatpush1.bf16.msra.mxu0 0
      %5429 = vmatprep.subr.bf16.mxu0 0
      %5430 = vmatpush1.bf16.msra.mxu0 0
      %5431 = vmatprep.subr.bf16.mxu0 0
      %5432 = vmatpush1.bf16.msra.mxu0 0
      %5433 = vmatprep.subr.bf16.mxu0 0
      %5434 = vmatpush1.bf16.msra.mxu0 0
      %5435 = vmatprep.mubr.bf16.mxu0 0
      %5436 = vmatmul.mubr.bf16.gmra.mrb[0].mxu0 %v5078
      %v5437 = vpop.f32.mrb[0].mxu0
      %v5438 = vadd.f32 0.0, %v5437
      %v5439 = vpop.f32.mrb[0].mxu0
      %v5440 = vpop.f32.mrb[0].mxu0
      %v5441 = vadd.f32 0.0, %v5440
      %v5442 = vpop.f32.mrb[0].mxu0
      %5443 = vmatprep.mubr.bf16.mxu0 0
      %5444 = vmatmul.mubr.bf16.gmra.mrb[0].mxu0 %v5096
      %v5445 = vpop.f32.mrb[0].mxu0
      %v5446 = vadd.f32 0.0, %v5445
      %v5447 = vpop.f32.mrb[0].mxu0
      %v5448 = vpop.f32.mrb[0].mxu0
      %v5449 = vadd.f32 0.0, %v5448
      %v5450 = vpop.f32.mrb[0].mxu0
      %5451 = vdwg.mxu0
      %v5452 = vadd.f32 %v5325, %v5438
      %v5453 = vadd.f32 %v5328, %v5441
      %v5454 = vadd.f32 %v5333, %v5446
      %v5455 = vadd.f32 %v5336, %v5449
      %v5456 = vld [vmem:[#allocation2 + $0x90] sm:$0xff]
      %v5457 = vld [vmem:[#allocation2 + $0x98] sm:$0xff]
      %v5458 = vld [vmem:[%s973] sm:$0xf]
      %v5459 = vld [vmem:[%s973 + $0x4] sm:$0xf]
      %v5460 = vld [vmem:[%s973 + $0x8] sm:$0xf]
      %v5461 = vld [vmem:[%s973 + $0xc] sm:$0xf]
      %v5462 = vld [vmem:[%s973 + $0x10] sm:$0xf]
      %v5463 = vld [vmem:[%s973 + $0x14] sm:$0xf]
      %v5464 = vld [vmem:[%s973 + $0x18] sm:$0xf]
      %v5465 = vld [vmem:[%s973 + $0x1c] sm:$0xf]
      %v5466 = vld [vmem:[%s973 + $0x20] sm:$0xf]
      %v5467 = vld [vmem:[%s973 + $0x24] sm:$0xf]
      %v5468 = vld [vmem:[%s973 + $0x28] sm:$0xf]
      %v5469 = vld [vmem:[%s973 + $0x2c] sm:$0xf]
      %v5470 = vld [vmem:[%s973 + $0x30] sm:$0xf]
      %v5471 = vld [vmem:[%s973 + $0x34] sm:$0xf]
      %v5472 = vld [vmem:[%s973 + $0x38] sm:$0xf]
      %v5473 = vld [vmem:[%s973 + $0x3c] sm:$0xf]
      %v5490 = vunpack.c.l.b16 %v5458
      %v5491 = vunpack.c.l.b16 %v5459
      %v5492 = vunpack.c.l.b16 %v5460
      %v5493 = vunpack.c.l.b16 %v5461
      %v5494 = vunpack.c.l.b16 %v5462
      %v5495 = vunpack.c.l.b16 %v5463
      %v5496 = vunpack.c.l.b16 %v5464
      %v5497 = vunpack.c.l.b16 %v5465
      %v5498 = vunpack.c.l.b16 %v5466
      %v5499 = vunpack.c.l.b16 %v5467
      %v5500 = vunpack.c.l.b16 %v5468
      %v5501 = vunpack.c.l.b16 %v5469
      %v5502 = vunpack.c.l.b16 %v5470
      %v5503 = vunpack.c.l.b16 %v5471
      %v5504 = vunpack.c.l.b16 %v5472
      %v5505 = vunpack.c.l.b16 %v5473
      %v5506 = vpack.c.b16 %v5491, %v5490
      %v5507 = vpack.c.b16 %v5493, %v5492
      %v5508 = vpack.c.b16 %v5495, %v5494
      %v5509 = vpack.c.b16 %v5497, %v5496
      %v5510 = vpack.c.b16 %v5499, %v5498
      %v5511 = vpack.c.b16 %v5501, %v5500
      %v5512 = vpack.c.b16 %v5503, %v5502
      %v5513 = vpack.c.b16 %v5505, %v5504
      %5522 = vmatprep.subr.bf16.mxu0 0
      %5523 = vmatpush1.bf16.msra.mxu0 %v5506
      %5524 = vmatprep.subr.bf16.mxu0 0
      %5525 = vmatpush1.bf16.msra.mxu0 %v5507
      %5526 = vmatprep.subr.bf16.mxu0 0
      %5527 = vmatpush1.bf16.msra.mxu0 %v5508
      %5528 = vmatprep.subr.bf16.mxu0 0
      %5529 = vmatpush1.bf16.msra.mxu0 %v5509
      %5530 = vmatprep.subr.bf16.mxu0 0
      %5531 = vmatpush1.bf16.msra.mxu0 %v5510
      %5532 = vmatprep.subr.bf16.mxu0 0
      %5533 = vmatpush1.bf16.msra.mxu0 %v5511
      %5534 = vmatprep.subr.bf16.mxu0 0
      %5535 = vmatpush1.bf16.msra.mxu0 %v5512
      %5536 = vmatprep.subr.bf16.mxu0 0
      %5537 = vmatpush1.bf16.msra.mxu0 %v5513
      %5538 = vmatprep.subr.bf16.mxu0 0
      %5539 = vmatpush1.bf16.msra.mxu0 0
      %5540 = vmatprep.subr.bf16.mxu0 0
      %5541 = vmatpush1.bf16.msra.mxu0 0
      %5542 = vmatprep.subr.bf16.mxu0 0
      %5543 = vmatpush1.bf16.msra.mxu0 0
      %5544 = vmatprep.subr.bf16.mxu0 0
      %5545 = vmatpush1.bf16.msra.mxu0 0
      %5546 = vmatprep.subr.bf16.mxu0 0
      %5547 = vmatpush1.bf16.msra.mxu0 0
      %5548 = vmatprep.subr.bf16.mxu0 0
      %5549 = vmatpush1.bf16.msra.mxu0 0
      %5550 = vmatprep.subr.bf16.mxu0 0
      %5551 = vmatpush1.bf16.msra.mxu0 0
      %5552 = vmatprep.subr.bf16.mxu0 0
      %5553 = vmatpush1.bf16.msra.mxu0 0
      %5554 = vmatprep.mubr.bf16.mxu0 0
      %5555 = vmatmul.mubr.bf16.gmra.mrb[0].mxu0 %v5456
      %v5556 = vpop.f32.mrb[0].mxu0
      %v5557 = vadd.f32 0.0, %v5556
      %v5558 = vpop.f32.mrb[0].mxu0
      %v5559 = vpop.f32.mrb[0].mxu0
      %v5560 = vadd.f32 0.0, %v5559
      %v5561 = vpop.f32.mrb[0].mxu0
      %5562 = vmatprep.mubr.bf16.mxu0 0
      %5563 = vmatmul.mubr.bf16.gmra.mrb[0].mxu0 %v5457
      %v5564 = vpop.f32.mrb[0].mxu0
      %v5565 = vadd.f32 0.0, %v5564
      %v5566 = vpop.f32.mrb[0].mxu0
      %v5567 = vpop.f32.mrb[0].mxu0
      %v5568 = vadd.f32 0.0, %v5567
      %v5569 = vpop.f32.mrb[0].mxu0
      %5570 = vdwg.mxu0
      %v5571 = vadd.f32 %v5452, %v5557
      %v5572 = vadd.f32 %v5453, %v5560
      %v5573 = vadd.f32 %v5454, %v5565
      %v5574 = vadd.f32 %v5455, %v5568
      %v5575 = vld [vmem:[#allocation2 + $0x90] sm:$0xff]
      %v5576 = vld [vmem:[#allocation2 + $0x98] sm:$0xff]
      %v5577 = vld [vmem:[#allocation2 + $0xa0] sm:$0x1]
      %v5578 = vld [vmem:[%s1160] sm:$0xf]
      %v5579 = vld [vmem:[%s1160 + $0x4] sm:$0xf]
      %v5580 = vld [vmem:[%s1160 + $0x8] sm:$0xf]
      %v5581 = vld [vmem:[%s1160 + $0xc] sm:$0xf]
      %v5582 = vld [vmem:[%s1160 + $0x10] sm:$0xf]
      %v5583 = vld [vmem:[%s1160 + $0x14] sm:$0xf]
      %v5584 = vld [vmem:[%s1160 + $0x18] sm:$0xf]
      %v5585 = vld [vmem:[%s1160 + $0x1c] sm:$0xf]
      %v5586 = vld [vmem:[%s1160 + $0x20] sm:$0xf]
      %v5587 = vld [vmem:[%s1160 + $0x24] sm:$0xf]
      %v5588 = vld [vmem:[%s1160 + $0x28] sm:$0xf]
      %v5589 = vld [vmem:[%s1160 + $0x2c] sm:$0xf]
      %v5590 = vld [vmem:[%s1160 + $0x30] sm:$0xf]
      %v5591 = vld [vmem:[%s1160 + $0x34] sm:$0xf]
      %v5592 = vld [vmem:[%s1160 + $0x38] sm:$0xf]
      %v5593 = vld [vmem:[%s1160 + $0x3c] sm:$0xf]
      %v5595 = vshrl.u32 %v5575, 16
      %v5597 = vshll.u32 %v5575, 16
      %v5599 = vrot.slane %v5597, 1
      %v5600 = vor.u32 %v5595, %v5599
      %v5602 = vshll.u32 %v5576, 16
      %v5604 = vrot.slane %v5602, 1
      %v5605 = vsel %vm1177, %v5600, %v5604
      %v5606 = vshrl.u32 %v5576, 16
      %v5608 = vor.u32 %v5606, %v5604
      %v5610 = vshll.u32 %v5577, 16
      %v5612 = vrot.slane %v5610, 1
      %v5613 = vsel %vm1177, %v5608, %v5612
      %v5632 = vunpack.c.l.b16 %v5578
      %v5633 = vunpack.c.l.b16 %v5579
      %v5634 = vunpack.c.l.b16 %v5580
      %v5635 = vunpack.c.l.b16 %v5581
      %v5636 = vunpack.c.l.b16 %v5582
      %v5637 = vunpack.c.l.b16 %v5583
      %v5638 = vunpack.c.l.b16 %v5584
      %v5639 = vunpack.c.l.b16 %v5585
      %v5640 = vunpack.c.l.b16 %v5586
      %v5641 = vunpack.c.l.b16 %v5587
      %v5642 = vunpack.c.l.b16 %v5588
      %v5643 = vunpack.c.l.b16 %v5589
      %v5644 = vunpack.c.l.b16 %v5590
      %v5645 = vunpack.c.l.b16 %v5591
      %v5646 = vunpack.c.l.b16 %v5592
      %v5647 = vunpack.c.l.b16 %v5593
      %v5648 = vpack.c.b16 %v5633, %v5632
      %v5649 = vpack.c.b16 %v5635, %v5634
      %v5650 = vpack.c.b16 %v5637, %v5636
      %v5651 = vpack.c.b16 %v5639, %v5638
      %v5652 = vpack.c.b16 %v5641, %v5640
      %v5653 = vpack.c.b16 %v5643, %v5642
      %v5654 = vpack.c.b16 %v5645, %v5644
      %v5655 = vpack.c.b16 %v5647, %v5646
      %5664 = vmatprep.subr.bf16.mxu0 0
      %5665 = vmatpush1.bf16.msra.mxu0 %v5648
      %5666 = vmatprep.subr.bf16.mxu0 0
      %5667 = vmatpush1.bf16.msra.mxu0 %v5649
      %5668 = vmatprep.subr.bf16.mxu0 0
      %5669 = vmatpush1.bf16.msra.mxu0 %v5650
      %5670 = vmatprep.subr.bf16.mxu0 0
      %5671 = vmatpush1.bf16.msra.mxu0 %v5651
      %5672 = vmatprep.subr.bf16.mxu0 0
      %5673 = vmatpush1.bf16.msra.mxu0 %v5652
      %5674 = vmatprep.subr.bf16.mxu0 0
      %5675 = vmatpush1.bf16.msra.mxu0 %v5653
      %5676 = vmatprep.subr.bf16.mxu0 0
      %5677 = vmatpush1.bf16.msra.mxu0 %v5654
      %5678 = vmatprep.subr.bf16.mxu0 0
      %5679 = vmatpush1.bf16.msra.mxu0 %v5655
      %5680 = vmatprep.subr.bf16.mxu0 0
      %5681 = vmatpush1.bf16.msra.mxu0 0
      %5682 = vmatprep.subr.bf16.mxu0 0
      %5683 = vmatpush1.bf16.msra.mxu0 0
      %5684 = vmatprep.subr.bf16.mxu0 0
      %5685 = vmatpush1.bf16.msra.mxu0 0
      %5686 = vmatprep.subr.bf16.mxu0 0
      %5687 = vmatpush1.bf16.msra.mxu0 0
      %5688 = vmatprep.subr.bf16.mxu0 0
      %5689 = vmatpush1.bf16.msra.mxu0 0
      %5690 = vmatprep.subr.bf16.mxu0 0
      %5691 = vmatpush1.bf16.msra.mxu0 0
      %5692 = vmatprep.subr.bf16.mxu0 0
      %5693 = vmatpush1.bf16.msra.mxu0 0
      %5694 = vmatprep.subr.bf16.mxu0 0
      %5695 = vmatpush1.bf16.msra.mxu0 0
      %5696 = vmatprep.mubr.bf16.mxu0 0
      %5697 = vmatmul.mubr.bf16.gmra.mrb[0].mxu0 %v5605
      %v5698 = vpop.f32.mrb[0].mxu0
      %v5699 = vadd.f32 0.0, %v5698
      %v5700 = vpop.f32.mrb[0].mxu0
      %v5701 = vpop.f32.mrb[0].mxu0
      %v5702 = vadd.f32 0.0, %v5701
      %v5703 = vpop.f32.mrb[0].mxu0
      %5704 = vmatprep.mubr.bf16.mxu0 0
      %5705 = vmatmul.mubr.bf16.gmra.mrb[0].mxu0 %v5613
      %v5706 = vpop.f32.mrb[0].mxu0
      %v5707 = vadd.f32 0.0, %v5706
      %v5708 = vpop.f32.mrb[0].mxu0
      %v5709 = vpop.f32.mrb[0].mxu0
      %v5710 = vadd.f32 0.0, %v5709
      %v5711 = vpop.f32.mrb[0].mxu0
      %5712 = vdwg.mxu0
      %v5713 = vadd.f32 %v5571, %v5699
      %v5714 = vadd.f32 %v5572, %v5702
      %v5715 = vadd.f32 %v5573, %v5707
      %v5716 = vadd.f32 %v5574, %v5710
      %v5717 = vld [vmem:[#allocation2 + $0x90] sm:$0xfe]
      %v5718 = vld [vmem:[%s1416] sm:$0xf]
      %v5719 = vld [vmem:[%s1416 + $0x4] sm:$0xf]
      %v5720 = vld [vmem:[%s1416 + $0x8] sm:$0xf]
      %v5721 = vld [vmem:[%s1416 + $0xc] sm:$0xf]
      %v5722 = vld [vmem:[%s1416 + $0x10] sm:$0xf]
      %v5723 = vld [vmem:[%s1416 + $0x14] sm:$0xf]
      %v5724 = vld [vmem:[%s1416 + $0x18] sm:$0xf]
      %v5725 = vld [vmem:[%s1416 + $0x1c] sm:$0xf]
      %v5726 = vld [vmem:[%s1416 + $0x20] sm:$0xf]
      %v5727 = vld [vmem:[%s1416 + $0x24] sm:$0xf]
      %v5728 = vld [vmem:[%s1416 + $0x28] sm:$0xf]
      %v5729 = vld [vmem:[%s1416 + $0x2c] sm:$0xf]
      %v5730 = vld [vmem:[%s1416 + $0x30] sm:$0xf]
      %v5731 = vld [vmem:[%s1416 + $0x34] sm:$0xf]
      %v5732 = vld [vmem:[%s1416 + $0x38] sm:$0xf]
      %v5733 = vld [vmem:[%s1416 + $0x3c] sm:$0xf]
      %v5737 = vrot.slane %v5717, 1
      %v5738 = vrot.slane %v5576, 1
      %v5739 = vsel %vm1442, %v5737, %v5738
      %v5740 = vrot.slane %v5577, 1
      %v5741 = vsel %vm1442, %v5738, %v5740
      %v5760 = vunpack.c.l.b16 %v5718
      %v5761 = vunpack.c.l.b16 %v5719
      %v5762 = vunpack.c.l.b16 %v5720
      %v5763 = vunpack.c.l.b16 %v5721
      %v5764 = vunpack.c.l.b16 %v5722
      %v5765 = vunpack.c.l.b16 %v5723
      %v5766 = vunpack.c.l.b16 %v5724
      %v5767 = vunpack.c.l.b16 %v5725
      %v5768 = vunpack.c.l.b16 %v5726
      %v5769 = vunpack.c.l.b16 %v5727
      %v5770 = vunpack.c.l.b16 %v5728
      %v5771 = vunpack.c.l.b16 %v5729
      %v5772 = vunpack.c.l.b16 %v5730
      %v5773 = vunpack.c.l.b16 %v5731
      %v5774 = vunpack.c.l.b16 %v5732
      %v5775 = vunpack.c.l.b16 %v5733
      %v5776 = vpack.c.b16 %v5761, %v5760
      %v5777 = vpack.c.b16 %v5763, %v5762
      %v5778 = vpack.c.b16 %v5765, %v5764
      %v5779 = vpack.c.b16 %v5767, %v5766
      %v5780 = vpack.c.b16 %v5769, %v5768
      %v5781 = vpack.c.b16 %v5771, %v5770
      %v5782 = vpack.c.b16 %v5773, %v5772
      %v5783 = vpack.c.b16 %v5775, %v5774
      %5792 = vmatprep.subr.bf16.mxu0 0
      %5793 = vmatpush1.bf16.msra.mxu0 %v5776
      %5794 = vmatprep.subr.bf16.mxu0 0
      %5795 = vmatpush1.bf16.msra.mxu0 %v5777
      %5796 = vmatprep.subr.bf16.mxu0 0
      %5797 = vmatpush1.bf16.msra.mxu0 %v5778
      %5798 = vmatprep.subr.bf16.mxu0 0
      %5799 = vmatpush1.bf16.msra.mxu0 %v5779
      %5800 = vmatprep.subr.bf16.mxu0 0
      %5801 = vmatpush1.bf16.msra.mxu0 %v5780
      %5802 = vmatprep.subr.bf16.mxu0 0
      %5803 = vmatpush1.bf16.msra.mxu0 %v5781
      %5804 = vmatprep.subr.bf16.mxu0 0
      %5805 = vmatpush1.bf16.msra.mxu0 %v5782
      %5806 = vmatprep.subr.bf16.mxu0 0
      %5807 = vmatpush1.bf16.msra.mxu0 %v5783
      %5808 = vmatprep.subr.bf16.mxu0 0
      %5809 = vmatpush1.bf16.msra.mxu0 0
      %5810 = vmatprep.subr.bf16.mxu0 0
      %5811 = vmatpush1.bf16.msra.mxu0 0
      %5812 = vmatprep.subr.bf16.mxu0 0
      %5813 = vmatpush1.bf16.msra.mxu0 0
      %5814 = vmatprep.subr.bf16.mxu0 0
      %5815 = vmatpush1.bf16.msra.mxu0 0
      %5816 = vmatprep.subr.bf16.mxu0 0
      %5817 = vmatpush1.bf16.msra.mxu0 0
      %5818 = vmatprep.subr.bf16.mxu0 0
      %5819 = vmatpush1.bf16.msra.mxu0 0
      %5820 = vmatprep.subr.bf16.mxu0 0
      %5821 = vmatpush1.bf16.msra.mxu0 0
      %5822 = vmatprep.subr.bf16.mxu0 0
      %5823 = vmatpush1.bf16.msra.mxu0 0
      %5824 = vmatprep.mubr.bf16.mxu0 0
      %5825 = vmatmul.mubr.bf16.gmra.mrb[0].mxu0 %v5739
      %v5826 = vpop.f32.mrb[0].mxu0
      %v5827 = vadd.f32 0.0, %v5826
      %v5828 = vpop.f32.mrb[0].mxu0
      %v5829 = vpop.f32.mrb[0].mxu0
      %v5830 = vadd.f32 0.0, %v5829
      %v5831 = vpop.f32.mrb[0].mxu0
      %5832 = vmatprep.mubr.bf16.mxu0 0
      %5833 = vmatmul.mubr.bf16.gmra.mrb[0].mxu0 %v5741
      %v5834 = vpop.f32.mrb[0].mxu0
      %v5835 = vadd.f32 0.0, %v5834
      %v5836 = vpop.f32.mrb[0].mxu0
      %v5837 = vpop.f32.mrb[0].mxu0
      %v5838 = vadd.f32 0.0, %v5837
      %v5839 = vpop.f32.mrb[0].mxu0
      %5840 = vdwg.mxu0
      %v5841 = vadd.f32 %v5713, %v5827
      %v5842 = vadd.f32 %v5714, %v5830
      %v5843 = vadd.f32 %v5715, %v5835
      %v5844 = vadd.f32 %v5716, %v5838
      %v5845 = vld [vmem:[#allocation2 + $0x98] sm:$0xfe]
      %v5846 = vld [vmem:[#allocation2 + $0xa0] sm:$0xff]
      %v5847 = vld [vmem:[#allocation2 + $0xa8] sm:$0x1]
      %v5848 = vld [vmem:[%s1638] sm:$0xf]
      %v5849 = vld [vmem:[%s1638 + $0x4] sm:$0xf]
      %v5850 = vld [vmem:[%s1638 + $0x8] sm:$0xf]
      %v5851 = vld [vmem:[%s1638 + $0xc] sm:$0xf]
      %v5852 = vld [vmem:[%s1638 + $0x10] sm:$0xf]
      %v5853 = vld [vmem:[%s1638 + $0x14] sm:$0xf]
      %v5854 = vld [vmem:[%s1638 + $0x18] sm:$0xf]
      %v5855 = vld [vmem:[%s1638 + $0x1c] sm:$0xf]
      %v5856 = vld [vmem:[%s1638 + $0x20] sm:$0xf]
      %v5857 = vld [vmem:[%s1638 + $0x24] sm:$0xf]
      %v5858 = vld [vmem:[%s1638 + $0x28] sm:$0xf]
      %v5859 = vld [vmem:[%s1638 + $0x2c] sm:$0xf]
      %v5860 = vld [vmem:[%s1638 + $0x30] sm:$0xf]
      %v5861 = vld [vmem:[%s1638 + $0x34] sm:$0xf]
      %v5862 = vld [vmem:[%s1638 + $0x38] sm:$0xf]
      %v5863 = vld [vmem:[%s1638 + $0x3c] sm:$0xf]
      %v5867 = vrot.slane %v5845, 1
      %v5868 = vrot.slane %v5846, 1
      %v5869 = vsel %vm1442, %v5867, %v5868
      %v5870 = vrot.slane %v5847, 1
      %v5871 = vsel %vm1442, %v5868, %v5870
      %v5890 = vunpack.c.l.b16 %v5848
      %v5891 = vunpack.c.l.b16 %v5849
      %v5892 = vunpack.c.l.b16 %v5850
      %v5893 = vunpack.c.l.b16 %v5851
      %v5894 = vunpack.c.l.b16 %v5852
      %v5895 = vunpack.c.l.b16 %v5853
      %v5896 = vunpack.c.l.b16 %v5854
      %v5897 = vunpack.c.l.b16 %v5855
      %v5898 = vunpack.c.l.b16 %v5856
      %v5899 = vunpack.c.l.b16 %v5857
      %v5900 = vunpack.c.l.b16 %v5858
      %v5901 = vunpack.c.l.b16 %v5859
      %v5902 = vunpack.c.l.b16 %v5860
      %v5903 = vunpack.c.l.b16 %v5861
      %v5904 = vunpack.c.l.b16 %v5862
      %v5905 = vunpack.c.l.b16 %v5863
      %v5906 = vpack.c.b16 %v5891, %v5890
      %v5907 = vpack.c.b16 %v5893, %v5892
      %v5908 = vpack.c.b16 %v5895, %v5894
      %v5909 = vpack.c.b16 %v5897, %v5896
      %v5910 = vpack.c.b16 %v5899, %v5898
      %v5911 = vpack.c.b16 %v5901, %v5900
      %v5912 = vpack.c.b16 %v5903, %v5902
      %v5913 = vpack.c.b16 %v5905, %v5904
      %5922 = vmatprep.subr.bf16.mxu0 0
      %5923 = vmatpush1.bf16.msra.mxu0 %v5906
      %5924 = vmatprep.subr.bf16.mxu0 0
      %5925 = vmatpush1.bf16.msra.mxu0 %v5907
      %5926 = vmatprep.subr.bf16.mxu0 0
      %5927 = vmatpush1.bf16.msra.mxu0 %v5908
      %5928 = vmatprep.subr.bf16.mxu0 0
      %5929 = vmatpush1.bf16.msra.mxu0 %v5909
      %5930 = vmatprep.subr.bf16.mxu0 0
      %5931 = vmatpush1.bf16.msra.mxu0 %v5910
      %5932 = vmatprep.subr.bf16.mxu0 0
      %5933 = vmatpush1.bf16.msra.mxu0 %v5911
      %5934 = vmatprep.subr.bf16.mxu0 0
      %5935 = vmatpush1.bf16.msra.mxu0 %v5912
      %5936 = vmatprep.subr.bf16.mxu0 0
      %5937 = vmatpush1.bf16.msra.mxu0 %v5913
      %5938 = vmatprep.subr.bf16.mxu0 0
      %5939 = vmatpush1.bf16.msra.mxu0 0
      %5940 = vmatprep.subr.bf16.mxu0 0
      %5941 = vmatpush1.bf16.msra.mxu0 0
      %5942 = vmatprep.subr.bf16.mxu0 0
      %5943 = vmatpush1.bf16.msra.mxu0 0
      %5944 = vmatprep.subr.bf16.mxu0 0
      %5945 = vmatpush1.bf16.msra.mxu0 0
      %5946 = vmatprep.subr.bf16.mxu0 0
      %5947 = vmatpush1.bf16.msra.mxu0 0
      %5948 = vmatprep.subr.bf16.mxu0 0
      %5949 = vmatpush1.bf16.msra.mxu0 0
      %5950 = vmatprep.subr.bf16.mxu0 0
      %5951 = vmatpush1.bf16.msra.mxu0 0
      %5952 = vmatprep.subr.bf16.mxu0 0
      %5953 = vmatpush1.bf16.msra.mxu0 0
      %5954 = vmatprep.mubr.bf16.mxu0 0
      %5955 = vmatmul.mubr.bf16.gmra.mrb[0].mxu0 %v5869
      %v5956 = vpop.f32.mrb[0].mxu0
      %v5957 = vadd.f32 0.0, %v5956
      %v5958 = vpop.f32.mrb[0].mxu0
      %v5959 = vpop.f32.mrb[0].mxu0
      %v5960 = vadd.f32 0.0, %v5959
      %v5961 = vpop.f32.mrb[0].mxu0
      %5962 = vmatprep.mubr.bf16.mxu0 0
      %5963 = vmatmul.mubr.bf16.gmra.mrb[0].mxu0 %v5871
      %v5964 = vpop.f32.mrb[0].mxu0
      %v5965 = vadd.f32 0.0, %v5964
      %v5966 = vpop.f32.mrb[0].mxu0
      %v5967 = vpop.f32.mrb[0].mxu0
      %v5968 = vadd.f32 0.0, %v5967
      %v5969 = vpop.f32.mrb[0].mxu0
      %5970 = vdwg.mxu0
      %v5971 = vadd.f32 %v5841, %v5957
      %v5972 = vadd.f32 %v5842, %v5960
      %v5973 = vadd.f32 %v5843, %v5965
      %v5974 = vadd.f32 %v5844, %v5968
      %v5975 = vld [vmem:[#allocation2 + $0xa8] sm:$0x3]
      %v5976 = vld [vmem:[%s1851] sm:$0xf]
      %v5977 = vld [vmem:[%s1851 + $0x4] sm:$0xf]
      %v5978 = vld [vmem:[%s1851 + $0x8] sm:$0xf]
      %v5979 = vld [vmem:[%s1851 + $0xc] sm:$0xf]
      %v5980 = vld [vmem:[%s1851 + $0x10] sm:$0xf]
      %v5981 = vld [vmem:[%s1851 + $0x14] sm:$0xf]
      %v5982 = vld [vmem:[%s1851 + $0x18] sm:$0xf]
      %v5983 = vld [vmem:[%s1851 + $0x1c] sm:$0xf]
      %v5984 = vld [vmem:[%s1851 + $0x20] sm:$0xf]
      %v5985 = vld [vmem:[%s1851 + $0x24] sm:$0xf]
      %v5986 = vld [vmem:[%s1851 + $0x28] sm:$0xf]
      %v5987 = vld [vmem:[%s1851 + $0x2c] sm:$0xf]
      %v5988 = vld [vmem:[%s1851 + $0x30] sm:$0xf]
      %v5989 = vld [vmem:[%s1851 + $0x34] sm:$0xf]
      %v5990 = vld [vmem:[%s1851 + $0x38] sm:$0xf]
      %v5991 = vld [vmem:[%s1851 + $0x3c] sm:$0xf]
      %v5993 = vshrl.u32 %v5845, 16
      %v5995 = vrot.slane %v5993, 1
      %v5996 = vshll.u32 %v5845, 16
      %v5998 = vrot.slane %v5996, 2
      %v5999 = vor.u32 %v5995, %v5998
      %v6001 = vshrl.u32 %v5846, 16
      %v6003 = vrot.slane %v6001, 1
      %v6004 = vshll.u32 %v5846, 16
      %v6006 = vrot.slane %v6004, 2
      %v6007 = vor.u32 %v6003, %v6006
      %v6008 = vsel %vm1868, %v5999, %v6007
      %v6010 = vshrl.u32 %v5975, 16
      %v6012 = vrot.slane %v6010, 1
      %v6013 = vshll.u32 %v5975, 16
      %v6015 = vrot.slane %v6013, 2
      %v6016 = vor.u32 %v6012, %v6015
      %v6017 = vsel %vm1868, %v6007, %v6016
      %v6036 = vunpack.c.l.b16 %v5976
      %v6037 = vunpack.c.l.b16 %v5977
      %v6038 = vunpack.c.l.b16 %v5978
      %v6039 = vunpack.c.l.b16 %v5979
      %v6040 = vunpack.c.l.b16 %v5980
      %v6041 = vunpack.c.l.b16 %v5981
      %v6042 = vunpack.c.l.b16 %v5982
      %v6043 = vunpack.c.l.b16 %v5983
      %v6044 = vunpack.c.l.b16 %v5984
      %v6045 = vunpack.c.l.b16 %v5985
      %v6046 = vunpack.c.l.b16 %v5986
      %v6047 = vunpack.c.l.b16 %v5987
      %v6048 = vunpack.c.l.b16 %v5988
      %v6049 = vunpack.c.l.b16 %v5989
      %v6050 = vunpack.c.l.b16 %v5990
      %v6051 = vunpack.c.l.b16 %v5991
      %v6052 = vpack.c.b16 %v6037, %v6036
      %v6053 = vpack.c.b16 %v6039, %v6038
      %v6054 = vpack.c.b16 %v6041, %v6040
      %v6055 = vpack.c.b16 %v6043, %v6042
      %v6056 = vpack.c.b16 %v6045, %v6044
      %v6057 = vpack.c.b16 %v6047, %v6046
      %v6058 = vpack.c.b16 %v6049, %v6048
      %v6059 = vpack.c.b16 %v6051, %v6050
      %6068 = vmatprep.subr.bf16.mxu0 0
      %6069 = vmatpush1.bf16.msra.mxu0 %v6052
      %6070 = vmatprep.subr.bf16.mxu0 0
      %6071 = vmatpush1.bf16.msra.mxu0 %v6053
      %6072 = vmatprep.subr.bf16.mxu0 0
      %6073 = vmatpush1.bf16.msra.mxu0 %v6054
      %6074 = vmatprep.subr.bf16.mxu0 0
      %6075 = vmatpush1.bf16.msra.mxu0 %v6055
      %6076 = vmatprep.subr.bf16.mxu0 0
      %6077 = vmatpush1.bf16.msra.mxu0 %v6056
      %6078 = vmatprep.subr.bf16.mxu0 0
      %6079 = vmatpush1.bf16.msra.mxu0 %v6057
      %6080 = vmatprep.subr.bf16.mxu0 0
      %6081 = vmatpush1.bf16.msra.mxu0 %v6058
      %6082 = vmatprep.subr.bf16.mxu0 0
      %6083 = vmatpush1.bf16.msra.mxu0 %v6059
      %6084 = vmatprep.subr.bf16.mxu0 0
      %6085 = vmatpush1.bf16.msra.mxu0 0
      %6086 = vmatprep.subr.bf16.mxu0 0
      %6087 = vmatpush1.bf16.msra.mxu0 0
      %6088 = vmatprep.subr.bf16.mxu0 0
      %6089 = vmatpush1.bf16.msra.mxu0 0
      %6090 = vmatprep.subr.bf16.mxu0 0
      %6091 = vmatpush1.bf16.msra.mxu0 0
      %6092 = vmatprep.subr.bf16.mxu0 0
      %6093 = vmatpush1.bf16.msra.mxu0 0
      %6094 = vmatprep.subr.bf16.mxu0 0
      %6095 = vmatpush1.bf16.msra.mxu0 0
      %6096 = vmatprep.subr.bf16.mxu0 0
      %6097 = vmatpush1.bf16.msra.mxu0 0
      %6098 = vmatprep.subr.bf16.mxu0 0
      %6099 = vmatpush1.bf16.msra.mxu0 0
      %6100 = vmatprep.mubr.bf16.mxu0 0
      %6101 = vmatmul.mubr.bf16.gmra.mrb[0].mxu0 %v6008
      %v6102 = vpop.f32.mrb[0].mxu0
      %v6103 = vadd.f32 0.0, %v6102
      %v6104 = vpop.f32.mrb[0].mxu0
      %v6105 = vpop.f32.mrb[0].mxu0
      %v6106 = vadd.f32 0.0, %v6105
      %v6107 = vpop.f32.mrb[0].mxu0
      %6108 = vmatprep.mubr.bf16.mxu0 0
      %6109 = vmatmul.mubr.bf16.gmra.mrb[0].mxu0 %v6017
      %v6110 = vpop.f32.mrb[0].mxu0
      %v6111 = vadd.f32 0.0, %v6110
      %v6112 = vpop.f32.mrb[0].mxu0
      %v6113 = vpop.f32.mrb[0].mxu0
      %v6114 = vadd.f32 0.0, %v6113
      %v6115 = vpop.f32.mrb[0].mxu0
      %6116 = vdwg.mxu0
      %v6117 = vadd.f32 %v5971, %v6103
      %v6118 = vadd.f32 %v5972, %v6106
      %v6119 = vadd.f32 %v5973, %v6111
      %v6120 = vadd.f32 %v5974, %v6114
      %v6121 = vld [vmem:[#allocation2 + $0x98] sm:$0xfc]
      %v6122 = vld [vmem:[%s2119] sm:$0xf]
      %v6123 = vld [vmem:[%s2119 + $0x4] sm:$0xf]
      %v6124 = vld [vmem:[%s2119 + $0x8] sm:$0xf]
      %v6125 = vld [vmem:[%s2119 + $0xc] sm:$0xf]
      %v6126 = vld [vmem:[%s2119 + $0x10] sm:$0xf]
      %v6127 = vld [vmem:[%s2119 + $0x14] sm:$0xf]
      %v6128 = vld [vmem:[%s2119 + $0x18] sm:$0xf]
      %v6129 = vld [vmem:[%s2119 + $0x1c] sm:$0xf]
      %v6130 = vld [vmem:[%s2119 + $0x20] sm:$0xf]
      %v6131 = vld [vmem:[%s2119 + $0x24] sm:$0xf]
      %v6132 = vld [vmem:[%s2119 + $0x28] sm:$0xf]
      %v6133 = vld [vmem:[%s2119 + $0x2c] sm:$0xf]
      %v6134 = vld [vmem:[%s2119 + $0x30] sm:$0xf]
      %v6135 = vld [vmem:[%s2119 + $0x34] sm:$0xf]
      %v6136 = vld [vmem:[%s2119 + $0x38] sm:$0xf]
      %v6137 = vld [vmem:[%s2119 + $0x3c] sm:$0xf]
      %v6140 = vrot.slane %v6121, 2
      %v6141 = vrot.slane %v5846, 2
      %v6142 = vsel %vm2138, %v6140, %v6141
      %v6143 = vrot.slane %v5975, 2
      %v6144 = vsel %vm2138, %v6141, %v6143
      %v6163 = vunpack.c.l.b16 %v6122
      %v6164 = vunpack.c.l.b16 %v6123
      %v6165 = vunpack.c.l.b16 %v6124
      %v6166 = vunpack.c.l.b16 %v6125
      %v6167 = vunpack.c.l.b16 %v6126
      %v6168 = vunpack.c.l.b16 %v6127
      %v6169 = vunpack.c.l.b16 %v6128
      %v6170 = vunpack.c.l.b16 %v6129
      %v6171 = vunpack.c.l.b16 %v6130
      %v6172 = vunpack.c.l.b16 %v6131
      %v6173 = vunpack.c.l.b16 %v6132
      %v6174 = vunpack.c.l.b16 %v6133
      %v6175 = vunpack.c.l.b16 %v6134
      %v6176 = vunpack.c.l.b16 %v6135
      %v6177 = vunpack.c.l.b16 %v6136
      %v6178 = vunpack.c.l.b16 %v6137
      %v6179 = vpack.c.b16 %v6164, %v6163
      %v6180 = vpack.c.b16 %v6166, %v6165
      %v6181 = vpack.c.b16 %v6168, %v6167
      %v6182 = vpack.c.b16 %v6170, %v6169
      %v6183 = vpack.c.b16 %v6172, %v6171
      %v6184 = vpack.c.b16 %v6174, %v6173
      %v6185 = vpack.c.b16 %v6176, %v6175
      %v6186 = vpack.c.b16 %v6178, %v6177
      %6195 = vmatprep.subr.bf16.mxu0 0
      %6196 = vmatpush1.bf16.msra.mxu0 %v6179
      %6197 = vmatprep.subr.bf16.mxu0 0
      %6198 = vmatpush1.bf16.msra.mxu0 %v6180
      %6199 = vmatprep.subr.bf16.mxu0 0
      %6200 = vmatpush1.bf16.msra.mxu0 %v6181
      %6201 = vmatprep.subr.bf16.mxu0 0
      %6202 = vmatpush1.bf16.msra.mxu0 %v6182
      %6203 = vmatprep.subr.bf16.mxu0 0
      %6204 = vmatpush1.bf16.msra.mxu0 %v6183
      %6205 = vmatprep.subr.bf16.mxu0 0
      %6206 = vmatpush1.bf16.msra.mxu0 %v6184
      %6207 = vmatprep.subr.bf16.mxu0 0
      %6208 = vmatpush1.bf16.msra.mxu0 %v6185
      %6209 = vmatprep.subr.bf16.mxu0 0
      %6210 = vmatpush1.bf16.msra.mxu0 %v6186
      %6211 = vmatprep.subr.bf16.mxu0 0
      %6212 = vmatpush1.bf16.msra.mxu0 0
      %6213 = vmatprep.subr.bf16.mxu0 0
      %6214 = vmatpush1.bf16.msra.mxu0 0
      %6215 = vmatprep.subr.bf16.mxu0 0
      %6216 = vmatpush1.bf16.msra.mxu0 0
      %6217 = vmatprep.subr.bf16.mxu0 0
      %6218 = vmatpush1.bf16.msra.mxu0 0
      %6219 = vmatprep.subr.bf16.mxu0 0
      %6220 = vmatpush1.bf16.msra.mxu0 0
      %6221 = vmatprep.subr.bf16.mxu0 0
      %6222 = vmatpush1.bf16.msra.mxu0 0
      %6223 = vmatprep.subr.bf16.mxu0 0
      %6224 = vmatpush1.bf16.msra.mxu0 0
      %6225 = vmatprep.subr.bf16.mxu0 0
      %6226 = vmatpush1.bf16.msra.mxu0 0
      %6227 = vmatprep.mubr.bf16.mxu0 0
      %6228 = vmatmul.mubr.bf16.gmra.mrb[0].mxu0 %v6142
      %v6229 = vpop.f32.mrb[0].mxu0
      %v6230 = vadd.f32 0.0, %v6229
      %v6231 = vpop.f32.mrb[0].mxu0
      %v6232 = vpop.f32.mrb[0].mxu0
      %v6233 = vadd.f32 0.0, %v6232
      %v6234 = vpop.f32.mrb[0].mxu0
      %6235 = vmatprep.mubr.bf16.mxu0 0
      %6236 = vmatmul.mubr.bf16.gmra.mrb[0].mxu0 %v6144
      %v6237 = vpop.f32.mrb[0].mxu0
      %v6238 = vadd.f32 0.0, %v6237
      %v6239 = vpop.f32.mrb[0].mxu0
      %v6240 = vpop.f32.mrb[0].mxu0
      %v6241 = vadd.f32 0.0, %v6240
      %v6242 = vpop.f32.mrb[0].mxu0
      %6243 = vdwg.mxu0
      %v6244 = vadd.f32 %v6117, %v6230
      %v6245 = vadd.f32 %v6118, %v6233
      %v6246 = vadd.f32 %v6119, %v6238
      %v6247 = vadd.f32 %v6120, %v6241
      %v6248 = vld [vmem:[%s2] sm:$0x1]
      %v6250 = vlaneseq
      %v6251 = vshrl.u32 %v6250, 7
      %v6252 = vsub.s32 0, %v6251
      %v6253 = vrot.slane %v6248, %v6252
      %v6255 = vadd.f32 %v6244, %v6253
      %v6256 = vadd.f32 %v6245, %v6253
      %v6257 = vadd.f32 %v6246, %v6253
      %v6258 = vadd.f32 %v6247, %v6253
      %v6259 = vmax.f32 %v6255, 0.0
      %v6260 = vmax.f32 %v6256, 0.0
      %v6261 = vmax.f32 %v6257, 0.0
      %v6262 = vmax.f32 %v6258, 0.0
      %v6263 = vadd.s32 %v2365, 256
      %v6264 = vadd.s32 %v2366, 256
      %v6265 = vadd.s32 %v2367, 256
      %v6266 = vadd.s32 %v2368, 256
      %vm6267 = vcmp.lt.s32.totalorder %v6263, 0
      %v6268 = vsub.s32 0, %v6263
      %v6269 = vsel %vm6267, %v6268, %v6263
      %v6270 = vmul.u32.u64.compose %v6269, 3817748708
      %v6271 = vextract.low.u32 %v6270
      %v6272 = vextract.high.u32 %v6270
      %v6273 = vshrl.u32 %v6272, 4
      %v6274 = vmul.u32 %v6273, 18
      %v6275 = vsub.s32 %v6269, %v6274
      %v6276 = vsub.s32 0, %v6275
      %v6277 = vsel %vm6267, %v6276, %v6275
      %vm6278 = vcmp.lt.s32.totalorder %v6264, 0
      %v6279 = vsub.s32 0, %v6264
      %v6280 = vsel %vm6278, %v6279, %v6264
      %v6281 = vmul.u32.u64.compose %v6280, 3817748708
      %v6282 = vextract.low.u32 %v6281
      %v6283 = vextract.high.u32 %v6281
      %v6284 = vshrl.u32 %v6283, 4
      %v6285 = vmul.u32 %v6284, 18
      %v6286 = vsub.s32 %v6280, %v6285
      %v6287 = vsub.s32 0, %v6286
      %v6288 = vsel %vm6278, %v6287, %v6286
      %vm6289 = vcmp.lt.s32.totalorder %v6265, 0
      %v6290 = vsub.s32 0, %v6265
      %v6291 = vsel %vm6289, %v6290, %v6265
      %v6292 = vmul.u32.u64.compose %v6291, 3817748708
      %v6293 = vextract.low.u32 %v6292
      %v6294 = vextract.high.u32 %v6292
      %v6295 = vshrl.u32 %v6294, 4
      %v6296 = vmul.u32 %v6295, 18
      %v6297 = vsub.s32 %v6291, %v6296
      %v6298 = vsub.s32 0, %v6297
      %v6299 = vsel %vm6289, %v6298, %v6297
      %vm6300 = vcmp.lt.s32.totalorder %v6266, 0
      %v6301 = vsub.s32 0, %v6266
      %v6302 = vsel %vm6300, %v6301, %v6266
      %v6303 = vmul.u32.u64.compose %v6302, 3817748708
      %v6304 = vextract.low.u32 %v6303
      %v6305 = vextract.high.u32 %v6303
      %v6306 = vshrl.u32 %v6305, 4
      %v6307 = vmul.u32 %v6306, 18
      %v6308 = vsub.s32 %v6302, %v6307
      %v6309 = vsub.s32 0, %v6308
      %v6310 = vsel %vm6300, %v6309, %v6308
      %vm6311 = vcmp.ne.s32.totalorder %v6277, 0
      %vm6312 = vcmp.ne.s32.totalorder %v6288, 0
      %vm6313 = vcmp.ne.s32.totalorder %v6299, 0
      %vm6314 = vcmp.ne.s32.totalorder %v6310, 0
      %vm6315 = vcmp.lt.s32.totalorder %v6277, 0
      %vm6316 = vcmp.lt.s32.totalorder %v6288, 0
      %vm6317 = vcmp.lt.s32.totalorder %v6299, 0
      %vm6318 = vcmp.lt.s32.totalorder %v6310, 0
      %vm6319 = vmand %vm6315, %vm6311
      %vm6320 = vmand %vm6316, %vm6312
      %vm6321 = vmand %vm6317, %vm6313
      %vm6322 = vmand %vm6318, %vm6314
      %v6323 = vadd.s32 %v6277, 18
      %v6324 = vadd.s32 %v6288, 18
      %v6325 = vadd.s32 %v6299, 18
      %v6326 = vadd.s32 %v6310, 18
      %v6327 = vsel %vm6319, %v6323, %v6277
      %v6328 = vsel %vm6320, %v6324, %v6288
      %v6329 = vsel %vm6321, %v6325, %v6299
      %v6330 = vsel %vm6322, %v6326, %v6310
      %vm6331 = vcmp.lt.s32.totalorder %v6327, 16
      %vm6332 = vcmp.lt.s32.totalorder %v6328, 16
      %vm6333 = vcmp.lt.s32.totalorder %v6329, 16
      %vm6334 = vcmp.lt.s32.totalorder %v6330, 16
      %v6335 = vsel %vm6331, 1, 0
      %v6336 = vsel %vm6332, 1, 0
      %v6337 = vsel %vm6333, 1, 0
      %v6338 = vsel %vm6334, 1, 0
      %vm6339 = vcmp.eq.s32.totalorder %v6335, 1
      %vm6340 = vcmp.eq.s32.totalorder %v6336, 1
      %vm6341 = vcmp.eq.s32.totalorder %v6337, 1
      %vm6342 = vcmp.eq.s32.totalorder %v6338, 1
      %v6343 = vsel %vm6339, %v6259, 0.0
      %v6344 = vsel %vm6340, %v6260, 0.0
      %v6345 = vsel %vm6341, %v6261, 0.0
      %v6346 = vsel %vm6342, %v6262, 0.0
      %v6347 = vpack.c.bf16 %v6344, %v6343
      %v6348 = vpack.c.bf16 %v6346, %v6345
      %6349 = vst [vmem:[#allocation3 + $0x90] sm:$0xff] %v6347
      %6350 = vst [vmem:[#allocation3 + $0x98] sm:$0xff] %v6348
      %v6351 = vld [vmem:[#allocation3] sm:$0xc0]
      %v6352 = vld [vmem:[#allocation3 + $0x8] sm:$0xff]
      %v6353 = vld [vmem:[#allocation3 + $0x10] sm:$0xff]
      %v6354 = vld [vmem:[#allocation3 + $0x18] sm:$0xff]
      %v6355 = vld [vmem:[#allocation3 + $0x20] sm:$0xff]
      %v6356 = vld [vmem:[#allocation3 + $0x28] sm:$0xff]
      %v6357 = vld [vmem:[#allocation3 + $0x30] sm:$0xff]
      %v6358 = vld [vmem:[#allocation3 + $0x38] sm:$0xff]
      %v6359 = vld [vmem:[#allocation3 + $0x40] sm:$0x7f]
      %v6360 = vld [vmem:[%s3] sm:$0xf]
      %v6361 = vld [vmem:[%s3 + $0x4] sm:$0xf]
      %v6362 = vld [vmem:[%s3 + $0x8] sm:$0xf]
      %v6363 = vld [vmem:[%s3 + $0xc] sm:$0xf]
      %v6364 = vld [vmem:[%s3 + $0x10] sm:$0xf]
      %v6365 = vld [vmem:[%s3 + $0x14] sm:$0xf]
      %v6366 = vld [vmem:[%s3 + $0x18] sm:$0xf]
      %v6367 = vld [vmem:[%s3 + $0x1c] sm:$0xf]
      %v6368 = vld [vmem:[%s3 + $0x20] sm:$0xf]
      %v6369 = vld [vmem:[%s3 + $0x24] sm:$0xf]
      %v6370 = vld [vmem:[%s3 + $0x28] sm:$0xf]
      %v6371 = vld [vmem:[%s3 + $0x2c] sm:$0xf]
      %v6372 = vld [vmem:[%s3 + $0x30] sm:$0xf]
      %v6373 = vld [vmem:[%s3 + $0x34] sm:$0xf]
      %v6374 = vld [vmem:[%s3 + $0x38] sm:$0xf]
      %v6375 = vld [vmem:[%s3 + $0x3c] sm:$0xf]
      %v6376 = vld [vmem:[#allocation3] sm:$0x80]
      %s6377 = scalar_lea.vmem %s3, 64
      %v6378 = vld [vmem:[%s6377] sm:$0xf]
      %v6379 = vld [vmem:[%s6377 + $0x4] sm:$0xf]
      %v6380 = vld [vmem:[%s6377 + $0x8] sm:$0xf]
      %v6381 = vld [vmem:[%s6377 + $0xc] sm:$0xf]
      %v6382 = vld [vmem:[%s6377 + $0x10] sm:$0xf]
      %v6383 = vld [vmem:[%s6377 + $0x14] sm:$0xf]
      %v6384 = vld [vmem:[%s6377 + $0x18] sm:$0xf]
      %v6385 = vld [vmem:[%s6377 + $0x1c] sm:$0xf]
      %v6386 = vld [vmem:[%s6377 + $0x20] sm:$0xf]
      %v6387 = vld [vmem:[%s6377 + $0x24] sm:$0xf]
      %v6388 = vld [vmem:[%s6377 + $0x28] sm:$0xf]
      %v6389 = vld [vmem:[%s6377 + $0x2c] sm:$0xf]
      %v6390 = vld [vmem:[%s6377 + $0x30] sm:$0xf]
      %v6391 = vld [vmem:[%s6377 + $0x34] sm:$0xf]
      %v6392 = vld [vmem:[%s6377 + $0x38] sm:$0xf]
      %v6393 = vld [vmem:[%s6377 + $0x3c] sm:$0xf]
      %v6403 = vrot.slane %v6376, 7
      %v6404 = vrot.slane %v6352, 7
      %v6405 = vsel %vm616, %v6403, %v6404
      %v6406 = vrot.slane %v6353, 7
      %v6407 = vsel %vm616, %v6404, %v6406
      %v6408 = vrot.slane %v6354, 7
      %v6409 = vsel %vm616, %v6406, %v6408
      %v6410 = vrot.slane %v6355, 7
      %v6411 = vsel %vm616, %v6408, %v6410
      %v6412 = vrot.slane %v6356, 7
      %v6413 = vsel %vm616, %v6410, %v6412
      %v6414 = vrot.slane %v6357, 7
      %v6415 = vsel %vm616, %v6412, %v6414
      %v6416 = vrot.slane %v6358, 7
      %v6417 = vsel %vm616, %v6414, %v6416
      %v6418 = vrot.slane %v6359, 7
      %v6419 = vsel %vm616, %v6416, %v6418
      %v6444 = vunpack.c.l.b16 %v6378
      %v6445 = vunpack.c.l.b16 %v6379
      %v6446 = vunpack.c.l.b16 %v6380
      %v6447 = vunpack.c.l.b16 %v6381
      %v6448 = vunpack.c.l.b16 %v6382
      %v6449 = vunpack.c.l.b16 %v6383
      %v6450 = vunpack.c.l.b16 %v6384
      %v6451 = vunpack.c.l.b16 %v6385
      %v6452 = vunpack.c.l.b16 %v6386
      %v6453 = vunpack.c.l.b16 %v6387
      %v6454 = vunpack.c.l.b16 %v6388
      %v6455 = vunpack.c.l.b16 %v6389
      %v6456 = vunpack.c.l.b16 %v6390
      %v6457 = vunpack.c.l.b16 %v6391
      %v6458 = vunpack.c.l.b16 %v6392
      %v6459 = vunpack.c.l.b16 %v6393
      %v6460 = vpack.c.b16 %v6445, %v6444
      %v6461 = vpack.c.b16 %v6447, %v6446
      %v6462 = vpack.c.b16 %v6449, %v6448
      %v6463 = vpack.c.b16 %v6451, %v6450
      %v6464 = vpack.c.b16 %v6453, %v6452
      %v6465 = vpack.c.b16 %v6455, %v6454
      %v6466 = vpack.c.b16 %v6457, %v6456
      %v6467 = vpack.c.b16 %v6459, %v6458
      %6476 = vmatprep.subr.bf16.mxu0 0
      %6477 = vmatpush1.bf16.msra.mxu0 %v6460
      %6478 = vmatprep.subr.bf16.mxu0 0
      %6479 = vmatpush1.bf16.msra.mxu0 %v6461
      %6480 = vmatprep.subr.bf16.mxu0 0
      %6481 = vmatpush1.bf16.msra.mxu0 %v6462
      %6482 = vmatprep.subr.bf16.mxu0 0
      %6483 = vmatpush1.bf16.msra.mxu0 %v6463
      %6484 = vmatprep.subr.bf16.mxu0 0
      %6485 = vmatpush1.bf16.msra.mxu0 %v6464
      %6486 = vmatprep.subr.bf16.mxu0 0
      %6487 = vmatpush1.bf16.msra.mxu0 %v6465
      %6488 = vmatprep.subr.bf16.mxu0 0
      %6489 = vmatpush1.bf16.msra.mxu0 %v6466
      %6490 = vmatprep.subr.bf16.mxu0 0
      %6491 = vmatpush1.bf16.msra.mxu0 %v6467
      %6492 = vmatprep.subr.bf16.mxu0 0
      %6493 = vmatpush1.bf16.msra.mxu0 0
      %6494 = vmatprep.subr.bf16.mxu0 0
      %6495 = vmatpush1.bf16.msra.mxu0 0
      %6496 = vmatprep.subr.bf16.mxu0 0
      %6497 = vmatpush1.bf16.msra.mxu0 0
      %6498 = vmatprep.subr.bf16.mxu0 0
      %6499 = vmatpush1.bf16.msra.mxu0 0
      %6500 = vmatprep.subr.bf16.mxu0 0
      %6501 = vmatpush1.bf16.msra.mxu0 0
      %6502 = vmatprep.subr.bf16.mxu0 0
      %6503 = vmatpush1.bf16.msra.mxu0 0
      %6504 = vmatprep.subr.bf16.mxu0 0
      %6505 = vmatpush1.bf16.msra.mxu0 0
      %6506 = vmatprep.subr.bf16.mxu0 0
      %6507 = vmatpush1.bf16.msra.mxu0 0
      %6508 = vmatprep.mubr.bf16.mxu0 0
      %6509 = vmatmul.mubr.bf16.gmra.mrb[0].mxu0 %v6405
      %v6510 = vpop.f32.mrb[0].mxu0
      %v6511 = vadd.f32 0.0, %v6510
      %v6512 = vpop.f32.mrb[0].mxu0
      %v6513 = vpop.f32.mrb[0].mxu0
      %v6514 = vadd.f32 0.0, %v6513
      %v6515 = vpop.f32.mrb[0].mxu0
      %6516 = vmatprep.mubr.bf16.mxu0 0
      %6517 = vmatmul.mubr.bf16.gmra.mrb[0].mxu0 %v6407
      %v6518 = vpop.f32.mrb[0].mxu0
      %v6519 = vadd.f32 0.0, %v6518
      %v6520 = vpop.f32.mrb[0].mxu0
      %v6521 = vpop.f32.mrb[0].mxu0
      %v6522 = vadd.f32 0.0, %v6521
      %v6523 = vpop.f32.mrb[0].mxu0
      %6524 = vmatprep.mubr.bf16.mxu0 0
      %6525 = vmatmul.mubr.bf16.gmra.mrb[0].mxu0 %v6409
      %v6526 = vpop.f32.mrb[0].mxu0
      %v6527 = vadd.f32 0.0, %v6526
      %v6528 = vpop.f32.mrb[0].mxu0
      %v6529 = vpop.f32.mrb[0].mxu0
      %v6530 = vadd.f32 0.0, %v6529
      %v6531 = vpop.f32.mrb[0].mxu0
      %6532 = vmatprep.mubr.bf16.mxu0 0
      %6533 = vmatmul.mubr.bf16.gmra.mrb[0].mxu0 %v6411
      %v6534 = vpop.f32.mrb[0].mxu0
      %v6535 = vadd.f32 0.0, %v6534
      %v6536 = vpop.f32.mrb[0].mxu0
      %v6537 = vpop.f32.mrb[0].mxu0
      %v6538 = vadd.f32 0.0, %v6537
      %v6539 = vpop.f32.mrb[0].mxu0
      %6540 = vmatprep.mubr.bf16.mxu0 0
      %6541 = vmatmul.mubr.bf16.gmra.mrb[0].mxu0 %v6413
      %v6542 = vpop.f32.mrb[0].mxu0
      %v6543 = vadd.f32 0.0, %v6542
      %v6544 = vpop.f32.mrb[0].mxu0
      %v6545 = vpop.f32.mrb[0].mxu0
      %v6546 = vadd.f32 0.0, %v6545
      %v6547 = vpop.f32.mrb[0].mxu0
      %6548 = vmatprep.mubr.bf16.mxu0 0
      %6549 = vmatmul.mubr.bf16.gmra.mrb[0].mxu0 %v6415
      %v6550 = vpop.f32.mrb[0].mxu0
      %v6551 = vadd.f32 0.0, %v6550
      %v6552 = vpop.f32.mrb[0].mxu0
      %v6553 = vpop.f32.mrb[0].mxu0
      %v6554 = vadd.f32 0.0, %v6553
      %v6555 = vpop.f32.mrb[0].mxu0
      %6556 = vmatprep.mubr.bf16.mxu0 0
      %6557 = vmatmul.mubr.bf16.gmra.mrb[0].mxu0 %v6417
      %v6558 = vpop.f32.mrb[0].mxu0
      %v6559 = vadd.f32 0.0, %v6558
      %v6560 = vpop.f32.mrb[0].mxu0
      %v6561 = vpop.f32.mrb[0].mxu0
      %v6562 = vadd.f32 0.0, %v6561
      %v6563 = vpop.f32.mrb[0].mxu0
      %6564 = vmatprep.mubr.bf16.mxu0 0
      %6565 = vmatmul.mubr.bf16.gmra.mrb[0].mxu0 %v6419
      %v6566 = vpop.f32.mrb[0].mxu0
      %v6567 = vadd.f32 0.0, %v6566
      %v6568 = vpop.f32.mrb[0].mxu0
      %v6569 = vpop.f32.mrb[0].mxu0
      %v6570 = vadd.f32 0.0, %v6569
      %v6571 = vpop.f32.mrb[0].mxu0
      %6572 = vdwg.mxu0
      %vm6573 = vsmask.f32 1280
      %v6575 = vshrl.u32 %v6351, 16
      %v6577 = vrot.slane %v6575, 6
      %v6578 = vshll.u32 %v6351, 16
      %v6580 = vrot.slane %v6578, 7
      %v6581 = vor.u32 %v6577, %v6580
      %v6583 = vshrl.u32 %v6352, 16
      %v6585 = vrot.slane %v6583, 6
      %v6586 = vshll.u32 %v6352, 16
      %v6588 = vrot.slane %v6586, 7
      %v6589 = vor.u32 %v6585, %v6588
      %v6590 = vsel %vm6573, %v6581, %v6589
      %v6592 = vshrl.u32 %v6353, 16
      %v6594 = vrot.slane %v6592, 6
      %v6595 = vshll.u32 %v6353, 16
      %v6597 = vrot.slane %v6595, 7
      %v6598 = vor.u32 %v6594, %v6597
      %v6599 = vsel %vm6573, %v6589, %v6598
      %v6601 = vshrl.u32 %v6354, 16
      %v6603 = vrot.slane %v6601, 6
      %v6604 = vshll.u32 %v6354, 16
      %v6606 = vrot.slane %v6604, 7
      %v6607 = vor.u32 %v6603, %v6606
      %v6608 = vsel %vm6573, %v6598, %v6607
      %v6610 = vshrl.u32 %v6355, 16
      %v6612 = vrot.slane %v6610, 6
      %v6613 = vshll.u32 %v6355, 16
      %v6615 = vrot.slane %v6613, 7
      %v6616 = vor.u32 %v6612, %v6615
      %v6617 = vsel %vm6573, %v6607, %v6616
      %v6619 = vshrl.u32 %v6356, 16
      %v6621 = vrot.slane %v6619, 6
      %v6622 = vshll.u32 %v6356, 16
      %v6624 = vrot.slane %v6622, 7
      %v6625 = vor.u32 %v6621, %v6624
      %v6626 = vsel %vm6573, %v6616, %v6625
      %v6628 = vshrl.u32 %v6357, 16
      %v6630 = vrot.slane %v6628, 6
      %v6631 = vshll.u32 %v6357, 16
      %v6633 = vrot.slane %v6631, 7
      %v6634 = vor.u32 %v6630, %v6633
      %v6635 = vsel %vm6573, %v6625, %v6634
      %v6637 = vshrl.u32 %v6358, 16
      %v6639 = vrot.slane %v6637, 6
      %v6640 = vshll.u32 %v6358, 16
      %v6642 = vrot.slane %v6640, 7
      %v6643 = vor.u32 %v6639, %v6642
      %v6644 = vsel %vm6573, %v6634, %v6643
      %v6646 = vshrl.u32 %v6359, 16
      %v6648 = vrot.slane %v6646, 6
      %v6649 = vshll.u32 %v6359, 16
      %v6651 = vrot.slane %v6649, 7
      %v6652 = vor.u32 %v6648, %v6651
      %v6653 = vsel %vm6573, %v6643, %v6652
      %v6678 = vunpack.c.l.b16 %v6360
      %v6679 = vunpack.c.l.b16 %v6361
      %v6680 = vunpack.c.l.b16 %v6362
      %v6681 = vunpack.c.l.b16 %v6363
      %v6682 = vunpack.c.l.b16 %v6364
      %v6683 = vunpack.c.l.b16 %v6365
      %v6684 = vunpack.c.l.b16 %v6366
      %v6685 = vunpack.c.l.b16 %v6367
      %v6686 = vunpack.c.l.b16 %v6368
      %v6687 = vunpack.c.l.b16 %v6369
      %v6688 = vunpack.c.l.b16 %v6370
      %v6689 = vunpack.c.l.b16 %v6371
      %v6690 = vunpack.c.l.b16 %v6372
      %v6691 = vunpack.c.l.b16 %v6373
      %v6692 = vunpack.c.l.b16 %v6374
      %v6693 = vunpack.c.l.b16 %v6375
      %v6694 = vpack.c.b16 %v6679, %v6678
      %v6695 = vpack.c.b16 %v6681, %v6680
      %v6696 = vpack.c.b16 %v6683, %v6682
      %v6697 = vpack.c.b16 %v6685, %v6684
      %v6698 = vpack.c.b16 %v6687, %v6686
      %v6699 = vpack.c.b16 %v6689, %v6688
      %v6700 = vpack.c.b16 %v6691, %v6690
      %v6701 = vpack.c.b16 %v6693, %v6692
      %6710 = vmatprep.subr.bf16.mxu0 0
      %6711 = vmatpush1.bf16.msra.mxu0 %v6694
      %6712 = vmatprep.subr.bf16.mxu0 0
      %6713 = vmatpush1.bf16.msra.mxu0 %v6695
      %6714 = vmatprep.subr.bf16.mxu0 0
      %6715 = vmatpush1.bf16.msra.mxu0 %v6696
      %6716 = vmatprep.subr.bf16.mxu0 0
      %6717 = vmatpush1.bf16.msra.mxu0 %v6697
      %6718 = vmatprep.subr.bf16.mxu0 0
      %6719 = vmatpush1.bf16.msra.mxu0 %v6698
      %6720 = vmatprep.subr.bf16.mxu0 0
      %6721 = vmatpush1.bf16.msra.mxu0 %v6699
      %6722 = vmatprep.subr.bf16.mxu0 0
      %6723 = vmatpush1.bf16.msra.mxu0 %v6700
      %6724 = vmatprep.subr.bf16.mxu0 0
      %6725 = vmatpush1.bf16.msra.mxu0 %v6701
      %6726 = vmatprep.subr.bf16.mxu0 0
      %6727 = vmatpush1.bf16.msra.mxu0 0
      %6728 = vmatprep.subr.bf16.mxu0 0
      %6729 = vmatpush1.bf16.msra.mxu0 0
      %6730 = vmatprep.subr.bf16.mxu0 0
      %6731 = vmatpush1.bf16.msra.mxu0 0
      %6732 = vmatprep.subr.bf16.mxu0 0
      %6733 = vmatpush1.bf16.msra.mxu0 0
      %6734 = vmatprep.subr.bf16.mxu0 0
      %6735 = vmatpush1.bf16.msra.mxu0 0
      %6736 = vmatprep.subr.bf16.mxu0 0
      %6737 = vmatpush1.bf16.msra.mxu0 0
      %6738 = vmatprep.subr.bf16.mxu0 0
      %6739 = vmatpush1.bf16.msra.mxu0 0
      %6740 = vmatprep.subr.bf16.mxu0 0
      %6741 = vmatpush1.bf16.msra.mxu0 0
      %6742 = vmatprep.mubr.bf16.mxu0 0
      %6743 = vmatmul.mubr.bf16.gmra.mrb[0].mxu0 %v6590
      %v6744 = vpop.f32.mrb[0].mxu0
      %v6745 = vadd.f32 %v6511, %v6744
      %v6746 = vpop.f32.mrb[0].mxu0
      %v6747 = vpop.f32.mrb[0].mxu0
      %v6748 = vadd.f32 %v6514, %v6747
      %v6749 = vpop.f32.mrb[0].mxu0
      %6750 = vmatprep.mubr.bf16.mxu0 0
      %6751 = vmatmul.mubr.bf16.gmra.mrb[0].mxu0 %v6599
      %v6752 = vpop.f32.mrb[0].mxu0
      %v6753 = vadd.f32 %v6519, %v6752
      %v6754 = vpop.f32.mrb[0].mxu0
      %v6755 = vpop.f32.mrb[0].mxu0
      %v6756 = vadd.f32 %v6522, %v6755
      %v6757 = vpop.f32.mrb[0].mxu0
      %6758 = vmatprep.mubr.bf16.mxu0 0
      %6759 = vmatmul.mubr.bf16.gmra.mrb[0].mxu0 %v6608
      %v6760 = vpop.f32.mrb[0].mxu0
      %v6761 = vadd.f32 %v6527, %v6760
      %v6762 = vpop.f32.mrb[0].mxu0
      %v6763 = vpop.f32.mrb[0].mxu0
      %v6764 = vadd.f32 %v6530, %v6763
      %v6765 = vpop.f32.mrb[0].mxu0
      %6766 = vmatprep.mubr.bf16.mxu0 0
      %6767 = vmatmul.mubr.bf16.gmra.mrb[0].mxu0 %v6617
      %v6768 = vpop.f32.mrb[0].mxu0
      %v6769 = vadd.f32 %v6535, %v6768
      %v6770 = vpop.f32.mrb[0].mxu0
      %v6771 = vpop.f32.mrb[0].mxu0
      %v6772 = vadd.f32 %v6538, %v6771
      %v6773 = vpop.f32.mrb[0].mxu0
      %6774 = vmatprep.mubr.bf16.mxu0 0
      %6775 = vmatmul.mubr.bf16.gmra.mrb[0].mxu0 %v6626
      %v6776 = vpop.f32.mrb[0].mxu0
      %v6777 = vadd.f32 %v6543, %v6776
      %v6778 = vpop.f32.mrb[0].mxu0
      %v6779 = vpop.f32.mrb[0].mxu0
      %v6780 = vadd.f32 %v6546, %v6779
      %v6781 = vpop.f32.mrb[0].mxu0
      %6782 = vmatprep.mubr.bf16.mxu0 0
      %6783 = vmatmul.mubr.bf16.gmra.mrb[0].mxu0 %v6635
      %v6784 = vpop.f32.mrb[0].mxu0
      %v6785 = vadd.f32 %v6551, %v6784
      %v6786 = vpop.f32.mrb[0].mxu0
      %v6787 = vpop.f32.mrb[0].mxu0
      %v6788 = vadd.f32 %v6554, %v6787
      %v6789 = vpop.f32.mrb[0].mxu0
      %6790 = vmatprep.mubr.bf16.mxu0 0
      %6791 = vmatmul.mubr.bf16.gmra.mrb[0].mxu0 %v6644
      %v6792 = vpop.f32.mrb[0].mxu0
      %v6793 = vadd.f32 %v6559, %v6792
      %v6794 = vpop.f32.mrb[0].mxu0
      %v6795 = vpop.f32.mrb[0].mxu0
      %v6796 = vadd.f32 %v6562, %v6795
      %v6797 = vpop.f32.mrb[0].mxu0
      %6798 = vmatprep.mubr.bf16.mxu0 0
      %6799 = vmatmul.mubr.bf16.gmra.mrb[0].mxu0 %v6653
      %v6800 = vpop.f32.mrb[0].mxu0
      %v6801 = vadd.f32 %v6567, %v6800
      %v6802 = vpop.f32.mrb[0].mxu0
      %v6803 = vpop.f32.mrb[0].mxu0
      %v6804 = vadd.f32 %v6570, %v6803
      %v6805 = vpop.f32.mrb[0].mxu0
      %6806 = vdwg.mxu0
      %v6807 = vld [vmem:[#allocation3 + $0x40] sm:$0xff]
      %s6808 = scalar_lea.vmem %s3, 128
      %v6809 = vld [vmem:[%s6808] sm:$0xf]
      %v6810 = vld [vmem:[%s6808 + $0x4] sm:$0xf]
      %v6811 = vld [vmem:[%s6808 + $0x8] sm:$0xf]
      %v6812 = vld [vmem:[%s6808 + $0xc] sm:$0xf]
      %v6813 = vld [vmem:[%s6808 + $0x10] sm:$0xf]
      %v6814 = vld [vmem:[%s6808 + $0x14] sm:$0xf]
      %v6815 = vld [vmem:[%s6808 + $0x18] sm:$0xf]
      %v6816 = vld [vmem:[%s6808 + $0x1c] sm:$0xf]
      %v6817 = vld [vmem:[%s6808 + $0x20] sm:$0xf]
      %v6818 = vld [vmem:[%s6808 + $0x24] sm:$0xf]
      %v6819 = vld [vmem:[%s6808 + $0x28] sm:$0xf]
      %v6820 = vld [vmem:[%s6808 + $0x2c] sm:$0xf]
      %v6821 = vld [vmem:[%s6808 + $0x30] sm:$0xf]
      %v6822 = vld [vmem:[%s6808 + $0x34] sm:$0xf]
      %v6823 = vld [vmem:[%s6808 + $0x38] sm:$0xf]
      %v6824 = vld [vmem:[%s6808 + $0x3c] sm:$0xf]
      %v6826 = vshrl.u32 %v6376, 16
      %v6828 = vrot.slane %v6826, 7
      %v6829 = vrot.slane %v6583, 7
      %v6830 = vor.u32 %v6829, %v6586
      %v6831 = vsel %vm385, %v6828, %v6830
      %v6832 = vrot.slane %v6592, 7
      %v6833 = vor.u32 %v6832, %v6595
      %v6834 = vsel %vm385, %v6829, %v6833
      %v6835 = vrot.slane %v6601, 7
      %v6836 = vor.u32 %v6835, %v6604
      %v6837 = vsel %vm385, %v6832, %v6836
      %v6838 = vrot.slane %v6610, 7
      %v6839 = vor.u32 %v6838, %v6613
      %v6840 = vsel %vm385, %v6835, %v6839
      %v6841 = vrot.slane %v6619, 7
      %v6842 = vor.u32 %v6841, %v6622
      %v6843 = vsel %vm385, %v6838, %v6842
      %v6844 = vrot.slane %v6628, 7
      %v6845 = vor.u32 %v6844, %v6631
      %v6846 = vsel %vm385, %v6841, %v6845
      %v6847 = vrot.slane %v6637, 7
      %v6848 = vor.u32 %v6847, %v6640
      %v6849 = vsel %vm385, %v6844, %v6848
      %v6851 = vshrl.u32 %v6807, 16
      %v6853 = vrot.slane %v6851, 7
      %v6854 = vshll.u32 %v6807, 16
      %v6856 = vor.u32 %v6853, %v6854
      %v6857 = vsel %vm385, %v6847, %v6856
      %v6882 = vunpack.c.l.b16 %v6809
      %v6883 = vunpack.c.l.b16 %v6810
      %v6884 = vunpack.c.l.b16 %v6811
      %v6885 = vunpack.c.l.b16 %v6812
      %v6886 = vunpack.c.l.b16 %v6813
      %v6887 = vunpack.c.l.b16 %v6814
      %v6888 = vunpack.c.l.b16 %v6815
      %v6889 = vunpack.c.l.b16 %v6816
      %v6890 = vunpack.c.l.b16 %v6817
      %v6891 = vunpack.c.l.b16 %v6818
      %v6892 = vunpack.c.l.b16 %v6819
      %v6893 = vunpack.c.l.b16 %v6820
      %v6894 = vunpack.c.l.b16 %v6821
      %v6895 = vunpack.c.l.b16 %v6822
      %v6896 = vunpack.c.l.b16 %v6823
      %v6897 = vunpack.c.l.b16 %v6824
      %v6898 = vpack.c.b16 %v6883, %v6882
      %v6899 = vpack.c.b16 %v6885, %v6884
      %v6900 = vpack.c.b16 %v6887, %v6886
      %v6901 = vpack.c.b16 %v6889, %v6888
      %v6902 = vpack.c.b16 %v6891, %v6890
      %v6903 = vpack.c.b16 %v6893, %v6892
      %v6904 = vpack.c.b16 %v6895, %v6894
      %v6905 = vpack.c.b16 %v6897, %v6896
      %6914 = vmatprep.subr.bf16.mxu0 0
      %6915 = vmatpush1.bf16.msra.mxu0 %v6898
      %6916 = vmatprep.subr.bf16.mxu0 0
      %6917 = vmatpush1.bf16.msra.mxu0 %v6899
      %6918 = vmatprep.subr.bf16.mxu0 0
      %6919 = vmatpush1.bf16.msra.mxu0 %v6900
      %6920 = vmatprep.subr.bf16.mxu0 0
      %6921 = vmatpush1.bf16.msra.mxu0 %v6901
      %6922 = vmatprep.subr.bf16.mxu0 0
      %6923 = vmatpush1.bf16.msra.mxu0 %v6902
      %6924 = vmatprep.subr.bf16.mxu0 0
      %6925 = vmatpush1.bf16.msra.mxu0 %v6903
      %6926 = vmatprep.subr.bf16.mxu0 0
      %6927 = vmatpush1.bf16.msra.mxu0 %v6904
      %6928 = vmatprep.subr.bf16.mxu0 0
      %6929 = vmatpush1.bf16.msra.mxu0 %v6905
      %6930 = vmatprep.subr.bf16.mxu0 0
      %6931 = vmatpush1.bf16.msra.mxu0 0
      %6932 = vmatprep.subr.bf16.mxu0 0
      %6933 = vmatpush1.bf16.msra.mxu0 0
      %6934 = vmatprep.subr.bf16.mxu0 0
      %6935 = vmatpush1.bf16.msra.mxu0 0
      %6936 = vmatprep.subr.bf16.mxu0 0
      %6937 = vmatpush1.bf16.msra.mxu0 0
      %6938 = vmatprep.subr.bf16.mxu0 0
      %6939 = vmatpush1.bf16.msra.mxu0 0
      %6940 = vmatprep.subr.bf16.mxu0 0
      %6941 = vmatpush1.bf16.msra.mxu0 0
      %6942 = vmatprep.subr.bf16.mxu0 0
      %6943 = vmatpush1.bf16.msra.mxu0 0
      %6944 = vmatprep.subr.bf16.mxu0 0
      %6945 = vmatpush1.bf16.msra.mxu0 0
      %6946 = vmatprep.mubr.bf16.mxu0 0
      %6947 = vmatmul.mubr.bf16.gmra.mrb[0].mxu0 %v6831
      %v6948 = vpop.f32.mrb[0].mxu0
      %v6949 = vadd.f32 0.0, %v6948
      %v6950 = vpop.f32.mrb[0].mxu0
      %v6951 = vpop.f32.mrb[0].mxu0
      %v6952 = vadd.f32 0.0, %v6951
      %v6953 = vpop.f32.mrb[0].mxu0
      %6954 = vmatprep.mubr.bf16.mxu0 0
      %6955 = vmatmul.mubr.bf16.gmra.mrb[0].mxu0 %v6834
      %v6956 = vpop.f32.mrb[0].mxu0
      %v6957 = vadd.f32 0.0, %v6956
      %v6958 = vpop.f32.mrb[0].mxu0
      %v6959 = vpop.f32.mrb[0].mxu0
      %v6960 = vadd.f32 0.0, %v6959
      %v6961 = vpop.f32.mrb[0].mxu0
      %6962 = vmatprep.mubr.bf16.mxu0 0
      %6963 = vmatmul.mubr.bf16.gmra.mrb[0].mxu0 %v6837
      %v6964 = vpop.f32.mrb[0].mxu0
      %v6965 = vadd.f32 0.0, %v6964
      %v6966 = vpop.f32.mrb[0].mxu0
      %v6967 = vpop.f32.mrb[0].mxu0
      %v6968 = vadd.f32 0.0, %v6967
      %v6969 = vpop.f32.mrb[0].mxu0
      %6970 = vmatprep.mubr.bf16.mxu0 0
      %6971 = vmatmul.mubr.bf16.gmra.mrb[0].mxu0 %v6840
      %v6972 = vpop.f32.mrb[0].mxu0
      %v6973 = vadd.f32 0.0, %v6972
      %v6974 = vpop.f32.mrb[0].mxu0
      %v6975 = vpop.f32.mrb[0].mxu0
      %v6976 = vadd.f32 0.0, %v6975
      %v6977 = vpop.f32.mrb[0].mxu0
      %6978 = vmatprep.mubr.bf16.mxu0 0
      %6979 = vmatmul.mubr.bf16.gmra.mrb[0].mxu0 %v6843
      %v6980 = vpop.f32.mrb[0].mxu0
      %v6981 = vadd.f32 0.0, %v6980
      %v6982 = vpop.f32.mrb[0].mxu0
      %v6983 = vpop.f32.mrb[0].mxu0
      %v6984 = vadd.f32 0.0, %v6983
      %v6985 = vpop.f32.mrb[0].mxu0
      %6986 = vmatprep.mubr.bf16.mxu0 0
      %6987 = vmatmul.mubr.bf16.gmra.mrb[0].mxu0 %v6846
      %v6988 = vpop.f32.mrb[0].mxu0
      %v6989 = vadd.f32 0.0, %v6988
      %v6990 = vpop.f32.mrb[0].mxu0
      %v6991 = vpop.f32.mrb[0].mxu0
      %v6992 = vadd.f32 0.0, %v6991
      %v6993 = vpop.f32.mrb[0].mxu0
      %6994 = vmatprep.mubr.bf16.mxu0 0
      %6995 = vmatmul.mubr.bf16.gmra.mrb[0].mxu0 %v6849
      %v6996 = vpop.f32.mrb[0].mxu0
      %v6997 = vadd.f32 0.0, %v6996
      %v6998 = vpop.f32.mrb[0].mxu0
      %v6999 = vpop.f32.mrb[0].mxu0
      %v7000 = vadd.f32 0.0, %v6999
      %v7001 = vpop.f32.mrb[0].mxu0
      %7002 = vmatprep.mubr.bf16.mxu0 0
      %7003 = vmatmul.mubr.bf16.gmra.mrb[0].mxu0 %v6857
      %v7004 = vpop.f32.mrb[0].mxu0
      %v7005 = vadd.f32 0.0, %v7004
      %v7006 = vpop.f32.mrb[0].mxu0
      %v7007 = vpop.f32.mrb[0].mxu0
      %v7008 = vadd.f32 0.0, %v7007
      %v7009 = vpop.f32.mrb[0].mxu0
      %7010 = vdwg.mxu0
      %v7011 = vadd.f32 %v6745, %v6949
      %v7012 = vadd.f32 %v6748, %v6952
      %v7013 = vadd.f32 %v6753, %v6957
      %v7014 = vadd.f32 %v6756, %v6960
      %v7015 = vadd.f32 %v6761, %v6965
      %v7016 = vadd.f32 %v6764, %v6968
      %v7017 = vadd.f32 %v6769, %v6973
      %v7018 = vadd.f32 %v6772, %v6976
      %v7019 = vadd.f32 %v6777, %v6981
      %v7020 = vadd.f32 %v6780, %v6984
      %v7021 = vadd.f32 %v6785, %v6989
      %v7022 = vadd.f32 %v6788, %v6992
      %v7023 = vadd.f32 %v6793, %v6997
      %v7024 = vadd.f32 %v6796, %v7000
      %v7025 = vadd.f32 %v6801, %v7005
      %v7026 = vadd.f32 %v6804, %v7008
      %v7027 = vld [vmem:[#allocation3 + $0x8] sm:$0x80]
      %v7028 = vld [vmem:[#allocation3 + $0x10] sm:$0xff]
      %v7029 = vld [vmem:[#allocation3 + $0x18] sm:$0xff]
      %v7030 = vld [vmem:[#allocation3 + $0x20] sm:$0xff]
      %v7031 = vld [vmem:[#allocation3 + $0x28] sm:$0xff]
      %v7032 = vld [vmem:[#allocation3 + $0x30] sm:$0xff]
      %v7033 = vld [vmem:[#allocation3 + $0x38] sm:$0xff]
      %v7034 = vld [vmem:[#allocation3 + $0x40] sm:$0xff]
      %v7035 = vld [vmem:[#allocation3 + $0x48] sm:$0xff]
      %s7036 = scalar_lea.vmem %s3, 192
      %v7037 = vld [vmem:[%s7036] sm:$0xf]
      %v7038 = vld [vmem:[%s7036 + $0x4] sm:$0xf]
      %v7039 = vld [vmem:[%s7036 + $0x8] sm:$0xf]
      %v7040 = vld [vmem:[%s7036 + $0xc] sm:$0xf]
      %v7041 = vld [vmem:[%s7036 + $0x10] sm:$0xf]
      %v7042 = vld [vmem:[%s7036 + $0x14] sm:$0xf]
      %v7043 = vld [vmem:[%s7036 + $0x18] sm:$0xf]
      %v7044 = vld [vmem:[%s7036 + $0x1c] sm:$0xf]
      %v7045 = vld [vmem:[%s7036 + $0x20] sm:$0xf]
      %v7046 = vld [vmem:[%s7036 + $0x24] sm:$0xf]
      %v7047 = vld [vmem:[%s7036 + $0x28] sm:$0xf]
      %v7048 = vld [vmem:[%s7036 + $0x2c] sm:$0xf]
      %v7049 = vld [vmem:[%s7036 + $0x30] sm:$0xf]
      %v7050 = vld [vmem:[%s7036 + $0x34] sm:$0xf]
      %v7051 = vld [vmem:[%s7036 + $0x38] sm:$0xf]
      %v7052 = vld [vmem:[%s7036 + $0x3c] sm:$0xf]
      %v7054 = vshrl.u32 %v7027, 16
      %v7056 = vrot.slane %v7054, 7
      %v7058 = vshrl.u32 %v7028, 16
      %v7060 = vrot.slane %v7058, 7
      %v7061 = vshll.u32 %v7028, 16
      %v7063 = vor.u32 %v7060, %v7061
      %v7064 = vsel %vm385, %v7056, %v7063
      %v7066 = vshrl.u32 %v7029, 16
      %v7068 = vrot.slane %v7066, 7
      %v7069 = vshll.u32 %v7029, 16
      %v7071 = vor.u32 %v7068, %v7069
      %v7072 = vsel %vm385, %v7060, %v7071
      %v7074 = vshrl.u32 %v7030, 16
      %v7076 = vrot.slane %v7074, 7
      %v7077 = vshll.u32 %v7030, 16
      %v7079 = vor.u32 %v7076, %v7077
      %v7080 = vsel %vm385, %v7068, %v7079
      %v7082 = vshrl.u32 %v7031, 16
      %v7084 = vrot.slane %v7082, 7
      %v7085 = vshll.u32 %v7031, 16
      %v7087 = vor.u32 %v7084, %v7085
      %v7088 = vsel %vm385, %v7076, %v7087
      %v7090 = vshrl.u32 %v7032, 16
      %v7092 = vrot.slane %v7090, 7
      %v7093 = vshll.u32 %v7032, 16
      %v7095 = vor.u32 %v7092, %v7093
      %v7096 = vsel %vm385, %v7084, %v7095
      %v7098 = vshrl.u32 %v7033, 16
      %v7100 = vrot.slane %v7098, 7
      %v7101 = vshll.u32 %v7033, 16
      %v7103 = vor.u32 %v7100, %v7101
      %v7104 = vsel %vm385, %v7092, %v7103
      %v7106 = vshrl.u32 %v7034, 16
      %v7108 = vrot.slane %v7106, 7
      %v7109 = vshll.u32 %v7034, 16
      %v7111 = vor.u32 %v7108, %v7109
      %v7112 = vsel %vm385, %v7100, %v7111
      %v7114 = vshrl.u32 %v7035, 16
      %v7116 = vrot.slane %v7114, 7
      %v7117 = vshll.u32 %v7035, 16
      %v7119 = vor.u32 %v7116, %v7117
      %v7120 = vsel %vm385, %v7108, %v7119
      %v7145 = vunpack.c.l.b16 %v7037
      %v7146 = vunpack.c.l.b16 %v7038
      %v7147 = vunpack.c.l.b16 %v7039
      %v7148 = vunpack.c.l.b16 %v7040
      %v7149 = vunpack.c.l.b16 %v7041
      %v7150 = vunpack.c.l.b16 %v7042
      %v7151 = vunpack.c.l.b16 %v7043
      %v7152 = vunpack.c.l.b16 %v7044
      %v7153 = vunpack.c.l.b16 %v7045
      %v7154 = vunpack.c.l.b16 %v7046
      %v7155 = vunpack.c.l.b16 %v7047
      %v7156 = vunpack.c.l.b16 %v7048
      %v7157 = vunpack.c.l.b16 %v7049
      %v7158 = vunpack.c.l.b16 %v7050
      %v7159 = vunpack.c.l.b16 %v7051
      %v7160 = vunpack.c.l.b16 %v7052
      %v7161 = vpack.c.b16 %v7146, %v7145
      %v7162 = vpack.c.b16 %v7148, %v7147
      %v7163 = vpack.c.b16 %v7150, %v7149
      %v7164 = vpack.c.b16 %v7152, %v7151
      %v7165 = vpack.c.b16 %v7154, %v7153
      %v7166 = vpack.c.b16 %v7156, %v7155
      %v7167 = vpack.c.b16 %v7158, %v7157
      %v7168 = vpack.c.b16 %v7160, %v7159
      %7177 = vmatprep.subr.bf16.mxu0 0
      %7178 = vmatpush1.bf16.msra.mxu0 %v7161
      %7179 = vmatprep.subr.bf16.mxu0 0
      %7180 = vmatpush1.bf16.msra.mxu0 %v7162
      %7181 = vmatprep.subr.bf16.mxu0 0
      %7182 = vmatpush1.bf16.msra.mxu0 %v7163
      %7183 = vmatprep.subr.bf16.mxu0 0
      %7184 = vmatpush1.bf16.msra.mxu0 %v7164
      %7185 = vmatprep.subr.bf16.mxu0 0
      %7186 = vmatpush1.bf16.msra.mxu0 %v7165
      %7187 = vmatprep.subr.bf16.mxu0 0
      %7188 = vmatpush1.bf16.msra.mxu0 %v7166
      %7189 = vmatprep.subr.bf16.mxu0 0
      %7190 = vmatpush1.bf16.msra.mxu0 %v7167
      %7191 = vmatprep.subr.bf16.mxu0 0
      %7192 = vmatpush1.bf16.msra.mxu0 %v7168
      %7193 = vmatprep.subr.bf16.mxu0 0
      %7194 = vmatpush1.bf16.msra.mxu0 0
      %7195 = vmatprep.subr.bf16.mxu0 0
      %7196 = vmatpush1.bf16.msra.mxu0 0
      %7197 = vmatprep.subr.bf16.mxu0 0
      %7198 = vmatpush1.bf16.msra.mxu0 0
      %7199 = vmatprep.subr.bf16.mxu0 0
      %7200 = vmatpush1.bf16.msra.mxu0 0
      %7201 = vmatprep.subr.bf16.mxu0 0
      %7202 = vmatpush1.bf16.msra.mxu0 0
      %7203 = vmatprep.subr.bf16.mxu0 0
      %7204 = vmatpush1.bf16.msra.mxu0 0
      %7205 = vmatprep.subr.bf16.mxu0 0
      %7206 = vmatpush1.bf16.msra.mxu0 0
      %7207 = vmatprep.subr.bf16.mxu0 0
      %7208 = vmatpush1.bf16.msra.mxu0 0
      %7209 = vmatprep.mubr.bf16.mxu0 0
      %7210 = vmatmul.mubr.bf16.gmra.mrb[0].mxu0 %v7064
      %v7211 = vpop.f32.mrb[0].mxu0
      %v7212 = vadd.f32 0.0, %v7211
      %v7213 = vpop.f32.mrb[0].mxu0
      %v7214 = vpop.f32.mrb[0].mxu0
      %v7215 = vadd.f32 0.0, %v7214
      %v7216 = vpop.f32.mrb[0].mxu0
      %7217 = vmatprep.mubr.bf16.mxu0 0
      %7218 = vmatmul.mubr.bf16.gmra.mrb[0].mxu0 %v7072
      %v7219 = vpop.f32.mrb[0].mxu0
      %v7220 = vadd.f32 0.0, %v7219
      %v7221 = vpop.f32.mrb[0].mxu0
      %v7222 = vpop.f32.mrb[0].mxu0
      %v7223 = vadd.f32 0.0, %v7222
      %v7224 = vpop.f32.mrb[0].mxu0
      %7225 = vmatprep.mubr.bf16.mxu0 0
      %7226 = vmatmul.mubr.bf16.gmra.mrb[0].mxu0 %v7080
      %v7227 = vpop.f32.mrb[0].mxu0
      %v7228 = vadd.f32 0.0, %v7227
      %v7229 = vpop.f32.mrb[0].mxu0
      %v7230 = vpop.f32.mrb[0].mxu0
      %v7231 = vadd.f32 0.0, %v7230
      %v7232 = vpop.f32.mrb[0].mxu0
      %7233 = vmatprep.mubr.bf16.mxu0 0
      %7234 = vmatmul.mubr.bf16.gmra.mrb[0].mxu0 %v7088
      %v7235 = vpop.f32.mrb[0].mxu0
      %v7236 = vadd.f32 0.0, %v7235
      %v7237 = vpop.f32.mrb[0].mxu0
      %v7238 = vpop.f32.mrb[0].mxu0
      %v7239 = vadd.f32 0.0, %v7238
      %v7240 = vpop.f32.mrb[0].mxu0
      %7241 = vmatprep.mubr.bf16.mxu0 0
      %7242 = vmatmul.mubr.bf16.gmra.mrb[0].mxu0 %v7096
      %v7243 = vpop.f32.mrb[0].mxu0
      %v7244 = vadd.f32 0.0, %v7243
      %v7245 = vpop.f32.mrb[0].mxu0
      %v7246 = vpop.f32.mrb[0].mxu0
      %v7247 = vadd.f32 0.0, %v7246
      %v7248 = vpop.f32.mrb[0].mxu0
      %7249 = vmatprep.mubr.bf16.mxu0 0
      %7250 = vmatmul.mubr.bf16.gmra.mrb[0].mxu0 %v7104
      %v7251 = vpop.f32.mrb[0].mxu0
      %v7252 = vadd.f32 0.0, %v7251
      %v7253 = vpop.f32.mrb[0].mxu0
      %v7254 = vpop.f32.mrb[0].mxu0
      %v7255 = vadd.f32 0.0, %v7254
      %v7256 = vpop.f32.mrb[0].mxu0
      %7257 = vmatprep.mubr.bf16.mxu0 0
      %7258 = vmatmul.mubr.bf16.gmra.mrb[0].mxu0 %v7112
      %v7259 = vpop.f32.mrb[0].mxu0
      %v7260 = vadd.f32 0.0, %v7259
      %v7261 = vpop.f32.mrb[0].mxu0
      %v7262 = vpop.f32.mrb[0].mxu0
      %v7263 = vadd.f32 0.0, %v7262
      %v7264 = vpop.f32.mrb[0].mxu0
      %7265 = vmatprep.mubr.bf16.mxu0 0
      %7266 = vmatmul.mubr.bf16.gmra.mrb[0].mxu0 %v7120
      %v7267 = vpop.f32.mrb[0].mxu0
      %v7268 = vadd.f32 0.0, %v7267
      %v7269 = vpop.f32.mrb[0].mxu0
      %v7270 = vpop.f32.mrb[0].mxu0
      %v7271 = vadd.f32 0.0, %v7270
      %v7272 = vpop.f32.mrb[0].mxu0
      %7273 = vdwg.mxu0
      %v7274 = vadd.f32 %v7011, %v7212
      %v7275 = vadd.f32 %v7012, %v7215
      %v7276 = vadd.f32 %v7013, %v7220
      %v7277 = vadd.f32 %v7014, %v7223
      %v7278 = vadd.f32 %v7015, %v7228
      %v7279 = vadd.f32 %v7016, %v7231
      %v7280 = vadd.f32 %v7017, %v7236
      %v7281 = vadd.f32 %v7018, %v7239
      %v7282 = vadd.f32 %v7019, %v7244
      %v7283 = vadd.f32 %v7020, %v7247
      %v7284 = vadd.f32 %v7021, %v7252
      %v7285 = vadd.f32 %v7022, %v7255
      %v7286 = vadd.f32 %v7023, %v7260
      %v7287 = vadd.f32 %v7024, %v7263
      %v7288 = vadd.f32 %v7025, %v7268
      %v7289 = vadd.f32 %v7026, %v7271
      %s7290 = scalar_lea.vmem %s3, 256
      %v7291 = vld [vmem:[%s7290] sm:$0xf]
      %v7292 = vld [vmem:[%s7290 + $0x4] sm:$0xf]
      %v7293 = vld [vmem:[%s7290 + $0x8] sm:$0xf]
      %v7294 = vld [vmem:[%s7290 + $0xc] sm:$0xf]
      %v7295 = vld [vmem:[%s7290 + $0x10] sm:$0xf]
      %v7296 = vld [vmem:[%s7290 + $0x14] sm:$0xf]
      %v7297 = vld [vmem:[%s7290 + $0x18] sm:$0xf]
      %v7298 = vld [vmem:[%s7290 + $0x1c] sm:$0xf]
      %v7299 = vld [vmem:[%s7290 + $0x20] sm:$0xf]
      %v7300 = vld [vmem:[%s7290 + $0x24] sm:$0xf]
      %v7301 = vld [vmem:[%s7290 + $0x28] sm:$0xf]
      %v7302 = vld [vmem:[%s7290 + $0x2c] sm:$0xf]
      %v7303 = vld [vmem:[%s7290 + $0x30] sm:$0xf]
      %v7304 = vld [vmem:[%s7290 + $0x34] sm:$0xf]
      %v7305 = vld [vmem:[%s7290 + $0x38] sm:$0xf]
      %v7306 = vld [vmem:[%s7290 + $0x3c] sm:$0xf]
      %v7323 = vunpack.c.l.b16 %v7291
      %v7324 = vunpack.c.l.b16 %v7292
      %v7325 = vunpack.c.l.b16 %v7293
      %v7326 = vunpack.c.l.b16 %v7294
      %v7327 = vunpack.c.l.b16 %v7295
      %v7328 = vunpack.c.l.b16 %v7296
      %v7329 = vunpack.c.l.b16 %v7297
      %v7330 = vunpack.c.l.b16 %v7298
      %v7331 = vunpack.c.l.b16 %v7299
      %v7332 = vunpack.c.l.b16 %v7300
      %v7333 = vunpack.c.l.b16 %v7301
      %v7334 = vunpack.c.l.b16 %v7302
      %v7335 = vunpack.c.l.b16 %v7303
      %v7336 = vunpack.c.l.b16 %v7304
      %v7337 = vunpack.c.l.b16 %v7305
      %v7338 = vunpack.c.l.b16 %v7306
      %v7339 = vpack.c.b16 %v7324, %v7323
      %v7340 = vpack.c.b16 %v7326, %v7325
      %v7341 = vpack.c.b16 %v7328, %v7327
      %v7342 = vpack.c.b16 %v7330, %v7329
      %v7343 = vpack.c.b16 %v7332, %v7331
      %v7344 = vpack.c.b16 %v7334, %v7333
      %v7345 = vpack.c.b16 %v7336, %v7335
      %v7346 = vpack.c.b16 %v7338, %v7337
      %7355 = vmatprep.subr.bf16.mxu0 0
      %7356 = vmatpush1.bf16.msra.mxu0 %v7339
      %7357 = vmatprep.subr.bf16.mxu0 0
      %7358 = vmatpush1.bf16.msra.mxu0 %v7340
      %7359 = vmatprep.subr.bf16.mxu0 0
      %7360 = vmatpush1.bf16.msra.mxu0 %v7341
      %7361 = vmatprep.subr.bf16.mxu0 0
      %7362 = vmatpush1.bf16.msra.mxu0 %v7342
      %7363 = vmatprep.subr.bf16.mxu0 0
      %7364 = vmatpush1.bf16.msra.mxu0 %v7343
      %7365 = vmatprep.subr.bf16.mxu0 0
      %7366 = vmatpush1.bf16.msra.mxu0 %v7344
      %7367 = vmatprep.subr.bf16.mxu0 0
      %7368 = vmatpush1.bf16.msra.mxu0 %v7345
      %7369 = vmatprep.subr.bf16.mxu0 0
      %7370 = vmatpush1.bf16.msra.mxu0 %v7346
      %7371 = vmatprep.subr.bf16.mxu0 0
      %7372 = vmatpush1.bf16.msra.mxu0 0
      %7373 = vmatprep.subr.bf16.mxu0 0
      %7374 = vmatpush1.bf16.msra.mxu0 0
      %7375 = vmatprep.subr.bf16.mxu0 0
      %7376 = vmatpush1.bf16.msra.mxu0 0
      %7377 = vmatprep.subr.bf16.mxu0 0
      %7378 = vmatpush1.bf16.msra.mxu0 0
      %7379 = vmatprep.subr.bf16.mxu0 0
      %7380 = vmatpush1.bf16.msra.mxu0 0
      %7381 = vmatprep.subr.bf16.mxu0 0
      %7382 = vmatpush1.bf16.msra.mxu0 0
      %7383 = vmatprep.subr.bf16.mxu0 0
      %7384 = vmatpush1.bf16.msra.mxu0 0
      %7385 = vmatprep.subr.bf16.mxu0 0
      %7386 = vmatpush1.bf16.msra.mxu0 0
      %7387 = vmatprep.mubr.bf16.mxu0 0
      %7388 = vmatmul.mubr.bf16.gmra.mrb[0].mxu0 %v7028
      %v7389 = vpop.f32.mrb[0].mxu0
      %v7390 = vadd.f32 0.0, %v7389
      %v7391 = vpop.f32.mrb[0].mxu0
      %v7392 = vpop.f32.mrb[0].mxu0
      %v7393 = vadd.f32 0.0, %v7392
      %v7394 = vpop.f32.mrb[0].mxu0
      %7395 = vmatprep.mubr.bf16.mxu0 0
      %7396 = vmatmul.mubr.bf16.gmra.mrb[0].mxu0 %v7029
      %v7397 = vpop.f32.mrb[0].mxu0
      %v7398 = vadd.f32 0.0, %v7397
      %v7399 = vpop.f32.mrb[0].mxu0
      %v7400 = vpop.f32.mrb[0].mxu0
      %v7401 = vadd.f32 0.0, %v7400
      %v7402 = vpop.f32.mrb[0].mxu0
      %7403 = vmatprep.mubr.bf16.mxu0 0
      %7404 = vmatmul.mubr.bf16.gmra.mrb[0].mxu0 %v7030
      %v7405 = vpop.f32.mrb[0].mxu0
      %v7406 = vadd.f32 0.0, %v7405
      %v7407 = vpop.f32.mrb[0].mxu0
      %v7408 = vpop.f32.mrb[0].mxu0
      %v7409 = vadd.f32 0.0, %v7408
      %v7410 = vpop.f32.mrb[0].mxu0
      %7411 = vmatprep.mubr.bf16.mxu0 0
      %7412 = vmatmul.mubr.bf16.gmra.mrb[0].mxu0 %v7031
      %v7413 = vpop.f32.mrb[0].mxu0
      %v7414 = vadd.f32 0.0, %v7413
      %v7415 = vpop.f32.mrb[0].mxu0
      %v7416 = vpop.f32.mrb[0].mxu0
      %v7417 = vadd.f32 0.0, %v7416
      %v7418 = vpop.f32.mrb[0].mxu0
      %7419 = vmatprep.mubr.bf16.mxu0 0
      %7420 = vmatmul.mubr.bf16.gmra.mrb[0].mxu0 %v7032
      %v7421 = vpop.f32.mrb[0].mxu0
      %v7422 = vadd.f32 0.0, %v7421
      %v7423 = vpop.f32.mrb[0].mxu0
      %v7424 = vpop.f32.mrb[0].mxu0
      %v7425 = vadd.f32 0.0, %v7424
      %v7426 = vpop.f32.mrb[0].mxu0
      %7427 = vmatprep.mubr.bf16.mxu0 0
      %7428 = vmatmul.mubr.bf16.gmra.mrb[0].mxu0 %v7033
      %v7429 = vpop.f32.mrb[0].mxu0
      %v7430 = vadd.f32 0.0, %v7429
      %v7431 = vpop.f32.mrb[0].mxu0
      %v7432 = vpop.f32.mrb[0].mxu0
      %v7433 = vadd.f32 0.0, %v7432
      %v7434 = vpop.f32.mrb[0].mxu0
      %7435 = vmatprep.mubr.bf16.mxu0 0
      %7436 = vmatmul.mubr.bf16.gmra.mrb[0].mxu0 %v7034
      %v7437 = vpop.f32.mrb[0].mxu0
      %v7438 = vadd.f32 0.0, %v7437
      %v7439 = vpop.f32.mrb[0].mxu0
      %v7440 = vpop.f32.mrb[0].mxu0
      %v7441 = vadd.f32 0.0, %v7440
      %v7442 = vpop.f32.mrb[0].mxu0
      %7443 = vmatprep.mubr.bf16.mxu0 0
      %7444 = vmatmul.mubr.bf16.gmra.mrb[0].mxu0 %v7035
      %v7445 = vpop.f32.mrb[0].mxu0
      %v7446 = vadd.f32 0.0, %v7445
      %v7447 = vpop.f32.mrb[0].mxu0
      %v7448 = vpop.f32.mrb[0].mxu0
      %v7449 = vadd.f32 0.0, %v7448
      %v7450 = vpop.f32.mrb[0].mxu0
      %7451 = vdwg.mxu0
      %v7452 = vadd.f32 %v7274, %v7390
      %v7453 = vadd.f32 %v7275, %v7393
      %v7454 = vadd.f32 %v7276, %v7398
      %v7455 = vadd.f32 %v7277, %v7401
      %v7456 = vadd.f32 %v7278, %v7406
      %v7457 = vadd.f32 %v7279, %v7409
      %v7458 = vadd.f32 %v7280, %v7414
      %v7459 = vadd.f32 %v7281, %v7417
      %v7460 = vadd.f32 %v7282, %v7422
      %v7461 = vadd.f32 %v7283, %v7425
      %v7462 = vadd.f32 %v7284, %v7430
      %v7463 = vadd.f32 %v7285, %v7433
      %v7464 = vadd.f32 %v7286, %v7438
      %v7465 = vadd.f32 %v7287, %v7441
      %v7466 = vadd.f32 %v7288, %v7446
      %v7467 = vadd.f32 %v7289, %v7449
      %v7468 = vld [vmem:[#allocation3 + $0x10] sm:$0xff]
      %v7469 = vld [vmem:[#allocation3 + $0x18] sm:$0xff]
      %v7470 = vld [vmem:[#allocation3 + $0x20] sm:$0xff]
      %v7471 = vld [vmem:[#allocation3 + $0x28] sm:$0xff]
      %v7472 = vld [vmem:[#allocation3 + $0x30] sm:$0xff]
      %v7473 = vld [vmem:[#allocation3 + $0x38] sm:$0xff]
      %v7474 = vld [vmem:[#allocation3 + $0x40] sm:$0xff]
      %v7475 = vld [vmem:[#allocation3 + $0x48] sm:$0xff]
      %v7476 = vld [vmem:[#allocation3 + $0x50] sm:$0x1]
      %s7477 = scalar_lea.vmem %s3, 320
      %v7478 = vld [vmem:[%s7477] sm:$0xf]
      %v7479 = vld [vmem:[%s7477 + $0x4] sm:$0xf]
      %v7480 = vld [vmem:[%s7477 + $0x8] sm:$0xf]
      %v7481 = vld [vmem:[%s7477 + $0xc] sm:$0xf]
      %v7482 = vld [vmem:[%s7477 + $0x10] sm:$0xf]
      %v7483 = vld [vmem:[%s7477 + $0x14] sm:$0xf]
      %v7484 = vld [vmem:[%s7477 + $0x18] sm:$0xf]
      %v7485 = vld [vmem:[%s7477 + $0x1c] sm:$0xf]
      %v7486 = vld [vmem:[%s7477 + $0x20] sm:$0xf]
      %v7487 = vld [vmem:[%s7477 + $0x24] sm:$0xf]
      %v7488 = vld [vmem:[%s7477 + $0x28] sm:$0xf]
      %v7489 = vld [vmem:[%s7477 + $0x2c] sm:$0xf]
      %v7490 = vld [vmem:[%s7477 + $0x30] sm:$0xf]
      %v7491 = vld [vmem:[%s7477 + $0x34] sm:$0xf]
      %v7492 = vld [vmem:[%s7477 + $0x38] sm:$0xf]
      %v7493 = vld [vmem:[%s7477 + $0x3c] sm:$0xf]
      %v7495 = vshrl.u32 %v7468, 16
      %v7497 = vshll.u32 %v7468, 16
      %v7499 = vrot.slane %v7497, 1
      %v7500 = vor.u32 %v7495, %v7499
      %v7502 = vshll.u32 %v7469, 16
      %v7504 = vrot.slane %v7502, 1
      %v7505 = vsel %vm1177, %v7500, %v7504
      %v7506 = vshrl.u32 %v7469, 16
      %v7508 = vor.u32 %v7506, %v7504
      %v7510 = vshll.u32 %v7470, 16
      %v7512 = vrot.slane %v7510, 1
      %v7513 = vsel %vm1177, %v7508, %v7512
      %v7514 = vshrl.u32 %v7470, 16
      %v7516 = vor.u32 %v7514, %v7512
      %v7518 = vshll.u32 %v7471, 16
      %v7520 = vrot.slane %v7518, 1
      %v7521 = vsel %vm1177, %v7516, %v7520
      %v7522 = vshrl.u32 %v7471, 16
      %v7524 = vor.u32 %v7522, %v7520
      %v7526 = vshll.u32 %v7472, 16
      %v7528 = vrot.slane %v7526, 1
      %v7529 = vsel %vm1177, %v7524, %v7528
      %v7530 = vshrl.u32 %v7472, 16
      %v7532 = vor.u32 %v7530, %v7528
      %v7534 = vshll.u32 %v7473, 16
      %v7536 = vrot.slane %v7534, 1
      %v7537 = vsel %vm1177, %v7532, %v7536
      %v7538 = vshrl.u32 %v7473, 16
      %v7540 = vor.u32 %v7538, %v7536
      %v7542 = vshll.u32 %v7474, 16
      %v7544 = vrot.slane %v7542, 1
      %v7545 = vsel %vm1177, %v7540, %v7544
      %v7546 = vshrl.u32 %v7474, 16
      %v7548 = vor.u32 %v7546, %v7544
      %v7550 = vshll.u32 %v7475, 16
      %v7552 = vrot.slane %v7550, 1
      %v7553 = vsel %vm1177, %v7548, %v7552
      %v7554 = vshrl.u32 %v7475, 16
      %v7556 = vor.u32 %v7554, %v7552
      %v7558 = vshll.u32 %v7476, 16
      %v7560 = vrot.slane %v7558, 1
      %v7561 = vsel %vm1177, %v7556, %v7560
      %v7586 = vunpack.c.l.b16 %v7478
      %v7587 = vunpack.c.l.b16 %v7479
      %v7588 = vunpack.c.l.b16 %v7480
      %v7589 = vunpack.c.l.b16 %v7481
      %v7590 = vunpack.c.l.b16 %v7482
      %v7591 = vunpack.c.l.b16 %v7483
      %v7592 = vunpack.c.l.b16 %v7484
      %v7593 = vunpack.c.l.b16 %v7485
      %v7594 = vunpack.c.l.b16 %v7486
      %v7595 = vunpack.c.l.b16 %v7487
      %v7596 = vunpack.c.l.b16 %v7488
      %v7597 = vunpack.c.l.b16 %v7489
      %v7598 = vunpack.c.l.b16 %v7490
      %v7599 = vunpack.c.l.b16 %v7491
      %v7600 = vunpack.c.l.b16 %v7492
      %v7601 = vunpack.c.l.b16 %v7493
      %v7602 = vpack.c.b16 %v7587, %v7586
      %v7603 = vpack.c.b16 %v7589, %v7588
      %v7604 = vpack.c.b16 %v7591, %v7590
      %v7605 = vpack.c.b16 %v7593, %v7592
      %v7606 = vpack.c.b16 %v7595, %v7594
      %v7607 = vpack.c.b16 %v7597, %v7596
      %v7608 = vpack.c.b16 %v7599, %v7598
      %v7609 = vpack.c.b16 %v7601, %v7600
      %7618 = vmatprep.subr.bf16.mxu0 0
      %7619 = vmatpush1.bf16.msra.mxu0 %v7602
      %7620 = vmatprep.subr.bf16.mxu0 0
      %7621 = vmatpush1.bf16.msra.mxu0 %v7603
      %7622 = vmatprep.subr.bf16.mxu0 0
      %7623 = vmatpush1.bf16.msra.mxu0 %v7604
      %7624 = vmatprep.subr.bf16.mxu0 0
      %7625 = vmatpush1.bf16.msra.mxu0 %v7605
      %7626 = vmatprep.subr.bf16.mxu0 0
      %7627 = vmatpush1.bf16.msra.mxu0 %v7606
      %7628 = vmatprep.subr.bf16.mxu0 0
      %7629 = vmatpush1.bf16.msra.mxu0 %v7607
      %7630 = vmatprep.subr.bf16.mxu0 0
      %7631 = vmatpush1.bf16.msra.mxu0 %v7608
      %7632 = vmatprep.subr.bf16.mxu0 0
      %7633 = vmatpush1.bf16.msra.mxu0 %v7609
      %7634 = vmatprep.subr.bf16.mxu0 0
      %7635 = vmatpush1.bf16.msra.mxu0 0
      %7636 = vmatprep.subr.bf16.mxu0 0
      %7637 = vmatpush1.bf16.msra.mxu0 0
      %7638 = vmatprep.subr.bf16.mxu0 0
      %7639 = vmatpush1.bf16.msra.mxu0 0
      %7640 = vmatprep.subr.bf16.mxu0 0
      %7641 = vmatpush1.bf16.msra.mxu0 0
      %7642 = vmatprep.subr.bf16.mxu0 0
      %7643 = vmatpush1.bf16.msra.mxu0 0
      %7644 = vmatprep.subr.bf16.mxu0 0
      %7645 = vmatpush1.bf16.msra.mxu0 0
      %7646 = vmatprep.subr.bf16.mxu0 0
      %7647 = vmatpush1.bf16.msra.mxu0 0
      %7648 = vmatprep.subr.bf16.mxu0 0
      %7649 = vmatpush1.bf16.msra.mxu0 0
      %7650 = vmatprep.mubr.bf16.mxu0 0
      %7651 = vmatmul.mubr.bf16.gmra.mrb[0].mxu0 %v7505
      %v7652 = vpop.f32.mrb[0].mxu0
      %v7653 = vadd.f32 0.0, %v7652
      %v7654 = vpop.f32.mrb[0].mxu0
      %v7655 = vpop.f32.mrb[0].mxu0
      %v7656 = vadd.f32 0.0, %v7655
      %v7657 = vpop.f32.mrb[0].mxu0
      %7658 = vmatprep.mubr.bf16.mxu0 0
      %7659 = vmatmul.mubr.bf16.gmra.mrb[0].mxu0 %v7513
      %v7660 = vpop.f32.mrb[0].mxu0
      %v7661 = vadd.f32 0.0, %v7660
      %v7662 = vpop.f32.mrb[0].mxu0
      %v7663 = vpop.f32.mrb[0].mxu0
      %v7664 = vadd.f32 0.0, %v7663
      %v7665 = vpop.f32.mrb[0].mxu0
      %7666 = vmatprep.mubr.bf16.mxu0 0
      %7667 = vmatmul.mubr.bf16.gmra.mrb[0].mxu0 %v7521
      %v7668 = vpop.f32.mrb[0].mxu0
      %v7669 = vadd.f32 0.0, %v7668
      %v7670 = vpop.f32.mrb[0].mxu0
      %v7671 = vpop.f32.mrb[0].mxu0
      %v7672 = vadd.f32 0.0, %v7671
      %v7673 = vpop.f32.mrb[0].mxu0
      %7674 = vmatprep.mubr.bf16.mxu0 0
      %7675 = vmatmul.mubr.bf16.gmra.mrb[0].mxu0 %v7529
      %v7676 = vpop.f32.mrb[0].mxu0
      %v7677 = vadd.f32 0.0, %v7676
      %v7678 = vpop.f32.mrb[0].mxu0
      %v7679 = vpop.f32.mrb[0].mxu0
      %v7680 = vadd.f32 0.0, %v7679
      %v7681 = vpop.f32.mrb[0].mxu0
      %7682 = vmatprep.mubr.bf16.mxu0 0
      %7683 = vmatmul.mubr.bf16.gmra.mrb[0].mxu0 %v7537
      %v7684 = vpop.f32.mrb[0].mxu0
      %v7685 = vadd.f32 0.0, %v7684
      %v7686 = vpop.f32.mrb[0].mxu0
      %v7687 = vpop.f32.mrb[0].mxu0
      %v7688 = vadd.f32 0.0, %v7687
      %v7689 = vpop.f32.mrb[0].mxu0
      %7690 = vmatprep.mubr.bf16.mxu0 0
      %7691 = vmatmul.mubr.bf16.gmra.mrb[0].mxu0 %v7545
      %v7692 = vpop.f32.mrb[0].mxu0
      %v7693 = vadd.f32 0.0, %v7692
      %v7694 = vpop.f32.mrb[0].mxu0
      %v7695 = vpop.f32.mrb[0].mxu0
      %v7696 = vadd.f32 0.0, %v7695
      %v7697 = vpop.f32.mrb[0].mxu0
      %7698 = vmatprep.mubr.bf16.mxu0 0
      %7699 = vmatmul.mubr.bf16.gmra.mrb[0].mxu0 %v7553
      %v7700 = vpop.f32.mrb[0].mxu0
      %v7701 = vadd.f32 0.0, %v7700
      %v7702 = vpop.f32.mrb[0].mxu0
      %v7703 = vpop.f32.mrb[0].mxu0
      %v7704 = vadd.f32 0.0, %v7703
      %v7705 = vpop.f32.mrb[0].mxu0
      %7706 = vmatprep.mubr.bf16.mxu0 0
      %7707 = vmatmul.mubr.bf16.gmra.mrb[0].mxu0 %v7561
      %v7708 = vpop.f32.mrb[0].mxu0
      %v7709 = vadd.f32 0.0, %v7708
      %v7710 = vpop.f32.mrb[0].mxu0
      %v7711 = vpop.f32.mrb[0].mxu0
      %v7712 = vadd.f32 0.0, %v7711
      %v7713 = vpop.f32.mrb[0].mxu0
      %7714 = vdwg.mxu0
      %v7715 = vadd.f32 %v7452, %v7653
      %v7716 = vadd.f32 %v7453, %v7656
      %v7717 = vadd.f32 %v7454, %v7661
      %v7718 = vadd.f32 %v7455, %v7664
      %v7719 = vadd.f32 %v7456, %v7669
      %v7720 = vadd.f32 %v7457, %v7672
      %v7721 = vadd.f32 %v7458, %v7677
      %v7722 = vadd.f32 %v7459, %v7680
      %v7723 = vadd.f32 %v7460, %v7685
      %v7724 = vadd.f32 %v7461, %v7688
      %v7725 = vadd.f32 %v7462, %v7693
      %v7726 = vadd.f32 %v7463, %v7696
      %v7727 = vadd.f32 %v7464, %v7701
      %v7728 = vadd.f32 %v7465, %v7704
      %v7729 = vadd.f32 %v7466, %v7709
      %v7730 = vadd.f32 %v7467, %v7712
      %v7731 = vld [vmem:[#allocation3 + $0x18] sm:$0xff]
      %v7732 = vld [vmem:[#allocation3 + $0x20] sm:$0xff]
      %v7733 = vld [vmem:[#allocation3 + $0x28] sm:$0xff]
      %v7734 = vld [vmem:[#allocation3 + $0x30] sm:$0xff]
      %v7735 = vld [vmem:[#allocation3 + $0x38] sm:$0xff]
      %v7736 = vld [vmem:[#allocation3 + $0x40] sm:$0xff]
      %v7737 = vld [vmem:[#allocation3 + $0x48] sm:$0xff]
      %v7738 = vld [vmem:[#allocation3 + $0x50] sm:$0xff]
      %v7739 = vld [vmem:[#allocation3 + $0x58] sm:$0x1]
      %s7740 = scalar_lea.vmem %s3, 384
      %v7741 = vld [vmem:[%s7740] sm:$0xf]
      %v7742 = vld [vmem:[%s7740 + $0x4] sm:$0xf]
      %v7743 = vld [vmem:[%s7740 + $0x8] sm:$0xf]
      %v7744 = vld [vmem:[%s7740 + $0xc] sm:$0xf]
      %v7745 = vld [vmem:[%s7740 + $0x10] sm:$0xf]
      %v7746 = vld [vmem:[%s7740 + $0x14] sm:$0xf]
      %v7747 = vld [vmem:[%s7740 + $0x18] sm:$0xf]
      %v7748 = vld [vmem:[%s7740 + $0x1c] sm:$0xf]
      %v7749 = vld [vmem:[%s7740 + $0x20] sm:$0xf]
      %v7750 = vld [vmem:[%s7740 + $0x24] sm:$0xf]
      %v7751 = vld [vmem:[%s7740 + $0x28] sm:$0xf]
      %v7752 = vld [vmem:[%s7740 + $0x2c] sm:$0xf]
      %v7753 = vld [vmem:[%s7740 + $0x30] sm:$0xf]
      %v7754 = vld [vmem:[%s7740 + $0x34] sm:$0xf]
      %v7755 = vld [vmem:[%s7740 + $0x38] sm:$0xf]
      %v7756 = vld [vmem:[%s7740 + $0x3c] sm:$0xf]
      %v7758 = vshrl.u32 %v7731, 16
      %v7760 = vshll.u32 %v7731, 16
      %v7762 = vrot.slane %v7760, 1
      %v7763 = vor.u32 %v7758, %v7762
      %v7765 = vshll.u32 %v7732, 16
      %v7767 = vrot.slane %v7765, 1
      %v7768 = vsel %vm1177, %v7763, %v7767
      %v7769 = vshrl.u32 %v7732, 16
      %v7771 = vor.u32 %v7769, %v7767
      %v7773 = vshll.u32 %v7733, 16
      %v7775 = vrot.slane %v7773, 1
      %v7776 = vsel %vm1177, %v7771, %v7775
      %v7777 = vshrl.u32 %v7733, 16
      %v7779 = vor.u32 %v7777, %v7775
      %v7781 = vshll.u32 %v7734, 16
      %v7783 = vrot.slane %v7781, 1
      %v7784 = vsel %vm1177, %v7779, %v7783
      %v7785 = vshrl.u32 %v7734, 16
      %v7787 = vor.u32 %v7785, %v7783
      %v7789 = vshll.u32 %v7735, 16
      %v7791 = vrot.slane %v7789, 1
      %v7792 = vsel %vm1177, %v7787, %v7791
      %v7793 = vshrl.u32 %v7735, 16
      %v7795 = vor.u32 %v7793, %v7791
      %v7797 = vshll.u32 %v7736, 16
      %v7799 = vrot.slane %v7797, 1
      %v7800 = vsel %vm1177, %v7795, %v7799
      %v7801 = vshrl.u32 %v7736, 16
      %v7803 = vor.u32 %v7801, %v7799
      %v7805 = vshll.u32 %v7737, 16
      %v7807 = vrot.slane %v7805, 1
      %v7808 = vsel %vm1177, %v7803, %v7807
      %v7809 = vshrl.u32 %v7737, 16
      %v7811 = vor.u32 %v7809, %v7807
      %v7813 = vshll.u32 %v7738, 16
      %v7815 = vrot.slane %v7813, 1
      %v7816 = vsel %vm1177, %v7811, %v7815
      %v7817 = vshrl.u32 %v7738, 16
      %v7819 = vor.u32 %v7817, %v7815
      %v7821 = vshll.u32 %v7739, 16
      %v7823 = vrot.slane %v7821, 1
      %v7824 = vsel %vm1177, %v7819, %v7823
      %v7849 = vunpack.c.l.b16 %v7741
      %v7850 = vunpack.c.l.b16 %v7742
      %v7851 = vunpack.c.l.b16 %v7743
      %v7852 = vunpack.c.l.b16 %v7744
      %v7853 = vunpack.c.l.b16 %v7745
      %v7854 = vunpack.c.l.b16 %v7746
      %v7855 = vunpack.c.l.b16 %v7747
      %v7856 = vunpack.c.l.b16 %v7748
      %v7857 = vunpack.c.l.b16 %v7749
      %v7858 = vunpack.c.l.b16 %v7750
      %v7859 = vunpack.c.l.b16 %v7751
      %v7860 = vunpack.c.l.b16 %v7752
      %v7861 = vunpack.c.l.b16 %v7753
      %v7862 = vunpack.c.l.b16 %v7754
      %v7863 = vunpack.c.l.b16 %v7755
      %v7864 = vunpack.c.l.b16 %v7756
      %v7865 = vpack.c.b16 %v7850, %v7849
      %v7866 = vpack.c.b16 %v7852, %v7851
      %v7867 = vpack.c.b16 %v7854, %v7853
      %v7868 = vpack.c.b16 %v7856, %v7855
      %v7869 = vpack.c.b16 %v7858, %v7857
      %v7870 = vpack.c.b16 %v7860, %v7859
      %v7871 = vpack.c.b16 %v7862, %v7861
      %v7872 = vpack.c.b16 %v7864, %v7863
      %7881 = vmatprep.subr.bf16.mxu0 0
      %7882 = vmatpush1.bf16.msra.mxu0 %v7865
      %7883 = vmatprep.subr.bf16.mxu0 0
      %7884 = vmatpush1.bf16.msra.mxu0 %v7866
      %7885 = vmatprep.subr.bf16.mxu0 0
      %7886 = vmatpush1.bf16.msra.mxu0 %v7867
      %7887 = vmatprep.subr.bf16.mxu0 0
      %7888 = vmatpush1.bf16.msra.mxu0 %v7868
      %7889 = vmatprep.subr.bf16.mxu0 0
      %7890 = vmatpush1.bf16.msra.mxu0 %v7869
      %7891 = vmatprep.subr.bf16.mxu0 0
      %7892 = vmatpush1.bf16.msra.mxu0 %v7870
      %7893 = vmatprep.subr.bf16.mxu0 0
      %7894 = vmatpush1.bf16.msra.mxu0 %v7871
      %7895 = vmatprep.subr.bf16.mxu0 0
      %7896 = vmatpush1.bf16.msra.mxu0 %v7872
      %7897 = vmatprep.subr.bf16.mxu0 0
      %7898 = vmatpush1.bf16.msra.mxu0 0
      %7899 = vmatprep.subr.bf16.mxu0 0
      %7900 = vmatpush1.bf16.msra.mxu0 0
      %7901 = vmatprep.subr.bf16.mxu0 0
      %7902 = vmatpush1.bf16.msra.mxu0 0
      %7903 = vmatprep.subr.bf16.mxu0 0
      %7904 = vmatpush1.bf16.msra.mxu0 0
      %7905 = vmatprep.subr.bf16.mxu0 0
      %7906 = vmatpush1.bf16.msra.mxu0 0
      %7907 = vmatprep.subr.bf16.mxu0 0
      %7908 = vmatpush1.bf16.msra.mxu0 0
      %7909 = vmatprep.subr.bf16.mxu0 0
      %7910 = vmatpush1.bf16.msra.mxu0 0
      %7911 = vmatprep.subr.bf16.mxu0 0
      %7912 = vmatpush1.bf16.msra.mxu0 0
      %7913 = vmatprep.mubr.bf16.mxu0 0
      %7914 = vmatmul.mubr.bf16.gmra.mrb[0].mxu0 %v7768
      %v7915 = vpop.f32.mrb[0].mxu0
      %v7916 = vadd.f32 0.0, %v7915
      %v7917 = vpop.f32.mrb[0].mxu0
      %v7918 = vpop.f32.mrb[0].mxu0
      %v7919 = vadd.f32 0.0, %v7918
      %v7920 = vpop.f32.mrb[0].mxu0
      %7921 = vmatprep.mubr.bf16.mxu0 0
      %7922 = vmatmul.mubr.bf16.gmra.mrb[0].mxu0 %v7776
      %v7923 = vpop.f32.mrb[0].mxu0
      %v7924 = vadd.f32 0.0, %v7923
      %v7925 = vpop.f32.mrb[0].mxu0
      %v7926 = vpop.f32.mrb[0].mxu0
      %v7927 = vadd.f32 0.0, %v7926
      %v7928 = vpop.f32.mrb[0].mxu0
      %7929 = vmatprep.mubr.bf16.mxu0 0
      %7930 = vmatmul.mubr.bf16.gmra.mrb[0].mxu0 %v7784
      %v7931 = vpop.f32.mrb[0].mxu0
      %v7932 = vadd.f32 0.0, %v7931
      %v7933 = vpop.f32.mrb[0].mxu0
      %v7934 = vpop.f32.mrb[0].mxu0
      %v7935 = vadd.f32 0.0, %v7934
      %v7936 = vpop.f32.mrb[0].mxu0
      %7937 = vmatprep.mubr.bf16.mxu0 0
      %7938 = vmatmul.mubr.bf16.gmra.mrb[0].mxu0 %v7792
      %v7939 = vpop.f32.mrb[0].mxu0
      %v7940 = vadd.f32 0.0, %v7939
      %v7941 = vpop.f32.mrb[0].mxu0
      %v7942 = vpop.f32.mrb[0].mxu0
      %v7943 = vadd.f32 0.0, %v7942
      %v7944 = vpop.f32.mrb[0].mxu0
      %7945 = vmatprep.mubr.bf16.mxu0 0
      %7946 = vmatmul.mubr.bf16.gmra.mrb[0].mxu0 %v7800
      %v7947 = vpop.f32.mrb[0].mxu0
      %v7948 = vadd.f32 0.0, %v7947
      %v7949 = vpop.f32.mrb[0].mxu0
      %v7950 = vpop.f32.mrb[0].mxu0
      %v7951 = vadd.f32 0.0, %v7950
      %v7952 = vpop.f32.mrb[0].mxu0
      %7953 = vmatprep.mubr.bf16.mxu0 0
      %7954 = vmatmul.mubr.bf16.gmra.mrb[0].mxu0 %v7808
      %v7955 = vpop.f32.mrb[0].mxu0
      %v7956 = vadd.f32 0.0, %v7955
      %v7957 = vpop.f32.mrb[0].mxu0
      %v7958 = vpop.f32.mrb[0].mxu0
      %v7959 = vadd.f32 0.0, %v7958
      %v7960 = vpop.f32.mrb[0].mxu0
      %7961 = vmatprep.mubr.bf16.mxu0 0
      %7962 = vmatmul.mubr.bf16.gmra.mrb[0].mxu0 %v7816
      %v7963 = vpop.f32.mrb[0].mxu0
      %v7964 = vadd.f32 0.0, %v7963
      %v7965 = vpop.f32.mrb[0].mxu0
      %v7966 = vpop.f32.mrb[0].mxu0
      %v7967 = vadd.f32 0.0, %v7966
      %v7968 = vpop.f32.mrb[0].mxu0
      %7969 = vmatprep.mubr.bf16.mxu0 0
      %7970 = vmatmul.mubr.bf16.gmra.mrb[0].mxu0 %v7824
      %v7971 = vpop.f32.mrb[0].mxu0
      %v7972 = vadd.f32 0.0, %v7971
      %v7973 = vpop.f32.mrb[0].mxu0
      %v7974 = vpop.f32.mrb[0].mxu0
      %v7975 = vadd.f32 0.0, %v7974
      %v7976 = vpop.f32.mrb[0].mxu0
      %7977 = vdwg.mxu0
      %v7978 = vadd.f32 %v7715, %v7916
      %v7979 = vadd.f32 %v7716, %v7919
      %v7980 = vadd.f32 %v7717, %v7924
      %v7981 = vadd.f32 %v7718, %v7927
      %v7982 = vadd.f32 %v7719, %v7932
      %v7983 = vadd.f32 %v7720, %v7935
      %v7984 = vadd.f32 %v7721, %v7940
      %v7985 = vadd.f32 %v7722, %v7943
      %v7986 = vadd.f32 %v7723, %v7948
      %v7987 = vadd.f32 %v7724, %v7951
      %v7988 = vadd.f32 %v7725, %v7956
      %v7989 = vadd.f32 %v7726, %v7959
      %v7990 = vadd.f32 %v7727, %v7964
      %v7991 = vadd.f32 %v7728, %v7967
      %v7992 = vadd.f32 %v7729, %v7972
      %v7993 = vadd.f32 %v7730, %v7975
      %v7994 = vld [vmem:[#allocation3 + $0x18] sm:$0xfe]
      %s7995 = scalar_lea.vmem %s3, 448
      %v7996 = vld [vmem:[%s7995] sm:$0xf]
      %v7997 = vld [vmem:[%s7995 + $0x4] sm:$0xf]
      %v7998 = vld [vmem:[%s7995 + $0x8] sm:$0xf]
      %v7999 = vld [vmem:[%s7995 + $0xc] sm:$0xf]
      %v8000 = vld [vmem:[%s7995 + $0x10] sm:$0xf]
      %v8001 = vld [vmem:[%s7995 + $0x14] sm:$0xf]
      %v8002 = vld [vmem:[%s7995 + $0x18] sm:$0xf]
      %v8003 = vld [vmem:[%s7995 + $0x1c] sm:$0xf]
      %v8004 = vld [vmem:[%s7995 + $0x20] sm:$0xf]
      %v8005 = vld [vmem:[%s7995 + $0x24] sm:$0xf]
      %v8006 = vld [vmem:[%s7995 + $0x28] sm:$0xf]
      %v8007 = vld [vmem:[%s7995 + $0x2c] sm:$0xf]
      %v8008 = vld [vmem:[%s7995 + $0x30] sm:$0xf]
      %v8009 = vld [vmem:[%s7995 + $0x34] sm:$0xf]
      %v8010 = vld [vmem:[%s7995 + $0x38] sm:$0xf]
      %v8011 = vld [vmem:[%s7995 + $0x3c] sm:$0xf]
      %v8021 = vrot.slane %v7994, 1
      %v8022 = vrot.slane %v7732, 1
      %v8023 = vsel %vm1442, %v8021, %v8022
      %v8024 = vrot.slane %v7733, 1
      %v8025 = vsel %vm1442, %v8022, %v8024
      %v8026 = vrot.slane %v7734, 1
      %v8027 = vsel %vm1442, %v8024, %v8026
      %v8028 = vrot.slane %v7735, 1
      %v8029 = vsel %vm1442, %v8026, %v8028
      %v8030 = vrot.slane %v7736, 1
      %v8031 = vsel %vm1442, %v8028, %v8030
      %v8032 = vrot.slane %v7737, 1
      %v8033 = vsel %vm1442, %v8030, %v8032
      %v8034 = vrot.slane %v7738, 1
      %v8035 = vsel %vm1442, %v8032, %v8034
      %v8036 = vrot.slane %v7739, 1
      %v8037 = vsel %vm1442, %v8034, %v8036
      %v8062 = vunpack.c.l.b16 %v7996
      %v8063 = vunpack.c.l.b16 %v7997
      %v8064 = vunpack.c.l.b16 %v7998
      %v8065 = vunpack.c.l.b16 %v7999
      %v8066 = vunpack.c.l.b16 %v8000
      %v8067 = vunpack.c.l.b16 %v8001
      %v8068 = vunpack.c.l.b16 %v8002
      %v8069 = vunpack.c.l.b16 %v8003
      %v8070 = vunpack.c.l.b16 %v8004
      %v8071 = vunpack.c.l.b16 %v8005
      %v8072 = vunpack.c.l.b16 %v8006
      %v8073 = vunpack.c.l.b16 %v8007
      %v8074 = vunpack.c.l.b16 %v8008
      %v8075 = vunpack.c.l.b16 %v8009
      %v8076 = vunpack.c.l.b16 %v8010
      %v8077 = vunpack.c.l.b16 %v8011
      %v8078 = vpack.c.b16 %v8063, %v8062
      %v8079 = vpack.c.b16 %v8065, %v8064
      %v8080 = vpack.c.b16 %v8067, %v8066
      %v8081 = vpack.c.b16 %v8069, %v8068
      %v8082 = vpack.c.b16 %v8071, %v8070
      %v8083 = vpack.c.b16 %v8073, %v8072
      %v8084 = vpack.c.b16 %v8075, %v8074
      %v8085 = vpack.c.b16 %v8077, %v8076
      %8094 = vmatprep.subr.bf16.mxu0 0
      %8095 = vmatpush1.bf16.msra.mxu0 %v8078
      %8096 = vmatprep.subr.bf16.mxu0 0
      %8097 = vmatpush1.bf16.msra.mxu0 %v8079
      %8098 = vmatprep.subr.bf16.mxu0 0
      %8099 = vmatpush1.bf16.msra.mxu0 %v8080
      %8100 = vmatprep.subr.bf16.mxu0 0
      %8101 = vmatpush1.bf16.msra.mxu0 %v8081
      %8102 = vmatprep.subr.bf16.mxu0 0
      %8103 = vmatpush1.bf16.msra.mxu0 %v8082
      %8104 = vmatprep.subr.bf16.mxu0 0
      %8105 = vmatpush1.bf16.msra.mxu0 %v8083
      %8106 = vmatprep.subr.bf16.mxu0 0
      %8107 = vmatpush1.bf16.msra.mxu0 %v8084
      %8108 = vmatprep.subr.bf16.mxu0 0
      %8109 = vmatpush1.bf16.msra.mxu0 %v8085
      %8110 = vmatprep.subr.bf16.mxu0 0
      %8111 = vmatpush1.bf16.msra.mxu0 0
      %8112 = vmatprep.subr.bf16.mxu0 0
      %8113 = vmatpush1.bf16.msra.mxu0 0
      %8114 = vmatprep.subr.bf16.mxu0 0
      %8115 = vmatpush1.bf16.msra.mxu0 0
      %8116 = vmatprep.subr.bf16.mxu0 0
      %8117 = vmatpush1.bf16.msra.mxu0 0
      %8118 = vmatprep.subr.bf16.mxu0 0
      %8119 = vmatpush1.bf16.msra.mxu0 0
      %8120 = vmatprep.subr.bf16.mxu0 0
      %8121 = vmatpush1.bf16.msra.mxu0 0
      %8122 = vmatprep.subr.bf16.mxu0 0
      %8123 = vmatpush1.bf16.msra.mxu0 0
      %8124 = vmatprep.subr.bf16.mxu0 0
      %8125 = vmatpush1.bf16.msra.mxu0 0
      %8126 = vmatprep.mubr.bf16.mxu0 0
      %8127 = vmatmul.mubr.bf16.gmra.mrb[0].mxu0 %v8023
      %v8128 = vpop.f32.mrb[0].mxu0
      %v8129 = vadd.f32 0.0, %v8128
      %v8130 = vpop.f32.mrb[0].mxu0
      %v8131 = vpop.f32.mrb[0].mxu0
      %v8132 = vadd.f32 0.0, %v8131
      %v8133 = vpop.f32.mrb[0].mxu0
      %8134 = vmatprep.mubr.bf16.mxu0 0
      %8135 = vmatmul.mubr.bf16.gmra.mrb[0].mxu0 %v8025
      %v8136 = vpop.f32.mrb[0].mxu0
      %v8137 = vadd.f32 0.0, %v8136
      %v8138 = vpop.f32.mrb[0].mxu0
      %v8139 = vpop.f32.mrb[0].mxu0
      %v8140 = vadd.f32 0.0, %v8139
      %v8141 = vpop.f32.mrb[0].mxu0
      %8142 = vmatprep.mubr.bf16.mxu0 0
      %8143 = vmatmul.mubr.bf16.gmra.mrb[0].mxu0 %v8027
      %v8144 = vpop.f32.mrb[0].mxu0
      %v8145 = vadd.f32 0.0, %v8144
      %v8146 = vpop.f32.mrb[0].mxu0
      %v8147 = vpop.f32.mrb[0].mxu0
      %v8148 = vadd.f32 0.0, %v8147
      %v8149 = vpop.f32.mrb[0].mxu0
      %8150 = vmatprep.mubr.bf16.mxu0 0
      %8151 = vmatmul.mubr.bf16.gmra.mrb[0].mxu0 %v8029
      %v8152 = vpop.f32.mrb[0].mxu0
      %v8153 = vadd.f32 0.0, %v8152
      %v8154 = vpop.f32.mrb[0].mxu0
      %v8155 = vpop.f32.mrb[0].mxu0
      %v8156 = vadd.f32 0.0, %v8155
      %v8157 = vpop.f32.mrb[0].mxu0
      %8158 = vmatprep.mubr.bf16.mxu0 0
      %8159 = vmatmul.mubr.bf16.gmra.mrb[0].mxu0 %v8031
      %v8160 = vpop.f32.mrb[0].mxu0
      %v8161 = vadd.f32 0.0, %v8160
      %v8162 = vpop.f32.mrb[0].mxu0
      %v8163 = vpop.f32.mrb[0].mxu0
      %v8164 = vadd.f32 0.0, %v8163
      %v8165 = vpop.f32.mrb[0].mxu0
      %8166 = vmatprep.mubr.bf16.mxu0 0
      %8167 = vmatmul.mubr.bf16.gmra.mrb[0].mxu0 %v8033
      %v8168 = vpop.f32.mrb[0].mxu0
      %v8169 = vadd.f32 0.0, %v8168
      %v8170 = vpop.f32.mrb[0].mxu0
      %v8171 = vpop.f32.mrb[0].mxu0
      %v8172 = vadd.f32 0.0, %v8171
      %v8173 = vpop.f32.mrb[0].mxu0
      %8174 = vmatprep.mubr.bf16.mxu0 0
      %8175 = vmatmul.mubr.bf16.gmra.mrb[0].mxu0 %v8035
      %v8176 = vpop.f32.mrb[0].mxu0
      %v8177 = vadd.f32 0.0, %v8176
      %v8178 = vpop.f32.mrb[0].mxu0
      %v8179 = vpop.f32.mrb[0].mxu0
      %v8180 = vadd.f32 0.0, %v8179
      %v8181 = vpop.f32.mrb[0].mxu0
      %8182 = vmatprep.mubr.bf16.mxu0 0
      %8183 = vmatmul.mubr.bf16.gmra.mrb[0].mxu0 %v8037
      %v8184 = vpop.f32.mrb[0].mxu0
      %v8185 = vadd.f32 0.0, %v8184
      %v8186 = vpop.f32.mrb[0].mxu0
      %v8187 = vpop.f32.mrb[0].mxu0
      %v8188 = vadd.f32 0.0, %v8187
      %v8189 = vpop.f32.mrb[0].mxu0
      %8190 = vdwg.mxu0
      %v8191 = vadd.f32 %v7978, %v8129
      %v8192 = vadd.f32 %v7979, %v8132
      %v8193 = vadd.f32 %v7980, %v8137
      %v8194 = vadd.f32 %v7981, %v8140
      %v8195 = vadd.f32 %v7982, %v8145
      %v8196 = vadd.f32 %v7983, %v8148
      %v8197 = vadd.f32 %v7984, %v8153
      %v8198 = vadd.f32 %v7985, %v8156
      %v8199 = vadd.f32 %v7986, %v8161
      %v8200 = vadd.f32 %v7987, %v8164
      %v8201 = vadd.f32 %v7988, %v8169
      %v8202 = vadd.f32 %v7989, %v8172
      %v8203 = vadd.f32 %v7990, %v8177
      %v8204 = vadd.f32 %v7991, %v8180
      %v8205 = vadd.f32 %v7992, %v8185
      %v8206 = vadd.f32 %v7993, %v8188
      %v8207 = vld [vmem:[#allocation3 + $0x58] sm:$0x3]
      %s8208 = scalar_lea.vmem %s3, 512
      %v8209 = vld [vmem:[%s8208] sm:$0xf]
      %v8210 = vld [vmem:[%s8208 + $0x4] sm:$0xf]
      %v8211 = vld [vmem:[%s8208 + $0x8] sm:$0xf]
      %v8212 = vld [vmem:[%s8208 + $0xc] sm:$0xf]
      %v8213 = vld [vmem:[%s8208 + $0x10] sm:$0xf]
      %v8214 = vld [vmem:[%s8208 + $0x14] sm:$0xf]
      %v8215 = vld [vmem:[%s8208 + $0x18] sm:$0xf]
      %v8216 = vld [vmem:[%s8208 + $0x1c] sm:$0xf]
      %v8217 = vld [vmem:[%s8208 + $0x20] sm:$0xf]
      %v8218 = vld [vmem:[%s8208 + $0x24] sm:$0xf]
      %v8219 = vld [vmem:[%s8208 + $0x28] sm:$0xf]
      %v8220 = vld [vmem:[%s8208 + $0x2c] sm:$0xf]
      %v8221 = vld [vmem:[%s8208 + $0x30] sm:$0xf]
      %v8222 = vld [vmem:[%s8208 + $0x34] sm:$0xf]
      %v8223 = vld [vmem:[%s8208 + $0x38] sm:$0xf]
      %v8224 = vld [vmem:[%s8208 + $0x3c] sm:$0xf]
      %v8226 = vshrl.u32 %v7994, 16
      %v8228 = vrot.slane %v8226, 1
      %v8229 = vshll.u32 %v7994, 16
      %v8231 = vrot.slane %v8229, 2
      %v8232 = vor.u32 %v8228, %v8231
      %v8233 = vrot.slane %v7769, 1
      %v8234 = vrot.slane %v7765, 2
      %v8235 = vor.u32 %v8233, %v8234
      %v8236 = vsel %vm1868, %v8232, %v8235
      %v8237 = vrot.slane %v7777, 1
      %v8238 = vrot.slane %v7773, 2
      %v8239 = vor.u32 %v8237, %v8238
      %v8240 = vsel %vm1868, %v8235, %v8239
      %v8241 = vrot.slane %v7785, 1
      %v8242 = vrot.slane %v7781, 2
      %v8243 = vor.u32 %v8241, %v8242
      %v8244 = vsel %vm1868, %v8239, %v8243
      %v8245 = vrot.slane %v7793, 1
      %v8246 = vrot.slane %v7789, 2
      %v8247 = vor.u32 %v8245, %v8246
      %v8248 = vsel %vm1868, %v8243, %v8247
      %v8249 = vrot.slane %v7801, 1
      %v8250 = vrot.slane %v7797, 2
      %v8251 = vor.u32 %v8249, %v8250
      %v8252 = vsel %vm1868, %v8247, %v8251
      %v8253 = vrot.slane %v7809, 1
      %v8254 = vrot.slane %v7805, 2
      %v8255 = vor.u32 %v8253, %v8254
      %v8256 = vsel %vm1868, %v8251, %v8255
      %v8257 = vrot.slane %v7817, 1
      %v8258 = vrot.slane %v7813, 2
      %v8259 = vor.u32 %v8257, %v8258
      %v8260 = vsel %vm1868, %v8255, %v8259
      %v8262 = vshrl.u32 %v8207, 16
      %v8264 = vrot.slane %v8262, 1
      %v8265 = vshll.u32 %v8207, 16
      %v8267 = vrot.slane %v8265, 2
      %v8268 = vor.u32 %v8264, %v8267
      %v8269 = vsel %vm1868, %v8259, %v8268
      %v8294 = vunpack.c.l.b16 %v8209
      %v8295 = vunpack.c.l.b16 %v8210
      %v8296 = vunpack.c.l.b16 %v8211
      %v8297 = vunpack.c.l.b16 %v8212
      %v8298 = vunpack.c.l.b16 %v8213
      %v8299 = vunpack.c.l.b16 %v8214
      %v8300 = vunpack.c.l.b16 %v8215
      %v8301 = vunpack.c.l.b16 %v8216
      %v8302 = vunpack.c.l.b16 %v8217
      %v8303 = vunpack.c.l.b16 %v8218
      %v8304 = vunpack.c.l.b16 %v8219
      %v8305 = vunpack.c.l.b16 %v8220
      %v8306 = vunpack.c.l.b16 %v8221
      %v8307 = vunpack.c.l.b16 %v8222
      %v8308 = vunpack.c.l.b16 %v8223
      %v8309 = vunpack.c.l.b16 %v8224
      %v8310 = vpack.c.b16 %v8295, %v8294
      %v8311 = vpack.c.b16 %v8297, %v8296
      %v8312 = vpack.c.b16 %v8299, %v8298
      %v8313 = vpack.c.b16 %v8301, %v8300
      %v8314 = vpack.c.b16 %v8303, %v8302
      %v8315 = vpack.c.b16 %v8305, %v8304
      %v8316 = vpack.c.b16 %v8307, %v8306
      %v8317 = vpack.c.b16 %v8309, %v8308
      %8326 = vmatprep.subr.bf16.mxu0 0
      %8327 = vmatpush1.bf16.msra.mxu0 %v8310
      %8328 = vmatprep.subr.bf16.mxu0 0
      %8329 = vmatpush1.bf16.msra.mxu0 %v8311
      %8330 = vmatprep.subr.bf16.mxu0 0
      %8331 = vmatpush1.bf16.msra.mxu0 %v8312
      %8332 = vmatprep.subr.bf16.mxu0 0
      %8333 = vmatpush1.bf16.msra.mxu0 %v8313
      %8334 = vmatprep.subr.bf16.mxu0 0
      %8335 = vmatpush1.bf16.msra.mxu0 %v8314
      %8336 = vmatprep.subr.bf16.mxu0 0
      %8337 = vmatpush1.bf16.msra.mxu0 %v8315
      %8338 = vmatprep.subr.bf16.mxu0 0
      %8339 = vmatpush1.bf16.msra.mxu0 %v8316
      %8340 = vmatprep.subr.bf16.mxu0 0
      %8341 = vmatpush1.bf16.msra.mxu0 %v8317
      %8342 = vmatprep.subr.bf16.mxu0 0
      %8343 = vmatpush1.bf16.msra.mxu0 0
      %8344 = vmatprep.subr.bf16.mxu0 0
      %8345 = vmatpush1.bf16.msra.mxu0 0
      %8346 = vmatprep.subr.bf16.mxu0 0
      %8347 = vmatpush1.bf16.msra.mxu0 0
      %8348 = vmatprep.subr.bf16.mxu0 0
      %8349 = vmatpush1.bf16.msra.mxu0 0
      %8350 = vmatprep.subr.bf16.mxu0 0
      %8351 = vmatpush1.bf16.msra.mxu0 0
      %8352 = vmatprep.subr.bf16.mxu0 0
      %8353 = vmatpush1.bf16.msra.mxu0 0
      %8354 = vmatprep.subr.bf16.mxu0 0
      %8355 = vmatpush1.bf16.msra.mxu0 0
      %8356 = vmatprep.subr.bf16.mxu0 0
      %8357 = vmatpush1.bf16.msra.mxu0 0
      %8358 = vmatprep.mubr.bf16.mxu0 0
      %8359 = vmatmul.mubr.bf16.gmra.mrb[0].mxu0 %v8236
      %v8360 = vpop.f32.mrb[0].mxu0
      %v8361 = vadd.f32 0.0, %v8360
      %v8362 = vpop.f32.mrb[0].mxu0
      %v8363 = vpop.f32.mrb[0].mxu0
      %v8364 = vadd.f32 0.0, %v8363
      %v8365 = vpop.f32.mrb[0].mxu0
      %8366 = vmatprep.mubr.bf16.mxu0 0
      %8367 = vmatmul.mubr.bf16.gmra.mrb[0].mxu0 %v8240
      %v8368 = vpop.f32.mrb[0].mxu0
      %v8369 = vadd.f32 0.0, %v8368
      %v8370 = vpop.f32.mrb[0].mxu0
      %v8371 = vpop.f32.mrb[0].mxu0
      %v8372 = vadd.f32 0.0, %v8371
      %v8373 = vpop.f32.mrb[0].mxu0
      %8374 = vmatprep.mubr.bf16.mxu0 0
      %8375 = vmatmul.mubr.bf16.gmra.mrb[0].mxu0 %v8244
      %v8376 = vpop.f32.mrb[0].mxu0
      %v8377 = vadd.f32 0.0, %v8376
      %v8378 = vpop.f32.mrb[0].mxu0
      %v8379 = vpop.f32.mrb[0].mxu0
      %v8380 = vadd.f32 0.0, %v8379
      %v8381 = vpop.f32.mrb[0].mxu0
      %8382 = vmatprep.mubr.bf16.mxu0 0
      %8383 = vmatmul.mubr.bf16.gmra.mrb[0].mxu0 %v8248
      %v8384 = vpop.f32.mrb[0].mxu0
      %v8385 = vadd.f32 0.0, %v8384
      %v8386 = vpop.f32.mrb[0].mxu0
      %v8387 = vpop.f32.mrb[0].mxu0
      %v8388 = vadd.f32 0.0, %v8387
      %v8389 = vpop.f32.mrb[0].mxu0
      %8390 = vmatprep.mubr.bf16.mxu0 0
      %8391 = vmatmul.mubr.bf16.gmra.mrb[0].mxu0 %v8252
      %v8392 = vpop.f32.mrb[0].mxu0
      %v8393 = vadd.f32 0.0, %v8392
      %v8394 = vpop.f32.mrb[0].mxu0
      %v8395 = vpop.f32.mrb[0].mxu0
      %v8396 = vadd.f32 0.0, %v8395
      %v8397 = vpop.f32.mrb[0].mxu0
      %8398 = vmatprep.mubr.bf16.mxu0 0
      %8399 = vmatmul.mubr.bf16.gmra.mrb[0].mxu0 %v8256
      %v8400 = vpop.f32.mrb[0].mxu0
      %v8401 = vadd.f32 0.0, %v8400
      %v8402 = vpop.f32.mrb[0].mxu0
      %v8403 = vpop.f32.mrb[0].mxu0
      %v8404 = vadd.f32 0.0, %v8403
      %v8405 = vpop.f32.mrb[0].mxu0
      %8406 = vmatprep.mubr.bf16.mxu0 0
      %8407 = vmatmul.mubr.bf16.gmra.mrb[0].mxu0 %v8260
      %v8408 = vpop.f32.mrb[0].mxu0
      %v8409 = vadd.f32 0.0, %v8408
      %v8410 = vpop.f32.mrb[0].mxu0
      %v8411 = vpop.f32.mrb[0].mxu0
      %v8412 = vadd.f32 0.0, %v8411
      %v8413 = vpop.f32.mrb[0].mxu0
      %8414 = vmatprep.mubr.bf16.mxu0 0
      %8415 = vmatmul.mubr.bf16.gmra.mrb[0].mxu0 %v8269
      %v8416 = vpop.f32.mrb[0].mxu0
      %v8417 = vadd.f32 0.0, %v8416
      %v8418 = vpop.f32.mrb[0].mxu0
      %v8419 = vpop.f32.mrb[0].mxu0
      %v8420 = vadd.f32 0.0, %v8419
      %v8421 = vpop.f32.mrb[0].mxu0
      %8422 = vdwg.mxu0
      %v8423 = vadd.f32 %v8191, %v8361
      %v8424 = vadd.f32 %v8192, %v8364
      %v8425 = vadd.f32 %v8193, %v8369
      %v8426 = vadd.f32 %v8194, %v8372
      %v8427 = vadd.f32 %v8195, %v8377
      %v8428 = vadd.f32 %v8196, %v8380
      %v8429 = vadd.f32 %v8197, %v8385
      %v8430 = vadd.f32 %v8198, %v8388
      %v8431 = vadd.f32 %v8199, %v8393
      %v8432 = vadd.f32 %v8200, %v8396
      %v8433 = vadd.f32 %v8201, %v8401
      %v8434 = vadd.f32 %v8202, %v8404
      %v8435 = vadd.f32 %v8203, %v8409
      %v8436 = vadd.f32 %v8204, %v8412
      %v8437 = vadd.f32 %v8205, %v8417
      %v8438 = vadd.f32 %v8206, %v8420
      %v8439 = vld [vmem:[%s219 + $0x1] sm:$0xff]
      %v8440 = vld [vmem:[%s219 + $0x9] sm:$0xff]
      %v8441 = vld [vmem:[%s219 + $0x11] sm:$0xff]
      %v8442 = vld [vmem:[%s219 + $0x19] sm:$0xff]
      %v8443 = vld [vmem:[%s219 + $0x21] sm:$0xff]
      %v8444 = vld [vmem:[%s219 + $0x29] sm:$0xff]
      %v8445 = vld [vmem:[%s219 + $0x31] sm:$0xff]
      %v8446 = vld [vmem:[%s219 + $0x39] sm:$0xff]
      %v8447 = vld [vmem:[%s219 + $0x41] sm:$0xff]
      %v8448 = vld [vmem:[%s219 + $0x49] sm:$0xff]
      %v8449 = vld [vmem:[%s219 + $0x51] sm:$0xff]
      %v8450 = vld [vmem:[%s219 + $0x59] sm:$0xff]
      %v8451 = vld [vmem:[%s219 + $0x61] sm:$0xff]
      %v8452 = vld [vmem:[%s219 + $0x69] sm:$0xff]
      %v8453 = vld [vmem:[%s219 + $0x71] sm:$0xff]
      %v8454 = vld [vmem:[%s219 + $0x79] sm:$0xff]
      %v8455 = vld [vmem:[%s4] sm:$0x1]
      %v8457 = vlaneseq
      %v8458 = vshrl.u32 %v8457, 7
      %v8459 = vsub.s32 0, %v8458
      %v8460 = vrot.slane %v8455, %v8459
      %v8462 = vadd.f32 %v8423, %v8460
      %v8463 = vadd.f32 %v8424, %v8460
      %v8464 = vadd.f32 %v8425, %v8460
      %v8465 = vadd.f32 %v8426, %v8460
      %v8466 = vadd.f32 %v8427, %v8460
      %v8467 = vadd.f32 %v8428, %v8460
      %v8468 = vadd.f32 %v8429, %v8460
      %v8469 = vadd.f32 %v8430, %v8460
      %v8470 = vadd.f32 %v8431, %v8460
      %v8471 = vadd.f32 %v8432, %v8460
      %v8472 = vadd.f32 %v8433, %v8460
      %v8473 = vadd.f32 %v8434, %v8460
      %v8474 = vadd.f32 %v8435, %v8460
      %v8475 = vadd.f32 %v8436, %v8460
      %v8476 = vadd.f32 %v8437, %v8460
      %v8477 = vadd.f32 %v8438, %v8460
      %v8478 = vadd.f32 %v8462, %v8439
      %v8479 = vadd.f32 %v8463, %v8440
      %v8480 = vadd.f32 %v8464, %v8441
      %v8481 = vadd.f32 %v8465, %v8442
      %v8482 = vadd.f32 %v8466, %v8443
      %v8483 = vadd.f32 %v8467, %v8444
      %v8484 = vadd.f32 %v8468, %v8445
      %v8485 = vadd.f32 %v8469, %v8446
      %v8486 = vadd.f32 %v8470, %v8447
      %v8487 = vadd.f32 %v8471, %v8448
      %v8488 = vadd.f32 %v8472, %v8449
      %v8489 = vadd.f32 %v8473, %v8450
      %v8490 = vadd.f32 %v8474, %v8451
      %v8491 = vadd.f32 %v8475, %v8452
      %v8492 = vadd.f32 %v8476, %v8453
      %v8493 = vadd.f32 %v8477, %v8454
      %8494 = vst [vmem:[%s224] sm:$0xff] %v8478
      %8495 = vst [vmem:[%s224 + $0x8] sm:$0xff] %v8479
      %8496 = vst [vmem:[%s224 + $0x10] sm:$0xff] %v8480
      %8497 = vst [vmem:[%s224 + $0x18] sm:$0xff] %v8481
      %8498 = vst [vmem:[%s224 + $0x20] sm:$0xff] %v8482
      %8499 = vst [vmem:[%s224 + $0x28] sm:$0xff] %v8483
      %8500 = vst [vmem:[%s224 + $0x30] sm:$0xff] %v8484
      %8501 = vst [vmem:[%s224 + $0x38] sm:$0xff] %v8485
      %8502 = vst [vmem:[%s224 + $0x40] sm:$0xff] %v8486
      %8503 = vst [vmem:[%s224 + $0x48] sm:$0xff] %v8487
      %8504 = vst [vmem:[%s224 + $0x50] sm:$0xff] %v8488
      %8505 = vst [vmem:[%s224 + $0x58] sm:$0xff] %v8489
      %8506 = vst [vmem:[%s224 + $0x60] sm:$0xff] %v8490
      %8507 = vst [vmem:[%s224 + $0x68] sm:$0xff] %v8491
      %8508 = vst [vmem:[%s224 + $0x70] sm:$0xff] %v8492
      %8509 = vst [vmem:[%s224 + $0x78] sm:$0xff] %v8493
      %v8510 = vld [vmem:[#allocation3 + $0x40] sm:$0xc0]
      %v8511 = vld [vmem:[#allocation3 + $0x48] sm:$0xff]
      %v8512 = vld [vmem:[#allocation3 + $0x50] sm:$0xff]
      %v8513 = vld [vmem:[#allocation3 + $0x58] sm:$0xff]
      %v8514 = vld [vmem:[#allocation3 + $0x60] sm:$0xff]
      %v8515 = vld [vmem:[#allocation3 + $0x68] sm:$0xff]
      %v8516 = vld [vmem:[#allocation3 + $0x70] sm:$0xff]
      %v8517 = vld [vmem:[#allocation3 + $0x78] sm:$0xff]
      %v8518 = vld [vmem:[#allocation3 + $0x80] sm:$0x7f]
      %v8519 = vld [vmem:[%s3] sm:$0xf]
      %v8520 = vld [vmem:[%s3 + $0x4] sm:$0xf]
      %v8521 = vld [vmem:[%s3 + $0x8] sm:$0xf]
      %v8522 = vld [vmem:[%s3 + $0xc] sm:$0xf]
      %v8523 = vld [vmem:[%s3 + $0x10] sm:$0xf]
      %v8524 = vld [vmem:[%s3 + $0x14] sm:$0xf]
      %v8525 = vld [vmem:[%s3 + $0x18] sm:$0xf]
      %v8526 = vld [vmem:[%s3 + $0x1c] sm:$0xf]
      %v8527 = vld [vmem:[%s3 + $0x20] sm:$0xf]
      %v8528 = vld [vmem:[%s3 + $0x24] sm:$0xf]
      %v8529 = vld [vmem:[%s3 + $0x28] sm:$0xf]
      %v8530 = vld [vmem:[%s3 + $0x2c] sm:$0xf]
      %v8531 = vld [vmem:[%s3 + $0x30] sm:$0xf]
      %v8532 = vld [vmem:[%s3 + $0x34] sm:$0xf]
      %v8533 = vld [vmem:[%s3 + $0x38] sm:$0xf]
      %v8534 = vld [vmem:[%s3 + $0x3c] sm:$0xf]
      %v8535 = vld [vmem:[#allocation3 + $0x40] sm:$0x80]
      %v8536 = vld [vmem:[%s6377] sm:$0xf]
      %v8537 = vld [vmem:[%s6377 + $0x4] sm:$0xf]
      %v8538 = vld [vmem:[%s6377 + $0x8] sm:$0xf]
      %v8539 = vld [vmem:[%s6377 + $0xc] sm:$0xf]
      %v8540 = vld [vmem:[%s6377 + $0x10] sm:$0xf]
      %v8541 = vld [vmem:[%s6377 + $0x14] sm:$0xf]
      %v8542 = vld [vmem:[%s6377 + $0x18] sm:$0xf]
      %v8543 = vld [vmem:[%s6377 + $0x1c] sm:$0xf]
      %v8544 = vld [vmem:[%s6377 + $0x20] sm:$0xf]
      %v8545 = vld [vmem:[%s6377 + $0x24] sm:$0xf]
      %v8546 = vld [vmem:[%s6377 + $0x28] sm:$0xf]
      %v8547 = vld [vmem:[%s6377 + $0x2c] sm:$0xf]
      %v8548 = vld [vmem:[%s6377 + $0x30] sm:$0xf]
      %v8549 = vld [vmem:[%s6377 + $0x34] sm:$0xf]
      %v8550 = vld [vmem:[%s6377 + $0x38] sm:$0xf]
      %v8551 = vld [vmem:[%s6377 + $0x3c] sm:$0xf]
      %v8561 = vrot.slane %v8535, 7
      %v8562 = vrot.slane %v8511, 7
      %v8563 = vsel %vm616, %v8561, %v8562
      %v8564 = vrot.slane %v8512, 7
      %v8565 = vsel %vm616, %v8562, %v8564
      %v8566 = vrot.slane %v8513, 7
      %v8567 = vsel %vm616, %v8564, %v8566
      %v8568 = vrot.slane %v8514, 7
      %v8569 = vsel %vm616, %v8566, %v8568
      %v8570 = vrot.slane %v8515, 7
      %v8571 = vsel %vm616, %v8568, %v8570
      %v8572 = vrot.slane %v8516, 7
      %v8573 = vsel %vm616, %v8570, %v8572
      %v8574 = vrot.slane %v8517, 7
      %v8575 = vsel %vm616, %v8572, %v8574
      %v8576 = vrot.slane %v8518, 7
      %v8577 = vsel %vm616, %v8574, %v8576
      %v8602 = vunpack.c.l.b16 %v8536
      %v8603 = vunpack.c.l.b16 %v8537
      %v8604 = vunpack.c.l.b16 %v8538
      %v8605 = vunpack.c.l.b16 %v8539
      %v8606 = vunpack.c.l.b16 %v8540
      %v8607 = vunpack.c.l.b16 %v8541
      %v8608 = vunpack.c.l.b16 %v8542
      %v8609 = vunpack.c.l.b16 %v8543
      %v8610 = vunpack.c.l.b16 %v8544
      %v8611 = vunpack.c.l.b16 %v8545
      %v8612 = vunpack.c.l.b16 %v8546
      %v8613 = vunpack.c.l.b16 %v8547
      %v8614 = vunpack.c.l.b16 %v8548
      %v8615 = vunpack.c.l.b16 %v8549
      %v8616 = vunpack.c.l.b16 %v8550
      %v8617 = vunpack.c.l.b16 %v8551
      %v8618 = vpack.c.b16 %v8603, %v8602
      %v8619 = vpack.c.b16 %v8605, %v8604
      %v8620 = vpack.c.b16 %v8607, %v8606
      %v8621 = vpack.c.b16 %v8609, %v8608
      %v8622 = vpack.c.b16 %v8611, %v8610
      %v8623 = vpack.c.b16 %v8613, %v8612
      %v8624 = vpack.c.b16 %v8615, %v8614
      %v8625 = vpack.c.b16 %v8617, %v8616
      %8634 = vmatprep.subr.bf16.mxu0 0
      %8635 = vmatpush1.bf16.msra.mxu0 %v8618
      %8636 = vmatprep.subr.bf16.mxu0 0
      %8637 = vmatpush1.bf16.msra.mxu0 %v8619
      %8638 = vmatprep.subr.bf16.mxu0 0
      %8639 = vmatpush1.bf16.msra.mxu0 %v8620
      %8640 = vmatprep.subr.bf16.mxu0 0
      %8641 = vmatpush1.bf16.msra.mxu0 %v8621
      %8642 = vmatprep.subr.bf16.mxu0 0
      %8643 = vmatpush1.bf16.msra.mxu0 %v8622
      %8644 = vmatprep.subr.bf16.mxu0 0
      %8645 = vmatpush1.bf16.msra.mxu0 %v8623
      %8646 = vmatprep.subr.bf16.mxu0 0
      %8647 = vmatpush1.bf16.msra.mxu0 %v8624
      %8648 = vmatprep.subr.bf16.mxu0 0
      %8649 = vmatpush1.bf16.msra.mxu0 %v8625
      %8650 = vmatprep.subr.bf16.mxu0 0
      %8651 = vmatpush1.bf16.msra.mxu0 0
      %8652 = vmatprep.subr.bf16.mxu0 0
      %8653 = vmatpush1.bf16.msra.mxu0 0
      %8654 = vmatprep.subr.bf16.mxu0 0
      %8655 = vmatpush1.bf16.msra.mxu0 0
      %8656 = vmatprep.subr.bf16.mxu0 0
      %8657 = vmatpush1.bf16.msra.mxu0 0
      %8658 = vmatprep.subr.bf16.mxu0 0
      %8659 = vmatpush1.bf16.msra.mxu0 0
      %8660 = vmatprep.subr.bf16.mxu0 0
      %8661 = vmatpush1.bf16.msra.mxu0 0
      %8662 = vmatprep.subr.bf16.mxu0 0
      %8663 = vmatpush1.bf16.msra.mxu0 0
      %8664 = vmatprep.subr.bf16.mxu0 0
      %8665 = vmatpush1.bf16.msra.mxu0 0
      %8666 = vmatprep.mubr.bf16.mxu0 0
      %8667 = vmatmul.mubr.bf16.gmra.mrb[0].mxu0 %v8563
      %v8668 = vpop.f32.mrb[0].mxu0
      %v8669 = vadd.f32 0.0, %v8668
      %v8670 = vpop.f32.mrb[0].mxu0
      %v8671 = vpop.f32.mrb[0].mxu0
      %v8672 = vadd.f32 0.0, %v8671
      %v8673 = vpop.f32.mrb[0].mxu0
      %8674 = vmatprep.mubr.bf16.mxu0 0
      %8675 = vmatmul.mubr.bf16.gmra.mrb[0].mxu0 %v8565
      %v8676 = vpop.f32.mrb[0].mxu0
      %v8677 = vadd.f32 0.0, %v8676
      %v8678 = vpop.f32.mrb[0].mxu0
      %v8679 = vpop.f32.mrb[0].mxu0
      %v8680 = vadd.f32 0.0, %v8679
      %v8681 = vpop.f32.mrb[0].mxu0
      %8682 = vmatprep.mubr.bf16.mxu0 0
      %8683 = vmatmul.mubr.bf16.gmra.mrb[0].mxu0 %v8567
      %v8684 = vpop.f32.mrb[0].mxu0
      %v8685 = vadd.f32 0.0, %v8684
      %v8686 = vpop.f32.mrb[0].mxu0
      %v8687 = vpop.f32.mrb[0].mxu0
      %v8688 = vadd.f32 0.0, %v8687
      %v8689 = vpop.f32.mrb[0].mxu0
      %8690 = vmatprep.mubr.bf16.mxu0 0
      %8691 = vmatmul.mubr.bf16.gmra.mrb[0].mxu0 %v8569
      %v8692 = vpop.f32.mrb[0].mxu0
      %v8693 = vadd.f32 0.0, %v8692
      %v8694 = vpop.f32.mrb[0].mxu0
      %v8695 = vpop.f32.mrb[0].mxu0
      %v8696 = vadd.f32 0.0, %v8695
      %v8697 = vpop.f32.mrb[0].mxu0
      %8698 = vmatprep.mubr.bf16.mxu0 0
      %8699 = vmatmul.mubr.bf16.gmra.mrb[0].mxu0 %v8571
      %v8700 = vpop.f32.mrb[0].mxu0
      %v8701 = vadd.f32 0.0, %v8700
      %v8702 = vpop.f32.mrb[0].mxu0
      %v8703 = vpop.f32.mrb[0].mxu0
      %v8704 = vadd.f32 0.0, %v8703
      %v8705 = vpop.f32.mrb[0].mxu0
      %8706 = vmatprep.mubr.bf16.mxu0 0
      %8707 = vmatmul.mubr.bf16.gmra.mrb[0].mxu0 %v8573
      %v8708 = vpop.f32.mrb[0].mxu0
      %v8709 = vadd.f32 0.0, %v8708
      %v8710 = vpop.f32.mrb[0].mxu0
      %v8711 = vpop.f32.mrb[0].mxu0
      %v8712 = vadd.f32 0.0, %v8711
      %v8713 = vpop.f32.mrb[0].mxu0
      %8714 = vmatprep.mubr.bf16.mxu0 0
      %8715 = vmatmul.mubr.bf16.gmra.mrb[0].mxu0 %v8575
      %v8716 = vpop.f32.mrb[0].mxu0
      %v8717 = vadd.f32 0.0, %v8716
      %v8718 = vpop.f32.mrb[0].mxu0
      %v8719 = vpop.f32.mrb[0].mxu0
      %v8720 = vadd.f32 0.0, %v8719
      %v8721 = vpop.f32.mrb[0].mxu0
      %8722 = vmatprep.mubr.bf16.mxu0 0
      %8723 = vmatmul.mubr.bf16.gmra.mrb[0].mxu0 %v8577
      %v8724 = vpop.f32.mrb[0].mxu0
      %v8725 = vadd.f32 0.0, %v8724
      %v8726 = vpop.f32.mrb[0].mxu0
      %v8727 = vpop.f32.mrb[0].mxu0
      %v8728 = vadd.f32 0.0, %v8727
      %v8729 = vpop.f32.mrb[0].mxu0
      %8730 = vdwg.mxu0
      %v8732 = vshrl.u32 %v8510, 16
      %v8734 = vrot.slane %v8732, 6
      %v8735 = vshll.u32 %v8510, 16
      %v8737 = vrot.slane %v8735, 7
      %v8738 = vor.u32 %v8734, %v8737
      %v8740 = vshrl.u32 %v8511, 16
      %v8742 = vrot.slane %v8740, 6
      %v8743 = vshll.u32 %v8511, 16
      %v8745 = vrot.slane %v8743, 7
      %v8746 = vor.u32 %v8742, %v8745
      %v8747 = vsel %vm6573, %v8738, %v8746
      %v8749 = vshrl.u32 %v8512, 16
      %v8751 = vrot.slane %v8749, 6
      %v8752 = vshll.u32 %v8512, 16
      %v8754 = vrot.slane %v8752, 7
      %v8755 = vor.u32 %v8751, %v8754
      %v8756 = vsel %vm6573, %v8746, %v8755
      %v8758 = vshrl.u32 %v8513, 16
      %v8760 = vrot.slane %v8758, 6
      %v8761 = vshll.u32 %v8513, 16
      %v8763 = vrot.slane %v8761, 7
      %v8764 = vor.u32 %v8760, %v8763
      %v8765 = vsel %vm6573, %v8755, %v8764
      %v8767 = vshrl.u32 %v8514, 16
      %v8769 = vrot.slane %v8767, 6
      %v8770 = vshll.u32 %v8514, 16
      %v8772 = vrot.slane %v8770, 7
      %v8773 = vor.u32 %v8769, %v8772
      %v8774 = vsel %vm6573, %v8764, %v8773
      %v8776 = vshrl.u32 %v8515, 16
      %v8778 = vrot.slane %v8776, 6
      %v8779 = vshll.u32 %v8515, 16
      %v8781 = vrot.slane %v8779, 7
      %v8782 = vor.u32 %v8778, %v8781
      %v8783 = vsel %vm6573, %v8773, %v8782
      %v8785 = vshrl.u32 %v8516, 16
      %v8787 = vrot.slane %v8785, 6
      %v8788 = vshll.u32 %v8516, 16
      %v8790 = vrot.slane %v8788, 7
      %v8791 = vor.u32 %v8787, %v8790
      %v8792 = vsel %vm6573, %v8782, %v8791
      %v8794 = vshrl.u32 %v8517, 16
      %v8796 = vrot.slane %v8794, 6
      %v8797 = vshll.u32 %v8517, 16
      %v8799 = vrot.slane %v8797, 7
      %v8800 = vor.u32 %v8796, %v8799
      %v8801 = vsel %vm6573, %v8791, %v8800
      %v8803 = vshrl.u32 %v8518, 16
      %v8805 = vrot.slane %v8803, 6
      %v8806 = vshll.u32 %v8518, 16
      %v8808 = vrot.slane %v8806, 7
      %v8809 = vor.u32 %v8805, %v8808
      %v8810 = vsel %vm6573, %v8800, %v8809
      %v8835 = vunpack.c.l.b16 %v8519
      %v8836 = vunpack.c.l.b16 %v8520
      %v8837 = vunpack.c.l.b16 %v8521
      %v8838 = vunpack.c.l.b16 %v8522
      %v8839 = vunpack.c.l.b16 %v8523
      %v8840 = vunpack.c.l.b16 %v8524
      %v8841 = vunpack.c.l.b16 %v8525
      %v8842 = vunpack.c.l.b16 %v8526
      %v8843 = vunpack.c.l.b16 %v8527
      %v8844 = vunpack.c.l.b16 %v8528
      %v8845 = vunpack.c.l.b16 %v8529
      %v8846 = vunpack.c.l.b16 %v8530
      %v8847 = vunpack.c.l.b16 %v8531
      %v8848 = vunpack.c.l.b16 %v8532
      %v8849 = vunpack.c.l.b16 %v8533
      %v8850 = vunpack.c.l.b16 %v8534
      %v8851 = vpack.c.b16 %v8836, %v8835
      %v8852 = vpack.c.b16 %v8838, %v8837
      %v8853 = vpack.c.b16 %v8840, %v8839
      %v8854 = vpack.c.b16 %v8842, %v8841
      %v8855 = vpack.c.b16 %v8844, %v8843
      %v8856 = vpack.c.b16 %v8846, %v8845
      %v8857 = vpack.c.b16 %v8848, %v8847
      %v8858 = vpack.c.b16 %v8850, %v8849
      %8867 = vmatprep.subr.bf16.mxu0 0
      %8868 = vmatpush1.bf16.msra.mxu0 %v8851
      %8869 = vmatprep.subr.bf16.mxu0 0
      %8870 = vmatpush1.bf16.msra.mxu0 %v8852
      %8871 = vmatprep.subr.bf16.mxu0 0
      %8872 = vmatpush1.bf16.msra.mxu0 %v8853
      %8873 = vmatprep.subr.bf16.mxu0 0
      %8874 = vmatpush1.bf16.msra.mxu0 %v8854
      %8875 = vmatprep.subr.bf16.mxu0 0
      %8876 = vmatpush1.bf16.msra.mxu0 %v8855
      %8877 = vmatprep.subr.bf16.mxu0 0
      %8878 = vmatpush1.bf16.msra.mxu0 %v8856
      %8879 = vmatprep.subr.bf16.mxu0 0
      %8880 = vmatpush1.bf16.msra.mxu0 %v8857
      %8881 = vmatprep.subr.bf16.mxu0 0
      %8882 = vmatpush1.bf16.msra.mxu0 %v8858
      %8883 = vmatprep.subr.bf16.mxu0 0
      %8884 = vmatpush1.bf16.msra.mxu0 0
      %8885 = vmatprep.subr.bf16.mxu0 0
      %8886 = vmatpush1.bf16.msra.mxu0 0
      %8887 = vmatprep.subr.bf16.mxu0 0
      %8888 = vmatpush1.bf16.msra.mxu0 0
      %8889 = vmatprep.subr.bf16.mxu0 0
      %8890 = vmatpush1.bf16.msra.mxu0 0
      %8891 = vmatprep.subr.bf16.mxu0 0
      %8892 = vmatpush1.bf16.msra.mxu0 0
      %8893 = vmatprep.subr.bf16.mxu0 0
      %8894 = vmatpush1.bf16.msra.mxu0 0
      %8895 = vmatprep.subr.bf16.mxu0 0
      %8896 = vmatpush1.bf16.msra.mxu0 0
      %8897 = vmatprep.subr.bf16.mxu0 0
      %8898 = vmatpush1.bf16.msra.mxu0 0
      %8899 = vmatprep.mubr.bf16.mxu0 0
      %8900 = vmatmul.mubr.bf16.gmra.mrb[0].mxu0 %v8747
      %v8901 = vpop.f32.mrb[0].mxu0
      %v8902 = vadd.f32 %v8669, %v8901
      %v8903 = vpop.f32.mrb[0].mxu0
      %v8904 = vpop.f32.mrb[0].mxu0
      %v8905 = vadd.f32 %v8672, %v8904
      %v8906 = vpop.f32.mrb[0].mxu0
      %8907 = vmatprep.mubr.bf16.mxu0 0
      %8908 = vmatmul.mubr.bf16.gmra.mrb[0].mxu0 %v8756
      %v8909 = vpop.f32.mrb[0].mxu0
      %v8910 = vadd.f32 %v8677, %v8909
      %v8911 = vpop.f32.mrb[0].mxu0
      %v8912 = vpop.f32.mrb[0].mxu0
      %v8913 = vadd.f32 %v8680, %v8912
      %v8914 = vpop.f32.mrb[0].mxu0
      %8915 = vmatprep.mubr.bf16.mxu0 0
      %8916 = vmatmul.mubr.bf16.gmra.mrb[0].mxu0 %v8765
      %v8917 = vpop.f32.mrb[0].mxu0
      %v8918 = vadd.f32 %v8685, %v8917
      %v8919 = vpop.f32.mrb[0].mxu0
      %v8920 = vpop.f32.mrb[0].mxu0
      %v8921 = vadd.f32 %v8688, %v8920
      %v8922 = vpop.f32.mrb[0].mxu0
      %8923 = vmatprep.mubr.bf16.mxu0 0
      %8924 = vmatmul.mubr.bf16.gmra.mrb[0].mxu0 %v8774
      %v8925 = vpop.f32.mrb[0].mxu0
      %v8926 = vadd.f32 %v8693, %v8925
      %v8927 = vpop.f32.mrb[0].mxu0
      %v8928 = vpop.f32.mrb[0].mxu0
      %v8929 = vadd.f32 %v8696, %v8928
      %v8930 = vpop.f32.mrb[0].mxu0
      %8931 = vmatprep.mubr.bf16.mxu0 0
      %8932 = vmatmul.mubr.bf16.gmra.mrb[0].mxu0 %v8783
      %v8933 = vpop.f32.mrb[0].mxu0
      %v8934 = vadd.f32 %v8701, %v8933
      %v8935 = vpop.f32.mrb[0].mxu0
      %v8936 = vpop.f32.mrb[0].mxu0
      %v8937 = vadd.f32 %v8704, %v8936
      %v8938 = vpop.f32.mrb[0].mxu0
      %8939 = vmatprep.mubr.bf16.mxu0 0
      %8940 = vmatmul.mubr.bf16.gmra.mrb[0].mxu0 %v8792
      %v8941 = vpop.f32.mrb[0].mxu0
      %v8942 = vadd.f32 %v8709, %v8941
      %v8943 = vpop.f32.mrb[0].mxu0
      %v8944 = vpop.f32.mrb[0].mxu0
      %v8945 = vadd.f32 %v8712, %v8944
      %v8946 = vpop.f32.mrb[0].mxu0
      %8947 = vmatprep.mubr.bf16.mxu0 0
      %8948 = vmatmul.mubr.bf16.gmra.mrb[0].mxu0 %v8801
      %v8949 = vpop.f32.mrb[0].mxu0
      %v8950 = vadd.f32 %v8717, %v8949
      %v8951 = vpop.f32.mrb[0].mxu0
      %v8952 = vpop.f32.mrb[0].mxu0
      %v8953 = vadd.f32 %v8720, %v8952
      %v8954 = vpop.f32.mrb[0].mxu0
      %8955 = vmatprep.mubr.bf16.mxu0 0
      %8956 = vmatmul.mubr.bf16.gmra.mrb[0].mxu0 %v8810
      %v8957 = vpop.f32.mrb[0].mxu0
      %v8958 = vadd.f32 %v8725, %v8957
      %v8959 = vpop.f32.mrb[0].mxu0
      %v8960 = vpop.f32.mrb[0].mxu0
      %v8961 = vadd.f32 %v8728, %v8960
      %v8962 = vpop.f32.mrb[0].mxu0
      %8963 = vdwg.mxu0
      %v8964 = vld [vmem:[#allocation3 + $0x80] sm:$0xff]
      %v8965 = vld [vmem:[%s6808] sm:$0xf]
      %v8966 = vld [vmem:[%s6808 + $0x4] sm:$0xf]
      %v8967 = vld [vmem:[%s6808 + $0x8] sm:$0xf]
      %v8968 = vld [vmem:[%s6808 + $0xc] sm:$0xf]
      %v8969 = vld [vmem:[%s6808 + $0x10] sm:$0xf]
      %v8970 = vld [vmem:[%s6808 + $0x14] sm:$0xf]
      %v8971 = vld [vmem:[%s6808 + $0x18] sm:$0xf]
      %v8972 = vld [vmem:[%s6808 + $0x1c] sm:$0xf]
      %v8973 = vld [vmem:[%s6808 + $0x20] sm:$0xf]
      %v8974 = vld [vmem:[%s6808 + $0x24] sm:$0xf]
      %v8975 = vld [vmem:[%s6808 + $0x28] sm:$0xf]
      %v8976 = vld [vmem:[%s6808 + $0x2c] sm:$0xf]
      %v8977 = vld [vmem:[%s6808 + $0x30] sm:$0xf]
      %v8978 = vld [vmem:[%s6808 + $0x34] sm:$0xf]
      %v8979 = vld [vmem:[%s6808 + $0x38] sm:$0xf]
      %v8980 = vld [vmem:[%s6808 + $0x3c] sm:$0xf]
      %v8982 = vshrl.u32 %v8535, 16
      %v8984 = vrot.slane %v8982, 7
      %v8985 = vrot.slane %v8740, 7
      %v8986 = vor.u32 %v8985, %v8743
      %v8987 = vsel %vm385, %v8984, %v8986
      %v8988 = vrot.slane %v8749, 7
      %v8989 = vor.u32 %v8988, %v8752
      %v8990 = vsel %vm385, %v8985, %v8989
      %v8991 = vrot.slane %v8758, 7
      %v8992 = vor.u32 %v8991, %v8761
      %v8993 = vsel %vm385, %v8988, %v8992
      %v8994 = vrot.slane %v8767, 7
      %v8995 = vor.u32 %v8994, %v8770
      %v8996 = vsel %vm385, %v8991, %v8995
      %v8997 = vrot.slane %v8776, 7
      %v8998 = vor.u32 %v8997, %v8779
      %v8999 = vsel %vm385, %v8994, %v8998
      %v9000 = vrot.slane %v8785, 7
      %v9001 = vor.u32 %v9000, %v8788
      %v9002 = vsel %vm385, %v8997, %v9001
      %v9003 = vrot.slane %v8794, 7
      %v9004 = vor.u32 %v9003, %v8797
      %v9005 = vsel %vm385, %v9000, %v9004
      %v9007 = vshrl.u32 %v8964, 16
      %v9009 = vrot.slane %v9007, 7
      %v9010 = vshll.u32 %v8964, 16
      %v9012 = vor.u32 %v9009, %v9010
      %v9013 = vsel %vm385, %v9003, %v9012
      %v9038 = vunpack.c.l.b16 %v8965
      %v9039 = vunpack.c.l.b16 %v8966
      %v9040 = vunpack.c.l.b16 %v8967
      %v9041 = vunpack.c.l.b16 %v8968
      %v9042 = vunpack.c.l.b16 %v8969
      %v9043 = vunpack.c.l.b16 %v8970
      %v9044 = vunpack.c.l.b16 %v8971
      %v9045 = vunpack.c.l.b16 %v8972
      %v9046 = vunpack.c.l.b16 %v8973
      %v9047 = vunpack.c.l.b16 %v8974
      %v9048 = vunpack.c.l.b16 %v8975
      %v9049 = vunpack.c.l.b16 %v8976
      %v9050 = vunpack.c.l.b16 %v8977
      %v9051 = vunpack.c.l.b16 %v8978
      %v9052 = vunpack.c.l.b16 %v8979
      %v9053 = vunpack.c.l.b16 %v8980
      %v9054 = vpack.c.b16 %v9039, %v9038
      %v9055 = vpack.c.b16 %v9041, %v9040
      %v9056 = vpack.c.b16 %v9043, %v9042
      %v9057 = vpack.c.b16 %v9045, %v9044
      %v9058 = vpack.c.b16 %v9047, %v9046
      %v9059 = vpack.c.b16 %v9049, %v9048
      %v9060 = vpack.c.b16 %v9051, %v9050
      %v9061 = vpack.c.b16 %v9053, %v9052
      %9070 = vmatprep.subr.bf16.mxu0 0
      %9071 = vmatpush1.bf16.msra.mxu0 %v9054
      %9072 = vmatprep.subr.bf16.mxu0 0
      %9073 = vmatpush1.bf16.msra.mxu0 %v9055
      %9074 = vmatprep.subr.bf16.mxu0 0
      %9075 = vmatpush1.bf16.msra.mxu0 %v9056
      %9076 = vmatprep.subr.bf16.mxu0 0
      %9077 = vmatpush1.bf16.msra.mxu0 %v9057
      %9078 = vmatprep.subr.bf16.mxu0 0
      %9079 = vmatpush1.bf16.msra.mxu0 %v9058
      %9080 = vmatprep.subr.bf16.mxu0 0
      %9081 = vmatpush1.bf16.msra.mxu0 %v9059
      %9082 = vmatprep.subr.bf16.mxu0 0
      %9083 = vmatpush1.bf16.msra.mxu0 %v9060
      %9084 = vmatprep.subr.bf16.mxu0 0
      %9085 = vmatpush1.bf16.msra.mxu0 %v9061
      %9086 = vmatprep.subr.bf16.mxu0 0
      %9087 = vmatpush1.bf16.msra.mxu0 0
      %9088 = vmatprep.subr.bf16.mxu0 0
      %9089 = vmatpush1.bf16.msra.mxu0 0
      %9090 = vmatprep.subr.bf16.mxu0 0
      %9091 = vmatpush1.bf16.msra.mxu0 0
      %9092 = vmatprep.subr.bf16.mxu0 0
      %9093 = vmatpush1.bf16.msra.mxu0 0
      %9094 = vmatprep.subr.bf16.mxu0 0
      %9095 = vmatpush1.bf16.msra.mxu0 0
      %9096 = vmatprep.subr.bf16.mxu0 0
      %9097 = vmatpush1.bf16.msra.mxu0 0
      %9098 = vmatprep.subr.bf16.mxu0 0
      %9099 = vmatpush1.bf16.msra.mxu0 0
      %9100 = vmatprep.subr.bf16.mxu0 0
      %9101 = vmatpush1.bf16.msra.mxu0 0
      %9102 = vmatprep.mubr.bf16.mxu0 0
      %9103 = vmatmul.mubr.bf16.gmra.mrb[0].mxu0 %v8987
      %v9104 = vpop.f32.mrb[0].mxu0
      %v9105 = vadd.f32 0.0, %v9104
      %v9106 = vpop.f32.mrb[0].mxu0
      %v9107 = vpop.f32.mrb[0].mxu0
      %v9108 = vadd.f32 0.0, %v9107
      %v9109 = vpop.f32.mrb[0].mxu0
      %9110 = vmatprep.mubr.bf16.mxu0 0
      %9111 = vmatmul.mubr.bf16.gmra.mrb[0].mxu0 %v8990
      %v9112 = vpop.f32.mrb[0].mxu0
      %v9113 = vadd.f32 0.0, %v9112
      %v9114 = vpop.f32.mrb[0].mxu0
      %v9115 = vpop.f32.mrb[0].mxu0
      %v9116 = vadd.f32 0.0, %v9115
      %v9117 = vpop.f32.mrb[0].mxu0
      %9118 = vmatprep.mubr.bf16.mxu0 0
      %9119 = vmatmul.mubr.bf16.gmra.mrb[0].mxu0 %v8993
      %v9120 = vpop.f32.mrb[0].mxu0
      %v9121 = vadd.f32 0.0, %v9120
      %v9122 = vpop.f32.mrb[0].mxu0
      %v9123 = vpop.f32.mrb[0].mxu0
      %v9124 = vadd.f32 0.0, %v9123
      %v9125 = vpop.f32.mrb[0].mxu0
      %9126 = vmatprep.mubr.bf16.mxu0 0
      %9127 = vmatmul.mubr.bf16.gmra.mrb[0].mxu0 %v8996
      %v9128 = vpop.f32.mrb[0].mxu0
      %v9129 = vadd.f32 0.0, %v9128
      %v9130 = vpop.f32.mrb[0].mxu0
      %v9131 = vpop.f32.mrb[0].mxu0
      %v9132 = vadd.f32 0.0, %v9131
      %v9133 = vpop.f32.mrb[0].mxu0
      %9134 = vmatprep.mubr.bf16.mxu0 0
      %9135 = vmatmul.mubr.bf16.gmra.mrb[0].mxu0 %v8999
      %v9136 = vpop.f32.mrb[0].mxu0
      %v9137 = vadd.f32 0.0, %v9136
      %v9138 = vpop.f32.mrb[0].mxu0
      %v9139 = vpop.f32.mrb[0].mxu0
      %v9140 = vadd.f32 0.0, %v9139
      %v9141 = vpop.f32.mrb[0].mxu0
      %9142 = vmatprep.mubr.bf16.mxu0 0
      %9143 = vmatmul.mubr.bf16.gmra.mrb[0].mxu0 %v9002
      %v9144 = vpop.f32.mrb[0].mxu0
      %v9145 = vadd.f32 0.0, %v9144
      %v9146 = vpop.f32.mrb[0].mxu0
      %v9147 = vpop.f32.mrb[0].mxu0
      %v9148 = vadd.f32 0.0, %v9147
      %v9149 = vpop.f32.mrb[0].mxu0
      %9150 = vmatprep.mubr.bf16.mxu0 0
      %9151 = vmatmul.mubr.bf16.gmra.mrb[0].mxu0 %v9005
      %v9152 = vpop.f32.mrb[0].mxu0
      %v9153 = vadd.f32 0.0, %v9152
      %v9154 = vpop.f32.mrb[0].mxu0
      %v9155 = vpop.f32.mrb[0].mxu0
      %v9156 = vadd.f32 0.0, %v9155
      %v9157 = vpop.f32.mrb[0].mxu0
      %9158 = vmatprep.mubr.bf16.mxu0 0
      %9159 = vmatmul.mubr.bf16.gmra.mrb[0].mxu0 %v9013
      %v9160 = vpop.f32.mrb[0].mxu0
      %v9161 = vadd.f32 0.0, %v9160
      %v9162 = vpop.f32.mrb[0].mxu0
      %v9163 = vpop.f32.mrb[0].mxu0
      %v9164 = vadd.f32 0.0, %v9163
      %v9165 = vpop.f32.mrb[0].mxu0
      %9166 = vdwg.mxu0
      %v9167 = vadd.f32 %v8902, %v9105
      %v9168 = vadd.f32 %v8905, %v9108
      %v9169 = vadd.f32 %v8910, %v9113
      %v9170 = vadd.f32 %v8913, %v9116
      %v9171 = vadd.f32 %v8918, %v9121
      %v9172 = vadd.f32 %v8921, %v9124
      %v9173 = vadd.f32 %v8926, %v9129
      %v9174 = vadd.f32 %v8929, %v9132
      %v9175 = vadd.f32 %v8934, %v9137
      %v9176 = vadd.f32 %v8937, %v9140
      %v9177 = vadd.f32 %v8942, %v9145
      %v9178 = vadd.f32 %v8945, %v9148
      %v9179 = vadd.f32 %v8950, %v9153
      %v9180 = vadd.f32 %v8953, %v9156
      %v9181 = vadd.f32 %v8958, %v9161
      %v9182 = vadd.f32 %v8961, %v9164
      %v9183 = vld [vmem:[#allocation3 + $0x48] sm:$0x80]
      %v9184 = vld [vmem:[#allocation3 + $0x50] sm:$0xff]
      %v9185 = vld [vmem:[#allocation3 + $0x58] sm:$0xff]
      %v9186 = vld [vmem:[#allocation3 + $0x60] sm:$0xff]
      %v9187 = vld [vmem:[#allocation3 + $0x68] sm:$0xff]
      %v9188 = vld [vmem:[#allocation3 + $0x70] sm:$0xff]
      %v9189 = vld [vmem:[#allocation3 + $0x78] sm:$0xff]
      %v9190 = vld [vmem:[#allocation3 + $0x80] sm:$0xff]
      %v9191 = vld [vmem:[#allocation3 + $0x88] sm:$0xff]
      %v9192 = vld [vmem:[%s7036] sm:$0xf]
      %v9193 = vld [vmem:[%s7036 + $0x4] sm:$0xf]
      %v9194 = vld [vmem:[%s7036 + $0x8] sm:$0xf]
      %v9195 = vld [vmem:[%s7036 + $0xc] sm:$0xf]
      %v9196 = vld [vmem:[%s7036 + $0x10] sm:$0xf]
      %v9197 = vld [vmem:[%s7036 + $0x14] sm:$0xf]
      %v9198 = vld [vmem:[%s7036 + $0x18] sm:$0xf]
      %v9199 = vld [vmem:[%s7036 + $0x1c] sm:$0xf]
      %v9200 = vld [vmem:[%s7036 + $0x20] sm:$0xf]
      %v9201 = vld [vmem:[%s7036 + $0x24] sm:$0xf]
      %v9202 = vld [vmem:[%s7036 + $0x28] sm:$0xf]
      %v9203 = vld [vmem:[%s7036 + $0x2c] sm:$0xf]
      %v9204 = vld [vmem:[%s7036 + $0x30] sm:$0xf]
      %v9205 = vld [vmem:[%s7036 + $0x34] sm:$0xf]
      %v9206 = vld [vmem:[%s7036 + $0x38] sm:$0xf]
      %v9207 = vld [vmem:[%s7036 + $0x3c] sm:$0xf]
      %v9209 = vshrl.u32 %v9183, 16
      %v9211 = vrot.slane %v9209, 7
      %v9213 = vshrl.u32 %v9184, 16
      %v9215 = vrot.slane %v9213, 7
      %v9216 = vshll.u32 %v9184, 16
      %v9218 = vor.u32 %v9215, %v9216
      %v9219 = vsel %vm385, %v9211, %v9218
      %v9221 = vshrl.u32 %v9185, 16
      %v9223 = vrot.slane %v9221, 7
      %v9224 = vshll.u32 %v9185, 16
      %v9226 = vor.u32 %v9223, %v9224
      %v9227 = vsel %vm385, %v9215, %v9226
      %v9229 = vshrl.u32 %v9186, 16
      %v9231 = vrot.slane %v9229, 7
      %v9232 = vshll.u32 %v9186, 16
      %v9234 = vor.u32 %v9231, %v9232
      %v9235 = vsel %vm385, %v9223, %v9234
      %v9237 = vshrl.u32 %v9187, 16
      %v9239 = vrot.slane %v9237, 7
      %v9240 = vshll.u32 %v9187, 16
      %v9242 = vor.u32 %v9239, %v9240
      %v9243 = vsel %vm385, %v9231, %v9242
      %v9245 = vshrl.u32 %v9188, 16
      %v9247 = vrot.slane %v9245, 7
      %v9248 = vshll.u32 %v9188, 16
      %v9250 = vor.u32 %v9247, %v9248
      %v9251 = vsel %vm385, %v9239, %v9250
      %v9253 = vshrl.u32 %v9189, 16
      %v9255 = vrot.slane %v9253, 7
      %v9256 = vshll.u32 %v9189, 16
      %v9258 = vor.u32 %v9255, %v9256
      %v9259 = vsel %vm385, %v9247, %v9258
      %v9261 = vshrl.u32 %v9190, 16
      %v9263 = vrot.slane %v9261, 7
      %v9264 = vshll.u32 %v9190, 16
      %v9266 = vor.u32 %v9263, %v9264
      %v9267 = vsel %vm385, %v9255, %v9266
      %v9269 = vshrl.u32 %v9191, 16
      %v9271 = vrot.slane %v9269, 7
      %v9272 = vshll.u32 %v9191, 16
      %v9274 = vor.u32 %v9271, %v9272
      %v9275 = vsel %vm385, %v9263, %v9274
      %v9300 = vunpack.c.l.b16 %v9192
      %v9301 = vunpack.c.l.b16 %v9193
      %v9302 = vunpack.c.l.b16 %v9194
      %v9303 = vunpack.c.l.b16 %v9195
      %v9304 = vunpack.c.l.b16 %v9196
      %v9305 = vunpack.c.l.b16 %v9197
      %v9306 = vunpack.c.l.b16 %v9198
      %v9307 = vunpack.c.l.b16 %v9199
      %v9308 = vunpack.c.l.b16 %v9200
      %v9309 = vunpack.c.l.b16 %v9201
      %v9310 = vunpack.c.l.b16 %v9202
      %v9311 = vunpack.c.l.b16 %v9203
      %v9312 = vunpack.c.l.b16 %v9204
      %v9313 = vunpack.c.l.b16 %v9205
      %v9314 = vunpack.c.l.b16 %v9206
      %v9315 = vunpack.c.l.b16 %v9207
      %v9316 = vpack.c.b16 %v9301, %v9300
      %v9317 = vpack.c.b16 %v9303, %v9302
      %v9318 = vpack.c.b16 %v9305, %v9304
      %v9319 = vpack.c.b16 %v9307, %v9306
      %v9320 = vpack.c.b16 %v9309, %v9308
      %v9321 = vpack.c.b16 %v9311, %v9310
      %v9322 = vpack.c.b16 %v9313, %v9312
      %v9323 = vpack.c.b16 %v9315, %v9314
      %9332 = vmatprep.subr.bf16.mxu0 0
      %9333 = vmatpush1.bf16.msra.mxu0 %v9316
      %9334 = vmatprep.subr.bf16.mxu0 0
      %9335 = vmatpush1.bf16.msra.mxu0 %v9317
      %9336 = vmatprep.subr.bf16.mxu0 0
      %9337 = vmatpush1.bf16.msra.mxu0 %v9318
      %9338 = vmatprep.subr.bf16.mxu0 0
      %9339 = vmatpush1.bf16.msra.mxu0 %v9319
      %9340 = vmatprep.subr.bf16.mxu0 0
      %9341 = vmatpush1.bf16.msra.mxu0 %v9320
      %9342 = vmatprep.subr.bf16.mxu0 0
      %9343 = vmatpush1.bf16.msra.mxu0 %v9321
      %9344 = vmatprep.subr.bf16.mxu0 0
      %9345 = vmatpush1.bf16.msra.mxu0 %v9322
      %9346 = vmatprep.subr.bf16.mxu0 0
      %9347 = vmatpush1.bf16.msra.mxu0 %v9323
      %9348 = vmatprep.subr.bf16.mxu0 0
      %9349 = vmatpush1.bf16.msra.mxu0 0
      %9350 = vmatprep.subr.bf16.mxu0 0
      %9351 = vmatpush1.bf16.msra.mxu0 0
      %9352 = vmatprep.subr.bf16.mxu0 0
      %9353 = vmatpush1.bf16.msra.mxu0 0
      %9354 = vmatprep.subr.bf16.mxu0 0
      %9355 = vmatpush1.bf16.msra.mxu0 0
      %9356 = vmatprep.subr.bf16.mxu0 0
      %9357 = vmatpush1.bf16.msra.mxu0 0
      %9358 = vmatprep.subr.bf16.mxu0 0
      %9359 = vmatpush1.bf16.msra.mxu0 0
      %9360 = vmatprep.subr.bf16.mxu0 0
      %9361 = vmatpush1.bf16.msra.mxu0 0
      %9362 = vmatprep.subr.bf16.mxu0 0
      %9363 = vmatpush1.bf16.msra.mxu0 0
      %9364 = vmatprep.mubr.bf16.mxu0 0
      %9365 = vmatmul.mubr.bf16.gmra.mrb[0].mxu0 %v9219
      %v9366 = vpop.f32.mrb[0].mxu0
      %v9367 = vadd.f32 0.0, %v9366
      %v9368 = vpop.f32.mrb[0].mxu0
      %v9369 = vpop.f32.mrb[0].mxu0
      %v9370 = vadd.f32 0.0, %v9369
      %v9371 = vpop.f32.mrb[0].mxu0
      %9372 = vmatprep.mubr.bf16.mxu0 0
      %9373 = vmatmul.mubr.bf16.gmra.mrb[0].mxu0 %v9227
      %v9374 = vpop.f32.mrb[0].mxu0
      %v9375 = vadd.f32 0.0, %v9374
      %v9376 = vpop.f32.mrb[0].mxu0
      %v9377 = vpop.f32.mrb[0].mxu0
      %v9378 = vadd.f32 0.0, %v9377
      %v9379 = vpop.f32.mrb[0].mxu0
      %9380 = vmatprep.mubr.bf16.mxu0 0
      %9381 = vmatmul.mubr.bf16.gmra.mrb[0].mxu0 %v9235
      %v9382 = vpop.f32.mrb[0].mxu0
      %v9383 = vadd.f32 0.0, %v9382
      %v9384 = vpop.f32.mrb[0].mxu0
      %v9385 = vpop.f32.mrb[0].mxu0
      %v9386 = vadd.f32 0.0, %v9385
      %v9387 = vpop.f32.mrb[0].mxu0
      %9388 = vmatprep.mubr.bf16.mxu0 0
      %9389 = vmatmul.mubr.bf16.gmra.mrb[0].mxu0 %v9243
      %v9390 = vpop.f32.mrb[0].mxu0
      %v9391 = vadd.f32 0.0, %v9390
      %v9392 = vpop.f32.mrb[0].mxu0
      %v9393 = vpop.f32.mrb[0].mxu0
      %v9394 = vadd.f32 0.0, %v9393
      %v9395 = vpop.f32.mrb[0].mxu0
      %9396 = vmatprep.mubr.bf16.mxu0 0
      %9397 = vmatmul.mubr.bf16.gmra.mrb[0].mxu0 %v9251
      %v9398 = vpop.f32.mrb[0].mxu0
      %v9399 = vadd.f32 0.0, %v9398
      %v9400 = vpop.f32.mrb[0].mxu0
      %v9401 = vpop.f32.mrb[0].mxu0
      %v9402 = vadd.f32 0.0, %v9401
      %v9403 = vpop.f32.mrb[0].mxu0
      %9404 = vmatprep.mubr.bf16.mxu0 0
      %9405 = vmatmul.mubr.bf16.gmra.mrb[0].mxu0 %v9259
      %v9406 = vpop.f32.mrb[0].mxu0
      %v9407 = vadd.f32 0.0, %v9406
      %v9408 = vpop.f32.mrb[0].mxu0
      %v9409 = vpop.f32.mrb[0].mxu0
      %v9410 = vadd.f32 0.0, %v9409
      %v9411 = vpop.f32.mrb[0].mxu0
      %9412 = vmatprep.mubr.bf16.mxu0 0
      %9413 = vmatmul.mubr.bf16.gmra.mrb[0].mxu0 %v9267
      %v9414 = vpop.f32.mrb[0].mxu0
      %v9415 = vadd.f32 0.0, %v9414
      %v9416 = vpop.f32.mrb[0].mxu0
      %v9417 = vpop.f32.mrb[0].mxu0
      %v9418 = vadd.f32 0.0, %v9417
      %v9419 = vpop.f32.mrb[0].mxu0
      %9420 = vmatprep.mubr.bf16.mxu0 0
      %9421 = vmatmul.mubr.bf16.gmra.mrb[0].mxu0 %v9275
      %v9422 = vpop.f32.mrb[0].mxu0
      %v9423 = vadd.f32 0.0, %v9422
      %v9424 = vpop.f32.mrb[0].mxu0
      %v9425 = vpop.f32.mrb[0].mxu0
      %v9426 = vadd.f32 0.0, %v9425
      %v9427 = vpop.f32.mrb[0].mxu0
      %9428 = vdwg.mxu0
      %v9429 = vadd.f32 %v9167, %v9367
      %v9430 = vadd.f32 %v9168, %v9370
      %v9431 = vadd.f32 %v9169, %v9375
      %v9432 = vadd.f32 %v9170, %v9378
      %v9433 = vadd.f32 %v9171, %v9383
      %v9434 = vadd.f32 %v9172, %v9386
      %v9435 = vadd.f32 %v9173, %v9391
      %v9436 = vadd.f32 %v9174, %v9394
      %v9437 = vadd.f32 %v9175, %v9399
      %v9438 = vadd.f32 %v9176, %v9402
      %v9439 = vadd.f32 %v9177, %v9407
      %v9440 = vadd.f32 %v9178, %v9410
      %v9441 = vadd.f32 %v9179, %v9415
      %v9442 = vadd.f32 %v9180, %v9418
      %v9443 = vadd.f32 %v9181, %v9423
      %v9444 = vadd.f32 %v9182, %v9426
      %v9445 = vld [vmem:[%s7290] sm:$0xf]
      %v9446 = vld [vmem:[%s7290 + $0x4] sm:$0xf]
      %v9447 = vld [vmem:[%s7290 + $0x8] sm:$0xf]
      %v9448 = vld [vmem:[%s7290 + $0xc] sm:$0xf]
      %v9449 = vld [vmem:[%s7290 + $0x10] sm:$0xf]
      %v9450 = vld [vmem:[%s7290 + $0x14] sm:$0xf]
      %v9451 = vld [vmem:[%s7290 + $0x18] sm:$0xf]
      %v9452 = vld [vmem:[%s7290 + $0x1c] sm:$0xf]
      %v9453 = vld [vmem:[%s7290 + $0x20] sm:$0xf]
      %v9454 = vld [vmem:[%s7290 + $0x24] sm:$0xf]
      %v9455 = vld [vmem:[%s7290 + $0x28] sm:$0xf]
      %v9456 = vld [vmem:[%s7290 + $0x2c] sm:$0xf]
      %v9457 = vld [vmem:[%s7290 + $0x30] sm:$0xf]
      %v9458 = vld [vmem:[%s7290 + $0x34] sm:$0xf]
      %v9459 = vld [vmem:[%s7290 + $0x38] sm:$0xf]
      %v9460 = vld [vmem:[%s7290 + $0x3c] sm:$0xf]
      %v9477 = vunpack.c.l.b16 %v9445
      %v9478 = vunpack.c.l.b16 %v9446
      %v9479 = vunpack.c.l.b16 %v9447
      %v9480 = vunpack.c.l.b16 %v9448
      %v9481 = vunpack.c.l.b16 %v9449
      %v9482 = vunpack.c.l.b16 %v9450
      %v9483 = vunpack.c.l.b16 %v9451
      %v9484 = vunpack.c.l.b16 %v9452
      %v9485 = vunpack.c.l.b16 %v9453
      %v9486 = vunpack.c.l.b16 %v9454
      %v9487 = vunpack.c.l.b16 %v9455
      %v9488 = vunpack.c.l.b16 %v9456
      %v9489 = vunpack.c.l.b16 %v9457
      %v9490 = vunpack.c.l.b16 %v9458
      %v9491 = vunpack.c.l.b16 %v9459
      %v9492 = vunpack.c.l.b16 %v9460
      %v9493 = vpack.c.b16 %v9478, %v9477
      %v9494 = vpack.c.b16 %v9480, %v9479
      %v9495 = vpack.c.b16 %v9482, %v9481
      %v9496 = vpack.c.b16 %v9484, %v9483
      %v9497 = vpack.c.b16 %v9486, %v9485
      %v9498 = vpack.c.b16 %v9488, %v9487
      %v9499 = vpack.c.b16 %v9490, %v9489
      %v9500 = vpack.c.b16 %v9492, %v9491
      %9509 = vmatprep.subr.bf16.mxu0 0
      %9510 = vmatpush1.bf16.msra.mxu0 %v9493
      %9511 = vmatprep.subr.bf16.mxu0 0
      %9512 = vmatpush1.bf16.msra.mxu0 %v9494
      %9513 = vmatprep.subr.bf16.mxu0 0
      %9514 = vmatpush1.bf16.msra.mxu0 %v9495
      %9515 = vmatprep.subr.bf16.mxu0 0
      %9516 = vmatpush1.bf16.msra.mxu0 %v9496
      %9517 = vmatprep.subr.bf16.mxu0 0
      %9518 = vmatpush1.bf16.msra.mxu0 %v9497
      %9519 = vmatprep.subr.bf16.mxu0 0
      %9520 = vmatpush1.bf16.msra.mxu0 %v9498
      %9521 = vmatprep.subr.bf16.mxu0 0
      %9522 = vmatpush1.bf16.msra.mxu0 %v9499
      %9523 = vmatprep.subr.bf16.mxu0 0
      %9524 = vmatpush1.bf16.msra.mxu0 %v9500
      %9525 = vmatprep.subr.bf16.mxu0 0
      %9526 = vmatpush1.bf16.msra.mxu0 0
      %9527 = vmatprep.subr.bf16.mxu0 0
      %9528 = vmatpush1.bf16.msra.mxu0 0
      %9529 = vmatprep.subr.bf16.mxu0 0
      %9530 = vmatpush1.bf16.msra.mxu0 0
      %9531 = vmatprep.subr.bf16.mxu0 0
      %9532 = vmatpush1.bf16.msra.mxu0 0
      %9533 = vmatprep.subr.bf16.mxu0 0
      %9534 = vmatpush1.bf16.msra.mxu0 0
      %9535 = vmatprep.subr.bf16.mxu0 0
      %9536 = vmatpush1.bf16.msra.mxu0 0
      %9537 = vmatprep.subr.bf16.mxu0 0
      %9538 = vmatpush1.bf16.msra.mxu0 0
      %9539 = vmatprep.subr.bf16.mxu0 0
      %9540 = vmatpush1.bf16.msra.mxu0 0
      %9541 = vmatprep.mubr.bf16.mxu0 0
      %9542 = vmatmul.mubr.bf16.gmra.mrb[0].mxu0 %v9184
      %v9543 = vpop.f32.mrb[0].mxu0
      %v9544 = vadd.f32 0.0, %v9543
      %v9545 = vpop.f32.mrb[0].mxu0
      %v9546 = vpop.f32.mrb[0].mxu0
      %v9547 = vadd.f32 0.0, %v9546
      %v9548 = vpop.f32.mrb[0].mxu0
      %9549 = vmatprep.mubr.bf16.mxu0 0
      %9550 = vmatmul.mubr.bf16.gmra.mrb[0].mxu0 %v9185
      %v9551 = vpop.f32.mrb[0].mxu0
      %v9552 = vadd.f32 0.0, %v9551
      %v9553 = vpop.f32.mrb[0].mxu0
      %v9554 = vpop.f32.mrb[0].mxu0
      %v9555 = vadd.f32 0.0, %v9554
      %v9556 = vpop.f32.mrb[0].mxu0
      %9557 = vmatprep.mubr.bf16.mxu0 0
      %9558 = vmatmul.mubr.bf16.gmra.mrb[0].mxu0 %v9186
      %v9559 = vpop.f32.mrb[0].mxu0
      %v9560 = vadd.f32 0.0, %v9559
      %v9561 = vpop.f32.mrb[0].mxu0
      %v9562 = vpop.f32.mrb[0].mxu0
      %v9563 = vadd.f32 0.0, %v9562
      %v9564 = vpop.f32.mrb[0].mxu0
      %9565 = vmatprep.mubr.bf16.mxu0 0
      %9566 = vmatmul.mubr.bf16.gmra.mrb[0].mxu0 %v9187
      %v9567 = vpop.f32.mrb[0].mxu0
      %v9568 = vadd.f32 0.0, %v9567
      %v9569 = vpop.f32.mrb[0].mxu0
      %v9570 = vpop.f32.mrb[0].mxu0
      %v9571 = vadd.f32 0.0, %v9570
      %v9572 = vpop.f32.mrb[0].mxu0
      %9573 = vmatprep.mubr.bf16.mxu0 0
      %9574 = vmatmul.mubr.bf16.gmra.mrb[0].mxu0 %v9188
      %v9575 = vpop.f32.mrb[0].mxu0
      %v9576 = vadd.f32 0.0, %v9575
      %v9577 = vpop.f32.mrb[0].mxu0
      %v9578 = vpop.f32.mrb[0].mxu0
      %v9579 = vadd.f32 0.0, %v9578
      %v9580 = vpop.f32.mrb[0].mxu0
      %9581 = vmatprep.mubr.bf16.mxu0 0
      %9582 = vmatmul.mubr.bf16.gmra.mrb[0].mxu0 %v9189
      %v9583 = vpop.f32.mrb[0].mxu0
      %v9584 = vadd.f32 0.0, %v9583
      %v9585 = vpop.f32.mrb[0].mxu0
      %v9586 = vpop.f32.mrb[0].mxu0
      %v9587 = vadd.f32 0.0, %v9586
      %v9588 = vpop.f32.mrb[0].mxu0
      %9589 = vmatprep.mubr.bf16.mxu0 0
      %9590 = vmatmul.mubr.bf16.gmra.mrb[0].mxu0 %v9190
      %v9591 = vpop.f32.mrb[0].mxu0
      %v9592 = vadd.f32 0.0, %v9591
      %v9593 = vpop.f32.mrb[0].mxu0
      %v9594 = vpop.f32.mrb[0].mxu0
      %v9595 = vadd.f32 0.0, %v9594
      %v9596 = vpop.f32.mrb[0].mxu0
      %9597 = vmatprep.mubr.bf16.mxu0 0
      %9598 = vmatmul.mubr.bf16.gmra.mrb[0].mxu0 %v9191
      %v9599 = vpop.f32.mrb[0].mxu0
      %v9600 = vadd.f32 0.0, %v9599
      %v9601 = vpop.f32.mrb[0].mxu0
      %v9602 = vpop.f32.mrb[0].mxu0
      %v9603 = vadd.f32 0.0, %v9602
      %v9604 = vpop.f32.mrb[0].mxu0
      %9605 = vdwg.mxu0
      %v9606 = vadd.f32 %v9429, %v9544
      %v9607 = vadd.f32 %v9430, %v9547
      %v9608 = vadd.f32 %v9431, %v9552
      %v9609 = vadd.f32 %v9432, %v9555
      %v9610 = vadd.f32 %v9433, %v9560
      %v9611 = vadd.f32 %v9434, %v9563
      %v9612 = vadd.f32 %v9435, %v9568
      %v9613 = vadd.f32 %v9436, %v9571
      %v9614 = vadd.f32 %v9437, %v9576
      %v9615 = vadd.f32 %v9438, %v9579
      %v9616 = vadd.f32 %v9439, %v9584
      %v9617 = vadd.f32 %v9440, %v9587
      %v9618 = vadd.f32 %v9441, %v9592
      %v9619 = vadd.f32 %v9442, %v9595
      %v9620 = vadd.f32 %v9443, %v9600
      %v9621 = vadd.f32 %v9444, %v9603
      %v9622 = vld [vmem:[#allocation3 + $0x50] sm:$0xff]
      %v9623 = vld [vmem:[#allocation3 + $0x58] sm:$0xff]
      %v9624 = vld [vmem:[#allocation3 + $0x60] sm:$0xff]
      %v9625 = vld [vmem:[#allocation3 + $0x68] sm:$0xff]
      %v9626 = vld [vmem:[#allocation3 + $0x70] sm:$0xff]
      %v9627 = vld [vmem:[#allocation3 + $0x78] sm:$0xff]
      %v9628 = vld [vmem:[#allocation3 + $0x80] sm:$0xff]
      %v9629 = vld [vmem:[#allocation3 + $0x88] sm:$0xff]
      %v9630 = vld [vmem:[#allocation3 + $0x90] sm:$0x1]
      %v9631 = vld [vmem:[%s7477] sm:$0xf]
      %v9632 = vld [vmem:[%s7477 + $0x4] sm:$0xf]
      %v9633 = vld [vmem:[%s7477 + $0x8] sm:$0xf]
      %v9634 = vld [vmem:[%s7477 + $0xc] sm:$0xf]
      %v9635 = vld [vmem:[%s7477 + $0x10] sm:$0xf]
      %v9636 = vld [vmem:[%s7477 + $0x14] sm:$0xf]
      %v9637 = vld [vmem:[%s7477 + $0x18] sm:$0xf]
      %v9638 = vld [vmem:[%s7477 + $0x1c] sm:$0xf]
      %v9639 = vld [vmem:[%s7477 + $0x20] sm:$0xf]
      %v9640 = vld [vmem:[%s7477 + $0x24] sm:$0xf]
      %v9641 = vld [vmem:[%s7477 + $0x28] sm:$0xf]
      %v9642 = vld [vmem:[%s7477 + $0x2c] sm:$0xf]
      %v9643 = vld [vmem:[%s7477 + $0x30] sm:$0xf]
      %v9644 = vld [vmem:[%s7477 + $0x34] sm:$0xf]
      %v9645 = vld [vmem:[%s7477 + $0x38] sm:$0xf]
      %v9646 = vld [vmem:[%s7477 + $0x3c] sm:$0xf]
      %v9648 = vshrl.u32 %v9622, 16
      %v9650 = vshll.u32 %v9622, 16
      %v9652 = vrot.slane %v9650, 1
      %v9653 = vor.u32 %v9648, %v9652
      %v9655 = vshll.u32 %v9623, 16
      %v9657 = vrot.slane %v9655, 1
      %v9658 = vsel %vm1177, %v9653, %v9657
      %v9659 = vshrl.u32 %v9623, 16
      %v9661 = vor.u32 %v9659, %v9657
      %v9663 = vshll.u32 %v9624, 16
      %v9665 = vrot.slane %v9663, 1
      %v9666 = vsel %vm1177, %v9661, %v9665
      %v9667 = vshrl.u32 %v9624, 16
      %v9669 = vor.u32 %v9667, %v9665
      %v9671 = vshll.u32 %v9625, 16
      %v9673 = vrot.slane %v9671, 1
      %v9674 = vsel %vm1177, %v9669, %v9673
      %v9675 = vshrl.u32 %v9625, 16
      %v9677 = vor.u32 %v9675, %v9673
      %v9679 = vshll.u32 %v9626, 16
      %v9681 = vrot.slane %v9679, 1
      %v9682 = vsel %vm1177, %v9677, %v9681
      %v9683 = vshrl.u32 %v9626, 16
      %v9685 = vor.u32 %v9683, %v9681
      %v9687 = vshll.u32 %v9627, 16
      %v9689 = vrot.slane %v9687, 1
      %v9690 = vsel %vm1177, %v9685, %v9689
      %v9691 = vshrl.u32 %v9627, 16
      %v9693 = vor.u32 %v9691, %v9689
      %v9695 = vshll.u32 %v9628, 16
      %v9697 = vrot.slane %v9695, 1
      %v9698 = vsel %vm1177, %v9693, %v9697
      %v9699 = vshrl.u32 %v9628, 16
      %v9701 = vor.u32 %v9699, %v9697
      %v9703 = vshll.u32 %v9629, 16
      %v9705 = vrot.slane %v9703, 1
      %v9706 = vsel %vm1177, %v9701, %v9705
      %v9707 = vshrl.u32 %v9629, 16
      %v9709 = vor.u32 %v9707, %v9705
      %v9711 = vshll.u32 %v9630, 16
      %v9713 = vrot.slane %v9711, 1
      %v9714 = vsel %vm1177, %v9709, %v9713
      %v9739 = vunpack.c.l.b16 %v9631
      %v9740 = vunpack.c.l.b16 %v9632
      %v9741 = vunpack.c.l.b16 %v9633
      %v9742 = vunpack.c.l.b16 %v9634
      %v9743 = vunpack.c.l.b16 %v9635
      %v9744 = vunpack.c.l.b16 %v9636
      %v9745 = vunpack.c.l.b16 %v9637
      %v9746 = vunpack.c.l.b16 %v9638
      %v9747 = vunpack.c.l.b16 %v9639
      %v9748 = vunpack.c.l.b16 %v9640
      %v9749 = vunpack.c.l.b16 %v9641
      %v9750 = vunpack.c.l.b16 %v9642
      %v9751 = vunpack.c.l.b16 %v9643
      %v9752 = vunpack.c.l.b16 %v9644
      %v9753 = vunpack.c.l.b16 %v9645
      %v9754 = vunpack.c.l.b16 %v9646
      %v9755 = vpack.c.b16 %v9740, %v9739
      %v9756 = vpack.c.b16 %v9742, %v9741
      %v9757 = vpack.c.b16 %v9744, %v9743
      %v9758 = vpack.c.b16 %v9746, %v9745
      %v9759 = vpack.c.b16 %v9748, %v9747
      %v9760 = vpack.c.b16 %v9750, %v9749
      %v9761 = vpack.c.b16 %v9752, %v9751
      %v9762 = vpack.c.b16 %v9754, %v9753
      %9771 = vmatprep.subr.bf16.mxu0 0
      %9772 = vmatpush1.bf16.msra.mxu0 %v9755
      %9773 = vmatprep.subr.bf16.mxu0 0
      %9774 = vmatpush1.bf16.msra.mxu0 %v9756
      %9775 = vmatprep.subr.bf16.mxu0 0
      %9776 = vmatpush1.bf16.msra.mxu0 %v9757
      %9777 = vmatprep.subr.bf16.mxu0 0
      %9778 = vmatpush1.bf16.msra.mxu0 %v9758
      %9779 = vmatprep.subr.bf16.mxu0 0
      %9780 = vmatpush1.bf16.msra.mxu0 %v9759
      %9781 = vmatprep.subr.bf16.mxu0 0
      %9782 = vmatpush1.bf16.msra.mxu0 %v9760
      %9783 = vmatprep.subr.bf16.mxu0 0
      %9784 = vmatpush1.bf16.msra.mxu0 %v9761
      %9785 = vmatprep.subr.bf16.mxu0 0
      %9786 = vmatpush1.bf16.msra.mxu0 %v9762
      %9787 = vmatprep.subr.bf16.mxu0 0
      %9788 = vmatpush1.bf16.msra.mxu0 0
      %9789 = vmatprep.subr.bf16.mxu0 0
      %9790 = vmatpush1.bf16.msra.mxu0 0
      %9791 = vmatprep.subr.bf16.mxu0 0
      %9792 = vmatpush1.bf16.msra.mxu0 0
      %9793 = vmatprep.subr.bf16.mxu0 0
      %9794 = vmatpush1.bf16.msra.mxu0 0
      %9795 = vmatprep.subr.bf16.mxu0 0
      %9796 = vmatpush1.bf16.msra.mxu0 0
      %9797 = vmatprep.subr.bf16.mxu0 0
      %9798 = vmatpush1.bf16.msra.mxu0 0
      %9799 = vmatprep.subr.bf16.mxu0 0
      %9800 = vmatpush1.bf16.msra.mxu0 0
      %9801 = vmatprep.subr.bf16.mxu0 0
      %9802 = vmatpush1.bf16.msra.mxu0 0
      %9803 = vmatprep.mubr.bf16.mxu0 0
      %9804 = vmatmul.mubr.bf16.gmra.mrb[0].mxu0 %v9658
      %v9805 = vpop.f32.mrb[0].mxu0
      %v9806 = vadd.f32 0.0, %v9805
      %v9807 = vpop.f32.mrb[0].mxu0
      %v9808 = vpop.f32.mrb[0].mxu0
      %v9809 = vadd.f32 0.0, %v9808
      %v9810 = vpop.f32.mrb[0].mxu0
      %9811 = vmatprep.mubr.bf16.mxu0 0
      %9812 = vmatmul.mubr.bf16.gmra.mrb[0].mxu0 %v9666
      %v9813 = vpop.f32.mrb[0].mxu0
      %v9814 = vadd.f32 0.0, %v9813
      %v9815 = vpop.f32.mrb[0].mxu0
      %v9816 = vpop.f32.mrb[0].mxu0
      %v9817 = vadd.f32 0.0, %v9816
      %v9818 = vpop.f32.mrb[0].mxu0
      %9819 = vmatprep.mubr.bf16.mxu0 0
      %9820 = vmatmul.mubr.bf16.gmra.mrb[0].mxu0 %v9674
      %v9821 = vpop.f32.mrb[0].mxu0
      %v9822 = vadd.f32 0.0, %v9821
      %v9823 = vpop.f32.mrb[0].mxu0
      %v9824 = vpop.f32.mrb[0].mxu0
      %v9825 = vadd.f32 0.0, %v9824
      %v9826 = vpop.f32.mrb[0].mxu0
      %9827 = vmatprep.mubr.bf16.mxu0 0
      %9828 = vmatmul.mubr.bf16.gmra.mrb[0].mxu0 %v9682
      %v9829 = vpop.f32.mrb[0].mxu0
      %v9830 = vadd.f32 0.0, %v9829
      %v9831 = vpop.f32.mrb[0].mxu0
      %v9832 = vpop.f32.mrb[0].mxu0
      %v9833 = vadd.f32 0.0, %v9832
      %v9834 = vpop.f32.mrb[0].mxu0
      %9835 = vmatprep.mubr.bf16.mxu0 0
      %9836 = vmatmul.mubr.bf16.gmra.mrb[0].mxu0 %v9690
      %v9837 = vpop.f32.mrb[0].mxu0
      %v9838 = vadd.f32 0.0, %v9837
      %v9839 = vpop.f32.mrb[0].mxu0
      %v9840 = vpop.f32.mrb[0].mxu0
      %v9841 = vadd.f32 0.0, %v9840
      %v9842 = vpop.f32.mrb[0].mxu0
      %9843 = vmatprep.mubr.bf16.mxu0 0
      %9844 = vmatmul.mubr.bf16.gmra.mrb[0].mxu0 %v9698
      %v9845 = vpop.f32.mrb[0].mxu0
      %v9846 = vadd.f32 0.0, %v9845
      %v9847 = vpop.f32.mrb[0].mxu0
      %v9848 = vpop.f32.mrb[0].mxu0
      %v9849 = vadd.f32 0.0, %v9848
      %v9850 = vpop.f32.mrb[0].mxu0
      %9851 = vmatprep.mubr.bf16.mxu0 0
      %9852 = vmatmul.mubr.bf16.gmra.mrb[0].mxu0 %v9706
      %v9853 = vpop.f32.mrb[0].mxu0
      %v9854 = vadd.f32 0.0, %v9853
      %v9855 = vpop.f32.mrb[0].mxu0
      %v9856 = vpop.f32.mrb[0].mxu0
      %v9857 = vadd.f32 0.0, %v9856
      %v9858 = vpop.f32.mrb[0].mxu0
      %9859 = vmatprep.mubr.bf16.mxu0 0
      %9860 = vmatmul.mubr.bf16.gmra.mrb[0].mxu0 %v9714
      %v9861 = vpop.f32.mrb[0].mxu0
      %v9862 = vadd.f32 0.0, %v9861
      %v9863 = vpop.f32.mrb[0].mxu0
      %v9864 = vpop.f32.mrb[0].mxu0
      %v9865 = vadd.f32 0.0, %v9864
      %v9866 = vpop.f32.mrb[0].mxu0
      %9867 = vdwg.mxu0
      %v9868 = vadd.f32 %v9606, %v9806
      %v9869 = vadd.f32 %v9607, %v9809
      %v9870 = vadd.f32 %v9608, %v9814
      %v9871 = vadd.f32 %v9609, %v9817
      %v9872 = vadd.f32 %v9610, %v9822
      %v9873 = vadd.f32 %v9611, %v9825
      %v9874 = vadd.f32 %v9612, %v9830
      %v9875 = vadd.f32 %v9613, %v9833
      %v9876 = vadd.f32 %v9614, %v9838
      %v9877 = vadd.f32 %v9615, %v9841
      %v9878 = vadd.f32 %v9616, %v9846
      %v9879 = vadd.f32 %v9617, %v9849
      %v9880 = vadd.f32 %v9618, %v9854
      %v9881 = vadd.f32 %v9619, %v9857
      %v9882 = vadd.f32 %v9620, %v9862
      %v9883 = vadd.f32 %v9621, %v9865
      %v9884 = vld [vmem:[#allocation3 + $0x58] sm:$0xff]
      %v9885 = vld [vmem:[#allocation3 + $0x60] sm:$0xff]
      %v9886 = vld [vmem:[#allocation3 + $0x68] sm:$0xff]
      %v9887 = vld [vmem:[#allocation3 + $0x70] sm:$0xff]
      %v9888 = vld [vmem:[#allocation3 + $0x78] sm:$0xff]
      %v9889 = vld [vmem:[#allocation3 + $0x80] sm:$0xff]
      %v9890 = vld [vmem:[#allocation3 + $0x88] sm:$0xff]
      %v9891 = vld [vmem:[#allocation3 + $0x90] sm:$0xff]
      %v9892 = vld [vmem:[#allocation3 + $0x98] sm:$0x1]
      %v9893 = vld [vmem:[%s7740] sm:$0xf]
      %v9894 = vld [vmem:[%s7740 + $0x4] sm:$0xf]
      %v9895 = vld [vmem:[%s7740 + $0x8] sm:$0xf]
      %v9896 = vld [vmem:[%s7740 + $0xc] sm:$0xf]
      %v9897 = vld [vmem:[%s7740 + $0x10] sm:$0xf]
      %v9898 = vld [vmem:[%s7740 + $0x14] sm:$0xf]
      %v9899 = vld [vmem:[%s7740 + $0x18] sm:$0xf]
      %v9900 = vld [vmem:[%s7740 + $0x1c] sm:$0xf]
      %v9901 = vld [vmem:[%s7740 + $0x20] sm:$0xf]
      %v9902 = vld [vmem:[%s7740 + $0x24] sm:$0xf]
      %v9903 = vld [vmem:[%s7740 + $0x28] sm:$0xf]
      %v9904 = vld [vmem:[%s7740 + $0x2c] sm:$0xf]
      %v9905 = vld [vmem:[%s7740 + $0x30] sm:$0xf]
      %v9906 = vld [vmem:[%s7740 + $0x34] sm:$0xf]
      %v9907 = vld [vmem:[%s7740 + $0x38] sm:$0xf]
      %v9908 = vld [vmem:[%s7740 + $0x3c] sm:$0xf]
      %v9910 = vshrl.u32 %v9884, 16
      %v9912 = vshll.u32 %v9884, 16
      %v9914 = vrot.slane %v9912, 1
      %v9915 = vor.u32 %v9910, %v9914
      %v9917 = vshll.u32 %v9885, 16
      %v9919 = vrot.slane %v9917, 1
      %v9920 = vsel %vm1177, %v9915, %v9919
      %v9921 = vshrl.u32 %v9885, 16
      %v9923 = vor.u32 %v9921, %v9919
      %v9925 = vshll.u32 %v9886, 16
      %v9927 = vrot.slane %v9925, 1
      %v9928 = vsel %vm1177, %v9923, %v9927
      %v9929 = vshrl.u32 %v9886, 16
      %v9931 = vor.u32 %v9929, %v9927
      %v9933 = vshll.u32 %v9887, 16
      %v9935 = vrot.slane %v9933, 1
      %v9936 = vsel %vm1177, %v9931, %v9935
      %v9937 = vshrl.u32 %v9887, 16
      %v9939 = vor.u32 %v9937, %v9935
      %v9941 = vshll.u32 %v9888, 16
      %v9943 = vrot.slane %v9941, 1
      %v9944 = vsel %vm1177, %v9939, %v9943
      %v9945 = vshrl.u32 %v9888, 16
      %v9947 = vor.u32 %v9945, %v9943
      %v9949 = vshll.u32 %v9889, 16
      %v9951 = vrot.slane %v9949, 1
      %v9952 = vsel %vm1177, %v9947, %v9951
      %v9953 = vshrl.u32 %v9889, 16
      %v9955 = vor.u32 %v9953, %v9951
      %v9957 = vshll.u32 %v9890, 16
      %v9959 = vrot.slane %v9957, 1
      %v9960 = vsel %vm1177, %v9955, %v9959
      %v9961 = vshrl.u32 %v9890, 16
      %v9963 = vor.u32 %v9961, %v9959
      %v9965 = vshll.u32 %v9891, 16
      %v9967 = vrot.slane %v9965, 1
      %v9968 = vsel %vm1177, %v9963, %v9967
      %v9969 = vshrl.u32 %v9891, 16
      %v9971 = vor.u32 %v9969, %v9967
      %v9973 = vshll.u32 %v9892, 16
      %v9975 = vrot.slane %v9973, 1
      %v9976 = vsel %vm1177, %v9971, %v9975
      %v10001 = vunpack.c.l.b16 %v9893
      %v10002 = vunpack.c.l.b16 %v9894
      %v10003 = vunpack.c.l.b16 %v9895
      %v10004 = vunpack.c.l.b16 %v9896
      %v10005 = vunpack.c.l.b16 %v9897
      %v10006 = vunpack.c.l.b16 %v9898
      %v10007 = vunpack.c.l.b16 %v9899
      %v10008 = vunpack.c.l.b16 %v9900
      %v10009 = vunpack.c.l.b16 %v9901
      %v10010 = vunpack.c.l.b16 %v9902
      %v10011 = vunpack.c.l.b16 %v9903
      %v10012 = vunpack.c.l.b16 %v9904
      %v10013 = vunpack.c.l.b16 %v9905
      %v10014 = vunpack.c.l.b16 %v9906
      %v10015 = vunpack.c.l.b16 %v9907
      %v10016 = vunpack.c.l.b16 %v9908
      %v10017 = vpack.c.b16 %v10002, %v10001
      %v10018 = vpack.c.b16 %v10004, %v10003
      %v10019 = vpack.c.b16 %v10006, %v10005
      %v10020 = vpack.c.b16 %v10008, %v10007
      %v10021 = vpack.c.b16 %v10010, %v10009
      %v10022 = vpack.c.b16 %v10012, %v10011
      %v10023 = vpack.c.b16 %v10014, %v10013
      %v10024 = vpack.c.b16 %v10016, %v10015
      %10033 = vmatprep.subr.bf16.mxu0 0
      %10034 = vmatpush1.bf16.msra.mxu0 %v10017
      %10035 = vmatprep.subr.bf16.mxu0 0
      %10036 = vmatpush1.bf16.msra.mxu0 %v10018
      %10037 = vmatprep.subr.bf16.mxu0 0
      %10038 = vmatpush1.bf16.msra.mxu0 %v10019
      %10039 = vmatprep.subr.bf16.mxu0 0
      %10040 = vmatpush1.bf16.msra.mxu0 %v10020
      %10041 = vmatprep.subr.bf16.mxu0 0
      %10042 = vmatpush1.bf16.msra.mxu0 %v10021
      %10043 = vmatprep.subr.bf16.mxu0 0
      %10044 = vmatpush1.bf16.msra.mxu0 %v10022
      %10045 = vmatprep.subr.bf16.mxu0 0
      %10046 = vmatpush1.bf16.msra.mxu0 %v10023
      %10047 = vmatprep.subr.bf16.mxu0 0
      %10048 = vmatpush1.bf16.msra.mxu0 %v10024
      %10049 = vmatprep.subr.bf16.mxu0 0
      %10050 = vmatpush1.bf16.msra.mxu0 0
      %10051 = vmatprep.subr.bf16.mxu0 0
      %10052 = vmatpush1.bf16.msra.mxu0 0
      %10053 = vmatprep.subr.bf16.mxu0 0
      %10054 = vmatpush1.bf16.msra.mxu0 0
      %10055 = vmatprep.subr.bf16.mxu0 0
      %10056 = vmatpush1.bf16.msra.mxu0 0
      %10057 = vmatprep.subr.bf16.mxu0 0
      %10058 = vmatpush1.bf16.msra.mxu0 0
      %10059 = vmatprep.subr.bf16.mxu0 0
      %10060 = vmatpush1.bf16.msra.mxu0 0
      %10061 = vmatprep.subr.bf16.mxu0 0
      %10062 = vmatpush1.bf16.msra.mxu0 0
      %10063 = vmatprep.subr.bf16.mxu0 0
      %10064 = vmatpush1.bf16.msra.mxu0 0
      %10065 = vmatprep.mubr.bf16.mxu0 0
      %10066 = vmatmul.mubr.bf16.gmra.mrb[0].mxu0 %v9920
      %v10067 = vpop.f32.mrb[0].mxu0
      %v10068 = vadd.f32 0.0, %v10067
      %v10069 = vpop.f32.mrb[0].mxu0
      %v10070 = vpop.f32.mrb[0].mxu0
      %v10071 = vadd.f32 0.0, %v10070
      %v10072 = vpop.f32.mrb[0].mxu0
      %10073 = vmatprep.mubr.bf16.mxu0 0
      %10074 = vmatmul.mubr.bf16.gmra.mrb[0].mxu0 %v9928
      %v10075 = vpop.f32.mrb[0].mxu0
      %v10076 = vadd.f32 0.0, %v10075
      %v10077 = vpop.f32.mrb[0].mxu0
      %v10078 = vpop.f32.mrb[0].mxu0
      %v10079 = vadd.f32 0.0, %v10078
      %v10080 = vpop.f32.mrb[0].mxu0
      %10081 = vmatprep.mubr.bf16.mxu0 0
      %10082 = vmatmul.mubr.bf16.gmra.mrb[0].mxu0 %v9936
      %v10083 = vpop.f32.mrb[0].mxu0
      %v10084 = vadd.f32 0.0, %v10083
      %v10085 = vpop.f32.mrb[0].mxu0
      %v10086 = vpop.f32.mrb[0].mxu0
      %v10087 = vadd.f32 0.0, %v10086
      %v10088 = vpop.f32.mrb[0].mxu0
      %10089 = vmatprep.mubr.bf16.mxu0 0
      %10090 = vmatmul.mubr.bf16.gmra.mrb[0].mxu0 %v9944
      %v10091 = vpop.f32.mrb[0].mxu0
      %v10092 = vadd.f32 0.0, %v10091
      %v10093 = vpop.f32.mrb[0].mxu0
      %v10094 = vpop.f32.mrb[0].mxu0
      %v10095 = vadd.f32 0.0, %v10094
      %v10096 = vpop.f32.mrb[0].mxu0
      %10097 = vmatprep.mubr.bf16.mxu0 0
      %10098 = vmatmul.mubr.bf16.gmra.mrb[0].mxu0 %v9952
      %v10099 = vpop.f32.mrb[0].mxu0
      %v10100 = vadd.f32 0.0, %v10099
      %v10101 = vpop.f32.mrb[0].mxu0
      %v10102 = vpop.f32.mrb[0].mxu0
      %v10103 = vadd.f32 0.0, %v10102
      %v10104 = vpop.f32.mrb[0].mxu0
      %10105 = vmatprep.mubr.bf16.mxu0 0
      %10106 = vmatmul.mubr.bf16.gmra.mrb[0].mxu0 %v9960
      %v10107 = vpop.f32.mrb[0].mxu0
      %v10108 = vadd.f32 0.0, %v10107
      %v10109 = vpop.f32.mrb[0].mxu0
      %v10110 = vpop.f32.mrb[0].mxu0
      %v10111 = vadd.f32 0.0, %v10110
      %v10112 = vpop.f32.mrb[0].mxu0
      %10113 = vmatprep.mubr.bf16.mxu0 0
      %10114 = vmatmul.mubr.bf16.gmra.mrb[0].mxu0 %v9968
      %v10115 = vpop.f32.mrb[0].mxu0
      %v10116 = vadd.f32 0.0, %v10115
      %v10117 = vpop.f32.mrb[0].mxu0
      %v10118 = vpop.f32.mrb[0].mxu0
      %v10119 = vadd.f32 0.0, %v10118
      %v10120 = vpop.f32.mrb[0].mxu0
      %10121 = vmatprep.mubr.bf16.mxu0 0
      %10122 = vmatmul.mubr.bf16.gmra.mrb[0].mxu0 %v9976
      %v10123 = vpop.f32.mrb[0].mxu0
      %v10124 = vadd.f32 0.0, %v10123
      %v10125 = vpop.f32.mrb[0].mxu0
      %v10126 = vpop.f32.mrb[0].mxu0
      %v10127 = vadd.f32 0.0, %v10126
      %v10128 = vpop.f32.mrb[0].mxu0
      %10129 = vdwg.mxu0
      %v10130 = vadd.f32 %v9868, %v10068
      %v10131 = vadd.f32 %v9869, %v10071
      %v10132 = vadd.f32 %v9870, %v10076
      %v10133 = vadd.f32 %v9871, %v10079
      %v10134 = vadd.f32 %v9872, %v10084
      %v10135 = vadd.f32 %v9873, %v10087
      %v10136 = vadd.f32 %v9874, %v10092
      %v10137 = vadd.f32 %v9875, %v10095
      %v10138 = vadd.f32 %v9876, %v10100
      %v10139 = vadd.f32 %v9877, %v10103
      %v10140 = vadd.f32 %v9878, %v10108
      %v10141 = vadd.f32 %v9879, %v10111
      %v10142 = vadd.f32 %v9880, %v10116
      %v10143 = vadd.f32 %v9881, %v10119
      %v10144 = vadd.f32 %v9882, %v10124
      %v10145 = vadd.f32 %v9883, %v10127
      %v10146 = vld [vmem:[#allocation3 + $0x58] sm:$0xfe]
      %v10147 = vld [vmem:[%s7995] sm:$0xf]
      %v10148 = vld [vmem:[%s7995 + $0x4] sm:$0xf]
      %v10149 = vld [vmem:[%s7995 + $0x8] sm:$0xf]
      %v10150 = vld [vmem:[%s7995 + $0xc] sm:$0xf]
      %v10151 = vld [vmem:[%s7995 + $0x10] sm:$0xf]
      %v10152 = vld [vmem:[%s7995 + $0x14] sm:$0xf]
      %v10153 = vld [vmem:[%s7995 + $0x18] sm:$0xf]
      %v10154 = vld [vmem:[%s7995 + $0x1c] sm:$0xf]
      %v10155 = vld [vmem:[%s7995 + $0x20] sm:$0xf]
      %v10156 = vld [vmem:[%s7995 + $0x24] sm:$0xf]
      %v10157 = vld [vmem:[%s7995 + $0x28] sm:$0xf]
      %v10158 = vld [vmem:[%s7995 + $0x2c] sm:$0xf]
      %v10159 = vld [vmem:[%s7995 + $0x30] sm:$0xf]
      %v10160 = vld [vmem:[%s7995 + $0x34] sm:$0xf]
      %v10161 = vld [vmem:[%s7995 + $0x38] sm:$0xf]
      %v10162 = vld [vmem:[%s7995 + $0x3c] sm:$0xf]
      %v10172 = vrot.slane %v10146, 1
      %v10173 = vrot.slane %v9885, 1
      %v10174 = vsel %vm1442, %v10172, %v10173
      %v10175 = vrot.slane %v9886, 1
      %v10176 = vsel %vm1442, %v10173, %v10175
      %v10177 = vrot.slane %v9887, 1
      %v10178 = vsel %vm1442, %v10175, %v10177
      %v10179 = vrot.slane %v9888, 1
      %v10180 = vsel %vm1442, %v10177, %v10179
      %v10181 = vrot.slane %v9889, 1
      %v10182 = vsel %vm1442, %v10179, %v10181
      %v10183 = vrot.slane %v9890, 1
      %v10184 = vsel %vm1442, %v10181, %v10183
      %v10185 = vrot.slane %v9891, 1
      %v10186 = vsel %vm1442, %v10183, %v10185
      %v10187 = vrot.slane %v9892, 1
      %v10188 = vsel %vm1442, %v10185, %v10187
      %v10213 = vunpack.c.l.b16 %v10147
      %v10214 = vunpack.c.l.b16 %v10148
      %v10215 = vunpack.c.l.b16 %v10149
      %v10216 = vunpack.c.l.b16 %v10150
      %v10217 = vunpack.c.l.b16 %v10151
      %v10218 = vunpack.c.l.b16 %v10152
      %v10219 = vunpack.c.l.b16 %v10153
      %v10220 = vunpack.c.l.b16 %v10154
      %v10221 = vunpack.c.l.b16 %v10155
      %v10222 = vunpack.c.l.b16 %v10156
      %v10223 = vunpack.c.l.b16 %v10157
      %v10224 = vunpack.c.l.b16 %v10158
      %v10225 = vunpack.c.l.b16 %v10159
      %v10226 = vunpack.c.l.b16 %v10160
      %v10227 = vunpack.c.l.b16 %v10161
      %v10228 = vunpack.c.l.b16 %v10162
      %v10229 = vpack.c.b16 %v10214, %v10213
      %v10230 = vpack.c.b16 %v10216, %v10215
      %v10231 = vpack.c.b16 %v10218, %v10217
      %v10232 = vpack.c.b16 %v10220, %v10219
      %v10233 = vpack.c.b16 %v10222, %v10221
      %v10234 = vpack.c.b16 %v10224, %v10223
      %v10235 = vpack.c.b16 %v10226, %v10225
      %v10236 = vpack.c.b16 %v10228, %v10227
      %10245 = vmatprep.subr.bf16.mxu0 0
      %10246 = vmatpush1.bf16.msra.mxu0 %v10229
      %10247 = vmatprep.subr.bf16.mxu0 0
      %10248 = vmatpush1.bf16.msra.mxu0 %v10230
      %10249 = vmatprep.subr.bf16.mxu0 0
      %10250 = vmatpush1.bf16.msra.mxu0 %v10231
      %10251 = vmatprep.subr.bf16.mxu0 0
      %10252 = vmatpush1.bf16.msra.mxu0 %v10232
      %10253 = vmatprep.subr.bf16.mxu0 0
      %10254 = vmatpush1.bf16.msra.mxu0 %v10233
      %10255 = vmatprep.subr.bf16.mxu0 0
      %10256 = vmatpush1.bf16.msra.mxu0 %v10234
      %10257 = vmatprep.subr.bf16.mxu0 0
      %10258 = vmatpush1.bf16.msra.mxu0 %v10235
      %10259 = vmatprep.subr.bf16.mxu0 0
      %10260 = vmatpush1.bf16.msra.mxu0 %v10236
      %10261 = vmatprep.subr.bf16.mxu0 0
      %10262 = vmatpush1.bf16.msra.mxu0 0
      %10263 = vmatprep.subr.bf16.mxu0 0
      %10264 = vmatpush1.bf16.msra.mxu0 0
      %10265 = vmatprep.subr.bf16.mxu0 0
      %10266 = vmatpush1.bf16.msra.mxu0 0
      %10267 = vmatprep.subr.bf16.mxu0 0
      %10268 = vmatpush1.bf16.msra.mxu0 0
      %10269 = vmatprep.subr.bf16.mxu0 0
      %10270 = vmatpush1.bf16.msra.mxu0 0
      %10271 = vmatprep.subr.bf16.mxu0 0
      %10272 = vmatpush1.bf16.msra.mxu0 0
      %10273 = vmatprep.subr.bf16.mxu0 0
      %10274 = vmatpush1.bf16.msra.mxu0 0
      %10275 = vmatprep.subr.bf16.mxu0 0
      %10276 = vmatpush1.bf16.msra.mxu0 0
      %10277 = vmatprep.mubr.bf16.mxu0 0
      %10278 = vmatmul.mubr.bf16.gmra.mrb[0].mxu0 %v10174
      %v10279 = vpop.f32.mrb[0].mxu0
      %v10280 = vadd.f32 0.0, %v10279
      %v10281 = vpop.f32.mrb[0].mxu0
      %v10282 = vpop.f32.mrb[0].mxu0
      %v10283 = vadd.f32 0.0, %v10282
      %v10284 = vpop.f32.mrb[0].mxu0
      %10285 = vmatprep.mubr.bf16.mxu0 0
      %10286 = vmatmul.mubr.bf16.gmra.mrb[0].mxu0 %v10176
      %v10287 = vpop.f32.mrb[0].mxu0
      %v10288 = vadd.f32 0.0, %v10287
      %v10289 = vpop.f32.mrb[0].mxu0
      %v10290 = vpop.f32.mrb[0].mxu0
      %v10291 = vadd.f32 0.0, %v10290
      %v10292 = vpop.f32.mrb[0].mxu0
      %10293 = vmatprep.mubr.bf16.mxu0 0
      %10294 = vmatmul.mubr.bf16.gmra.mrb[0].mxu0 %v10178
      %v10295 = vpop.f32.mrb[0].mxu0
      %v10296 = vadd.f32 0.0, %v10295
      %v10297 = vpop.f32.mrb[0].mxu0
      %v10298 = vpop.f32.mrb[0].mxu0
      %v10299 = vadd.f32 0.0, %v10298
      %v10300 = vpop.f32.mrb[0].mxu0
      %10301 = vmatprep.mubr.bf16.mxu0 0
      %10302 = vmatmul.mubr.bf16.gmra.mrb[0].mxu0 %v10180
      %v10303 = vpop.f32.mrb[0].mxu0
      %v10304 = vadd.f32 0.0, %v10303
      %v10305 = vpop.f32.mrb[0].mxu0
      %v10306 = vpop.f32.mrb[0].mxu0
      %v10307 = vadd.f32 0.0, %v10306
      %v10308 = vpop.f32.mrb[0].mxu0
      %10309 = vmatprep.mubr.bf16.mxu0 0
      %10310 = vmatmul.mubr.bf16.gmra.mrb[0].mxu0 %v10182
      %v10311 = vpop.f32.mrb[0].mxu0
      %v10312 = vadd.f32 0.0, %v10311
      %v10313 = vpop.f32.mrb[0].mxu0
      %v10314 = vpop.f32.mrb[0].mxu0
      %v10315 = vadd.f32 0.0, %v10314
      %v10316 = vpop.f32.mrb[0].mxu0
      %10317 = vmatprep.mubr.bf16.mxu0 0
      %10318 = vmatmul.mubr.bf16.gmra.mrb[0].mxu0 %v10184
      %v10319 = vpop.f32.mrb[0].mxu0
      %v10320 = vadd.f32 0.0, %v10319
      %v10321 = vpop.f32.mrb[0].mxu0
      %v10322 = vpop.f32.mrb[0].mxu0
      %v10323 = vadd.f32 0.0, %v10322
      %v10324 = vpop.f32.mrb[0].mxu0
      %10325 = vmatprep.mubr.bf16.mxu0 0
      %10326 = vmatmul.mubr.bf16.gmra.mrb[0].mxu0 %v10186
      %v10327 = vpop.f32.mrb[0].mxu0
      %v10328 = vadd.f32 0.0, %v10327
      %v10329 = vpop.f32.mrb[0].mxu0
      %v10330 = vpop.f32.mrb[0].mxu0
      %v10331 = vadd.f32 0.0, %v10330
      %v10332 = vpop.f32.mrb[0].mxu0
      %10333 = vmatprep.mubr.bf16.mxu0 0
      %10334 = vmatmul.mubr.bf16.gmra.mrb[0].mxu0 %v10188
      %v10335 = vpop.f32.mrb[0].mxu0
      %v10336 = vadd.f32 0.0, %v10335
      %v10337 = vpop.f32.mrb[0].mxu0
      %v10338 = vpop.f32.mrb[0].mxu0
      %v10339 = vadd.f32 0.0, %v10338
      %v10340 = vpop.f32.mrb[0].mxu0
      %10341 = vdwg.mxu0
      %v10342 = vadd.f32 %v10130, %v10280
      %v10343 = vadd.f32 %v10131, %v10283
      %v10344 = vadd.f32 %v10132, %v10288
      %v10345 = vadd.f32 %v10133, %v10291
      %v10346 = vadd.f32 %v10134, %v10296
      %v10347 = vadd.f32 %v10135, %v10299
      %v10348 = vadd.f32 %v10136, %v10304
      %v10349 = vadd.f32 %v10137, %v10307
      %v10350 = vadd.f32 %v10138, %v10312
      %v10351 = vadd.f32 %v10139, %v10315
      %v10352 = vadd.f32 %v10140, %v10320
      %v10353 = vadd.f32 %v10141, %v10323
      %v10354 = vadd.f32 %v10142, %v10328
      %v10355 = vadd.f32 %v10143, %v10331
      %v10356 = vadd.f32 %v10144, %v10336
      %v10357 = vadd.f32 %v10145, %v10339
      %v10358 = vld [vmem:[#allocation3 + $0x98] sm:$0x3]
      %v10359 = vld [vmem:[%s8208] sm:$0xf]
      %v10360 = vld [vmem:[%s8208 + $0x4] sm:$0xf]
      %v10361 = vld [vmem:[%s8208 + $0x8] sm:$0xf]
      %v10362 = vld [vmem:[%s8208 + $0xc] sm:$0xf]
      %v10363 = vld [vmem:[%s8208 + $0x10] sm:$0xf]
      %v10364 = vld [vmem:[%s8208 + $0x14] sm:$0xf]
      %v10365 = vld [vmem:[%s8208 + $0x18] sm:$0xf]
      %v10366 = vld [vmem:[%s8208 + $0x1c] sm:$0xf]
      %v10367 = vld [vmem:[%s8208 + $0x20] sm:$0xf]
      %v10368 = vld [vmem:[%s8208 + $0x24] sm:$0xf]
      %v10369 = vld [vmem:[%s8208 + $0x28] sm:$0xf]
      %v10370 = vld [vmem:[%s8208 + $0x2c] sm:$0xf]
      %v10371 = vld [vmem:[%s8208 + $0x30] sm:$0xf]
      %v10372 = vld [vmem:[%s8208 + $0x34] sm:$0xf]
      %v10373 = vld [vmem:[%s8208 + $0x38] sm:$0xf]
      %v10374 = vld [vmem:[%s8208 + $0x3c] sm:$0xf]
      %v10376 = vshrl.u32 %v10146, 16
      %v10378 = vrot.slane %v10376, 1
      %v10379 = vshll.u32 %v10146, 16
      %v10381 = vrot.slane %v10379, 2
      %v10382 = vor.u32 %v10378, %v10381
      %v10383 = vrot.slane %v9921, 1
      %v10384 = vrot.slane %v9917, 2
      %v10385 = vor.u32 %v10383, %v10384
      %v10386 = vsel %vm1868, %v10382, %v10385
      %v10387 = vrot.slane %v9929, 1
      %v10388 = vrot.slane %v9925, 2
      %v10389 = vor.u32 %v10387, %v10388
      %v10390 = vsel %vm1868, %v10385, %v10389
      %v10391 = vrot.slane %v9937, 1
      %v10392 = vrot.slane %v9933, 2
      %v10393 = vor.u32 %v10391, %v10392
      %v10394 = vsel %vm1868, %v10389, %v10393
      %v10395 = vrot.slane %v9945, 1
      %v10396 = vrot.slane %v9941, 2
      %v10397 = vor.u32 %v10395, %v10396
      %v10398 = vsel %vm1868, %v10393, %v10397
      %v10399 = vrot.slane %v9953, 1
      %v10400 = vrot.slane %v9949, 2
      %v10401 = vor.u32 %v10399, %v10400
      %v10402 = vsel %vm1868, %v10397, %v10401
      %v10403 = vrot.slane %v9961, 1
      %v10404 = vrot.slane %v9957, 2
      %v10405 = vor.u32 %v10403, %v10404
      %v10406 = vsel %vm1868, %v10401, %v10405
      %v10407 = vrot.slane %v9969, 1
      %v10408 = vrot.slane %v9965, 2
      %v10409 = vor.u32 %v10407, %v10408
      %v10410 = vsel %vm1868, %v10405, %v10409
      %v10412 = vshrl.u32 %v10358, 16
      %v10414 = vrot.slane %v10412, 1
      %v10415 = vshll.u32 %v10358, 16
      %v10417 = vrot.slane %v10415, 2
      %v10418 = vor.u32 %v10414, %v10417
      %v10419 = vsel %vm1868, %v10409, %v10418
      %v10444 = vunpack.c.l.b16 %v10359
      %v10445 = vunpack.c.l.b16 %v10360
      %v10446 = vunpack.c.l.b16 %v10361
      %v10447 = vunpack.c.l.b16 %v10362
      %v10448 = vunpack.c.l.b16 %v10363
      %v10449 = vunpack.c.l.b16 %v10364
      %v10450 = vunpack.c.l.b16 %v10365
      %v10451 = vunpack.c.l.b16 %v10366
      %v10452 = vunpack.c.l.b16 %v10367
      %v10453 = vunpack.c.l.b16 %v10368
      %v10454 = vunpack.c.l.b16 %v10369
      %v10455 = vunpack.c.l.b16 %v10370
      %v10456 = vunpack.c.l.b16 %v10371
      %v10457 = vunpack.c.l.b16 %v10372
      %v10458 = vunpack.c.l.b16 %v10373
      %v10459 = vunpack.c.l.b16 %v10374
      %v10460 = vpack.c.b16 %v10445, %v10444
      %v10461 = vpack.c.b16 %v10447, %v10446
      %v10462 = vpack.c.b16 %v10449, %v10448
      %v10463 = vpack.c.b16 %v10451, %v10450
      %v10464 = vpack.c.b16 %v10453, %v10452
      %v10465 = vpack.c.b16 %v10455, %v10454
      %v10466 = vpack.c.b16 %v10457, %v10456
      %v10467 = vpack.c.b16 %v10459, %v10458
      %10476 = vmatprep.subr.bf16.mxu0 0
      %10477 = vmatpush1.bf16.msra.mxu0 %v10460
      %10478 = vmatprep.subr.bf16.mxu0 0
      %10479 = vmatpush1.bf16.msra.mxu0 %v10461
      %10480 = vmatprep.subr.bf16.mxu0 0
      %10481 = vmatpush1.bf16.msra.mxu0 %v10462
      %10482 = vmatprep.subr.bf16.mxu0 0
      %10483 = vmatpush1.bf16.msra.mxu0 %v10463
      %10484 = vmatprep.subr.bf16.mxu0 0
      %10485 = vmatpush1.bf16.msra.mxu0 %v10464
      %10486 = vmatprep.subr.bf16.mxu0 0
      %10487 = vmatpush1.bf16.msra.mxu0 %v10465
      %10488 = vmatprep.subr.bf16.mxu0 0
      %10489 = vmatpush1.bf16.msra.mxu0 %v10466
      %10490 = vmatprep.subr.bf16.mxu0 0
      %10491 = vmatpush1.bf16.msra.mxu0 %v10467
      %10492 = vmatprep.subr.bf16.mxu0 0
      %10493 = vmatpush1.bf16.msra.mxu0 0
      %10494 = vmatprep.subr.bf16.mxu0 0
      %10495 = vmatpush1.bf16.msra.mxu0 0
      %10496 = vmatprep.subr.bf16.mxu0 0
      %10497 = vmatpush1.bf16.msra.mxu0 0
      %10498 = vmatprep.subr.bf16.mxu0 0
      %10499 = vmatpush1.bf16.msra.mxu0 0
      %10500 = vmatprep.subr.bf16.mxu0 0
      %10501 = vmatpush1.bf16.msra.mxu0 0
      %10502 = vmatprep.subr.bf16.mxu0 0
      %10503 = vmatpush1.bf16.msra.mxu0 0
      %10504 = vmatprep.subr.bf16.mxu0 0
      %10505 = vmatpush1.bf16.msra.mxu0 0
      %10506 = vmatprep.subr.bf16.mxu0 0
      %10507 = vmatpush1.bf16.msra.mxu0 0
      %10508 = vmatprep.mubr.bf16.mxu0 0
      %10509 = vmatmul.mubr.bf16.gmra.mrb[0].mxu0 %v10386
      %v10510 = vpop.f32.mrb[0].mxu0
      %v10511 = vadd.f32 0.0, %v10510
      %v10512 = vpop.f32.mrb[0].mxu0
      %v10513 = vpop.f32.mrb[0].mxu0
      %v10514 = vadd.f32 0.0, %v10513
      %v10515 = vpop.f32.mrb[0].mxu0
      %10516 = vmatprep.mubr.bf16.mxu0 0
      %10517 = vmatmul.mubr.bf16.gmra.mrb[0].mxu0 %v10390
      %v10518 = vpop.f32.mrb[0].mxu0
      %v10519 = vadd.f32 0.0, %v10518
      %v10520 = vpop.f32.mrb[0].mxu0
      %v10521 = vpop.f32.mrb[0].mxu0
      %v10522 = vadd.f32 0.0, %v10521
      %v10523 = vpop.f32.mrb[0].mxu0
      %10524 = vmatprep.mubr.bf16.mxu0 0
      %10525 = vmatmul.mubr.bf16.gmra.mrb[0].mxu0 %v10394
      %v10526 = vpop.f32.mrb[0].mxu0
      %v10527 = vadd.f32 0.0, %v10526
      %v10528 = vpop.f32.mrb[0].mxu0
      %v10529 = vpop.f32.mrb[0].mxu0
      %v10530 = vadd.f32 0.0, %v10529
      %v10531 = vpop.f32.mrb[0].mxu0
      %10532 = vmatprep.mubr.bf16.mxu0 0
      %10533 = vmatmul.mubr.bf16.gmra.mrb[0].mxu0 %v10398
      %v10534 = vpop.f32.mrb[0].mxu0
      %v10535 = vadd.f32 0.0, %v10534
      %v10536 = vpop.f32.mrb[0].mxu0
      %v10537 = vpop.f32.mrb[0].mxu0
      %v10538 = vadd.f32 0.0, %v10537
      %v10539 = vpop.f32.mrb[0].mxu0
      %10540 = vmatprep.mubr.bf16.mxu0 0
      %10541 = vmatmul.mubr.bf16.gmra.mrb[0].mxu0 %v10402
      %v10542 = vpop.f32.mrb[0].mxu0
      %v10543 = vadd.f32 0.0, %v10542
      %v10544 = vpop.f32.mrb[0].mxu0
      %v10545 = vpop.f32.mrb[0].mxu0
      %v10546 = vadd.f32 0.0, %v10545
      %v10547 = vpop.f32.mrb[0].mxu0
      %10548 = vmatprep.mubr.bf16.mxu0 0
      %10549 = vmatmul.mubr.bf16.gmra.mrb[0].mxu0 %v10406
      %v10550 = vpop.f32.mrb[0].mxu0
      %v10551 = vadd.f32 0.0, %v10550
      %v10552 = vpop.f32.mrb[0].mxu0
      %v10553 = vpop.f32.mrb[0].mxu0
      %v10554 = vadd.f32 0.0, %v10553
      %v10555 = vpop.f32.mrb[0].mxu0
      %10556 = vmatprep.mubr.bf16.mxu0 0
      %10557 = vmatmul.mubr.bf16.gmra.mrb[0].mxu0 %v10410
      %v10558 = vpop.f32.mrb[0].mxu0
      %v10559 = vadd.f32 0.0, %v10558
      %v10560 = vpop.f32.mrb[0].mxu0
      %v10561 = vpop.f32.mrb[0].mxu0
      %v10562 = vadd.f32 0.0, %v10561
      %v10563 = vpop.f32.mrb[0].mxu0
      %10564 = vmatprep.mubr.bf16.mxu0 0
      %10565 = vmatmul.mubr.bf16.gmra.mrb[0].mxu0 %v10419
      %v10566 = vpop.f32.mrb[0].mxu0
      %v10567 = vadd.f32 0.0, %v10566
      %v10568 = vpop.f32.mrb[0].mxu0
      %v10569 = vpop.f32.mrb[0].mxu0
      %v10570 = vadd.f32 0.0, %v10569
      %v10571 = vpop.f32.mrb[0].mxu0
      %10572 = vdwg.mxu0
      %v10573 = vadd.f32 %v10342, %v10511
      %v10574 = vadd.f32 %v10343, %v10514
      %v10575 = vadd.f32 %v10344, %v10519
      %v10576 = vadd.f32 %v10345, %v10522
      %v10577 = vadd.f32 %v10346, %v10527
      %v10578 = vadd.f32 %v10347, %v10530
      %v10579 = vadd.f32 %v10348, %v10535
      %v10580 = vadd.f32 %v10349, %v10538
      %v10581 = vadd.f32 %v10350, %v10543
      %v10582 = vadd.f32 %v10351, %v10546
      %v10583 = vadd.f32 %v10352, %v10551
      %v10584 = vadd.f32 %v10353, %v10554
      %v10585 = vadd.f32 %v10354, %v10559
      %v10586 = vadd.f32 %v10355, %v10562
      %v10587 = vadd.f32 %v10356, %v10567
      %v10588 = vadd.f32 %v10357, %v10570
      %v10589 = vld [vmem:[%s219 + $0x81] sm:$0xff]
      %v10590 = vld [vmem:[%s219 + $0x89] sm:$0xff]
      %v10591 = vld [vmem:[%s219 + $0x91] sm:$0xff]
      %v10592 = vld [vmem:[%s219 + $0x99] sm:$0xff]
      %v10593 = vld [vmem:[%s219 + $0xa1] sm:$0xff]
      %v10594 = vld [vmem:[%s219 + $0xa9] sm:$0xff]
      %v10595 = vld [vmem:[%s219 + $0xb1] sm:$0xff]
      %v10596 = vld [vmem:[%s219 + $0xb9] sm:$0xff]
      %v10597 = vld [vmem:[%s219 + $0xc1] sm:$0xff]
      %v10598 = vld [vmem:[%s219 + $0xc9] sm:$0xff]
      %v10599 = vld [vmem:[%s219 + $0xd1] sm:$0xff]
      %v10600 = vld [vmem:[%s219 + $0xd9] sm:$0xff]
      %v10601 = vld [vmem:[%s219 + $0xe1] sm:$0xff]
      %v10602 = vld [vmem:[%s219 + $0xe9] sm:$0xff]
      %v10603 = vld [vmem:[%s219 + $0xf1] sm:$0xff]
      %v10604 = vld [vmem:[%s219 + $0xf9] sm:$0xff]
      %v10605 = vld [vmem:[%s4] sm:$0x1]
      %v10607 = vlaneseq
      %v10608 = vshrl.u32 %v10607, 7
      %v10609 = vsub.s32 0, %v10608
      %v10610 = vrot.slane %v10605, %v10609
      %v10612 = vadd.f32 %v10573, %v10610
      %v10613 = vadd.f32 %v10574, %v10610
      %v10614 = vadd.f32 %v10575, %v10610
      %v10615 = vadd.f32 %v10576, %v10610
      %v10616 = vadd.f32 %v10577, %v10610
      %v10617 = vadd.f32 %v10578, %v10610
      %v10618 = vadd.f32 %v10579, %v10610
      %v10619 = vadd.f32 %v10580, %v10610
      %v10620 = vadd.f32 %v10581, %v10610
      %v10621 = vadd.f32 %v10582, %v10610
      %v10622 = vadd.f32 %v10583, %v10610
      %v10623 = vadd.f32 %v10584, %v10610
      %v10624 = vadd.f32 %v10585, %v10610
      %v10625 = vadd.f32 %v10586, %v10610
      %v10626 = vadd.f32 %v10587, %v10610
      %v10627 = vadd.f32 %v10588, %v10610
      %v10628 = vadd.f32 %v10612, %v10589
      %v10629 = vadd.f32 %v10613, %v10590
      %v10630 = vadd.f32 %v10614, %v10591
      %v10631 = vadd.f32 %v10615, %v10592
      %v10632 = vadd.f32 %v10616, %v10593
      %v10633 = vadd.f32 %v10617, %v10594
      %v10634 = vadd.f32 %v10618, %v10595
      %v10635 = vadd.f32 %v10619, %v10596
      %v10636 = vadd.f32 %v10620, %v10597
      %v10637 = vadd.f32 %v10621, %v10598
      %v10638 = vadd.f32 %v10622, %v10599
      %v10639 = vadd.f32 %v10623, %v10600
      %v10640 = vadd.f32 %v10624, %v10601
      %v10641 = vadd.f32 %v10625, %v10602
      %v10642 = vadd.f32 %v10626, %v10603
      %v10643 = vadd.f32 %v10627, %v10604
      %10644 = vst [vmem:[%s224 + $0x80] sm:$0xff] %v10628
      %10645 = vst [vmem:[%s224 + $0x88] sm:$0xff] %v10629
      %10646 = vst [vmem:[%s224 + $0x90] sm:$0xff] %v10630
      %10647 = vst [vmem:[%s224 + $0x98] sm:$0xff] %v10631
      %10648 = vst [vmem:[%s224 + $0xa0] sm:$0xff] %v10632
      %10649 = vst [vmem:[%s224 + $0xa8] sm:$0xff] %v10633
      %10650 = vst [vmem:[%s224 + $0xb0] sm:$0xff] %v10634
      %10651 = vst [vmem:[%s224 + $0xb8] sm:$0xff] %v10635
      %10652 = vst [vmem:[%s224 + $0xc0] sm:$0xff] %v10636
      %10653 = vst [vmem:[%s224 + $0xc8] sm:$0xff] %v10637
      %10654 = vst [vmem:[%s224 + $0xd0] sm:$0xff] %v10638
      %10655 = vst [vmem:[%s224 + $0xd8] sm:$0xff] %v10639
      %10656 = vst [vmem:[%s224 + $0xe0] sm:$0xff] %v10640
      %10657 = vst [vmem:[%s224 + $0xe8] sm:$0xff] %v10641
      %10658 = vst [vmem:[%s224 + $0xf0] sm:$0xff] %v10642
      %10659 = vst [vmem:[%s224 + $0xf8] sm:$0xff] %v10643
      %v10660 = vld [vmem:[#allocation3 + $0x80] sm:$0xc0]
      %v10661 = vld [vmem:[#allocation3 + $0x88] sm:$0xff]
      %v10662 = vld [vmem:[#allocation3 + $0x90] sm:$0x7f]
      %v10663 = vld [vmem:[%s3] sm:$0xf]
      %v10664 = vld [vmem:[%s3 + $0x4] sm:$0xf]
      %v10665 = vld [vmem:[%s3 + $0x8] sm:$0xf]
      %v10666 = vld [vmem:[%s3 + $0xc] sm:$0xf]
      %v10667 = vld [vmem:[%s3 + $0x10] sm:$0xf]
      %v10668 = vld [vmem:[%s3 + $0x14] sm:$0xf]
      %v10669 = vld [vmem:[%s3 + $0x18] sm:$0xf]
      %v10670 = vld [vmem:[%s3 + $0x1c] sm:$0xf]
      %v10671 = vld [vmem:[%s3 + $0x20] sm:$0xf]
      %v10672 = vld [vmem:[%s3 + $0x24] sm:$0xf]
      %v10673 = vld [vmem:[%s3 + $0x28] sm:$0xf]
      %v10674 = vld [vmem:[%s3 + $0x2c] sm:$0xf]
      %v10675 = vld [vmem:[%s3 + $0x30] sm:$0xf]
      %v10676 = vld [vmem:[%s3 + $0x34] sm:$0xf]
      %v10677 = vld [vmem:[%s3 + $0x38] sm:$0xf]
      %v10678 = vld [vmem:[%s3 + $0x3c] sm:$0xf]
      %v10679 = vld [vmem:[#allocation3 + $0x80] sm:$0x80]
      %v10680 = vld [vmem:[%s6377] sm:$0xf]
      %v10681 = vld [vmem:[%s6377 + $0x4] sm:$0xf]
      %v10682 = vld [vmem:[%s6377 + $0x8] sm:$0xf]
      %v10683 = vld [vmem:[%s6377 + $0xc] sm:$0xf]
      %v10684 = vld [vmem:[%s6377 + $0x10] sm:$0xf]
      %v10685 = vld [vmem:[%s6377 + $0x14] sm:$0xf]
      %v10686 = vld [vmem:[%s6377 + $0x18] sm:$0xf]
      %v10687 = vld [vmem:[%s6377 + $0x1c] sm:$0xf]
      %v10688 = vld [vmem:[%s6377 + $0x20] sm:$0xf]
      %v10689 = vld [vmem:[%s6377 + $0x24] sm:$0xf]
      %v10690 = vld [vmem:[%s6377 + $0x28] sm:$0xf]
      %v10691 = vld [vmem:[%s6377 + $0x2c] sm:$0xf]
      %v10692 = vld [vmem:[%s6377 + $0x30] sm:$0xf]
      %v10693 = vld [vmem:[%s6377 + $0x34] sm:$0xf]
      %v10694 = vld [vmem:[%s6377 + $0x38] sm:$0xf]
      %v10695 = vld [vmem:[%s6377 + $0x3c] sm:$0xf]
      %v10699 = vrot.slane %v10679, 7
      %v10700 = vrot.slane %v10661, 7
      %v10701 = vsel %vm616, %v10699, %v10700
      %v10702 = vrot.slane %v10662, 7
      %v10703 = vsel %vm616, %v10700, %v10702
      %v10722 = vunpack.c.l.b16 %v10680
      %v10723 = vunpack.c.l.b16 %v10681
      %v10724 = vunpack.c.l.b16 %v10682
      %v10725 = vunpack.c.l.b16 %v10683
      %v10726 = vunpack.c.l.b16 %v10684
      %v10727 = vunpack.c.l.b16 %v10685
      %v10728 = vunpack.c.l.b16 %v10686
      %v10729 = vunpack.c.l.b16 %v10687
      %v10730 = vunpack.c.l.b16 %v10688
      %v10731 = vunpack.c.l.b16 %v10689
      %v10732 = vunpack.c.l.b16 %v10690
      %v10733 = vunpack.c.l.b16 %v10691
      %v10734 = vunpack.c.l.b16 %v10692
      %v10735 = vunpack.c.l.b16 %v10693
      %v10736 = vunpack.c.l.b16 %v10694
      %v10737 = vunpack.c.l.b16 %v10695
      %v10738 = vpack.c.b16 %v10723, %v10722
      %v10739 = vpack.c.b16 %v10725, %v10724
      %v10740 = vpack.c.b16 %v10727, %v10726
      %v10741 = vpack.c.b16 %v10729, %v10728
      %v10742 = vpack.c.b16 %v10731, %v10730
      %v10743 = vpack.c.b16 %v10733, %v10732
      %v10744 = vpack.c.b16 %v10735, %v10734
      %v10745 = vpack.c.b16 %v10737, %v10736
      %10754 = vmatprep.subr.bf16.mxu0 0
      %10755 = vmatpush1.bf16.msra.mxu0 %v10738
      %10756 = vmatprep.subr.bf16.mxu0 0
      %10757 = vmatpush1.bf16.msra.mxu0 %v10739
      %10758 = vmatprep.subr.bf16.mxu0 0
      %10759 = vmatpush1.bf16.msra.mxu0 %v10740
      %10760 = vmatprep.subr.bf16.mxu0 0
      %10761 = vmatpush1.bf16.msra.mxu0 %v10741
      %10762 = vmatprep.subr.bf16.mxu0 0
      %10763 = vmatpush1.bf16.msra.mxu0 %v10742
      %10764 = vmatprep.subr.bf16.mxu0 0
      %10765 = vmatpush1.bf16.msra.mxu0 %v10743
      %10766 = vmatprep.subr.bf16.mxu0 0
      %10767 = vmatpush1.bf16.msra.mxu0 %v10744
      %10768 = vmatprep.subr.bf16.mxu0 0
      %10769 = vmatpush1.bf16.msra.mxu0 %v10745
      %10770 = vmatprep.subr.bf16.mxu0 0
      %10771 = vmatpush1.bf16.msra.mxu0 0
      %10772 = vmatprep.subr.bf16.mxu0 0
      %10773 = vmatpush1.bf16.msra.mxu0 0
      %10774 = vmatprep.subr.bf16.mxu0 0
      %10775 = vmatpush1.bf16.msra.mxu0 0
      %10776 = vmatprep.subr.bf16.mxu0 0
      %10777 = vmatpush1.bf16.msra.mxu0 0
      %10778 = vmatprep.subr.bf16.mxu0 0
      %10779 = vmatpush1.bf16.msra.mxu0 0
      %10780 = vmatprep.subr.bf16.mxu0 0
      %10781 = vmatpush1.bf16.msra.mxu0 0
      %10782 = vmatprep.subr.bf16.mxu0 0
      %10783 = vmatpush1.bf16.msra.mxu0 0
      %10784 = vmatprep.subr.bf16.mxu0 0
      %10785 = vmatpush1.bf16.msra.mxu0 0
      %10786 = vmatprep.mubr.bf16.mxu0 0
      %10787 = vmatmul.mubr.bf16.gmra.mrb[0].mxu0 %v10701
      %v10788 = vpop.f32.mrb[0].mxu0
      %v10789 = vadd.f32 0.0, %v10788
      %v10790 = vpop.f32.mrb[0].mxu0
      %v10791 = vpop.f32.mrb[0].mxu0
      %v10792 = vadd.f32 0.0, %v10791
      %v10793 = vpop.f32.mrb[0].mxu0
      %10794 = vmatprep.mubr.bf16.mxu0 0
      %10795 = vmatmul.mubr.bf16.gmra.mrb[0].mxu0 %v10703
      %v10796 = vpop.f32.mrb[0].mxu0
      %v10797 = vadd.f32 0.0, %v10796
      %v10798 = vpop.f32.mrb[0].mxu0
      %v10799 = vpop.f32.mrb[0].mxu0
      %v10800 = vadd.f32 0.0, %v10799
      %v10801 = vpop.f32.mrb[0].mxu0
      %10802 = vdwg.mxu0
      %v10804 = vshrl.u32 %v10660, 16
      %v10806 = vrot.slane %v10804, 6
      %v10807 = vshll.u32 %v10660, 16
      %v10809 = vrot.slane %v10807, 7
      %v10810 = vor.u32 %v10806, %v10809
      %v10812 = vshrl.u32 %v10661, 16
      %v10814 = vrot.slane %v10812, 6
      %v10815 = vshll.u32 %v10661, 16
      %v10817 = vrot.slane %v10815, 7
      %v10818 = vor.u32 %v10814, %v10817
      %v10819 = vsel %vm6573, %v10810, %v10818
      %v10821 = vshrl.u32 %v10662, 16
      %v10823 = vrot.slane %v10821, 6
      %v10824 = vshll.u32 %v10662, 16
      %v10826 = vrot.slane %v10824, 7
      %v10827 = vor.u32 %v10823, %v10826
      %v10828 = vsel %vm6573, %v10818, %v10827
      %v10847 = vunpack.c.l.b16 %v10663
      %v10848 = vunpack.c.l.b16 %v10664
      %v10849 = vunpack.c.l.b16 %v10665
      %v10850 = vunpack.c.l.b16 %v10666
      %v10851 = vunpack.c.l.b16 %v10667
      %v10852 = vunpack.c.l.b16 %v10668
      %v10853 = vunpack.c.l.b16 %v10669
      %v10854 = vunpack.c.l.b16 %v10670
      %v10855 = vunpack.c.l.b16 %v10671
      %v10856 = vunpack.c.l.b16 %v10672
      %v10857 = vunpack.c.l.b16 %v10673
      %v10858 = vunpack.c.l.b16 %v10674
      %v10859 = vunpack.c.l.b16 %v10675
      %v10860 = vunpack.c.l.b16 %v10676
      %v10861 = vunpack.c.l.b16 %v10677
      %v10862 = vunpack.c.l.b16 %v10678
      %v10863 = vpack.c.b16 %v10848, %v10847
      %v10864 = vpack.c.b16 %v10850, %v10849
      %v10865 = vpack.c.b16 %v10852, %v10851
      %v10866 = vpack.c.b16 %v10854, %v10853
      %v10867 = vpack.c.b16 %v10856, %v10855
      %v10868 = vpack.c.b16 %v10858, %v10857
      %v10869 = vpack.c.b16 %v10860, %v10859
      %v10870 = vpack.c.b16 %v10862, %v10861
      %10879 = vmatprep.subr.bf16.mxu0 0
      %10880 = vmatpush1.bf16.msra.mxu0 %v10863
      %10881 = vmatprep.subr.bf16.mxu0 0
      %10882 = vmatpush1.bf16.msra.mxu0 %v10864
      %10883 = vmatprep.subr.bf16.mxu0 0
      %10884 = vmatpush1.bf16.msra.mxu0 %v10865
      %10885 = vmatprep.subr.bf16.mxu0 0
      %10886 = vmatpush1.bf16.msra.mxu0 %v10866
      %10887 = vmatprep.subr.bf16.mxu0 0
      %10888 = vmatpush1.bf16.msra.mxu0 %v10867
      %10889 = vmatprep.subr.bf16.mxu0 0
      %10890 = vmatpush1.bf16.msra.mxu0 %v10868
      %10891 = vmatprep.subr.bf16.mxu0 0
      %10892 = vmatpush1.bf16.msra.mxu0 %v10869
      %10893 = vmatprep.subr.bf16.mxu0 0
      %10894 = vmatpush1.bf16.msra.mxu0 %v10870
      %10895 = vmatprep.subr.bf16.mxu0 0
      %10896 = vmatpush1.bf16.msra.mxu0 0
      %10897 = vmatprep.subr.bf16.mxu0 0
      %10898 = vmatpush1.bf16.msra.mxu0 0
      %10899 = vmatprep.subr.bf16.mxu0 0
      %10900 = vmatpush1.bf16.msra.mxu0 0
      %10901 = vmatprep.subr.bf16.mxu0 0
      %10902 = vmatpush1.bf16.msra.mxu0 0
      %10903 = vmatprep.subr.bf16.mxu0 0
      %10904 = vmatpush1.bf16.msra.mxu0 0
      %10905 = vmatprep.subr.bf16.mxu0 0
      %10906 = vmatpush1.bf16.msra.mxu0 0
      %10907 = vmatprep.subr.bf16.mxu0 0
      %10908 = vmatpush1.bf16.msra.mxu0 0
      %10909 = vmatprep.subr.bf16.mxu0 0
      %10910 = vmatpush1.bf16.msra.mxu0 0
      %10911 = vmatprep.mubr.bf16.mxu0 0
      %10912 = vmatmul.mubr.bf16.gmra.mrb[0].mxu0 %v10819
      %v10913 = vpop.f32.mrb[0].mxu0
      %v10914 = vadd.f32 %v10789, %v10913
      %v10915 = vpop.f32.mrb[0].mxu0
      %v10916 = vpop.f32.mrb[0].mxu0
      %v10917 = vadd.f32 %v10792, %v10916
      %v10918 = vpop.f32.mrb[0].mxu0
      %10919 = vmatprep.mubr.bf16.mxu0 0
      %10920 = vmatmul.mubr.bf16.gmra.mrb[0].mxu0 %v10828
      %v10921 = vpop.f32.mrb[0].mxu0
      %v10922 = vadd.f32 %v10797, %v10921
      %v10923 = vpop.f32.mrb[0].mxu0
      %v10924 = vpop.f32.mrb[0].mxu0
      %v10925 = vadd.f32 %v10800, %v10924
      %v10926 = vpop.f32.mrb[0].mxu0
      %10927 = vdwg.mxu0
      %v10928 = vld [vmem:[#allocation3 + $0x90] sm:$0xff]
      %v10929 = vld [vmem:[%s6808] sm:$0xf]
      %v10930 = vld [vmem:[%s6808 + $0x4] sm:$0xf]
      %v10931 = vld [vmem:[%s6808 + $0x8] sm:$0xf]
      %v10932 = vld [vmem:[%s6808 + $0xc] sm:$0xf]
      %v10933 = vld [vmem:[%s6808 + $0x10] sm:$0xf]
      %v10934 = vld [vmem:[%s6808 + $0x14] sm:$0xf]
      %v10935 = vld [vmem:[%s6808 + $0x18] sm:$0xf]
      %v10936 = vld [vmem:[%s6808 + $0x1c] sm:$0xf]
      %v10937 = vld [vmem:[%s6808 + $0x20] sm:$0xf]
      %v10938 = vld [vmem:[%s6808 + $0x24] sm:$0xf]
      %v10939 = vld [vmem:[%s6808 + $0x28] sm:$0xf]
      %v10940 = vld [vmem:[%s6808 + $0x2c] sm:$0xf]
      %v10941 = vld [vmem:[%s6808 + $0x30] sm:$0xf]
      %v10942 = vld [vmem:[%s6808 + $0x34] sm:$0xf]
      %v10943 = vld [vmem:[%s6808 + $0x38] sm:$0xf]
      %v10944 = vld [vmem:[%s6808 + $0x3c] sm:$0xf]
      %v10946 = vshrl.u32 %v10679, 16
      %v10948 = vrot.slane %v10946, 7
      %v10949 = vrot.slane %v10812, 7
      %v10950 = vor.u32 %v10949, %v10815
      %v10951 = vsel %vm385, %v10948, %v10950
      %v10953 = vshrl.u32 %v10928, 16
      %v10955 = vrot.slane %v10953, 7
      %v10956 = vshll.u32 %v10928, 16
      %v10958 = vor.u32 %v10955, %v10956
      %v10959 = vsel %vm385, %v10949, %v10958
      %v10978 = vunpack.c.l.b16 %v10929
      %v10979 = vunpack.c.l.b16 %v10930
      %v10980 = vunpack.c.l.b16 %v10931
      %v10981 = vunpack.c.l.b16 %v10932
      %v10982 = vunpack.c.l.b16 %v10933
      %v10983 = vunpack.c.l.b16 %v10934
      %v10984 = vunpack.c.l.b16 %v10935
      %v10985 = vunpack.c.l.b16 %v10936
      %v10986 = vunpack.c.l.b16 %v10937
      %v10987 = vunpack.c.l.b16 %v10938
      %v10988 = vunpack.c.l.b16 %v10939
      %v10989 = vunpack.c.l.b16 %v10940
      %v10990 = vunpack.c.l.b16 %v10941
      %v10991 = vunpack.c.l.b16 %v10942
      %v10992 = vunpack.c.l.b16 %v10943
      %v10993 = vunpack.c.l.b16 %v10944
      %v10994 = vpack.c.b16 %v10979, %v10978
      %v10995 = vpack.c.b16 %v10981, %v10980
      %v10996 = vpack.c.b16 %v10983, %v10982
      %v10997 = vpack.c.b16 %v10985, %v10984
      %v10998 = vpack.c.b16 %v10987, %v10986
      %v10999 = vpack.c.b16 %v10989, %v10988
      %v11000 = vpack.c.b16 %v10991, %v10990
      %v11001 = vpack.c.b16 %v10993, %v10992
      %11010 = vmatprep.subr.bf16.mxu0 0
      %11011 = vmatpush1.bf16.msra.mxu0 %v10994
      %11012 = vmatprep.subr.bf16.mxu0 0
      %11013 = vmatpush1.bf16.msra.mxu0 %v10995
      %11014 = vmatprep.subr.bf16.mxu0 0
      %11015 = vmatpush1.bf16.msra.mxu0 %v10996
      %11016 = vmatprep.subr.bf16.mxu0 0
      %11017 = vmatpush1.bf16.msra.mxu0 %v10997
      %11018 = vmatprep.subr.bf16.mxu0 0
      %11019 = vmatpush1.bf16.msra.mxu0 %v10998
      %11020 = vmatprep.subr.bf16.mxu0 0
      %11021 = vmatpush1.bf16.msra.mxu0 %v10999
      %11022 = vmatprep.subr.bf16.mxu0 0
      %11023 = vmatpush1.bf16.msra.mxu0 %v11000
      %11024 = vmatprep.subr.bf16.mxu0 0
      %11025 = vmatpush1.bf16.msra.mxu0 %v11001
      %11026 = vmatprep.subr.bf16.mxu0 0
      %11027 = vmatpush1.bf16.msra.mxu0 0
      %11028 = vmatprep.subr.bf16.mxu0 0
      %11029 = vmatpush1.bf16.msra.mxu0 0
      %11030 = vmatprep.subr.bf16.mxu0 0
      %11031 = vmatpush1.bf16.msra.mxu0 0
      %11032 = vmatprep.subr.bf16.mxu0 0
      %11033 = vmatpush1.bf16.msra.mxu0 0
      %11034 = vmatprep.subr.bf16.mxu0 0
      %11035 = vmatpush1.bf16.msra.mxu0 0
      %11036 = vmatprep.subr.bf16.mxu0 0
      %11037 = vmatpush1.bf16.msra.mxu0 0
      %11038 = vmatprep.subr.bf16.mxu0 0
      %11039 = vmatpush1.bf16.msra.mxu0 0
      %11040 = vmatprep.subr.bf16.mxu0 0
      %11041 = vmatpush1.bf16.msra.mxu0 0
      %11042 = vmatprep.mubr.bf16.mxu0 0
      %11043 = vmatmul.mubr.bf16.gmra.mrb[0].mxu0 %v10951
      %v11044 = vpop.f32.mrb[0].mxu0
      %v11045 = vadd.f32 0.0, %v11044
      %v11046 = vpop.f32.mrb[0].mxu0
      %v11047 = vpop.f32.mrb[0].mxu0
      %v11048 = vadd.f32 0.0, %v11047
      %v11049 = vpop.f32.mrb[0].mxu0
      %11050 = vmatprep.mubr.bf16.mxu0 0
      %11051 = vmatmul.mubr.bf16.gmra.mrb[0].mxu0 %v10959
      %v11052 = vpop.f32.mrb[0].mxu0
      %v11053 = vadd.f32 0.0, %v11052
      %v11054 = vpop.f32.mrb[0].mxu0
      %v11055 = vpop.f32.mrb[0].mxu0
      %v11056 = vadd.f32 0.0, %v11055
      %v11057 = vpop.f32.mrb[0].mxu0
      %11058 = vdwg.mxu0
      %v11059 = vadd.f32 %v10914, %v11045
      %v11060 = vadd.f32 %v10917, %v11048
      %v11061 = vadd.f32 %v10922, %v11053
      %v11062 = vadd.f32 %v10925, %v11056
      %v11063 = vld [vmem:[#allocation3 + $0x88] sm:$0x80]
      %v11064 = vld [vmem:[#allocation3 + $0x90] sm:$0xff]
      %v11065 = vld [vmem:[#allocation3 + $0x98] sm:$0xff]
      %v11066 = vld [vmem:[%s7036] sm:$0xf]
      %v11067 = vld [vmem:[%s7036 + $0x4] sm:$0xf]
      %v11068 = vld [vmem:[%s7036 + $0x8] sm:$0xf]
      %v11069 = vld [vmem:[%s7036 + $0xc] sm:$0xf]
      %v11070 = vld [vmem:[%s7036 + $0x10] sm:$0xf]
      %v11071 = vld [vmem:[%s7036 + $0x14] sm:$0xf]
      %v11072 = vld [vmem:[%s7036 + $0x18] sm:$0xf]
      %v11073 = vld [vmem:[%s7036 + $0x1c] sm:$0xf]
      %v11074 = vld [vmem:[%s7036 + $0x20] sm:$0xf]
      %v11075 = vld [vmem:[%s7036 + $0x24] sm:$0xf]
      %v11076 = vld [vmem:[%s7036 + $0x28] sm:$0xf]
      %v11077 = vld [vmem:[%s7036 + $0x2c] sm:$0xf]
      %v11078 = vld [vmem:[%s7036 + $0x30] sm:$0xf]
      %v11079 = vld [vmem:[%s7036 + $0x34] sm:$0xf]
      %v11080 = vld [vmem:[%s7036 + $0x38] sm:$0xf]
      %v11081 = vld [vmem:[%s7036 + $0x3c] sm:$0xf]
      %v11083 = vshrl.u32 %v11063, 16
      %v11085 = vrot.slane %v11083, 7
      %v11087 = vshrl.u32 %v11064, 16
      %v11089 = vrot.slane %v11087, 7
      %v11090 = vshll.u32 %v11064, 16
      %v11092 = vor.u32 %v11089, %v11090
      %v11093 = vsel %vm385, %v11085, %v11092
      %v11095 = vshrl.u32 %v11065, 16
      %v11097 = vrot.slane %v11095, 7
      %v11098 = vshll.u32 %v11065, 16
      %v11100 = vor.u32 %v11097, %v11098
      %v11101 = vsel %vm385, %v11089, %v11100
      %v11120 = vunpack.c.l.b16 %v11066
      %v11121 = vunpack.c.l.b16 %v11067
      %v11122 = vunpack.c.l.b16 %v11068
      %v11123 = vunpack.c.l.b16 %v11069
      %v11124 = vunpack.c.l.b16 %v11070
      %v11125 = vunpack.c.l.b16 %v11071
      %v11126 = vunpack.c.l.b16 %v11072
      %v11127 = vunpack.c.l.b16 %v11073
      %v11128 = vunpack.c.l.b16 %v11074
      %v11129 = vunpack.c.l.b16 %v11075
      %v11130 = vunpack.c.l.b16 %v11076
      %v11131 = vunpack.c.l.b16 %v11077
      %v11132 = vunpack.c.l.b16 %v11078
      %v11133 = vunpack.c.l.b16 %v11079
      %v11134 = vunpack.c.l.b16 %v11080
      %v11135 = vunpack.c.l.b16 %v11081
      %v11136 = vpack.c.b16 %v11121, %v11120
      %v11137 = vpack.c.b16 %v11123, %v11122
      %v11138 = vpack.c.b16 %v11125, %v11124
      %v11139 = vpack.c.b16 %v11127, %v11126
      %v11140 = vpack.c.b16 %v11129, %v11128
      %v11141 = vpack.c.b16 %v11131, %v11130
      %v11142 = vpack.c.b16 %v11133, %v11132
      %v11143 = vpack.c.b16 %v11135, %v11134
      %11152 = vmatprep.subr.bf16.mxu0 0
      %11153 = vmatpush1.bf16.msra.mxu0 %v11136
      %11154 = vmatprep.subr.bf16.mxu0 0
      %11155 = vmatpush1.bf16.msra.mxu0 %v11137
      %11156 = vmatprep.subr.bf16.mxu0 0
      %11157 = vmatpush1.bf16.msra.mxu0 %v11138
      %11158 = vmatprep.subr.bf16.mxu0 0
      %11159 = vmatpush1.bf16.msra.mxu0 %v11139
      %11160 = vmatprep.subr.bf16.mxu0 0
      %11161 = vmatpush1.bf16.msra.mxu0 %v11140
      %11162 = vmatprep.subr.bf16.mxu0 0
      %11163 = vmatpush1.bf16.msra.mxu0 %v11141
      %11164 = vmatprep.subr.bf16.mxu0 0
      %11165 = vmatpush1.bf16.msra.mxu0 %v11142
      %11166 = vmatprep.subr.bf16.mxu0 0
      %11167 = vmatpush1.bf16.msra.mxu0 %v11143
      %11168 = vmatprep.subr.bf16.mxu0 0
      %11169 = vmatpush1.bf16.msra.mxu0 0
      %11170 = vmatprep.subr.bf16.mxu0 0
      %11171 = vmatpush1.bf16.msra.mxu0 0
      %11172 = vmatprep.subr.bf16.mxu0 0
      %11173 = vmatpush1.bf16.msra.mxu0 0
      %11174 = vmatprep.subr.bf16.mxu0 0
      %11175 = vmatpush1.bf16.msra.mxu0 0
      %11176 = vmatprep.subr.bf16.mxu0 0
      %11177 = vmatpush1.bf16.msra.mxu0 0
      %11178 = vmatprep.subr.bf16.mxu0 0
      %11179 = vmatpush1.bf16.msra.mxu0 0
      %11180 = vmatprep.subr.bf16.mxu0 0
      %11181 = vmatpush1.bf16.msra.mxu0 0
      %11182 = vmatprep.subr.bf16.mxu0 0
      %11183 = vmatpush1.bf16.msra.mxu0 0
      %11184 = vmatprep.mubr.bf16.mxu0 0
      %11185 = vmatmul.mubr.bf16.gmra.mrb[0].mxu0 %v11093
      %v11186 = vpop.f32.mrb[0].mxu0
      %v11187 = vadd.f32 0.0, %v11186
      %v11188 = vpop.f32.mrb[0].mxu0
      %v11189 = vpop.f32.mrb[0].mxu0
      %v11190 = vadd.f32 0.0, %v11189
      %v11191 = vpop.f32.mrb[0].mxu0
      %11192 = vmatprep.mubr.bf16.mxu0 0
      %11193 = vmatmul.mubr.bf16.gmra.mrb[0].mxu0 %v11101
      %v11194 = vpop.f32.mrb[0].mxu0
      %v11195 = vadd.f32 0.0, %v11194
      %v11196 = vpop.f32.mrb[0].mxu0
      %v11197 = vpop.f32.mrb[0].mxu0
      %v11198 = vadd.f32 0.0, %v11197
      %v11199 = vpop.f32.mrb[0].mxu0
      %11200 = vdwg.mxu0
      %v11201 = vadd.f32 %v11059, %v11187
      %v11202 = vadd.f32 %v11060, %v11190
      %v11203 = vadd.f32 %v11061, %v11195
      %v11204 = vadd.f32 %v11062, %v11198
      %v11205 = vld [vmem:[%s7290] sm:$0xf]
      %v11206 = vld [vmem:[%s7290 + $0x4] sm:$0xf]
      %v11207 = vld [vmem:[%s7290 + $0x8] sm:$0xf]
      %v11208 = vld [vmem:[%s7290 + $0xc] sm:$0xf]
      %v11209 = vld [vmem:[%s7290 + $0x10] sm:$0xf]
      %v11210 = vld [vmem:[%s7290 + $0x14] sm:$0xf]
      %v11211 = vld [vmem:[%s7290 + $0x18] sm:$0xf]
      %v11212 = vld [vmem:[%s7290 + $0x1c] sm:$0xf]
      %v11213 = vld [vmem:[%s7290 + $0x20] sm:$0xf]
      %v11214 = vld [vmem:[%s7290 + $0x24] sm:$0xf]
      %v11215 = vld [vmem:[%s7290 + $0x28] sm:$0xf]
      %v11216 = vld [vmem:[%s7290 + $0x2c] sm:$0xf]
      %v11217 = vld [vmem:[%s7290 + $0x30] sm:$0xf]
      %v11218 = vld [vmem:[%s7290 + $0x34] sm:$0xf]
      %v11219 = vld [vmem:[%s7290 + $0x38] sm:$0xf]
      %v11220 = vld [vmem:[%s7290 + $0x3c] sm:$0xf]
      %v11237 = vunpack.c.l.b16 %v11205
      %v11238 = vunpack.c.l.b16 %v11206
      %v11239 = vunpack.c.l.b16 %v11207
      %v11240 = vunpack.c.l.b16 %v11208
      %v11241 = vunpack.c.l.b16 %v11209
      %v11242 = vunpack.c.l.b16 %v11210
      %v11243 = vunpack.c.l.b16 %v11211
      %v11244 = vunpack.c.l.b16 %v11212
      %v11245 = vunpack.c.l.b16 %v11213
      %v11246 = vunpack.c.l.b16 %v11214
      %v11247 = vunpack.c.l.b16 %v11215
      %v11248 = vunpack.c.l.b16 %v11216
      %v11249 = vunpack.c.l.b16 %v11217
      %v11250 = vunpack.c.l.b16 %v11218
      %v11251 = vunpack.c.l.b16 %v11219
      %v11252 = vunpack.c.l.b16 %v11220
      %v11253 = vpack.c.b16 %v11238, %v11237
      %v11254 = vpack.c.b16 %v11240, %v11239
      %v11255 = vpack.c.b16 %v11242, %v11241
      %v11256 = vpack.c.b16 %v11244, %v11243
      %v11257 = vpack.c.b16 %v11246, %v11245
      %v11258 = vpack.c.b16 %v11248, %v11247
      %v11259 = vpack.c.b16 %v11250, %v11249
      %v11260 = vpack.c.b16 %v11252, %v11251
      %11269 = vmatprep.subr.bf16.mxu0 0
      %11270 = vmatpush1.bf16.msra.mxu0 %v11253
      %11271 = vmatprep.subr.bf16.mxu0 0
      %11272 = vmatpush1.bf16.msra.mxu0 %v11254
      %11273 = vmatprep.subr.bf16.mxu0 0
      %11274 = vmatpush1.bf16.msra.mxu0 %v11255
      %11275 = vmatprep.subr.bf16.mxu0 0
      %11276 = vmatpush1.bf16.msra.mxu0 %v11256
      %11277 = vmatprep.subr.bf16.mxu0 0
      %11278 = vmatpush1.bf16.msra.mxu0 %v11257
      %11279 = vmatprep.subr.bf16.mxu0 0
      %11280 = vmatpush1.bf16.msra.mxu0 %v11258
      %11281 = vmatprep.subr.bf16.mxu0 0
      %11282 = vmatpush1.bf16.msra.mxu0 %v11259
      %11283 = vmatprep.subr.bf16.mxu0 0
      %11284 = vmatpush1.bf16.msra.mxu0 %v11260
      %11285 = vmatprep.subr.bf16.mxu0 0
      %11286 = vmatpush1.bf16.msra.mxu0 0
      %11287 = vmatprep.subr.bf16.mxu0 0
      %11288 = vmatpush1.bf16.msra.mxu0 0
      %11289 = vmatprep.subr.bf16.mxu0 0
      %11290 = vmatpush1.bf16.msra.mxu0 0
      %11291 = vmatprep.subr.bf16.mxu0 0
      %11292 = vmatpush1.bf16.msra.mxu0 0
      %11293 = vmatprep.subr.bf16.mxu0 0
      %11294 = vmatpush1.bf16.msra.mxu0 0
      %11295 = vmatprep.subr.bf16.mxu0 0
      %11296 = vmatpush1.bf16.msra.mxu0 0
      %11297 = vmatprep.subr.bf16.mxu0 0
      %11298 = vmatpush1.bf16.msra.mxu0 0
      %11299 = vmatprep.subr.bf16.mxu0 0
      %11300 = vmatpush1.bf16.msra.mxu0 0
      %11301 = vmatprep.mubr.bf16.mxu0 0
      %11302 = vmatmul.mubr.bf16.gmra.mrb[0].mxu0 %v11064
      %v11303 = vpop.f32.mrb[0].mxu0
      %v11304 = vadd.f32 0.0, %v11303
      %v11305 = vpop.f32.mrb[0].mxu0
      %v11306 = vpop.f32.mrb[0].mxu0
      %v11307 = vadd.f32 0.0, %v11306
      %v11308 = vpop.f32.mrb[0].mxu0
      %11309 = vmatprep.mubr.bf16.mxu0 0
      %11310 = vmatmul.mubr.bf16.gmra.mrb[0].mxu0 %v11065
      %v11311 = vpop.f32.mrb[0].mxu0
      %v11312 = vadd.f32 0.0, %v11311
      %v11313 = vpop.f32.mrb[0].mxu0
      %v11314 = vpop.f32.mrb[0].mxu0
      %v11315 = vadd.f32 0.0, %v11314
      %v11316 = vpop.f32.mrb[0].mxu0
      %11317 = vdwg.mxu0
      %v11318 = vadd.f32 %v11201, %v11304
      %v11319 = vadd.f32 %v11202, %v11307
      %v11320 = vadd.f32 %v11203, %v11312
      %v11321 = vadd.f32 %v11204, %v11315
      %v11322 = vld [vmem:[#allocation3 + $0x90] sm:$0xff]
      %v11323 = vld [vmem:[#allocation3 + $0x98] sm:$0xff]
      %v11324 = vld [vmem:[#allocation3 + $0xa0] sm:$0x1]
      %v11325 = vld [vmem:[%s7477] sm:$0xf]
      %v11326 = vld [vmem:[%s7477 + $0x4] sm:$0xf]
      %v11327 = vld [vmem:[%s7477 + $0x8] sm:$0xf]
      %v11328 = vld [vmem:[%s7477 + $0xc] sm:$0xf]
      %v11329 = vld [vmem:[%s7477 + $0x10] sm:$0xf]
      %v11330 = vld [vmem:[%s7477 + $0x14] sm:$0xf]
      %v11331 = vld [vmem:[%s7477 + $0x18] sm:$0xf]
      %v11332 = vld [vmem:[%s7477 + $0x1c] sm:$0xf]
      %v11333 = vld [vmem:[%s7477 + $0x20] sm:$0xf]
      %v11334 = vld [vmem:[%s7477 + $0x24] sm:$0xf]
      %v11335 = vld [vmem:[%s7477 + $0x28] sm:$0xf]
      %v11336 = vld [vmem:[%s7477 + $0x2c] sm:$0xf]
      %v11337 = vld [vmem:[%s7477 + $0x30] sm:$0xf]
      %v11338 = vld [vmem:[%s7477 + $0x34] sm:$0xf]
      %v11339 = vld [vmem:[%s7477 + $0x38] sm:$0xf]
      %v11340 = vld [vmem:[%s7477 + $0x3c] sm:$0xf]
      %v11342 = vshrl.u32 %v11322, 16
      %v11344 = vshll.u32 %v11322, 16
      %v11346 = vrot.slane %v11344, 1
      %v11347 = vor.u32 %v11342, %v11346
      %v11349 = vshll.u32 %v11323, 16
      %v11351 = vrot.slane %v11349, 1
      %v11352 = vsel %vm1177, %v11347, %v11351
      %v11353 = vshrl.u32 %v11323, 16
      %v11355 = vor.u32 %v11353, %v11351
      %v11357 = vshll.u32 %v11324, 16
      %v11359 = vrot.slane %v11357, 1
      %v11360 = vsel %vm1177, %v11355, %v11359
      %v11379 = vunpack.c.l.b16 %v11325
      %v11380 = vunpack.c.l.b16 %v11326
      %v11381 = vunpack.c.l.b16 %v11327
      %v11382 = vunpack.c.l.b16 %v11328
      %v11383 = vunpack.c.l.b16 %v11329
      %v11384 = vunpack.c.l.b16 %v11330
      %v11385 = vunpack.c.l.b16 %v11331
      %v11386 = vunpack.c.l.b16 %v11332
      %v11387 = vunpack.c.l.b16 %v11333
      %v11388 = vunpack.c.l.b16 %v11334
      %v11389 = vunpack.c.l.b16 %v11335
      %v11390 = vunpack.c.l.b16 %v11336
      %v11391 = vunpack.c.l.b16 %v11337
      %v11392 = vunpack.c.l.b16 %v11338
      %v11393 = vunpack.c.l.b16 %v11339
      %v11394 = vunpack.c.l.b16 %v11340
      %v11395 = vpack.c.b16 %v11380, %v11379
      %v11396 = vpack.c.b16 %v11382, %v11381
      %v11397 = vpack.c.b16 %v11384, %v11383
      %v11398 = vpack.c.b16 %v11386, %v11385
      %v11399 = vpack.c.b16 %v11388, %v11387
      %v11400 = vpack.c.b16 %v11390, %v11389
      %v11401 = vpack.c.b16 %v11392, %v11391
      %v11402 = vpack.c.b16 %v11394, %v11393
      %11411 = vmatprep.subr.bf16.mxu0 0
      %11412 = vmatpush1.bf16.msra.mxu0 %v11395
      %11413 = vmatprep.subr.bf16.mxu0 0
      %11414 = vmatpush1.bf16.msra.mxu0 %v11396
      %11415 = vmatprep.subr.bf16.mxu0 0
      %11416 = vmatpush1.bf16.msra.mxu0 %v11397
      %11417 = vmatprep.subr.bf16.mxu0 0
      %11418 = vmatpush1.bf16.msra.mxu0 %v11398
      %11419 = vmatprep.subr.bf16.mxu0 0
      %11420 = vmatpush1.bf16.msra.mxu0 %v11399
      %11421 = vmatprep.subr.bf16.mxu0 0
      %11422 = vmatpush1.bf16.msra.mxu0 %v11400
      %11423 = vmatprep.subr.bf16.mxu0 0
      %11424 = vmatpush1.bf16.msra.mxu0 %v11401
      %11425 = vmatprep.subr.bf16.mxu0 0
      %11426 = vmatpush1.bf16.msra.mxu0 %v11402
      %11427 = vmatprep.subr.bf16.mxu0 0
      %11428 = vmatpush1.bf16.msra.mxu0 0
      %11429 = vmatprep.subr.bf16.mxu0 0
      %11430 = vmatpush1.bf16.msra.mxu0 0
      %11431 = vmatprep.subr.bf16.mxu0 0
      %11432 = vmatpush1.bf16.msra.mxu0 0
      %11433 = vmatprep.subr.bf16.mxu0 0
      %11434 = vmatpush1.bf16.msra.mxu0 0
      %11435 = vmatprep.subr.bf16.mxu0 0
      %11436 = vmatpush1.bf16.msra.mxu0 0
      %11437 = vmatprep.subr.bf16.mxu0 0
      %11438 = vmatpush1.bf16.msra.mxu0 0
      %11439 = vmatprep.subr.bf16.mxu0 0
      %11440 = vmatpush1.bf16.msra.mxu0 0
      %11441 = vmatprep.subr.bf16.mxu0 0
      %11442 = vmatpush1.bf16.msra.mxu0 0
      %11443 = vmatprep.mubr.bf16.mxu0 0
      %11444 = vmatmul.mubr.bf16.gmra.mrb[0].mxu0 %v11352
      %v11445 = vpop.f32.mrb[0].mxu0
      %v11446 = vadd.f32 0.0, %v11445
      %v11447 = vpop.f32.mrb[0].mxu0
      %v11448 = vpop.f32.mrb[0].mxu0
      %v11449 = vadd.f32 0.0, %v11448
      %v11450 = vpop.f32.mrb[0].mxu0
      %11451 = vmatprep.mubr.bf16.mxu0 0
      %11452 = vmatmul.mubr.bf16.gmra.mrb[0].mxu0 %v11360
      %v11453 = vpop.f32.mrb[0].mxu0
      %v11454 = vadd.f32 0.0, %v11453
      %v11455 = vpop.f32.mrb[0].mxu0
      %v11456 = vpop.f32.mrb[0].mxu0
      %v11457 = vadd.f32 0.0, %v11456
      %v11458 = vpop.f32.mrb[0].mxu0
      %11459 = vdwg.mxu0
      %v11460 = vadd.f32 %v11318, %v11446
      %v11461 = vadd.f32 %v11319, %v11449
      %v11462 = vadd.f32 %v11320, %v11454
      %v11463 = vadd.f32 %v11321, %v11457
      %v11464 = vld [vmem:[#allocation3 + $0x98] sm:$0xff]
      %v11465 = vld [vmem:[#allocation3 + $0xa0] sm:$0xff]
      %v11466 = vld [vmem:[#allocation3 + $0xa8] sm:$0x1]
      %v11467 = vld [vmem:[%s7740] sm:$0xf]
      %v11468 = vld [vmem:[%s7740 + $0x4] sm:$0xf]
      %v11469 = vld [vmem:[%s7740 + $0x8] sm:$0xf]
      %v11470 = vld [vmem:[%s7740 + $0xc] sm:$0xf]
      %v11471 = vld [vmem:[%s7740 + $0x10] sm:$0xf]
      %v11472 = vld [vmem:[%s7740 + $0x14] sm:$0xf]
      %v11473 = vld [vmem:[%s7740 + $0x18] sm:$0xf]
      %v11474 = vld [vmem:[%s7740 + $0x1c] sm:$0xf]
      %v11475 = vld [vmem:[%s7740 + $0x20] sm:$0xf]
      %v11476 = vld [vmem:[%s7740 + $0x24] sm:$0xf]
      %v11477 = vld [vmem:[%s7740 + $0x28] sm:$0xf]
      %v11478 = vld [vmem:[%s7740 + $0x2c] sm:$0xf]
      %v11479 = vld [vmem:[%s7740 + $0x30] sm:$0xf]
      %v11480 = vld [vmem:[%s7740 + $0x34] sm:$0xf]
      %v11481 = vld [vmem:[%s7740 + $0x38] sm:$0xf]
      %v11482 = vld [vmem:[%s7740 + $0x3c] sm:$0xf]
      %v11484 = vshrl.u32 %v11464, 16
      %v11486 = vshll.u32 %v11464, 16
      %v11488 = vrot.slane %v11486, 1
      %v11489 = vor.u32 %v11484, %v11488
      %v11491 = vshll.u32 %v11465, 16
      %v11493 = vrot.slane %v11491, 1
      %v11494 = vsel %vm1177, %v11489, %v11493
      %v11495 = vshrl.u32 %v11465, 16
      %v11497 = vor.u32 %v11495, %v11493
      %v11499 = vshll.u32 %v11466, 16
      %v11501 = vrot.slane %v11499, 1
      %v11502 = vsel %vm1177, %v11497, %v11501
      %v11521 = vunpack.c.l.b16 %v11467
      %v11522 = vunpack.c.l.b16 %v11468
      %v11523 = vunpack.c.l.b16 %v11469
      %v11524 = vunpack.c.l.b16 %v11470
      %v11525 = vunpack.c.l.b16 %v11471
      %v11526 = vunpack.c.l.b16 %v11472
      %v11527 = vunpack.c.l.b16 %v11473
      %v11528 = vunpack.c.l.b16 %v11474
      %v11529 = vunpack.c.l.b16 %v11475
      %v11530 = vunpack.c.l.b16 %v11476
      %v11531 = vunpack.c.l.b16 %v11477
      %v11532 = vunpack.c.l.b16 %v11478
      %v11533 = vunpack.c.l.b16 %v11479
      %v11534 = vunpack.c.l.b16 %v11480
      %v11535 = vunpack.c.l.b16 %v11481
      %v11536 = vunpack.c.l.b16 %v11482
      %v11537 = vpack.c.b16 %v11522, %v11521
      %v11538 = vpack.c.b16 %v11524, %v11523
      %v11539 = vpack.c.b16 %v11526, %v11525
      %v11540 = vpack.c.b16 %v11528, %v11527
      %v11541 = vpack.c.b16 %v11530, %v11529
      %v11542 = vpack.c.b16 %v11532, %v11531
      %v11543 = vpack.c.b16 %v11534, %v11533
      %v11544 = vpack.c.b16 %v11536, %v11535
      %11553 = vmatprep.subr.bf16.mxu0 0
      %11554 = vmatpush1.bf16.msra.mxu0 %v11537
      %11555 = vmatprep.subr.bf16.mxu0 0
      %11556 = vmatpush1.bf16.msra.mxu0 %v11538
      %11557 = vmatprep.subr.bf16.mxu0 0
      %11558 = vmatpush1.bf16.msra.mxu0 %v11539
      %11559 = vmatprep.subr.bf16.mxu0 0
      %11560 = vmatpush1.bf16.msra.mxu0 %v11540
      %11561 = vmatprep.subr.bf16.mxu0 0
      %11562 = vmatpush1.bf16.msra.mxu0 %v11541
      %11563 = vmatprep.subr.bf16.mxu0 0
      %11564 = vmatpush1.bf16.msra.mxu0 %v11542
      %11565 = vmatprep.subr.bf16.mxu0 0
      %11566 = vmatpush1.bf16.msra.mxu0 %v11543
      %11567 = vmatprep.subr.bf16.mxu0 0
      %11568 = vmatpush1.bf16.msra.mxu0 %v11544
      %11569 = vmatprep.subr.bf16.mxu0 0
      %11570 = vmatpush1.bf16.msra.mxu0 0
      %11571 = vmatprep.subr.bf16.mxu0 0
      %11572 = vmatpush1.bf16.msra.mxu0 0
      %11573 = vmatprep.subr.bf16.mxu0 0
      %11574 = vmatpush1.bf16.msra.mxu0 0
      %11575 = vmatprep.subr.bf16.mxu0 0
      %11576 = vmatpush1.bf16.msra.mxu0 0
      %11577 = vmatprep.subr.bf16.mxu0 0
      %11578 = vmatpush1.bf16.msra.mxu0 0
      %11579 = vmatprep.subr.bf16.mxu0 0
      %11580 = vmatpush1.bf16.msra.mxu0 0
      %11581 = vmatprep.subr.bf16.mxu0 0
      %11582 = vmatpush1.bf16.msra.mxu0 0
      %11583 = vmatprep.subr.bf16.mxu0 0
      %11584 = vmatpush1.bf16.msra.mxu0 0
      %11585 = vmatprep.mubr.bf16.mxu0 0
      %11586 = vmatmul.mubr.bf16.gmra.mrb[0].mxu0 %v11494
      %v11587 = vpop.f32.mrb[0].mxu0
      %v11588 = vadd.f32 0.0, %v11587
      %v11589 = vpop.f32.mrb[0].mxu0
      %v11590 = vpop.f32.mrb[0].mxu0
      %v11591 = vadd.f32 0.0, %v11590
      %v11592 = vpop.f32.mrb[0].mxu0
      %11593 = vmatprep.mubr.bf16.mxu0 0
      %11594 = vmatmul.mubr.bf16.gmra.mrb[0].mxu0 %v11502
      %v11595 = vpop.f32.mrb[0].mxu0
      %v11596 = vadd.f32 0.0, %v11595
      %v11597 = vpop.f32.mrb[0].mxu0
      %v11598 = vpop.f32.mrb[0].mxu0
      %v11599 = vadd.f32 0.0, %v11598
      %v11600 = vpop.f32.mrb[0].mxu0
      %11601 = vdwg.mxu0
      %v11602 = vadd.f32 %v11460, %v11588
      %v11603 = vadd.f32 %v11461, %v11591
      %v11604 = vadd.f32 %v11462, %v11596
      %v11605 = vadd.f32 %v11463, %v11599
      %v11606 = vld [vmem:[#allocation3 + $0x98] sm:$0xfe]
      %v11607 = vld [vmem:[%s7995] sm:$0xf]
      %v11608 = vld [vmem:[%s7995 + $0x4] sm:$0xf]
      %v11609 = vld [vmem:[%s7995 + $0x8] sm:$0xf]
      %v11610 = vld [vmem:[%s7995 + $0xc] sm:$0xf]
      %v11611 = vld [vmem:[%s7995 + $0x10] sm:$0xf]
      %v11612 = vld [vmem:[%s7995 + $0x14] sm:$0xf]
      %v11613 = vld [vmem:[%s7995 + $0x18] sm:$0xf]
      %v11614 = vld [vmem:[%s7995 + $0x1c] sm:$0xf]
      %v11615 = vld [vmem:[%s7995 + $0x20] sm:$0xf]
      %v11616 = vld [vmem:[%s7995 + $0x24] sm:$0xf]
      %v11617 = vld [vmem:[%s7995 + $0x28] sm:$0xf]
      %v11618 = vld [vmem:[%s7995 + $0x2c] sm:$0xf]
      %v11619 = vld [vmem:[%s7995 + $0x30] sm:$0xf]
      %v11620 = vld [vmem:[%s7995 + $0x34] sm:$0xf]
      %v11621 = vld [vmem:[%s7995 + $0x38] sm:$0xf]
      %v11622 = vld [vmem:[%s7995 + $0x3c] sm:$0xf]
      %v11626 = vrot.slane %v11606, 1
      %v11627 = vrot.slane %v11465, 1
      %v11628 = vsel %vm1442, %v11626, %v11627
      %v11629 = vrot.slane %v11466, 1
      %v11630 = vsel %vm1442, %v11627, %v11629
      %v11649 = vunpack.c.l.b16 %v11607
      %v11650 = vunpack.c.l.b16 %v11608
      %v11651 = vunpack.c.l.b16 %v11609
      %v11652 = vunpack.c.l.b16 %v11610
      %v11653 = vunpack.c.l.b16 %v11611
      %v11654 = vunpack.c.l.b16 %v11612
      %v11655 = vunpack.c.l.b16 %v11613
      %v11656 = vunpack.c.l.b16 %v11614
      %v11657 = vunpack.c.l.b16 %v11615
      %v11658 = vunpack.c.l.b16 %v11616
      %v11659 = vunpack.c.l.b16 %v11617
      %v11660 = vunpack.c.l.b16 %v11618
      %v11661 = vunpack.c.l.b16 %v11619
      %v11662 = vunpack.c.l.b16 %v11620
      %v11663 = vunpack.c.l.b16 %v11621
      %v11664 = vunpack.c.l.b16 %v11622
      %v11665 = vpack.c.b16 %v11650, %v11649
      %v11666 = vpack.c.b16 %v11652, %v11651
      %v11667 = vpack.c.b16 %v11654, %v11653
      %v11668 = vpack.c.b16 %v11656, %v11655
      %v11669 = vpack.c.b16 %v11658, %v11657
      %v11670 = vpack.c.b16 %v11660, %v11659
      %v11671 = vpack.c.b16 %v11662, %v11661
      %v11672 = vpack.c.b16 %v11664, %v11663
      %11681 = vmatprep.subr.bf16.mxu0 0
      %11682 = vmatpush1.bf16.msra.mxu0 %v11665
      %11683 = vmatprep.subr.bf16.mxu0 0
      %11684 = vmatpush1.bf16.msra.mxu0 %v11666
      %11685 = vmatprep.subr.bf16.mxu0 0
      %11686 = vmatpush1.bf16.msra.mxu0 %v11667
      %11687 = vmatprep.subr.bf16.mxu0 0
      %11688 = vmatpush1.bf16.msra.mxu0 %v11668
      %11689 = vmatprep.subr.bf16.mxu0 0
      %11690 = vmatpush1.bf16.msra.mxu0 %v11669
      %11691 = vmatprep.subr.bf16.mxu0 0
      %11692 = vmatpush1.bf16.msra.mxu0 %v11670
      %11693 = vmatprep.subr.bf16.mxu0 0
      %11694 = vmatpush1.bf16.msra.mxu0 %v11671
      %11695 = vmatprep.subr.bf16.mxu0 0
      %11696 = vmatpush1.bf16.msra.mxu0 %v11672
      %11697 = vmatprep.subr.bf16.mxu0 0
      %11698 = vmatpush1.bf16.msra.mxu0 0
      %11699 = vmatprep.subr.bf16.mxu0 0
      %11700 = vmatpush1.bf16.msra.mxu0 0
      %11701 = vmatprep.subr.bf16.mxu0 0
      %11702 = vmatpush1.bf16.msra.mxu0 0
      %11703 = vmatprep.subr.bf16.mxu0 0
      %11704 = vmatpush1.bf16.msra.mxu0 0
      %11705 = vmatprep.subr.bf16.mxu0 0
      %11706 = vmatpush1.bf16.msra.mxu0 0
      %11707 = vmatprep.subr.bf16.mxu0 0
      %11708 = vmatpush1.bf16.msra.mxu0 0
      %11709 = vmatprep.subr.bf16.mxu0 0
      %11710 = vmatpush1.bf16.msra.mxu0 0
      %11711 = vmatprep.subr.bf16.mxu0 0
      %11712 = vmatpush1.bf16.msra.mxu0 0
      %11713 = vmatprep.mubr.bf16.mxu0 0
      %11714 = vmatmul.mubr.bf16.gmra.mrb[0].mxu0 %v11628
      %v11715 = vpop.f32.mrb[0].mxu0
      %v11716 = vadd.f32 0.0, %v11715
      %v11717 = vpop.f32.mrb[0].mxu0
      %v11718 = vpop.f32.mrb[0].mxu0
      %v11719 = vadd.f32 0.0, %v11718
      %v11720 = vpop.f32.mrb[0].mxu0
      %11721 = vmatprep.mubr.bf16.mxu0 0
      %11722 = vmatmul.mubr.bf16.gmra.mrb[0].mxu0 %v11630
      %v11723 = vpop.f32.mrb[0].mxu0
      %v11724 = vadd.f32 0.0, %v11723
      %v11725 = vpop.f32.mrb[0].mxu0
      %v11726 = vpop.f32.mrb[0].mxu0
      %v11727 = vadd.f32 0.0, %v11726
      %v11728 = vpop.f32.mrb[0].mxu0
      %11729 = vdwg.mxu0
      %v11730 = vadd.f32 %v11602, %v11716
      %v11731 = vadd.f32 %v11603, %v11719
      %v11732 = vadd.f32 %v11604, %v11724
      %v11733 = vadd.f32 %v11605, %v11727
      %v11734 = vld [vmem:[#allocation3 + $0xa8] sm:$0x3]
      %v11735 = vld [vmem:[%s8208] sm:$0xf]
      %v11736 = vld [vmem:[%s8208 + $0x4] sm:$0xf]
      %v11737 = vld [vmem:[%s8208 + $0x8] sm:$0xf]
      %v11738 = vld [vmem:[%s8208 + $0xc] sm:$0xf]
      %v11739 = vld [vmem:[%s8208 + $0x10] sm:$0xf]
      %v11740 = vld [vmem:[%s8208 + $0x14] sm:$0xf]
      %v11741 = vld [vmem:[%s8208 + $0x18] sm:$0xf]
      %v11742 = vld [vmem:[%s8208 + $0x1c] sm:$0xf]
      %v11743 = vld [vmem:[%s8208 + $0x20] sm:$0xf]
      %v11744 = vld [vmem:[%s8208 + $0x24] sm:$0xf]
      %v11745 = vld [vmem:[%s8208 + $0x28] sm:$0xf]
      %v11746 = vld [vmem:[%s8208 + $0x2c] sm:$0xf]
      %v11747 = vld [vmem:[%s8208 + $0x30] sm:$0xf]
      %v11748 = vld [vmem:[%s8208 + $0x34] sm:$0xf]
      %v11749 = vld [vmem:[%s8208 + $0x38] sm:$0xf]
      %v11750 = vld [vmem:[%s8208 + $0x3c] sm:$0xf]
      %v11752 = vshrl.u32 %v11606, 16
      %v11754 = vrot.slane %v11752, 1
      %v11755 = vshll.u32 %v11606, 16
      %v11757 = vrot.slane %v11755, 2
      %v11758 = vor.u32 %v11754, %v11757
      %v11759 = vrot.slane %v11495, 1
      %v11760 = vrot.slane %v11491, 2
      %v11761 = vor.u32 %v11759, %v11760
      %v11762 = vsel %vm1868, %v11758, %v11761
      %v11764 = vshrl.u32 %v11734, 16
      %v11766 = vrot.slane %v11764, 1
      %v11767 = vshll.u32 %v11734, 16
      %v11769 = vrot.slane %v11767, 2
      %v11770 = vor.u32 %v11766, %v11769
      %v11771 = vsel %vm1868, %v11761, %v11770
      %v11790 = vunpack.c.l.b16 %v11735
      %v11791 = vunpack.c.l.b16 %v11736
      %v11792 = vunpack.c.l.b16 %v11737
      %v11793 = vunpack.c.l.b16 %v11738
      %v11794 = vunpack.c.l.b16 %v11739
      %v11795 = vunpack.c.l.b16 %v11740
      %v11796 = vunpack.c.l.b16 %v11741
      %v11797 = vunpack.c.l.b16 %v11742
      %v11798 = vunpack.c.l.b16 %v11743
      %v11799 = vunpack.c.l.b16 %v11744
      %v11800 = vunpack.c.l.b16 %v11745
      %v11801 = vunpack.c.l.b16 %v11746
      %v11802 = vunpack.c.l.b16 %v11747
      %v11803 = vunpack.c.l.b16 %v11748
      %v11804 = vunpack.c.l.b16 %v11749
      %v11805 = vunpack.c.l.b16 %v11750
      %v11806 = vpack.c.b16 %v11791, %v11790
      %v11807 = vpack.c.b16 %v11793, %v11792
      %v11808 = vpack.c.b16 %v11795, %v11794
      %v11809 = vpack.c.b16 %v11797, %v11796
      %v11810 = vpack.c.b16 %v11799, %v11798
      %v11811 = vpack.c.b16 %v11801, %v11800
      %v11812 = vpack.c.b16 %v11803, %v11802
      %v11813 = vpack.c.b16 %v11805, %v11804
      %11822 = vmatprep.subr.bf16.mxu0 0
      %11823 = vmatpush1.bf16.msra.mxu0 %v11806
      %11824 = vmatprep.subr.bf16.mxu0 0
      %11825 = vmatpush1.bf16.msra.mxu0 %v11807
      %11826 = vmatprep.subr.bf16.mxu0 0
      %11827 = vmatpush1.bf16.msra.mxu0 %v11808
      %11828 = vmatprep.subr.bf16.mxu0 0
      %11829 = vmatpush1.bf16.msra.mxu0 %v11809
      %11830 = vmatprep.subr.bf16.mxu0 0
      %11831 = vmatpush1.bf16.msra.mxu0 %v11810
      %11832 = vmatprep.subr.bf16.mxu0 0
      %11833 = vmatpush1.bf16.msra.mxu0 %v11811
      %11834 = vmatprep.subr.bf16.mxu0 0
      %11835 = vmatpush1.bf16.msra.mxu0 %v11812
      %11836 = vmatprep.subr.bf16.mxu0 0
      %11837 = vmatpush1.bf16.msra.mxu0 %v11813
      %11838 = vmatprep.subr.bf16.mxu0 0
      %11839 = vmatpush1.bf16.msra.mxu0 0
      %11840 = vmatprep.subr.bf16.mxu0 0
      %11841 = vmatpush1.bf16.msra.mxu0 0
      %11842 = vmatprep.subr.bf16.mxu0 0
      %11843 = vmatpush1.bf16.msra.mxu0 0
      %11844 = vmatprep.subr.bf16.mxu0 0
      %11845 = vmatpush1.bf16.msra.mxu0 0
      %11846 = vmatprep.subr.bf16.mxu0 0
      %11847 = vmatpush1.bf16.msra.mxu0 0
      %11848 = vmatprep.subr.bf16.mxu0 0
      %11849 = vmatpush1.bf16.msra.mxu0 0
      %11850 = vmatprep.subr.bf16.mxu0 0
      %11851 = vmatpush1.bf16.msra.mxu0 0
      %11852 = vmatprep.subr.bf16.mxu0 0
      %11853 = vmatpush1.bf16.msra.mxu0 0
      %11854 = vmatprep.mubr.bf16.mxu0 0
      %11855 = vmatmul.mubr.bf16.gmra.mrb[0].mxu0 %v11762
      %v11856 = vpop.f32.mrb[0].mxu0
      %v11857 = vadd.f32 0.0, %v11856
      %v11858 = vpop.f32.mrb[0].mxu0
      %v11859 = vpop.f32.mrb[0].mxu0
      %v11860 = vadd.f32 0.0, %v11859
      %v11861 = vpop.f32.mrb[0].mxu0
      %11862 = vmatprep.mubr.bf16.mxu0 0
      %11863 = vmatmul.mubr.bf16.gmra.mrb[0].mxu0 %v11771
      %v11864 = vpop.f32.mrb[0].mxu0
      %v11865 = vadd.f32 0.0, %v11864
      %v11866 = vpop.f32.mrb[0].mxu0
      %v11867 = vpop.f32.mrb[0].mxu0
      %v11868 = vadd.f32 0.0, %v11867
      %v11869 = vpop.f32.mrb[0].mxu0
      %11870 = vdwg.mxu0
      %v11871 = vadd.f32 %v11730, %v11857
      %v11872 = vadd.f32 %v11731, %v11860
      %v11873 = vadd.f32 %v11732, %v11865
      %v11874 = vadd.f32 %v11733, %v11868
      %v11875 = vld [vmem:[%s219 + $0x101] sm:$0xff]
      %v11876 = vld [vmem:[%s219 + $0x109] sm:$0xff]
      %v11877 = vld [vmem:[%s219 + $0x111] sm:$0xff]
      %v11878 = vld [vmem:[%s219 + $0x119] sm:$0xff]
      %v11879 = vld [vmem:[%s4] sm:$0x1]
      %v11881 = vlaneseq
      %v11882 = vshrl.u32 %v11881, 7
      %v11883 = vsub.s32 0, %v11882
      %v11884 = vrot.slane %v11879, %v11883
      %v11886 = vadd.f32 %v11871, %v11884
      %v11887 = vadd.f32 %v11872, %v11884
      %v11888 = vadd.f32 %v11873, %v11884
      %v11889 = vadd.f32 %v11874, %v11884
      %v11890 = vadd.f32 %v11886, %v11875
      %v11891 = vadd.f32 %v11887, %v11876
      %v11892 = vadd.f32 %v11888, %v11877
      %v11893 = vadd.f32 %v11889, %v11878
      %11894 = vst [vmem:[%s224 + $0x100] sm:$0xff] %v11890
      %11895 = vst [vmem:[%s224 + $0x108] sm:$0xff] %v11891
      %11896 = vst [vmem:[%s224 + $0x110] sm:$0xff] %v11892
      %11897 = vst [vmem:[%s224 + $0x118] sm:$0xff] %v11893
      %p11898 = scmp.lt.s32.totalorder %s16, 1
      %s11899 = scalar_select %p11898, %s16, 1
      %s11900 = smul.addr %s11899, 36
      %s11901 = smul.addr %s11900, 8
      %s11902 = scalar_lea.vmem %s5, %s11901
      // Predicated region
      $region41: #{residual_block.1} parent=39 // pred_check
        %p11903 = pneg %p144
      $region42: #{residual_block.1} parent=39 // pred_check_branch
        %11905 = sbr.rel (%p11903) target = $region44
      $region43: #{residual_block.1} parent=39 // pred_region
        _
      $region44: #{residual_block.1} parent=39 // pred_fallthru
        _
    $region40: #{residual_block.1} parent=5 // pred_fallthru
      _
    %p11906 = scmp.le.s32.totalorder 2, %s11
    // Predicated region
    $region45: #{residual_block.1} parent=5 // pred_check
      %p11907 = pneg %p11906
    $region46: #{residual_block.1} parent=5 // pred_check_branch
      %11909 = sbr.rel (%p11907) target = $region48
    $region47: #{residual_block.1} parent=5 // pred_region
      %s11910 = ssub.s32 %s11, 2
      // Predicated region
      $region49: #{residual_block.1} parent=47 // pred_check
        %p11911 = pneg %p150
      $region50: #{residual_block.1} parent=47 // pred_check_branch
        %11913 = sbr.rel (%p11911) target = $region52
      $region51: #{residual_block.1} parent=47 // pred_region
        %p11914 = scmp.lt.s32.totalorder %s17, 1
        %s11915 = scalar_select %p11914, %s17, 1
        %s11916 = smul.addr %s11915, 36
        %s11917 = smul.addr %s11916, 8
        %s11918 = scalar_lea.vmem %s5, %s11917
      $region52: #{residual_block.1} parent=47 // pred_fallthru
        _
    $region48: #{residual_block.1} parent=5 // pred_fallthru
      _
  $region6: #{residual_block.1} parent=0 // loop_footer
    %s15 = sadd.s32 1, %s11
  $region7: #{residual_block.1} parent=0 // loop_footer_branch
    %10 = sbr.rel target = $region3
  $region8: #{residual_block.1} parent=0 // loop_exit
    _

</llo_original>
